<compile_context>
chip_gen: v7x
topology: tpu7x:2x2x1
jax: 0.10.0
libtpu: 0.0.40
codegen_flags: <defaults>
</compile_context>

<pallas_src>
import jax
import jax.numpy as jnp
from jax.experimental import pallas as pl
from jax.experimental.pallas import tpu as pltpu

BATCH = 2
DIM_IN = 256
DIM_Z = 8
DIM_U = 2
H_ENC = 800        # pendulum encoder/decoder hidden width (kept unpadded)
H_TRANS = 100      # pendulum transition hidden width (logical)
H_TRANS_PAD = 128  # tiny; padded to a lane multiple
BN_EPS = 1e-5


# ----------------------------- kernel helpers ------------------------------

def _mm(x, w_ref, bias):
    """x @ W + bias; bf16 operands, f32 accumulation on the MXU."""
    return jnp.dot(x.astype(jnp.bfloat16), w_ref[...],
                   preferred_element_type=jnp.float32) + bias


def _bn_relu(h, gamma, beta):
    """Training-mode BatchNorm1d (batch stats, biased variance) + ReLU, in f32."""
    mu = jnp.mean(h, axis=0, keepdims=True)
    var = jnp.mean(jnp.square(h - mu), axis=0, keepdims=True)
    hhat = (h - mu) * jax.lax.rsqrt(var + BN_EPS)
    return jnp.maximum(gamma * hhat + beta, 0.0)


def _vmem_spec(shape):
    n = len(shape)
    return pl.BlockSpec(shape, lambda *_: (0,) * n)


_SMEM_SPEC = pl.BlockSpec(memory_space=pltpu.MemorySpace.SMEM)
_ANY_SPEC = pl.BlockSpec(memory_space=pl.ANY)

_COMPILER_PARAMS = pltpu.CompilerParams(
    dimension_semantics=("arbitrary",),
    vmem_limit_bytes=32 * 1024 * 1024,
)


# ------------------------------ fused kernel --------------------------------

def e2c_fused_kernel(
        # inputs
        eps_ref, x_ref, u_ref,
        e_w1, e_w2, e_w3, e_vec,
        t_w1, t_w2, t_w3, t_wbo, t_vec,
        d_w1_hbm, d_w2_hbm, d_w3_hbm, d_vec_hbm,
        # output
        out_ref,
        # scratch
        d_w1_buf, d_w2_buf, d_w3_buf, d_vec_buf, dsem):
    dz = DIM_Z
    du = DIM_U

    # Kick off the decoder-weight DMAs immediately: the ~2 MB transfer overlaps
    # the encoder / transition compute instead of serializing ahead of it.
    cps = (pltpu.make_async_copy(d_w1_hbm, d_w1_buf, dsem.at[0]),
           pltpu.make_async_copy(d_w2_hbm, d_w2_buf, dsem.at[1]),
           pltpu.make_async_copy(d_w3_hbm, d_w3_buf, dsem.at[2]),
           pltpu.make_async_copy(d_vec_hbm, d_vec_buf, dsem.at[3]))
    for cp in cps:
        cp.start()

    # ---- encoder on x only ----
    # TODO(synk): encode(x_next) / Qz_next / z_next / x_dec / x_next_dec are
    # side-effect attributes only and do not affect the returned tensor.
    ev = e_vec[...]                                       # (8, H_ENC) f32 stack
    h = _bn_relu(_mm(x_ref[...], e_w1, ev[0:1, :]), ev[1:2, :], ev[2:3, :])
    h = _bn_relu(_mm(h, e_w2, ev[3:4, :]), ev[4:5, :], ev[5:6, :])
    enc_out = _mm(h, e_w3, ev[6:7, 0:2 * dz])             # (b, 2*dz)

    # ---- reparameterization (eps = scalar prior.sample(), as in the module) ----
    mean = enc_out[:, 0:dz]
    logvar = enc_out[:, dz:2 * dz]
    z = mean + eps_ref[0, 0] * jnp.exp(0.5 * logvar)

    # ---- transition ----
    tv = t_vec[...]                                       # (8, H_TRANS_PAD) f32
    g = _bn_relu(_mm(z, t_w1, tv[0:1, :]), tv[1:2, :], tv[2:3, :])
    g = _bn_relu(_mm(g, t_w2, tv[3:4, :]), tv[4:5, :], tv[5:6, :])
    vr = _mm(g, t_w3, tv[6:7, 0:2 * dz])                  # (b, 2*dz)
    v = vr[:, 0:dz]
    r = vr[:, dz:2 * dz]
    # A @ z with A = I + v r^T  ==>  z + v * (r . z)
    az = z + v * jnp.sum(r * z, axis=1, keepdims=True)

    # fc_B and fc_o fused into one matmul; fc_B columns pre-permuted host-side
    # so output block j holds B[:, :, j] contiguously.
    bo = _mm(z, t_wbo, tv[7:8, 0:dz * du + dz])           # (b, dz*du + dz)
    u = u_ref[...]
    bu = jnp.zeros_like(z)
    for j in range(du):
        bu = bu + bo[:, j * dz:(j + 1) * dz] * u[:, j:j + 1]
    o = bo[:, du * dz:du * dz + dz]
    z_next_pred = az + bu + o

    # ---- decoder (wait for the overlapped weight DMAs, then compute) ----
    for cp in cps:
        cp.wait()
    dv = d_vec_buf[...]                                   # (8, H_ENC) f32 stack
    d = _bn_relu(_mm(z_next_pred, d_w1_buf, dv[0:1, :]), dv[1:2, :], dv[2:3, :])
    d = _bn_relu(_mm(d, d_w2_buf, dv[3:4, :]), dv[4:5, :], dv[5:6, :])
    out_ref[...] = jax.nn.sigmoid(
        _mm(d, d_w3_buf, dv[6:7, 0:out_ref.shape[1]]))


# ------------------------------ JAX wrapper ----------------------------------

@jax.jit
def e2c_forward(packed, x, action, x_next, key):
    """Return x_next_pred_dec = decode(transition(reparam(encode(x)), action))."""
    del x_next  # only feeds side attributes; dead w.r.t. the returned tensor
    b, dim_in = x.shape
    k1, _ = jax.random.split(key)
    eps = jax.random.normal(k1, (1, 1), jnp.float32)      # prior.sample() scalar

    (e_w1, e_w2, e_w3, e_vec,
     t_w1, t_w2, t_w3, t_wbo, t_vec,
     d_w1, d_w2, d_w3, d_vec) = packed

    vmem_args = (x, action, e_w1, e_w2, e_w3, e_vec,
                 t_w1, t_w2, t_w3, t_wbo, t_vec)
    in_specs = ([_SMEM_SPEC]
                + [_vmem_spec(a.shape) for a in vmem_args]
                + [_ANY_SPEC] * 4)                        # decoder stays in HBM

    scratch_shapes = [
        pltpu.VMEM(d_w1.shape, d_w1.dtype),
        pltpu.VMEM(d_w2.shape, d_w2.dtype),
        pltpu.VMEM(d_w3.shape, d_w3.dtype),
        pltpu.VMEM(d_vec.shape, d_vec.dtype),
        pltpu.SemaphoreType.DMA((4,)),
    ]

    return pl.pallas_call(
        e2c_fused_kernel,
        grid=(1,),
        in_specs=in_specs,
        out_specs=_vmem_spec((b, dim_in)),
        out_shape=jax.ShapeDtypeStruct((b, dim_in), jnp.float32),
        scratch_shapes=scratch_shapes,
        compiler_params=_COMPILER_PARAMS,
    )(eps, x, action,
      e_w1, e_w2, e_w3, e_vec,
      t_w1, t_w2, t_w3, t_wbo, t_vec,
      d_w1, d_w2, d_w3, d_vec)


# ---------------------------- parameter handling -----------------------------

def _linear(key, fan_in, fan_out):
    kw, kb = jax.random.split(key)
    bound = fan_in ** -0.5
    w = jax.random.uniform(kw, (fan_in, fan_out), jnp.float32, -bound, bound)
    b = jax.random.uniform(kb, (1, fan_out), jnp.float32, -bound, bound)
    return w, b


def _bn_params(key, dim):
    kg, kb = jax.random.split(key)
    g = 1.0 + 0.05 * jax.random.normal(kg, (1, dim), jnp.float32)
    be = 0.05 * jax.random.normal(kb, (1, dim), jnp.float32)
    return g, be


def init_params(key, dim_in, dim_z, dim_u, h_enc=H_ENC, h_trans=H_TRANS):
    ks = jax.random.split(key, 16)
    enc, dec, tr = {}, {}, {}
    enc["W1"], enc["b1"] = _linear(ks[0], dim_in, h_enc)
    enc["g1"], enc["be1"] = _bn_params(ks[1], h_enc)
    enc["W2"], enc["b2"] = _linear(ks[2], h_enc, h_enc)
    enc["g2"], enc["be2"] = _bn_params(ks[3], h_enc)
    enc["W3"], enc["b3"] = _linear(ks[4], h_enc, 2 * dim_z)

    dec["W1"], dec["b1"] = _linear(ks[5], dim_z, h_enc)
    dec["g1"], dec["be1"] = _bn_params(ks[6], h_enc)
    dec["W2"], dec["b2"] = _linear(ks[7], h_enc, h_enc)
    dec["g2"], dec["be2"] = _bn_params(ks[8], h_enc)
    dec["W3"], dec["b3"] = _linear(ks[9], h_enc, dim_in)

    tr["W1"], tr["b1"] = _linear(ks[10], dim_z, h_trans)
    tr["g1"], tr["be1"] = _bn_params(ks[11], h_trans)
    tr["W2"], tr["b2"] = _linear(ks[12], h_trans, h_trans)
    tr["g2"], tr["be2"] = _bn_params(ks[13], h_trans)
    tr["W3"], tr["b3"] = _linear(ks[14], h_trans, 2 * dim_z)
    kB, ko = jax.random.split(ks[15])
    tr["WB"], tr["bB"] = _linear(kB, dim_z, dim_z * dim_u)
    tr["Wo"], tr["bo"] = _linear(ko, dim_z, dim_z)
    return {"enc": enc, "dec": dec, "trans": tr}


def _pad2(a, rows, cols):
    return jnp.pad(a, ((0, rows - a.shape[0]), (0, cols - a.shape[1])))


def _row(v, width):
    return jnp.pad(v, ((0, 0), (0, width - v.shape[1])))


def pack_params(p):
    """Layout-only transform of the logical f32 parameters.

    * Big encoder/decoder matrices stay at logical width 800 (full-array
      blocks are exempt from the 128-lane rule) and are cast to bf16.
    * Transition hidden width is zero-padded 100->128 (padded cols stay 0
      through Linear/BN/ReLU; padded rows are 0, so math is unchanged).
    * fc_B columns are permuted so B@u is two contiguous lane slices; fc_B and
      fc_o are concatenated into one matrix.
    * All per-layer bias/gamma/beta row vectors are stacked into one (8, H)
      f32 block per sub-net (fewer, denser DMAs).
    """
    enc, dec, tr = p["enc"], p["dec"], p["trans"]
    he, ht, dz, du = H_ENC, H_TRANS_PAD, DIM_Z, DIM_U
    bf16 = jnp.bfloat16
    zero_e = jnp.zeros((1, he), jnp.float32)

    perm = jnp.asarray([i * du + j for j in range(du) for i in range(dz)],
                       jnp.int32)

    e_vec = jnp.concatenate([
        enc["b1"], enc["g1"], enc["be1"],
        enc["b2"], enc["g2"], enc["be2"],
        _row(enc["b3"], he), zero_e], axis=0)             # (8, 800) f32

    t_vec = jnp.concatenate([
        _row(tr["b1"], ht), _row(tr["g1"], ht), _row(tr["be1"], ht),
        _row(tr["b2"], ht), _row(tr["g2"], ht), _row(tr["be2"], ht),
        _row(tr["b3"], ht),
        _row(jnp.concatenate([tr["bB"][:, perm], tr["bo"]], axis=1), ht)],
        axis=0)                                           # (8, 128) f32

    d_vec = jnp.concatenate([
        dec["b1"], dec["g1"], dec["be1"],
        dec["b2"], dec["g2"], dec["be2"],
        _row(dec["b3"], he), zero_e], axis=0)             # (8, 800) f32

    t_wbo = jnp.concatenate([tr["WB"][:, perm], tr["Wo"]], axis=1)  # (8, 24)

    return (
        # encoder
        enc["W1"].astype(bf16), enc["W2"].astype(bf16), enc["W3"].astype(bf16),
        e_vec,
        # transition
        _pad2(tr["W1"], tr["W1"].shape[0], ht).astype(bf16),
        _pad2(tr["W2"], ht, ht).astype(bf16),
        _pad2(tr["W3"], ht, tr["W3"].shape[1]).astype(bf16),
        t_wbo.astype(bf16),
        t_vec,
        # decoder (manual-DMA group)
        dec["W1"].astype(bf16), dec["W2"].astype(bf16), dec["W3"].astype(bf16),
        d_vec,
    )


# ----------------------------------- main ------------------------------------

if __name__ == "__main__":
    key = jax.random.PRNGKey(0)
    kp, kx, kxn, ku, keps = jax.random.split(key, 5)

    params = init_params(kp, DIM_IN, DIM_Z, DIM_U)
    packed = pack_params(params)

    x = jax.random.uniform(kx, (BATCH, DIM_IN), jnp.float32)
    x_next = jax.random.uniform(kxn, (BATCH, DIM_IN), jnp.float32)
    action = jax.random.normal(ku, (BATCH, DIM_U), jnp.float32)

    out = e2c_forward(packed, x, action, x_next, keps)
    out = jax.block_until_ready(out)
    assert out.shape == (BATCH, DIM_IN) and out.dtype == jnp.float32
    assert bool(jnp.all(jnp.isfinite(out)))
    print("KERNEL_OK")
</pallas_src>

<mosaic_0001>
module attributes {stable_mosaic.version = 11 : i64} {
  func.func @e2c_fused_kernel(%arg0: i32, %arg1: memref<1x1xf32, #tpu.memory_space<smem>>, %arg2: memref<2x256xf32, #tpu.memory_space<vmem>>, %arg3: memref<2x2xf32, #tpu.memory_space<vmem>>, %arg4: memref<256x800xbf16, #tpu.memory_space<vmem>>, %arg5: memref<800x800xbf16, #tpu.memory_space<vmem>>, %arg6: memref<800x16xbf16, #tpu.memory_space<vmem>>, %arg7: memref<8x800xf32, #tpu.memory_space<vmem>>, %arg8: memref<8x128xbf16, #tpu.memory_space<vmem>>, %arg9: memref<128x128xbf16, #tpu.memory_space<vmem>>, %arg10: memref<128x16xbf16, #tpu.memory_space<vmem>>, %arg11: memref<8x24xbf16, #tpu.memory_space<vmem>>, %arg12: memref<8x128xf32, #tpu.memory_space<vmem>>, %arg13: memref<8x800xbf16, #tpu.memory_space<any>>, %arg14: memref<800x800xbf16, #tpu.memory_space<any>>, %arg15: memref<800x256xbf16, #tpu.memory_space<any>>, %arg16: memref<8x800xf32, #tpu.memory_space<any>>, %arg17: memref<2x256xf32, #tpu.memory_space<vmem>>, %arg18: memref<8x800xbf16, #tpu.memory_space<vmem>>, %arg19: memref<800x800xbf16, #tpu.memory_space<vmem>>, %arg20: memref<800x256xbf16, #tpu.memory_space<vmem>>, %arg21: memref<8x800xf32, #tpu.memory_space<vmem>>, %arg22: memref<4x!tpu.dma_semaphore, #tpu.memory_space<semaphore_mem>>) attributes {dimension_semantics = [#tpu.dimension_semantics<arbitrary>], iteration_bounds = array<i64: 1>, scalar_prefetch = 0 : i64, scratch_operands = 5 : i64, tpu.core_type = #tpu.core_type<tc>, window_params = [{transform_indices = @transform_0, window_bounds = array<i64: 1, 1>}, {pipeline_mode = #tpu.pipeline_mode<synchronous>, transform_indices = @transform_1, window_bounds = array<i64: 2, 256>}, {pipeline_mode = #tpu.pipeline_mode<synchronous>, transform_indices = @transform_2, window_bounds = array<i64: 2, 2>}, {pipeline_mode = #tpu.pipeline_mode<synchronous>, transform_indices = @transform_3, window_bounds = array<i64: 256, 800>}, {pipeline_mode = #tpu.pipeline_mode<synchronous>, transform_indices = @transform_4, window_bounds = array<i64: 800, 800>}, {pipeline_mode = #tpu.pipeline_mode<synchronous>, transform_indices = @transform_5, window_bounds = array<i64: 800, 16>}, {pipeline_mode = #tpu.pipeline_mode<synchronous>, transform_indices = @transform_6, window_bounds = array<i64: 8, 800>}, {pipeline_mode = #tpu.pipeline_mode<synchronous>, transform_indices = @transform_7, window_bounds = array<i64: 8, 128>}, {pipeline_mode = #tpu.pipeline_mode<synchronous>, transform_indices = @transform_8, window_bounds = array<i64: 128, 128>}, {pipeline_mode = #tpu.pipeline_mode<synchronous>, transform_indices = @transform_9, window_bounds = array<i64: 128, 16>}, {pipeline_mode = #tpu.pipeline_mode<synchronous>, transform_indices = @transform_10, window_bounds = array<i64: 8, 24>}, {pipeline_mode = #tpu.pipeline_mode<synchronous>, transform_indices = @transform_11, window_bounds = array<i64: 8, 128>}, {}, {}, {}, {}, {pipeline_mode = #tpu.pipeline_mode<synchronous>, transform_indices = @transform_16, window_bounds = array<i64: 2, 256>}]} {
    %c0_i32 = arith.constant 0 : i32
    %0 = tpu.memref_slice %arg22[%c0_i32] : memref<4x!tpu.dma_semaphore, #tpu.memory_space<semaphore_mem>> -> memref<1x!tpu.dma_semaphore, #tpu.memory_space<semaphore_mem>>
    %1 = tpu.memref_squeeze %0 : memref<1x!tpu.dma_semaphore, #tpu.memory_space<semaphore_mem>> -> memref<!tpu.dma_semaphore, #tpu.memory_space<semaphore_mem>>
    tpu.enqueue_dma source(%arg13 : memref<8x800xbf16, #tpu.memory_space<any>>) target(%arg18 : memref<8x800xbf16, #tpu.memory_space<vmem>>) target_semaphore(%1 : memref<!tpu.dma_semaphore, #tpu.memory_space<semaphore_mem>>)
    %c1_i32 = arith.constant 1 : i32
    %2 = tpu.memref_slice %arg22[%c1_i32] : memref<4x!tpu.dma_semaphore, #tpu.memory_space<semaphore_mem>> -> memref<1x!tpu.dma_semaphore, #tpu.memory_space<semaphore_mem>>
    %3 = tpu.memref_squeeze %2 : memref<1x!tpu.dma_semaphore, #tpu.memory_space<semaphore_mem>> -> memref<!tpu.dma_semaphore, #tpu.memory_space<semaphore_mem>>
    tpu.enqueue_dma source(%arg14 : memref<800x800xbf16, #tpu.memory_space<any>>) target(%arg19 : memref<800x800xbf16, #tpu.memory_space<vmem>>) target_semaphore(%3 : memref<!tpu.dma_semaphore, #tpu.memory_space<semaphore_mem>>)
    %c2_i32 = arith.constant 2 : i32
    %4 = tpu.memref_slice %arg22[%c2_i32] : memref<4x!tpu.dma_semaphore, #tpu.memory_space<semaphore_mem>> -> memref<1x!tpu.dma_semaphore, #tpu.memory_space<semaphore_mem>>
    %5 = tpu.memref_squeeze %4 : memref<1x!tpu.dma_semaphore, #tpu.memory_space<semaphore_mem>> -> memref<!tpu.dma_semaphore, #tpu.memory_space<semaphore_mem>>
    tpu.enqueue_dma source(%arg15 : memref<800x256xbf16, #tpu.memory_space<any>>) target(%arg20 : memref<800x256xbf16, #tpu.memory_space<vmem>>) target_semaphore(%5 : memref<!tpu.dma_semaphore, #tpu.memory_space<semaphore_mem>>)
    %c3_i32 = arith.constant 3 : i32
    %6 = tpu.memref_slice %arg22[%c3_i32] : memref<4x!tpu.dma_semaphore, #tpu.memory_space<semaphore_mem>> -> memref<1x!tpu.dma_semaphore, #tpu.memory_space<semaphore_mem>>
    %7 = tpu.memref_squeeze %6 : memref<1x!tpu.dma_semaphore, #tpu.memory_space<semaphore_mem>> -> memref<!tpu.dma_semaphore, #tpu.memory_space<semaphore_mem>>
    tpu.enqueue_dma source(%arg16 : memref<8x800xf32, #tpu.memory_space<any>>) target(%arg21 : memref<8x800xf32, #tpu.memory_space<vmem>>) target_semaphore(%7 : memref<!tpu.dma_semaphore, #tpu.memory_space<semaphore_mem>>)
    %c0 = arith.constant 0 : index
    %c0_0 = arith.constant 0 : index
    %8 = vector.load %arg7[%c0, %c0_0] : memref<8x800xf32, #tpu.memory_space<vmem>>, vector<8x800xf32>
    %c0_1 = arith.constant 0 : index
    %c0_2 = arith.constant 0 : index
    %9 = vector.load %arg2[%c0_1, %c0_2] : memref<2x256xf32, #tpu.memory_space<vmem>>, vector<2x256xf32>
    %10 = vector.extract_strided_slice %8 {offsets = [0, 0], sizes = [1, 800], strides = [1, 1]} : vector<8x800xf32> to vector<1x800xf32>
    %11 = arith.truncf %9 : vector<2x256xf32> to vector<2x256xbf16>
    %c0_3 = arith.constant 0 : index
    %c0_4 = arith.constant 0 : index
    %12 = vector.load %arg4[%c0_3, %c0_4] : memref<256x800xbf16, #tpu.memory_space<vmem>>, vector<256x800xbf16>
    %cst = arith.constant dense<0.000000e+00> : vector<2x800xf32>
    %13 = tpu.matmul %11, %12, %cst {dimension_numbers = #tpu.dot_dimension_numbers<[1], [0], [0], [1], [0, 0, 1, 1], [], []>} : vector<2x256xbf16>, vector<256x800xbf16>, vector<2x800xf32> -> vector<2x800xf32>
    %14 = vector.broadcast %10 : vector<1x800xf32> to vector<2x800xf32>
    %15 = arith.addf %13, %14 : vector<2x800xf32>
    %16 = vector.extract_strided_slice %8 {offsets = [1, 0], sizes = [1, 800], strides = [1, 1]} : vector<8x800xf32> to vector<1x800xf32>
    %17 = vector.extract_strided_slice %8 {offsets = [2, 0], sizes = [1, 800], strides = [1, 1]} : vector<8x800xf32> to vector<1x800xf32>
    %cst_5 = arith.constant dense<0.000000e+00> : vector<800xf32>
    %18 = vector.multi_reduction <add>, %15, %cst_5 [0] : vector<2x800xf32> to vector<800xf32>
    %19 = vector.shape_cast %18 : vector<800xf32> to vector<1x800xf32>
    %cst_6 = arith.constant 2.000000e+00 : f32
    %20 = vector.broadcast %cst_6 : f32 to vector<1x800xf32>
    %21 = arith.divf %19, %20 : vector<1x800xf32>
    %22 = vector.broadcast %21 : vector<1x800xf32> to vector<2x800xf32>
    %23 = arith.subf %15, %22 : vector<2x800xf32>
    %24 = arith.mulf %23, %23 : vector<2x800xf32>
    %cst_7 = arith.constant dense<0.000000e+00> : vector<800xf32>
    %25 = vector.multi_reduction <add>, %24, %cst_7 [0] : vector<2x800xf32> to vector<800xf32>
    %26 = vector.shape_cast %25 : vector<800xf32> to vector<1x800xf32>
    %cst_8 = arith.constant 2.000000e+00 : f32
    %27 = vector.broadcast %cst_8 : f32 to vector<1x800xf32>
    %28 = arith.divf %26, %27 : vector<1x800xf32>
    %29 = vector.broadcast %21 : vector<1x800xf32> to vector<2x800xf32>
    %30 = arith.subf %15, %29 : vector<2x800xf32>
    %cst_9 = arith.constant 9.99999974E-6 : f32
    %31 = vector.broadcast %cst_9 : f32 to vector<1x800xf32>
    %32 = arith.addf %28, %31 : vector<1x800xf32>
    %33 = math.rsqrt %32 : vector<1x800xf32>
    %34 = vector.broadcast %33 : vector<1x800xf32> to vector<2x800xf32>
    %35 = arith.mulf %30, %34 : vector<2x800xf32>
    %36 = vector.broadcast %16 : vector<1x800xf32> to vector<2x800xf32>
    %37 = arith.mulf %36, %35 : vector<2x800xf32>
    %38 = vector.broadcast %17 : vector<1x800xf32> to vector<2x800xf32>
    %39 = arith.addf %37, %38 : vector<2x800xf32>
    %cst_10 = arith.constant 0.000000e+00 : f32
    %40 = vector.broadcast %cst_10 : f32 to vector<2x800xf32>
    %41 = arith.maximumf %39, %40 : vector<2x800xf32>
    %42 = vector.extract_strided_slice %8 {offsets = [3, 0], sizes = [1, 800], strides = [1, 1]} : vector<8x800xf32> to vector<1x800xf32>
    %43 = arith.truncf %41 : vector<2x800xf32> to vector<2x800xbf16>
    %c0_11 = arith.constant 0 : index
    %c0_12 = arith.constant 0 : index
    %44 = vector.load %arg5[%c0_11, %c0_12] : memref<800x800xbf16, #tpu.memory_space<vmem>>, vector<800x800xbf16>
    %cst_13 = arith.constant dense<0.000000e+00> : vector<2x800xf32>
    %45 = tpu.matmul %43, %44, %cst_13 {dimension_numbers = #tpu.dot_dimension_numbers<[1], [0], [0], [1], [0, 0, 1, 1], [], []>} : vector<2x800xbf16>, vector<800x800xbf16>, vector<2x800xf32> -> vector<2x800xf32>
    %46 = vector.broadcast %42 : vector<1x800xf32> to vector<2x800xf32>
    %47 = arith.addf %45, %46 : vector<2x800xf32>
    %48 = vector.extract_strided_slice %8 {offsets = [4, 0], sizes = [1, 800], strides = [1, 1]} : vector<8x800xf32> to vector<1x800xf32>
    %49 = vector.extract_strided_slice %8 {offsets = [5, 0], sizes = [1, 800], strides = [1, 1]} : vector<8x800xf32> to vector<1x800xf32>
    %cst_14 = arith.constant dense<0.000000e+00> : vector<800xf32>
    %50 = vector.multi_reduction <add>, %47, %cst_14 [0] : vector<2x800xf32> to vector<800xf32>
    %51 = vector.shape_cast %50 : vector<800xf32> to vector<1x800xf32>
    %cst_15 = arith.constant 2.000000e+00 : f32
    %52 = vector.broadcast %cst_15 : f32 to vector<1x800xf32>
    %53 = arith.divf %51, %52 : vector<1x800xf32>
    %54 = vector.broadcast %53 : vector<1x800xf32> to vector<2x800xf32>
    %55 = arith.subf %47, %54 : vector<2x800xf32>
    %56 = arith.mulf %55, %55 : vector<2x800xf32>
    %cst_16 = arith.constant dense<0.000000e+00> : vector<800xf32>
    %57 = vector.multi_reduction <add>, %56, %cst_16 [0] : vector<2x800xf32> to vector<800xf32>
    %58 = vector.shape_cast %57 : vector<800xf32> to vector<1x800xf32>
    %cst_17 = arith.constant 2.000000e+00 : f32
    %59 = vector.broadcast %cst_17 : f32 to vector<1x800xf32>
    %60 = arith.divf %58, %59 : vector<1x800xf32>
    %61 = vector.broadcast %53 : vector<1x800xf32> to vector<2x800xf32>
    %62 = arith.subf %47, %61 : vector<2x800xf32>
    %cst_18 = arith.constant 9.99999974E-6 : f32
    %63 = vector.broadcast %cst_18 : f32 to vector<1x800xf32>
    %64 = arith.addf %60, %63 : vector<1x800xf32>
    %65 = math.rsqrt %64 : vector<1x800xf32>
    %66 = vector.broadcast %65 : vector<1x800xf32> to vector<2x800xf32>
    %67 = arith.mulf %62, %66 : vector<2x800xf32>
    %68 = vector.broadcast %48 : vector<1x800xf32> to vector<2x800xf32>
    %69 = arith.mulf %68, %67 : vector<2x800xf32>
    %70 = vector.broadcast %49 : vector<1x800xf32> to vector<2x800xf32>
    %71 = arith.addf %69, %70 : vector<2x800xf32>
    %cst_19 = arith.constant 0.000000e+00 : f32
    %72 = vector.broadcast %cst_19 : f32 to vector<2x800xf32>
    %73 = arith.maximumf %71, %72 : vector<2x800xf32>
    %74 = vector.extract_strided_slice %8 {offsets = [6, 0], sizes = [1, 16], strides = [1, 1]} : vector<8x800xf32> to vector<1x16xf32>
    %75 = arith.truncf %73 : vector<2x800xf32> to vector<2x800xbf16>
    %c0_20 = arith.constant 0 : index
    %c0_21 = arith.constant 0 : index
    %76 = vector.load %arg6[%c0_20, %c0_21] : memref<800x16xbf16, #tpu.memory_space<vmem>>, vector<800x16xbf16>
    %cst_22 = arith.constant dense<0.000000e+00> : vector<2x16xf32>
    %77 = tpu.matmul %75, %76, %cst_22 {dimension_numbers = #tpu.dot_dimension_numbers<[1], [0], [0], [1], [0, 0, 1, 1], [], []>} : vector<2x800xbf16>, vector<800x16xbf16>, vector<2x16xf32> -> vector<2x16xf32>
    %78 = vector.broadcast %74 : vector<1x16xf32> to vector<2x16xf32>
    %79 = arith.addf %77, %78 : vector<2x16xf32>
    %80 = vector.extract_strided_slice %79 {offsets = [0, 0], sizes = [2, 8], strides = [1, 1]} : vector<2x16xf32> to vector<2x8xf32>
    %81 = vector.extract_strided_slice %79 {offsets = [0, 8], sizes = [2, 8], strides = [1, 1]} : vector<2x16xf32> to vector<2x8xf32>
    %c0_23 = arith.constant 0 : index
    %c0_24 = arith.constant 0 : index
    %82 = memref.load %arg1[%c0_23, %c0_24] : memref<1x1xf32, #tpu.memory_space<smem>>
    %cst_25 = arith.constant 5.000000e-01 : f32
    %83 = vector.broadcast %cst_25 : f32 to vector<2x8xf32>
    %84 = arith.mulf %83, %81 : vector<2x8xf32>
    %85 = math.exp %84 : vector<2x8xf32>
    %86 = vector.broadcast %82 : f32 to vector<2x8xf32>
    %87 = arith.mulf %86, %85 : vector<2x8xf32>
    %88 = arith.addf %80, %87 : vector<2x8xf32>
    %c0_26 = arith.constant 0 : index
    %c0_27 = arith.constant 0 : index
    %89 = vector.load %arg12[%c0_26, %c0_27] : memref<8x128xf32, #tpu.memory_space<vmem>>, vector<8x128xf32>
    %90 = vector.extract_strided_slice %89 {offsets = [0, 0], sizes = [1, 128], strides = [1, 1]} : vector<8x128xf32> to vector<1x128xf32>
    %91 = arith.truncf %88 : vector<2x8xf32> to vector<2x8xbf16>
    %c0_28 = arith.constant 0 : index
    %c0_29 = arith.constant 0 : index
    %92 = vector.load %arg8[%c0_28, %c0_29] : memref<8x128xbf16, #tpu.memory_space<vmem>>, vector<8x128xbf16>
    %cst_30 = arith.constant dense<0.000000e+00> : vector<2x128xf32>
    %93 = tpu.matmul %91, %92, %cst_30 {dimension_numbers = #tpu.dot_dimension_numbers<[1], [0], [0], [1], [0, 0, 1, 1], [], []>} : vector<2x8xbf16>, vector<8x128xbf16>, vector<2x128xf32> -> vector<2x128xf32>
    %94 = vector.broadcast %90 : vector<1x128xf32> to vector<2x128xf32>
    %95 = arith.addf %93, %94 : vector<2x128xf32>
    %96 = vector.extract_strided_slice %89 {offsets = [1, 0], sizes = [1, 128], strides = [1, 1]} : vector<8x128xf32> to vector<1x128xf32>
    %97 = vector.extract_strided_slice %89 {offsets = [2, 0], sizes = [1, 128], strides = [1, 1]} : vector<8x128xf32> to vector<1x128xf32>
    %cst_31 = arith.constant dense<0.000000e+00> : vector<128xf32>
    %98 = vector.multi_reduction <add>, %95, %cst_31 [0] : vector<2x128xf32> to vector<128xf32>
    %99 = vector.shape_cast %98 : vector<128xf32> to vector<1x128xf32>
    %cst_32 = arith.constant 2.000000e+00 : f32
    %100 = vector.broadcast %cst_32 : f32 to vector<1x128xf32>
    %101 = arith.divf %99, %100 : vector<1x128xf32>
    %102 = vector.broadcast %101 : vector<1x128xf32> to vector<2x128xf32>
    %103 = arith.subf %95, %102 : vector<2x128xf32>
    %104 = arith.mulf %103, %103 : vector<2x128xf32>
    %cst_33 = arith.constant dense<0.000000e+00> : vector<128xf32>
    %105 = vector.multi_reduction <add>, %104, %cst_33 [0] : vector<2x128xf32> to vector<128xf32>
    %106 = vector.shape_cast %105 : vector<128xf32> to vector<1x128xf32>
    %cst_34 = arith.constant 2.000000e+00 : f32
    %107 = vector.broadcast %cst_34 : f32 to vector<1x128xf32>
    %108 = arith.divf %106, %107 : vector<1x128xf32>
    %109 = vector.broadcast %101 : vector<1x128xf32> to vector<2x128xf32>
    %110 = arith.subf %95, %109 : vector<2x128xf32>
    %cst_35 = arith.constant 9.99999974E-6 : f32
    %111 = vector.broadcast %cst_35 : f32 to vector<1x128xf32>
    %112 = arith.addf %108, %111 : vector<1x128xf32>
    %113 = math.rsqrt %112 : vector<1x128xf32>
    %114 = vector.broadcast %113 : vector<1x128xf32> to vector<2x128xf32>
    %115 = arith.mulf %110, %114 : vector<2x128xf32>
    %116 = vector.broadcast %96 : vector<1x128xf32> to vector<2x128xf32>
    %117 = arith.mulf %116, %115 : vector<2x128xf32>
    %118 = vector.broadcast %97 : vector<1x128xf32> to vector<2x128xf32>
    %119 = arith.addf %117, %118 : vector<2x128xf32>
    %cst_36 = arith.constant 0.000000e+00 : f32
    %120 = vector.broadcast %cst_36 : f32 to vector<2x128xf32>
    %121 = arith.maximumf %119, %120 : vector<2x128xf32>
    %122 = vector.extract_strided_slice %89 {offsets = [3, 0], sizes = [1, 128], strides = [1, 1]} : vector<8x128xf32> to vector<1x128xf32>
    %123 = arith.truncf %121 : vector<2x128xf32> to vector<2x128xbf16>
    %c0_37 = arith.constant 0 : index
    %c0_38 = arith.constant 0 : index
    %124 = vector.load %arg9[%c0_37, %c0_38] : memref<128x128xbf16, #tpu.memory_space<vmem>>, vector<128x128xbf16>
    %cst_39 = arith.constant dense<0.000000e+00> : vector<2x128xf32>
    %125 = tpu.matmul %123, %124, %cst_39 {dimension_numbers = #tpu.dot_dimension_numbers<[1], [0], [0], [1], [0, 0, 1, 1], [], []>} : vector<2x128xbf16>, vector<128x128xbf16>, vector<2x128xf32> -> vector<2x128xf32>
    %126 = vector.broadcast %122 : vector<1x128xf32> to vector<2x128xf32>
    %127 = arith.addf %125, %126 : vector<2x128xf32>
    %128 = vector.extract_strided_slice %89 {offsets = [4, 0], sizes = [1, 128], strides = [1, 1]} : vector<8x128xf32> to vector<1x128xf32>
    %129 = vector.extract_strided_slice %89 {offsets = [5, 0], sizes = [1, 128], strides = [1, 1]} : vector<8x128xf32> to vector<1x128xf32>
    %cst_40 = arith.constant dense<0.000000e+00> : vector<128xf32>
    %130 = vector.multi_reduction <add>, %127, %cst_40 [0] : vector<2x128xf32> to vector<128xf32>
    %131 = vector.shape_cast %130 : vector<128xf32> to vector<1x128xf32>
    %cst_41 = arith.constant 2.000000e+00 : f32
    %132 = vector.broadcast %cst_41 : f32 to vector<1x128xf32>
    %133 = arith.divf %131, %132 : vector<1x128xf32>
    %134 = vector.broadcast %133 : vector<1x128xf32> to vector<2x128xf32>
    %135 = arith.subf %127, %134 : vector<2x128xf32>
    %136 = arith.mulf %135, %135 : vector<2x128xf32>
    %cst_42 = arith.constant dense<0.000000e+00> : vector<128xf32>
    %137 = vector.multi_reduction <add>, %136, %cst_42 [0] : vector<2x128xf32> to vector<128xf32>
    %138 = vector.shape_cast %137 : vector<128xf32> to vector<1x128xf32>
    %cst_43 = arith.constant 2.000000e+00 : f32
    %139 = vector.broadcast %cst_43 : f32 to vector<1x128xf32>
    %140 = arith.divf %138, %139 : vector<1x128xf32>
    %141 = vector.broadcast %133 : vector<1x128xf32> to vector<2x128xf32>
    %142 = arith.subf %127, %141 : vector<2x128xf32>
    %cst_44 = arith.constant 9.99999974E-6 : f32
    %143 = vector.broadcast %cst_44 : f32 to vector<1x128xf32>
    %144 = arith.addf %140, %143 : vector<1x128xf32>
    %145 = math.rsqrt %144 : vector<1x128xf32>
    %146 = vector.broadcast %145 : vector<1x128xf32> to vector<2x128xf32>
    %147 = arith.mulf %142, %146 : vector<2x128xf32>
    %148 = vector.broadcast %128 : vector<1x128xf32> to vector<2x128xf32>
    %149 = arith.mulf %148, %147 : vector<2x128xf32>
    %150 = vector.broadcast %129 : vector<1x128xf32> to vector<2x128xf32>
    %151 = arith.addf %149, %150 : vector<2x128xf32>
    %cst_45 = arith.constant 0.000000e+00 : f32
    %152 = vector.broadcast %cst_45 : f32 to vector<2x128xf32>
    %153 = arith.maximumf %151, %152 : vector<2x128xf32>
    %154 = vector.extract_strided_slice %89 {offsets = [6, 0], sizes = [1, 16], strides = [1, 1]} : vector<8x128xf32> to vector<1x16xf32>
    %155 = arith.truncf %153 : vector<2x128xf32> to vector<2x128xbf16>
    %c0_46 = arith.constant 0 : index
    %c0_47 = arith.constant 0 : index
    %156 = vector.load %arg10[%c0_46, %c0_47] : memref<128x16xbf16, #tpu.memory_space<vmem>>, vector<128x16xbf16>
    %cst_48 = arith.constant dense<0.000000e+00> : vector<2x16xf32>
    %157 = tpu.matmul %155, %156, %cst_48 {dimension_numbers = #tpu.dot_dimension_numbers<[1], [0], [0], [1], [0, 0, 1, 1], [], []>} : vector<2x128xbf16>, vector<128x16xbf16>, vector<2x16xf32> -> vector<2x16xf32>
    %158 = vector.broadcast %154 : vector<1x16xf32> to vector<2x16xf32>
    %159 = arith.addf %157, %158 : vector<2x16xf32>
    %160 = vector.extract_strided_slice %159 {offsets = [0, 0], sizes = [2, 8], strides = [1, 1]} : vector<2x16xf32> to vector<2x8xf32>
    %161 = vector.extract_strided_slice %159 {offsets = [0, 8], sizes = [2, 8], strides = [1, 1]} : vector<2x16xf32> to vector<2x8xf32>
    %162 = arith.mulf %161, %88 : vector<2x8xf32>
    %cst_49 = arith.constant dense<0.000000e+00> : vector<2xf32>
    %163 = vector.multi_reduction <add>, %162, %cst_49 [1] : vector<2x8xf32> to vector<2xf32>
    %164 = vector.shape_cast %163 : vector<2xf32> to vector<2x1xf32>
    %165 = vector.broadcast %164 : vector<2x1xf32> to vector<2x8xf32>
    %166 = arith.mulf %160, %165 : vector<2x8xf32>
    %167 = arith.addf %88, %166 : vector<2x8xf32>
    %168 = vector.extract_strided_slice %89 {offsets = [7, 0], sizes = [1, 24], strides = [1, 1]} : vector<8x128xf32> to vector<1x24xf32>
    %169 = arith.truncf %88 : vector<2x8xf32> to vector<2x8xbf16>
    %c0_50 = arith.constant 0 : index
    %c0_51 = arith.constant 0 : index
    %170 = vector.load %arg11[%c0_50, %c0_51] : memref<8x24xbf16, #tpu.memory_space<vmem>>, vector<8x24xbf16>
    %cst_52 = arith.constant dense<0.000000e+00> : vector<2x24xf32>
    %171 = tpu.matmul %169, %170, %cst_52 {dimension_numbers = #tpu.dot_dimension_numbers<[1], [0], [0], [1], [0, 0, 1, 1], [], []>} : vector<2x8xbf16>, vector<8x24xbf16>, vector<2x24xf32> -> vector<2x24xf32>
    %172 = vector.broadcast %168 : vector<1x24xf32> to vector<2x24xf32>
    %173 = arith.addf %171, %172 : vector<2x24xf32>
    %c0_53 = arith.constant 0 : index
    %c0_54 = arith.constant 0 : index
    %174 = vector.load %arg3[%c0_53, %c0_54] : memref<2x2xf32, #tpu.memory_space<vmem>>, vector<2x2xf32>
    %cst_55 = arith.constant 0.000000e+00 : f32
    %175 = vector.broadcast %cst_55 : f32 to vector<2x8xf32>
    %176 = vector.extract_strided_slice %173 {offsets = [0, 0], sizes = [2, 8], strides = [1, 1]} : vector<2x24xf32> to vector<2x8xf32>
    %177 = vector.extract_strided_slice %174 {offsets = [0, 0], sizes = [2, 1], strides = [1, 1]} : vector<2x2xf32> to vector<2x1xf32>
    %178 = vector.broadcast %177 : vector<2x1xf32> to vector<2x8xf32>
    %179 = arith.mulf %176, %178 : vector<2x8xf32>
    %180 = arith.addf %175, %179 : vector<2x8xf32>
    %181 = vector.extract_strided_slice %173 {offsets = [0, 8], sizes = [2, 8], strides = [1, 1]} : vector<2x24xf32> to vector<2x8xf32>
    %182 = vector.extract_strided_slice %174 {offsets = [0, 1], sizes = [2, 1], strides = [1, 1]} : vector<2x2xf32> to vector<2x1xf32>
    %183 = vector.broadcast %182 : vector<2x1xf32> to vector<2x8xf32>
    %184 = arith.mulf %181, %183 : vector<2x8xf32>
    %185 = arith.addf %180, %184 : vector<2x8xf32>
    %186 = vector.extract_strided_slice %173 {offsets = [0, 16], sizes = [2, 8], strides = [1, 1]} : vector<2x24xf32> to vector<2x8xf32>
    %187 = arith.addf %167, %185 : vector<2x8xf32>
    %188 = arith.addf %187, %186 : vector<2x8xf32>
    %c0_i32_56 = arith.constant 0 : i32
    %189 = tpu.memref_slice %arg22[%c0_i32_56] : memref<4x!tpu.dma_semaphore, #tpu.memory_space<semaphore_mem>> -> memref<1x!tpu.dma_semaphore, #tpu.memory_space<semaphore_mem>>
    %190 = tpu.memref_squeeze %189 : memref<1x!tpu.dma_semaphore, #tpu.memory_space<semaphore_mem>> -> memref<!tpu.dma_semaphore, #tpu.memory_space<semaphore_mem>>
    tpu.wait_dma2 semaphore(%190 : memref<!tpu.dma_semaphore, #tpu.memory_space<semaphore_mem>>) src(%arg13 : memref<8x800xbf16, #tpu.memory_space<any>>) dst(%arg18 : memref<8x800xbf16, #tpu.memory_space<vmem>>)
    %c1_i32_57 = arith.constant 1 : i32
    %191 = tpu.memref_slice %arg22[%c1_i32_57] : memref<4x!tpu.dma_semaphore, #tpu.memory_space<semaphore_mem>> -> memref<1x!tpu.dma_semaphore, #tpu.memory_space<semaphore_mem>>
    %192 = tpu.memref_squeeze %191 : memref<1x!tpu.dma_semaphore, #tpu.memory_space<semaphore_mem>> -> memref<!tpu.dma_semaphore, #tpu.memory_space<semaphore_mem>>
    tpu.wait_dma2 semaphore(%192 : memref<!tpu.dma_semaphore, #tpu.memory_space<semaphore_mem>>) src(%arg14 : memref<800x800xbf16, #tpu.memory_space<any>>) dst(%arg19 : memref<800x800xbf16, #tpu.memory_space<vmem>>)
    %c2_i32_58 = arith.constant 2 : i32
    %193 = tpu.memref_slice %arg22[%c2_i32_58] : memref<4x!tpu.dma_semaphore, #tpu.memory_space<semaphore_mem>> -> memref<1x!tpu.dma_semaphore, #tpu.memory_space<semaphore_mem>>
    %194 = tpu.memref_squeeze %193 : memref<1x!tpu.dma_semaphore, #tpu.memory_space<semaphore_mem>> -> memref<!tpu.dma_semaphore, #tpu.memory_space<semaphore_mem>>
    tpu.wait_dma2 semaphore(%194 : memref<!tpu.dma_semaphore, #tpu.memory_space<semaphore_mem>>) src(%arg15 : memref<800x256xbf16, #tpu.memory_space<any>>) dst(%arg20 : memref<800x256xbf16, #tpu.memory_space<vmem>>)
    %c3_i32_59 = arith.constant 3 : i32
    %195 = tpu.memref_slice %arg22[%c3_i32_59] : memref<4x!tpu.dma_semaphore, #tpu.memory_space<semaphore_mem>> -> memref<1x!tpu.dma_semaphore, #tpu.memory_space<semaphore_mem>>
    %196 = tpu.memref_squeeze %195 : memref<1x!tpu.dma_semaphore, #tpu.memory_space<semaphore_mem>> -> memref<!tpu.dma_semaphore, #tpu.memory_space<semaphore_mem>>
    tpu.wait_dma2 semaphore(%196 : memref<!tpu.dma_semaphore, #tpu.memory_space<semaphore_mem>>) src(%arg16 : memref<8x800xf32, #tpu.memory_space<any>>) dst(%arg21 : memref<8x800xf32, #tpu.memory_space<vmem>>)
    %c0_60 = arith.constant 0 : index
    %c0_61 = arith.constant 0 : index
    %197 = vector.load %arg21[%c0_60, %c0_61] : memref<8x800xf32, #tpu.memory_space<vmem>>, vector<8x800xf32>
    %198 = vector.extract_strided_slice %197 {offsets = [0, 0], sizes = [1, 800], strides = [1, 1]} : vector<8x800xf32> to vector<1x800xf32>
    %199 = arith.truncf %188 : vector<2x8xf32> to vector<2x8xbf16>
    %c0_62 = arith.constant 0 : index
    %c0_63 = arith.constant 0 : index
    %200 = vector.load %arg18[%c0_62, %c0_63] : memref<8x800xbf16, #tpu.memory_space<vmem>>, vector<8x800xbf16>
    %cst_64 = arith.constant dense<0.000000e+00> : vector<2x800xf32>
    %201 = tpu.matmul %199, %200, %cst_64 {dimension_numbers = #tpu.dot_dimension_numbers<[1], [0], [0], [1], [0, 0, 1, 1], [], []>} : vector<2x8xbf16>, vector<8x800xbf16>, vector<2x800xf32> -> vector<2x800xf32>
    %202 = vector.broadcast %198 : vector<1x800xf32> to vector<2x800xf32>
    %203 = arith.addf %201, %202 : vector<2x800xf32>
    %204 = vector.extract_strided_slice %197 {offsets = [1, 0], sizes = [1, 800], strides = [1, 1]} : vector<8x800xf32> to vector<1x800xf32>
    %205 = vector.extract_strided_slice %197 {offsets = [2, 0], sizes = [1, 800], strides = [1, 1]} : vector<8x800xf32> to vector<1x800xf32>
    %cst_65 = arith.constant dense<0.000000e+00> : vector<800xf32>
    %206 = vector.multi_reduction <add>, %203, %cst_65 [0] : vector<2x800xf32> to vector<800xf32>
    %207 = vector.shape_cast %206 : vector<800xf32> to vector<1x800xf32>
    %cst_66 = arith.constant 2.000000e+00 : f32
    %208 = vector.broadcast %cst_66 : f32 to vector<1x800xf32>
    %209 = arith.divf %207, %208 : vector<1x800xf32>
    %210 = vector.broadcast %209 : vector<1x800xf32> to vector<2x800xf32>
    %211 = arith.subf %203, %210 : vector<2x800xf32>
    %212 = arith.mulf %211, %211 : vector<2x800xf32>
    %cst_67 = arith.constant dense<0.000000e+00> : vector<800xf32>
    %213 = vector.multi_reduction <add>, %212, %cst_67 [0] : vector<2x800xf32> to vector<800xf32>
    %214 = vector.shape_cast %213 : vector<800xf32> to vector<1x800xf32>
    %cst_68 = arith.constant 2.000000e+00 : f32
    %215 = vector.broadcast %cst_68 : f32 to vector<1x800xf32>
    %216 = arith.divf %214, %215 : vector<1x800xf32>
    %217 = vector.broadcast %209 : vector<1x800xf32> to vector<2x800xf32>
    %218 = arith.subf %203, %217 : vector<2x800xf32>
    %cst_69 = arith.constant 9.99999974E-6 : f32
    %219 = vector.broadcast %cst_69 : f32 to vector<1x800xf32>
    %220 = arith.addf %216, %219 : vector<1x800xf32>
    %221 = math.rsqrt %220 : vector<1x800xf32>
    %222 = vector.broadcast %221 : vector<1x800xf32> to vector<2x800xf32>
    %223 = arith.mulf %218, %222 : vector<2x800xf32>
    %224 = vector.broadcast %204 : vector<1x800xf32> to vector<2x800xf32>
    %225 = arith.mulf %224, %223 : vector<2x800xf32>
    %226 = vector.broadcast %205 : vector<1x800xf32> to vector<2x800xf32>
    %227 = arith.addf %225, %226 : vector<2x800xf32>
    %cst_70 = arith.constant 0.000000e+00 : f32
    %228 = vector.broadcast %cst_70 : f32 to vector<2x800xf32>
    %229 = arith.maximumf %227, %228 : vector<2x800xf32>
    %230 = vector.extract_strided_slice %197 {offsets = [3, 0], sizes = [1, 800], strides = [1, 1]} : vector<8x800xf32> to vector<1x800xf32>
    %231 = arith.truncf %229 : vector<2x800xf32> to vector<2x800xbf16>
    %c0_71 = arith.constant 0 : index
    %c0_72 = arith.constant 0 : index
    %232 = vector.load %arg19[%c0_71, %c0_72] : memref<800x800xbf16, #tpu.memory_space<vmem>>, vector<800x800xbf16>
    %cst_73 = arith.constant dense<0.000000e+00> : vector<2x800xf32>
    %233 = tpu.matmul %231, %232, %cst_73 {dimension_numbers = #tpu.dot_dimension_numbers<[1], [0], [0], [1], [0, 0, 1, 1], [], []>} : vector<2x800xbf16>, vector<800x800xbf16>, vector<2x800xf32> -> vector<2x800xf32>
    %234 = vector.broadcast %230 : vector<1x800xf32> to vector<2x800xf32>
    %235 = arith.addf %233, %234 : vector<2x800xf32>
    %236 = vector.extract_strided_slice %197 {offsets = [4, 0], sizes = [1, 800], strides = [1, 1]} : vector<8x800xf32> to vector<1x800xf32>
    %237 = vector.extract_strided_slice %197 {offsets = [5, 0], sizes = [1, 800], strides = [1, 1]} : vector<8x800xf32> to vector<1x800xf32>
    %cst_74 = arith.constant dense<0.000000e+00> : vector<800xf32>
    %238 = vector.multi_reduction <add>, %235, %cst_74 [0] : vector<2x800xf32> to vector<800xf32>
    %239 = vector.shape_cast %238 : vector<800xf32> to vector<1x800xf32>
    %cst_75 = arith.constant 2.000000e+00 : f32
    %240 = vector.broadcast %cst_75 : f32 to vector<1x800xf32>
    %241 = arith.divf %239, %240 : vector<1x800xf32>
    %242 = vector.broadcast %241 : vector<1x800xf32> to vector<2x800xf32>
    %243 = arith.subf %235, %242 : vector<2x800xf32>
    %244 = arith.mulf %243, %243 : vector<2x800xf32>
    %cst_76 = arith.constant dense<0.000000e+00> : vector<800xf32>
    %245 = vector.multi_reduction <add>, %244, %cst_76 [0] : vector<2x800xf32> to vector<800xf32>
    %246 = vector.shape_cast %245 : vector<800xf32> to vector<1x800xf32>
    %cst_77 = arith.constant 2.000000e+00 : f32
    %247 = vector.broadcast %cst_77 : f32 to vector<1x800xf32>
    %248 = arith.divf %246, %247 : vector<1x800xf32>
    %249 = vector.broadcast %241 : vector<1x800xf32> to vector<2x800xf32>
    %250 = arith.subf %235, %249 : vector<2x800xf32>
    %cst_78 = arith.constant 9.99999974E-6 : f32
    %251 = vector.broadcast %cst_78 : f32 to vector<1x800xf32>
    %252 = arith.addf %248, %251 : vector<1x800xf32>
    %253 = math.rsqrt %252 : vector<1x800xf32>
    %254 = vector.broadcast %253 : vector<1x800xf32> to vector<2x800xf32>
    %255 = arith.mulf %250, %254 : vector<2x800xf32>
    %256 = vector.broadcast %236 : vector<1x800xf32> to vector<2x800xf32>
    %257 = arith.mulf %256, %255 : vector<2x800xf32>
    %258 = vector.broadcast %237 : vector<1x800xf32> to vector<2x800xf32>
    %259 = arith.addf %257, %258 : vector<2x800xf32>
    %cst_79 = arith.constant 0.000000e+00 : f32
    %260 = vector.broadcast %cst_79 : f32 to vector<2x800xf32>
    %261 = arith.maximumf %259, %260 : vector<2x800xf32>
    %262 = vector.extract_strided_slice %197 {offsets = [6, 0], sizes = [1, 256], strides = [1, 1]} : vector<8x800xf32> to vector<1x256xf32>
    %263 = arith.truncf %261 : vector<2x800xf32> to vector<2x800xbf16>
    %c0_80 = arith.constant 0 : index
    %c0_81 = arith.constant 0 : index
    %264 = vector.load %arg20[%c0_80, %c0_81] : memref<800x256xbf16, #tpu.memory_space<vmem>>, vector<800x256xbf16>
    %cst_82 = arith.constant dense<0.000000e+00> : vector<2x256xf32>
    %265 = tpu.matmul %263, %264, %cst_82 {dimension_numbers = #tpu.dot_dimension_numbers<[1], [0], [0], [1], [0, 0, 1, 1], [], []>} : vector<2x800xbf16>, vector<800x256xbf16>, vector<2x256xf32> -> vector<2x256xf32>
    %266 = vector.broadcast %262 : vector<1x256xf32> to vector<2x256xf32>
    %267 = arith.addf %265, %266 : vector<2x256xf32>
    %268 = arith.negf %267 : vector<2x256xf32>
    %269 = math.exp %268 : vector<2x256xf32>
    %cst_83 = arith.constant 1.000000e+00 : f32
    %270 = vector.broadcast %cst_83 : f32 to vector<2x256xf32>
    %271 = arith.addf %270, %269 : vector<2x256xf32>
    %272 = arith.divf %270, %271 : vector<2x256xf32>
    %c0_84 = arith.constant 0 : index
    %c0_85 = arith.constant 0 : index
    %273 = vector.load %arg17[%c0_84, %c0_85] : memref<2x256xf32, #tpu.memory_space<vmem>>, vector<2x256xf32>
    tpu.vector_store %arg17[%c0_84, %c0_85], %272 {strides = array<i32>} : memref<2x256xf32, #tpu.memory_space<vmem>>, vector<2x256xf32>,
    return
  }
  func.func @transform_0(%arg0: i32) -> (i32, i32) {
    %c0_i32 = arith.constant 0 : i32
    %c0_i32_0 = arith.constant 0 : i32
    %c0_i32_1 = arith.constant 0 : i32
    return %c0_i32, %c0_i32_0 : i32, i32
  }
  func.func @transform_1(%arg0: i32) -> (i32, i32) {
    %c0_i32 = arith.constant 0 : i32
    %c0_i32_0 = arith.constant 0 : i32
    %c0_i32_1 = arith.constant 0 : i32
    return %c0_i32, %c0_i32_0 : i32, i32
  }
  func.func @transform_2(%arg0: i32) -> (i32, i32) {
    %c0_i32 = arith.constant 0 : i32
    %c0_i32_0 = arith.constant 0 : i32
    %c0_i32_1 = arith.constant 0 : i32
    return %c0_i32, %c0_i32_0 : i32, i32
  }
  func.func @transform_3(%arg0: i32) -> (i32, i32) {
    %c0_i32 = arith.constant 0 : i32
    %c0_i32_0 = arith.constant 0 : i32
    %c0_i32_1 = arith.constant 0 : i32
    return %c0_i32, %c0_i32_0 : i32, i32
  }
  func.func @transform_4(%arg0: i32) -> (i32, i32) {
    %c0_i32 = arith.constant 0 : i32
    %c0_i32_0 = arith.constant 0 : i32
    %c0_i32_1 = arith.constant 0 : i32
    return %c0_i32, %c0_i32_0 : i32, i32
  }
  func.func @transform_5(%arg0: i32) -> (i32, i32) {
    %c0_i32 = arith.constant 0 : i32
    %c0_i32_0 = arith.constant 0 : i32
    %c0_i32_1 = arith.constant 0 : i32
    return %c0_i32, %c0_i32_0 : i32, i32
  }
  func.func @transform_6(%arg0: i32) -> (i32, i32) {
    %c0_i32 = arith.constant 0 : i32
    %c0_i32_0 = arith.constant 0 : i32
    %c0_i32_1 = arith.constant 0 : i32
    return %c0_i32, %c0_i32_0 : i32, i32
  }
  func.func @transform_7(%arg0: i32) -> (i32, i32) {
    %c0_i32 = arith.constant 0 : i32
    %c0_i32_0 = arith.constant 0 : i32
    %c0_i32_1 = arith.constant 0 : i32
    return %c0_i32, %c0_i32_0 : i32, i32
  }
  func.func @transform_8(%arg0: i32) -> (i32, i32) {
    %c0_i32 = arith.constant 0 : i32
    %c0_i32_0 = arith.constant 0 : i32
    %c0_i32_1 = arith.constant 0 : i32
    return %c0_i32, %c0_i32_0 : i32, i32
  }
  func.func @transform_9(%arg0: i32) -> (i32, i32) {
    %c0_i32 = arith.constant 0 : i32
    %c0_i32_0 = arith.constant 0 : i32
    %c0_i32_1 = arith.constant 0 : i32
    return %c0_i32, %c0_i32_0 : i32, i32
  }
  func.func @transform_10(%arg0: i32) -> (i32, i32) {
    %c0_i32 = arith.constant 0 : i32
    %c0_i32_0 = arith.constant 0 : i32
    %c0_i32_1 = arith.constant 0 : i32
    return %c0_i32, %c0_i32_0 : i32, i32
  }
  func.func @transform_11(%arg0: i32) -> (i32, i32) {
    %c0_i32 = arith.constant 0 : i32
    %c0_i32_0 = arith.constant 0 : i32
    %c0_i32_1 = arith.constant 0 : i32
    return %c0_i32, %c0_i32_0 : i32, i32
  }
  func.func @transform_16(%arg0: i32) -> (i32, i32) {
    %c0_i32 = arith.constant 0 : i32
    %c0_i32_0 = arith.constant 0 : i32
    %c0_i32_1 = arith.constant 0 : i32
    return %c0_i32, %c0_i32_0 : i32, i32
  }
}

</mosaic_0001>

<llo_original>
// kernel: e2c_forward.3
$region0: #{e2c_forward.3}
  #allocation0 [shape = 'u32[]', space=smem, size = 0x4, offset = 0x4, fixed_abs, tag = 'smem constant byte address 0x4 - core index']
  #allocation1 [shape = 'u32[144,128]{1,0:T(1,128)}', space=vmem, size = 0x12000, scoped, tag = 'internal scratch']
  #allocation2 [shape = 'bf16[8,800]{1,0:T(8,128)(2,1)}', space=vmem, size = 0x3800, scoped, tag = 'scratch operand']
  #allocation3 [shape = 'bf16[800,800]{1,0:T(16,128)(2,1)}', space=vmem, size = 0x15e000, scoped, tag = 'scratch operand']
  #allocation4 [shape = 'bf16[800,256]{1,0:T(16,128)(2,1)}', space=vmem, size = 0x64000, scoped, tag = 'scratch operand']
  #allocation5 [shape = 'f32[8,800]{1,0:T(8,128)}', space=vmem, size = 0x7000, scoped, tag = 'scratch operand']
  #allocation6 [shape = 's32[4]{0}', space=sflag, size = 0x10, scoped, tag = 'scratch operand']
  #allocation7 [shape = 'f32[1,1]{1,0:T(1,128)S(6)}', space=smem, size = 0x200, scoped, tag = 'scoped memory for e2c_forward.3']
  #allocation17 [shape = 's32[]', space=sflag, size = 0x4, offset = 0, fixed_abs, tag = 'sflag constant byte address 0x0 - dummy sync flag']
  #allocation18 [shape = 's32[]', space=sflag, size = 0x4, offset = 0, fixed_abs, tag = 'sflag constant byte address 0x0 - dummy sync flag']
  #allocation19 [shape = 'u32[]', space=smem, size = 0x4, offset = 0x44, fixed_abs, tag = 'smem constant byte address 0x44 - assertion arg 0']
  #allocation20 [shape = 'u32[]', space=smem, size = 0x4, offset = 0x48, fixed_abs, tag = 'smem constant byte address 0x48 - assertion arg 1']
  #allocation21 [shape = 's32[]', space=sflag, size = 0x4, offset = 0, fixed_abs, tag = 'sflag constant byte address 0x0 - dummy sync flag']
  #allocation23 [shape = 's32[]', space=sflag, size = 0x4, offset = 0, fixed_abs, tag = 'sflag constant byte address 0x0 - dummy sync flag']
  #allocation25 [shape = 's32[]', space=sflag, size = 0x4, offset = 0, fixed_abs, tag = 'sflag constant byte address 0x0 - dummy sync flag']
  %s0 = inlined_call_operand.<no memory space> [shape: f32[1,1], index: 0, kind: input, shape index: {}]
  %s1 = inlined_call_operand.vmem [shape: f32[2,256], index: 1, kind: input, shape index: {}]
  %s2 = inlined_call_operand.hbm [shape: f32[2,2], index: 2, kind: input, shape index: {}]
  %s3 = inlined_call_operand.vmem [shape: bf16[256,800], index: 3, kind: input, shape index: {}]
  %s4 = inlined_call_operand.vmem [shape: bf16[800,800], index: 4, kind: input, shape index: {}]
  %s5 = inlined_call_operand.vmem [shape: bf16[800,16], index: 5, kind: input, shape index: {}]
  %s6 = inlined_call_operand.vmem [shape: f32[8,800], index: 6, kind: input, shape index: {}]
  %s7 = inlined_call_operand.hbm [shape: bf16[8,128], index: 7, kind: input, shape index: {}]
  %s8 = inlined_call_operand.vmem [shape: bf16[128,128], index: 8, kind: input, shape index: {}]
  %s9 = inlined_call_operand.vmem [shape: bf16[128,16], index: 9, kind: input, shape index: {}]
  %s10 = inlined_call_operand.hbm [shape: bf16[8,24], index: 10, kind: input, shape index: {}]
  %s11 = inlined_call_operand.hbm [shape: f32[8,128], index: 11, kind: input, shape index: {}]
  %s12 = inlined_call_operand.hbm [shape: bf16[8,800], index: 12, kind: input, shape index: {}]
  %s13 = inlined_call_operand.hbm [shape: bf16[800,800], index: 13, kind: input, shape index: {}]
  %s14 = inlined_call_operand.hbm [shape: bf16[800,256], index: 14, kind: input, shape index: {}]
  %s15 = inlined_call_operand.vmem [shape: f32[8,800], index: 15, kind: input, shape index: {}]
  %s16 = inlined_call_operand.hbm [shape: f32[2,256], index: 16, kind: output, shape index: {}]
  %s17 = sld [smem:[#allocation0]]
  $region112: #{e2c_forward.3} parent=0
    _
  %s19 = ssub.s32 1, %s17
  %s20 = scalar_select 0, %s19, %s17
  %21 = sst [smem:[#allocation7]] %s0
  $region1: #{e2c_forward.3} parent=0
    #allocation8 [shape = 'u8[1024]{0}', space=vmem, size = 0x400, scoped, tag = 'input window, operand 2, single buffered']
    #allocation9 [shape = 's32[1]{0}', space=sflag, size = 0x4, scoped, tag = 'scoped memory for e2c_forward.3']
    #allocation10 [shape = 's32[1]{0}', space=sflag, size = 0x4, scoped, tag = 'scoped memory for e2c_forward.3']
    #allocation11 [shape = 'u8[2048]{0}', space=vmem, size = 0x800, scoped, tag = 'input window, operand 7, single buffered']
    #allocation12 [shape = 's32[1]{0}', space=sflag, size = 0x4, scoped, tag = 'scoped memory for e2c_forward.3']
    #allocation13 [shape = 'u8[2048]{0}', space=vmem, size = 0x800, scoped, tag = 'input window, operand 10, single buffered']
    #allocation14 [shape = 'u8[4096]{0}', space=vmem, size = 0x1000, scoped, tag = 'input window, operand 11, single buffered']
    #allocation15 [shape = 's32[1]{0}', space=sflag, size = 0x4, scoped, tag = 'scoped memory for e2c_forward.3']
    #allocation16 [shape = 'u8[2048]{0}', space=vmem, size = 0x800, scoped, tag = 'output window, operand 0, single buffered']
    #allocation22 [shape = 'u32[9]{0}', space=smem, size = 0x24, scoped, tag = 'DMA stride descriptor']
    #allocation24 [shape = 'u32[9]{0}', space=smem, size = 0x24, scoped, tag = 'DMA stride descriptor']
    %22 = vsyncpa [#allocation9], 0
    %23 = vsyncpa [#allocation12], 0
    %24 = vsyncpa [#allocation15], 0
    %25 = vsyncpa [#allocation10], 0
    // Predicated region
    $region2: #{e2c_forward.3} parent=1 // pred_check
      _
    $region3: #{e2c_forward.3} parent=1 // pred_check_branch
      %27 = sbr.rel (0) target = $region5
    $region4: #{e2c_forward.3} parent=1 // pred_region
      _
    $region5: #{e2c_forward.3} parent=1 // pred_fallthru
      _
    // Predicated region
    $region6: #{e2c_forward.3} parent=1 // pred_check
      _
    $region7: #{e2c_forward.3} parent=1 // pred_check_branch
      %29 = sbr.rel (0) target = $region9
    $region8: #{e2c_forward.3} parent=1 // pred_region
      _
    $region9: #{e2c_forward.3} parent=1 // pred_fallthru
      _
    // Predicated region
    $region10: #{e2c_forward.3} parent=1 // pred_check
      _
    $region11: #{e2c_forward.3} parent=1 // pred_check_branch
      %31 = sbr.rel (0) target = $region13
    $region12: #{e2c_forward.3} parent=1 // pred_region
      %s33 = ssub.s32 32, 32
      %34 = vsyncadd [#allocation9], %s33
      %s36 = sshll.u32 [#allocation8], 4
      %s37 = int_to_ptr.vmem [resolvable:$true] %s36
      %39 = dma.hbm_to_vmem [thread:$0]  %s2, 32, %s37, [#allocation9]
    $region13: #{e2c_forward.3} parent=1 // pred_fallthru
      _
    // Predicated region
    $region14: #{e2c_forward.3} parent=1 // pred_check
      _
    $region15: #{e2c_forward.3} parent=1 // pred_check_branch
      %41 = sbr.rel (0) target = $region17
    $region16: #{e2c_forward.3} parent=1 // pred_region
      _
    $region17: #{e2c_forward.3} parent=1 // pred_fallthru
      _
    // Predicated region
    $region18: #{e2c_forward.3} parent=1 // pred_check
      _
    $region19: #{e2c_forward.3} parent=1 // pred_check_branch
      %43 = sbr.rel (0) target = $region21
    $region20: #{e2c_forward.3} parent=1 // pred_region
      _
    $region21: #{e2c_forward.3} parent=1 // pred_fallthru
      _
    // Predicated region
    $region22: #{e2c_forward.3} parent=1 // pred_check
      _
    $region23: #{e2c_forward.3} parent=1 // pred_check_branch
      %45 = sbr.rel (0) target = $region25
    $region24: #{e2c_forward.3} parent=1 // pred_region
      _
    $region25: #{e2c_forward.3} parent=1 // pred_fallthru
      _
    // Predicated region
    $region26: #{e2c_forward.3} parent=1 // pred_check
      _
    $region27: #{e2c_forward.3} parent=1 // pred_check_branch
      %47 = sbr.rel (0) target = $region29
    $region28: #{e2c_forward.3} parent=1 // pred_region
      _
    $region29: #{e2c_forward.3} parent=1 // pred_fallthru
      _
    // Predicated region
    $region30: #{e2c_forward.3} parent=1 // pred_check
      _
    $region31: #{e2c_forward.3} parent=1 // pred_check_branch
      %49 = sbr.rel (0) target = $region33
    $region32: #{e2c_forward.3} parent=1 // pred_region
      %s51 = ssub.s32 64, 64
      %52 = vsyncadd [#allocation12], %s51
      %s54 = sshll.u32 [#allocation11], 4
      %s55 = int_to_ptr.vmem [resolvable:$true] %s54
      %57 = dma.hbm_to_vmem [thread:$0]  %s7, 64, %s55, [#allocation12]
    $region33: #{e2c_forward.3} parent=1 // pred_fallthru
      _
    // Predicated region
    $region34: #{e2c_forward.3} parent=1 // pred_check
      _
    $region35: #{e2c_forward.3} parent=1 // pred_check_branch
      %59 = sbr.rel (0) target = $region37
    $region36: #{e2c_forward.3} parent=1 // pred_region
      _
    $region37: #{e2c_forward.3} parent=1 // pred_fallthru
      _
    // Predicated region
    $region38: #{e2c_forward.3} parent=1 // pred_check
      _
    $region39: #{e2c_forward.3} parent=1 // pred_check_branch
      %61 = sbr.rel (0) target = $region41
    $region40: #{e2c_forward.3} parent=1 // pred_region
      _
    $region41: #{e2c_forward.3} parent=1 // pred_fallthru
      _
    // Predicated region
    $region42: #{e2c_forward.3} parent=1 // pred_check
      _
    $region43: #{e2c_forward.3} parent=1 // pred_check_branch
      %63 = sbr.rel (0) target = $region45
    $region44: #{e2c_forward.3} parent=1 // pred_region
      %s65 = ssub.s32 64, 64
      %66 = vsyncadd [#allocation12], %s65
      %s68 = sshll.u32 [#allocation13], 4
      %s69 = int_to_ptr.vmem [resolvable:$true] %s68
      %71 = dma.hbm_to_vmem [thread:$0]  %s10, 64, %s69, [#allocation12]
    $region45: #{e2c_forward.3} parent=1 // pred_fallthru
      _
    // Predicated region
    $region46: #{e2c_forward.3} parent=1 // pred_check
      _
    $region47: #{e2c_forward.3} parent=1 // pred_check_branch
      %73 = sbr.rel (0) target = $region49
    $region48: #{e2c_forward.3} parent=1 // pred_region
      %s75 = ssub.s32 128, 128
      %76 = vsyncadd [#allocation15], %s75
      %s78 = sshll.u32 [#allocation14], 4
      %s79 = int_to_ptr.vmem [resolvable:$true] %s78
      %81 = dma.hbm_to_vmem [thread:$0]  %s11, 128, %s79, [#allocation15]
    $region49: #{e2c_forward.3} parent=1 // pred_fallthru
      _
    // Predicated region
    $region50: #{e2c_forward.3} parent=1 // pred_check
      _
    $region51: #{e2c_forward.3} parent=1 // pred_check_branch
      %83 = sbr.rel (0) target = $region53
    $region52: #{e2c_forward.3} parent=1 // pred_region
      %84 = dma.done [#allocation9], 32
    $region53: #{e2c_forward.3} parent=1 // pred_fallthru
      _
    // Predicated region
    $region54: #{e2c_forward.3} parent=1 // pred_check
      _
    $region55: #{e2c_forward.3} parent=1 // pred_check_branch
      %86 = sbr.rel (0) target = $region57
    $region56: #{e2c_forward.3} parent=1 // pred_region
      %87 = dma.done [#allocation12], 64
    $region57: #{e2c_forward.3} parent=1 // pred_fallthru
      _
    // Predicated region
    $region58: #{e2c_forward.3} parent=1 // pred_check
      _
    $region59: #{e2c_forward.3} parent=1 // pred_check_branch
      %89 = sbr.rel (0) target = $region61
    $region60: #{e2c_forward.3} parent=1 // pred_region
      %90 = dma.done [#allocation12], 64
    $region61: #{e2c_forward.3} parent=1 // pred_fallthru
      _
    // Predicated region
    $region62: #{e2c_forward.3} parent=1 // pred_check
      _
    $region63: #{e2c_forward.3} parent=1 // pred_check_branch
      %92 = sbr.rel (0) target = $region65
    $region64: #{e2c_forward.3} parent=1 // pred_region
      %93 = dma.done [#allocation15], 128
    $region65: #{e2c_forward.3} parent=1 // pred_fallthru
      _
    // Predicated region
    $region66: #{e2c_forward.3} parent=1 // pred_check
      _
    $region67: #{e2c_forward.3} parent=1 // pred_check_branch
      %96 = sbr.rel target = $region69
    $region68: #{e2c_forward.3} parent=1 // pred_region
      %97 = sst [smem:[#allocation19]] [#allocation18]
      %98 = sst [smem:[#allocation20]] [#allocation17]
    $region69: #{e2c_forward.3} parent=1 // pred_fallthru
      _
    %100 = shalt.err (0)
    %s102 = sshll.u32 [#allocation2], 4
    %s103 = int_to_ptr.vmem [resolvable:$true] %s102
    %105 = dma.hbm_to_vmem [thread:$0]  %s12, 448, %s103, [#allocation6]
    %s106 = scalar_lea.sflag [#allocation6], 1
    %s108 = sshll.u32 1, 14
    %s109 = sxor.u32 4294967295, %s108
    %s111 = sld [smem:[#allocation0]]
    %s112 = sadd.s32 2, %s111
    %s114 = sshll.u32 7, 26
    %s115 = sxor.u32 4294967295, %s114
    %s116 = sand.u32 0, %s115
    %s117 = sshll.u32 %s112, 26
    %s118 = sor.u32 %s116, %s117
    %s119 = sshll.u32 [#allocation3], 4
    %s120 = int_to_ptr.vmem [resolvable:$true] %s119
    %123 = sst [smem:[#allocation22]] 896
    %s124 = scalar_lea.smem [#allocation22], 1
    %125 = sst [smem:[%s124]] 896
    %s126 = scalar_lea.smem [#allocation22], 2
    %127 = sst [smem:[%s126]] 7
    %s128 = scalar_lea.smem [#allocation22], 3
    %129 = sst [smem:[%s128]] 64
    %s130 = scalar_lea.smem [#allocation22], 4
    %131 = sst [smem:[%s130]] 128
    %s132 = scalar_lea.smem [#allocation22], 5
    %133 = sst [smem:[%s132]] 2
    %s134 = scalar_lea.smem [#allocation22], 6
    %135 = sst [smem:[%s134]] 448
    %s136 = scalar_lea.smem [#allocation22], 7
    %137 = sst [smem:[%s136]] 64
    %s138 = scalar_lea.smem [#allocation22], 8
    %139 = sst [smem:[%s138]] 4
    %141 = dma.general %s13, 44800, %s120, %s106, [#allocation21], [#allocation22], %s118, 0
    %s142 = scalar_lea.sflag [#allocation6], 2
    %s144 = sshll.u32 1, 14
    %s145 = sxor.u32 4294967295, %s144
    %s147 = sadd.s32 2, %s111
    %s149 = sshll.u32 7, 26
    %s150 = sxor.u32 4294967295, %s149
    %s151 = sand.u32 0, %s150
    %s152 = sshll.u32 %s147, 26
    %s153 = sor.u32 %s151, %s152
    %s154 = sshll.u32 [#allocation4], 4
    %s155 = int_to_ptr.vmem [resolvable:$true] %s154
    %158 = sst [smem:[#allocation24]] 256
    %s159 = scalar_lea.smem [#allocation24], 1
    %160 = sst [smem:[%s159]] 256
    %s161 = scalar_lea.smem [#allocation24], 2
    %162 = sst [smem:[%s161]] 2
    %s163 = scalar_lea.smem [#allocation24], 3
    %164 = sst [smem:[%s163]] 64
    %s165 = scalar_lea.smem [#allocation24], 4
    %166 = sst [smem:[%s165]] 128
    %s167 = scalar_lea.smem [#allocation24], 5
    %168 = sst [smem:[%s167]] 2
    %s169 = scalar_lea.smem [#allocation24], 6
    %170 = sst [smem:[%s169]] 128
    %s171 = scalar_lea.smem [#allocation24], 7
    %172 = sst [smem:[%s171]] 64
    %s173 = scalar_lea.smem [#allocation24], 8
    %174 = sst [smem:[%s173]] 4
    %176 = dma.general %s14, 12800, %s155, %s142, [#allocation23], [#allocation24], %s153, 0
    %s177 = scalar_lea.sflag [#allocation6], 3
    %p179 = scmp.lt.u32.totalorder 56, 8
    %p180 = pneg %p179
    // Predicated region
    $region70: #{e2c_forward.3} parent=1 // pred_check
      _
    $region71: #{e2c_forward.3} parent=1 // pred_check_branch
      %182 = sbr.rel (%p179) target = $region73
    $region72: #{e2c_forward.3} parent=1 // pred_region
      %s197 = sand.u32 56, 7
      %p198 = scmp.eq.s32.totalorder %s197, 0
      // Predicated region
      $region85: #{e2c_forward.3} parent=72 // pred_check
        %p199 = pneg %p198
      $region86: #{e2c_forward.3} parent=72 // pred_check_branch
        %201 = sbr.rel (%p199) target = $region88
      $region87: #{e2c_forward.3} parent=72 // pred_region
        loop: start=0, step=1, limit=1
        $region89: #{e2c_forward.3} parent=87 // loop_pre_header
          _
        $region90: #{e2c_forward.3} parent=87 // loop_header
          %s203 = sphi 0, %s207
          %p204 = scmp.ge.s32.totalorder %s203, 1
          %s208 = sphi %s15, %s15
          %s209 = sphi [#allocation5], [#allocation5]
        $region91: #{e2c_forward.3} parent=87 // loop_header_branch
          %206 = sbr.rel (%p204) target = $region95
        $region92: #{e2c_forward.3} parent=87 // loop_body
          %v210 = vld [vmem:[%s208] sm:$0xff]
          %211 = vst [vmem:[%s209] sm:$0xff] %v210
          %v212 = vld [vmem:[%s208 + $0x8] sm:$0xff]
          %213 = vst [vmem:[%s209 + $0x8] sm:$0xff] %v212
          %v214 = vld [vmem:[%s208 + $0x10] sm:$0xff]
          %215 = vst [vmem:[%s209 + $0x10] sm:$0xff] %v214
          %v216 = vld [vmem:[%s208 + $0x18] sm:$0xff]
          %217 = vst [vmem:[%s209 + $0x18] sm:$0xff] %v216
          %v218 = vld [vmem:[%s208 + $0x20] sm:$0xff]
          %219 = vst [vmem:[%s209 + $0x20] sm:$0xff] %v218
          %v220 = vld [vmem:[%s208 + $0x28] sm:$0xff]
          %221 = vst [vmem:[%s209 + $0x28] sm:$0xff] %v220
          %v222 = vld [vmem:[%s208 + $0x30] sm:$0xff]
          %223 = vst [vmem:[%s209 + $0x30] sm:$0xff] %v222
        $region93: #{e2c_forward.3} parent=87 // loop_footer
          %s207 = sadd.s32 1, %s203
        $region94: #{e2c_forward.3} parent=87 // loop_footer_branch
          %202 = sbr.rel target = $region90
        $region95: #{e2c_forward.3} parent=87 // loop_exit
          _
      $region88: #{e2c_forward.3} parent=72 // pred_fallthru
        _
      %p224 = pneg %p198
      // Predicated region
      $region96: #{e2c_forward.3} parent=72 // pred_check
        _
      $region97: #{e2c_forward.3} parent=72 // pred_check_branch
        %226 = sbr.rel (%p198) target = $region99
      $region98: #{e2c_forward.3} parent=72 // pred_region
        %s227 = sand.u32 56, 7
      $region99: #{e2c_forward.3} parent=72 // pred_fallthru
        _
    $region73: #{e2c_forward.3} parent=1 // pred_fallthru
      _
    // Predicated region
    $region74: #{e2c_forward.3} parent=1 // pred_check
      %p183 = pneg %p179
    $region75: #{e2c_forward.3} parent=1 // pred_check_branch
      %185 = sbr.rel (%p183) target = $region77
    $region76: #{e2c_forward.3} parent=1 // pred_region
      %s186 = sshllo.u32 0, 56
      loop: start=0, step=1, limit=1
      $region78: #{e2c_forward.3} parent=76 // loop_pre_header
        _
      $region79: #{e2c_forward.3} parent=76 // loop_header
        %s188 = sphi 0, %s192
        %p189 = scmp.ge.s32.totalorder %s188, 1
        %s193 = sphi %s15, %s15
        %s194 = sphi [#allocation5], [#allocation5]
      $region80: #{e2c_forward.3} parent=76 // loop_header_branch
        %191 = sbr.rel (%p189) target = $region84
      $region81: #{e2c_forward.3} parent=76 // loop_body
        %v195 = vld [vmem:[%s193] sm:%s186]
        %196 = vst [vmem:[%s194] sm:%s186] %v195
      $region82: #{e2c_forward.3} parent=76 // loop_footer
        %s192 = sadd.s32 1, %s188
      $region83: #{e2c_forward.3} parent=76 // loop_footer_branch
        %187 = sbr.rel target = $region79
      $region84: #{e2c_forward.3} parent=76 // loop_exit
        _
    $region77: #{e2c_forward.3} parent=1 // pred_fallthru
      _
    // Predicated region
    $region100: #{e2c_forward.3} parent=1 // pred_check
      _
    $region101: #{e2c_forward.3} parent=1 // pred_check_branch
      %230 = sbr.rel (0) target = $region103
    $region102: #{e2c_forward.3} parent=1 // pred_region
      %231 = vsyncadd %s177, 896
    $region103: #{e2c_forward.3} parent=1 // pred_fallthru
      _
    %v232 = vld [vmem:[%s6] sm:$0xff]
    %v233 = vld [vmem:[%s6 + $0x8] sm:$0xff]
    %v234 = vld [vmem:[%s6 + $0x10] sm:$0xff]
    %v235 = vld [vmem:[%s6 + $0x18] sm:$0xff]
    %v236 = vld [vmem:[%s6 + $0x20] sm:$0xff]
    %v237 = vld [vmem:[%s6 + $0x28] sm:$0xff]
    %v238 = vld [vmem:[%s6 + $0x30] sm:$0xff]
    %v239 = vld [vmem:[%s1] sm:$0xf]
    %v242 = vunpack.c.l.s4 1983009808
    %v243 = vunpack.c.0.s8 %v242
    %v244 = vlaneseq
    %v245 = vshrl.u32 %v244, 7
    %v246 = vsub.s32 %v243, %v245
    %v247 = vrot.slane %v239, %v246
    %v248 = vcombine.high %v247, %v247
    %v251 = vpack.c.bf16 %v247, %v247
    %v252 = vpack.c.bf16 %v248, %v248
    %v253 = vld [vmem:[%s3] sm:$0xff]
    %v254 = vld [vmem:[%s3 + $0x8] sm:$0xff]
    %v255 = vld [vmem:[%s3 + $0x10] sm:$0xff]
    %v256 = vld [vmem:[%s3 + $0x18] sm:$0xf]
    %v257 = vld [vmem:[%s3 + $0x1c] sm:$0xff]
    %v258 = vld [vmem:[%s3 + $0x24] sm:$0xff]
    %v259 = vld [vmem:[%s3 + $0x2c] sm:$0xff]
    %v260 = vld [vmem:[%s3 + $0x34] sm:$0xf]
    %v261 = vld [vmem:[%s3 + $0x38] sm:$0xff]
    %v262 = vld [vmem:[%s3 + $0x40] sm:$0xff]
    %v263 = vld [vmem:[%s3 + $0x48] sm:$0xff]
    %v264 = vld [vmem:[%s3 + $0x50] sm:$0xf]
    %v265 = vld [vmem:[%s3 + $0x54] sm:$0xff]
    %v266 = vld [vmem:[%s3 + $0x5c] sm:$0xff]
    %v267 = vld [vmem:[%s3 + $0x64] sm:$0xff]
    %v268 = vld [vmem:[%s3 + $0x6c] sm:$0xf]
    %v269 = vld [vmem:[%s3 + $0x70] sm:$0xff]
    %v270 = vld [vmem:[%s3 + $0x78] sm:$0xff]
    %v271 = vld [vmem:[%s3 + $0x80] sm:$0xff]
    %v272 = vld [vmem:[%s3 + $0x88] sm:$0xf]
    %v273 = vld [vmem:[%s3 + $0x8c] sm:$0xff]
    %v274 = vld [vmem:[%s3 + $0x94] sm:$0xff]
    %v275 = vld [vmem:[%s3 + $0x9c] sm:$0xff]
    %v276 = vld [vmem:[%s3 + $0xa4] sm:$0xf]
    %v277 = vld [vmem:[%s3 + $0xa8] sm:$0xff]
    %v278 = vld [vmem:[%s3 + $0xb0] sm:$0xff]
    %v279 = vld [vmem:[%s3 + $0xb8] sm:$0xff]
    %v280 = vld [vmem:[%s3 + $0xc0] sm:$0xf]
    %v281 = vld [vmem:[%s3 + $0xc4] sm:$0xff]
    %v282 = vld [vmem:[%s3 + $0xcc] sm:$0xff]
    %v283 = vld [vmem:[%s3 + $0xd4] sm:$0xff]
    %v284 = vld [vmem:[%s3 + $0xdc] sm:$0xf]
    %v285 = vld [vmem:[%s3 + $0xe0] sm:$0xff]
    %v286 = vld [vmem:[%s3 + $0xe8] sm:$0xff]
    %v287 = vld [vmem:[%s3 + $0xf0] sm:$0xff]
    %v288 = vld [vmem:[%s3 + $0xf8] sm:$0xf]
    %v289 = vld [vmem:[%s3 + $0xfc] sm:$0xff]
    %v290 = vld [vmem:[%s3 + $0x104] sm:$0xff]
    %v291 = vld [vmem:[%s3 + $0x10c] sm:$0xff]
    %v292 = vld [vmem:[%s3 + $0x114] sm:$0xf]
    %v293 = vld [vmem:[%s3 + $0x118] sm:$0xff]
    %v294 = vld [vmem:[%s3 + $0x120] sm:$0xff]
    %v295 = vld [vmem:[%s3 + $0x128] sm:$0xff]
    %v296 = vld [vmem:[%s3 + $0x130] sm:$0xf]
    %v297 = vld [vmem:[%s3 + $0x134] sm:$0xff]
    %v298 = vld [vmem:[%s3 + $0x13c] sm:$0xff]
    %v299 = vld [vmem:[%s3 + $0x144] sm:$0xff]
    %v300 = vld [vmem:[%s3 + $0x14c] sm:$0xf]
    %v301 = vld [vmem:[%s3 + $0x150] sm:$0xff]
    %v302 = vld [vmem:[%s3 + $0x158] sm:$0xff]
    %v303 = vld [vmem:[%s3 + $0x160] sm:$0xff]
    %v304 = vld [vmem:[%s3 + $0x168] sm:$0xf]
    %v305 = vld [vmem:[%s3 + $0x16c] sm:$0xff]
    %v306 = vld [vmem:[%s3 + $0x174] sm:$0xff]
    %v307 = vld [vmem:[%s3 + $0x17c] sm:$0xff]
    %v308 = vld [vmem:[%s3 + $0x184] sm:$0xf]
    %v309 = vld [vmem:[%s3 + $0x188] sm:$0xff]
    %v310 = vld [vmem:[%s3 + $0x190] sm:$0xff]
    %v311 = vld [vmem:[%s3 + $0x198] sm:$0xff]
    %v312 = vld [vmem:[%s3 + $0x1a0] sm:$0xf]
    %v313 = vld [vmem:[%s3 + $0x1a4] sm:$0xff]
    %v314 = vld [vmem:[%s3 + $0x1ac] sm:$0xff]
    %v315 = vld [vmem:[%s3 + $0x1b4] sm:$0xff]
    %v316 = vld [vmem:[%s3 + $0x1bc] sm:$0xf]
    %v317 = vld [vmem:[%s3 + $0x1c0] sm:$0xff]
    %v318 = vld [vmem:[%s3 + $0x1c8] sm:$0xff]
    %v319 = vld [vmem:[%s3 + $0x1d0] sm:$0xff]
    %v320 = vld [vmem:[%s3 + $0x1d8] sm:$0xf]
    %v321 = vld [vmem:[%s3 + $0x1dc] sm:$0xff]
    %v322 = vld [vmem:[%s3 + $0x1e4] sm:$0xff]
    %v323 = vld [vmem:[%s3 + $0x1ec] sm:$0xff]
    %v324 = vld [vmem:[%s3 + $0x1f4] sm:$0xf]
    %v325 = vld [vmem:[%s3 + $0x1f8] sm:$0xff]
    %v326 = vld [vmem:[%s3 + $0x200] sm:$0xff]
    %v327 = vld [vmem:[%s3 + $0x208] sm:$0xff]
    %v328 = vld [vmem:[%s3 + $0x210] sm:$0xf]
    %v329 = vld [vmem:[%s3 + $0x214] sm:$0xff]
    %v330 = vld [vmem:[%s3 + $0x21c] sm:$0xff]
    %v331 = vld [vmem:[%s3 + $0x224] sm:$0xff]
    %v332 = vld [vmem:[%s3 + $0x22c] sm:$0xf]
    %v333 = vld [vmem:[%s3 + $0x230] sm:$0xff]
    %v334 = vld [vmem:[%s3 + $0x238] sm:$0xff]
    %v335 = vld [vmem:[%s3 + $0x240] sm:$0xff]
    %v336 = vld [vmem:[%s3 + $0x248] sm:$0xf]
    %v337 = vld [vmem:[%s3 + $0x24c] sm:$0xff]
    %v338 = vld [vmem:[%s3 + $0x254] sm:$0xff]
    %v339 = vld [vmem:[%s3 + $0x25c] sm:$0xff]
    %v340 = vld [vmem:[%s3 + $0x264] sm:$0xf]
    %v341 = vld [vmem:[%s3 + $0x268] sm:$0xff]
    %v342 = vld [vmem:[%s3 + $0x270] sm:$0xff]
    %v343 = vld [vmem:[%s3 + $0x278] sm:$0xff]
    %v344 = vld [vmem:[%s3 + $0x280] sm:$0xf]
    %v345 = vld [vmem:[%s3 + $0x284] sm:$0xff]
    %v346 = vld [vmem:[%s3 + $0x28c] sm:$0xff]
    %v347 = vld [vmem:[%s3 + $0x294] sm:$0xff]
    %v348 = vld [vmem:[%s3 + $0x29c] sm:$0xf]
    %v349 = vld [vmem:[%s3 + $0x2a0] sm:$0xff]
    %v350 = vld [vmem:[%s3 + $0x2a8] sm:$0xff]
    %v351 = vld [vmem:[%s3 + $0x2b0] sm:$0xff]
    %v352 = vld [vmem:[%s3 + $0x2b8] sm:$0xf]
    %v353 = vld [vmem:[%s3 + $0x2bc] sm:$0xff]
    %v354 = vld [vmem:[%s3 + $0x2c4] sm:$0xff]
    %v355 = vld [vmem:[%s3 + $0x2cc] sm:$0xff]
    %v356 = vld [vmem:[%s3 + $0x2d4] sm:$0xf]
    %v357 = vld [vmem:[%s3 + $0x2d8] sm:$0xff]
    %v358 = vld [vmem:[%s3 + $0x2e0] sm:$0xff]
    %v359 = vld [vmem:[%s3 + $0x2e8] sm:$0xff]
    %v360 = vld [vmem:[%s3 + $0x2f0] sm:$0xf]
    %v361 = vld [vmem:[%s3 + $0x2f4] sm:$0xff]
    %v362 = vld [vmem:[%s3 + $0x2fc] sm:$0xff]
    %v363 = vld [vmem:[%s3 + $0x304] sm:$0xff]
    %v364 = vld [vmem:[%s3 + $0x30c] sm:$0xf]
    %v365 = vld [vmem:[%s3 + $0x310] sm:$0xff]
    %v366 = vld [vmem:[%s3 + $0x318] sm:$0xff]
    %v367 = vld [vmem:[%s3 + $0x320] sm:$0xff]
    %v368 = vld [vmem:[%s3 + $0x328] sm:$0xf]
    %v369 = vld [vmem:[%s3 + $0x32c] sm:$0xff]
    %v370 = vld [vmem:[%s3 + $0x334] sm:$0xff]
    %v371 = vld [vmem:[%s3 + $0x33c] sm:$0xff]
    %v372 = vld [vmem:[%s3 + $0x344] sm:$0xf]
    %v373 = vld [vmem:[%s3 + $0x348] sm:$0xff]
    %v374 = vld [vmem:[%s3 + $0x350] sm:$0xff]
    %v375 = vld [vmem:[%s3 + $0x358] sm:$0xff]
    %v376 = vld [vmem:[%s3 + $0x360] sm:$0xf]
    %v377 = vld [vmem:[%s3 + $0x364] sm:$0xff]
    %v378 = vld [vmem:[%s3 + $0x36c] sm:$0xff]
    %v379 = vld [vmem:[%s3 + $0x374] sm:$0xff]
    %v380 = vld [vmem:[%s3 + $0x37c] sm:$0xf]
    %v381 = vlaneseq
    %v382 = vshrl.u32 %v381, 7
    %v383 = vsub.s32 0, %v382
    %v384 = vrot.slane %v232, %v383
    %v385 = vlaneseq
    %v386 = vshrl.u32 %v385, 7
    %v387 = vsub.s32 0, %v386
    %v388 = vrot.slane %v233, %v387
    %v389 = vlaneseq
    %v390 = vshrl.u32 %v389, 7
    %v391 = vsub.s32 0, %v390
    %v392 = vrot.slane %v234, %v391
    %v393 = vlaneseq
    %v394 = vshrl.u32 %v393, 7
    %v395 = vsub.s32 0, %v394
    %v396 = vrot.slane %v235, %v395
    %v397 = vlaneseq
    %v398 = vshrl.u32 %v397, 7
    %v399 = vsub.s32 0, %v398
    %v400 = vrot.slane %v236, %v399
    %v401 = vlaneseq
    %v402 = vshrl.u32 %v401, 7
    %v403 = vsub.s32 0, %v402
    %v404 = vrot.slane %v237, %v403
    %v405 = vlaneseq
    %v406 = vshrl.u32 %v405, 7
    %v407 = vsub.s32 0, %v406
    %v408 = vrot.slane %v238, %v407
    %v537 = vunpack.c.l.b16 %v253
    %v538 = vunpack.c.h.b16 %v253
    %v539 = vunpack.c.l.b16 %v254
    %v540 = vunpack.c.h.b16 %v254
    %v541 = vunpack.c.l.b16 %v255
    %v542 = vunpack.c.h.b16 %v255
    %v543 = vunpack.c.l.b16 %v256
    %v544 = vunpack.c.l.b16 %v257
    %v545 = vunpack.c.h.b16 %v257
    %v546 = vunpack.c.l.b16 %v258
    %v547 = vunpack.c.h.b16 %v258
    %v548 = vunpack.c.l.b16 %v259
    %v549 = vunpack.c.h.b16 %v259
    %v550 = vunpack.c.l.b16 %v260
    %v551 = vunpack.c.l.b16 %v261
    %v552 = vunpack.c.h.b16 %v261
    %v553 = vunpack.c.l.b16 %v262
    %v554 = vunpack.c.h.b16 %v262
    %v555 = vunpack.c.l.b16 %v263
    %v556 = vunpack.c.h.b16 %v263
    %v557 = vunpack.c.l.b16 %v264
    %v558 = vunpack.c.l.b16 %v265
    %v559 = vunpack.c.h.b16 %v265
    %v560 = vunpack.c.l.b16 %v266
    %v561 = vunpack.c.h.b16 %v266
    %v562 = vunpack.c.l.b16 %v267
    %v563 = vunpack.c.h.b16 %v267
    %v564 = vunpack.c.l.b16 %v268
    %v565 = vunpack.c.l.b16 %v269
    %v566 = vunpack.c.h.b16 %v269
    %v567 = vunpack.c.l.b16 %v270
    %v568 = vunpack.c.h.b16 %v270
    %v569 = vunpack.c.l.b16 %v271
    %v570 = vunpack.c.h.b16 %v271
    %v571 = vunpack.c.l.b16 %v272
    %v572 = vunpack.c.l.b16 %v273
    %v573 = vunpack.c.h.b16 %v273
    %v574 = vunpack.c.l.b16 %v274
    %v575 = vunpack.c.h.b16 %v274
    %v576 = vunpack.c.l.b16 %v275
    %v577 = vunpack.c.h.b16 %v275
    %v578 = vunpack.c.l.b16 %v276
    %v579 = vunpack.c.l.b16 %v277
    %v580 = vunpack.c.h.b16 %v277
    %v581 = vunpack.c.l.b16 %v278
    %v582 = vunpack.c.h.b16 %v278
    %v583 = vunpack.c.l.b16 %v279
    %v584 = vunpack.c.h.b16 %v279
    %v585 = vunpack.c.l.b16 %v280
    %v586 = vunpack.c.l.b16 %v281
    %v587 = vunpack.c.h.b16 %v281
    %v588 = vunpack.c.l.b16 %v282
    %v589 = vunpack.c.h.b16 %v282
    %v590 = vunpack.c.l.b16 %v283
    %v591 = vunpack.c.h.b16 %v283
    %v592 = vunpack.c.l.b16 %v284
    %v593 = vunpack.c.l.b16 %v285
    %v594 = vunpack.c.h.b16 %v285
    %v595 = vunpack.c.l.b16 %v286
    %v596 = vunpack.c.h.b16 %v286
    %v597 = vunpack.c.l.b16 %v287
    %v598 = vunpack.c.h.b16 %v287
    %v599 = vunpack.c.l.b16 %v288
    %v600 = vunpack.c.l.b16 %v289
    %v601 = vunpack.c.h.b16 %v289
    %v602 = vunpack.c.l.b16 %v290
    %v603 = vunpack.c.h.b16 %v290
    %v604 = vunpack.c.l.b16 %v291
    %v605 = vunpack.c.h.b16 %v291
    %v606 = vunpack.c.l.b16 %v292
    %v607 = vunpack.c.l.b16 %v293
    %v608 = vunpack.c.h.b16 %v293
    %v609 = vunpack.c.l.b16 %v294
    %v610 = vunpack.c.h.b16 %v294
    %v611 = vunpack.c.l.b16 %v295
    %v612 = vunpack.c.h.b16 %v295
    %v613 = vunpack.c.l.b16 %v296
    %v614 = vunpack.c.l.b16 %v297
    %v615 = vunpack.c.h.b16 %v297
    %v616 = vunpack.c.l.b16 %v298
    %v617 = vunpack.c.h.b16 %v298
    %v618 = vunpack.c.l.b16 %v299
    %v619 = vunpack.c.h.b16 %v299
    %v620 = vunpack.c.l.b16 %v300
    %v621 = vunpack.c.l.b16 %v301
    %v622 = vunpack.c.h.b16 %v301
    %v623 = vunpack.c.l.b16 %v302
    %v624 = vunpack.c.h.b16 %v302
    %v625 = vunpack.c.l.b16 %v303
    %v626 = vunpack.c.h.b16 %v303
    %v627 = vunpack.c.l.b16 %v304
    %v628 = vunpack.c.l.b16 %v305
    %v629 = vunpack.c.h.b16 %v305
    %v630 = vunpack.c.l.b16 %v306
    %v631 = vunpack.c.h.b16 %v306
    %v632 = vunpack.c.l.b16 %v307
    %v633 = vunpack.c.h.b16 %v307
    %v634 = vunpack.c.l.b16 %v308
    %v635 = vunpack.c.l.b16 %v309
    %v636 = vunpack.c.h.b16 %v309
    %v637 = vunpack.c.l.b16 %v310
    %v638 = vunpack.c.h.b16 %v310
    %v639 = vunpack.c.l.b16 %v311
    %v640 = vunpack.c.h.b16 %v311
    %v641 = vunpack.c.l.b16 %v312
    %v642 = vunpack.c.l.b16 %v313
    %v643 = vunpack.c.h.b16 %v313
    %v644 = vunpack.c.l.b16 %v314
    %v645 = vunpack.c.h.b16 %v314
    %v646 = vunpack.c.l.b16 %v315
    %v647 = vunpack.c.h.b16 %v315
    %v648 = vunpack.c.l.b16 %v316
    %v649 = vunpack.c.l.b16 %v317
    %v650 = vunpack.c.h.b16 %v317
    %v651 = vunpack.c.l.b16 %v318
    %v652 = vunpack.c.h.b16 %v318
    %v653 = vunpack.c.l.b16 %v319
    %v654 = vunpack.c.h.b16 %v319
    %v655 = vunpack.c.l.b16 %v320
    %v656 = vunpack.c.l.b16 %v321
    %v657 = vunpack.c.h.b16 %v321
    %v658 = vunpack.c.l.b16 %v322
    %v659 = vunpack.c.h.b16 %v322
    %v660 = vunpack.c.l.b16 %v323
    %v661 = vunpack.c.h.b16 %v323
    %v662 = vunpack.c.l.b16 %v324
    %v663 = vunpack.c.l.b16 %v325
    %v664 = vunpack.c.h.b16 %v325
    %v665 = vunpack.c.l.b16 %v326
    %v666 = vunpack.c.h.b16 %v326
    %v667 = vunpack.c.l.b16 %v327
    %v668 = vunpack.c.h.b16 %v327
    %v669 = vunpack.c.l.b16 %v328
    %v670 = vunpack.c.l.b16 %v329
    %v671 = vunpack.c.h.b16 %v329
    %v672 = vunpack.c.l.b16 %v330
    %v673 = vunpack.c.h.b16 %v330
    %v674 = vunpack.c.l.b16 %v331
    %v675 = vunpack.c.h.b16 %v331
    %v676 = vunpack.c.l.b16 %v332
    %v677 = vunpack.c.l.b16 %v333
    %v678 = vunpack.c.h.b16 %v333
    %v679 = vunpack.c.l.b16 %v334
    %v680 = vunpack.c.h.b16 %v334
    %v681 = vunpack.c.l.b16 %v335
    %v682 = vunpack.c.h.b16 %v335
    %v683 = vunpack.c.l.b16 %v336
    %v684 = vunpack.c.l.b16 %v337
    %v685 = vunpack.c.h.b16 %v337
    %v686 = vunpack.c.l.b16 %v338
    %v687 = vunpack.c.h.b16 %v338
    %v688 = vunpack.c.l.b16 %v339
    %v689 = vunpack.c.h.b16 %v339
    %v690 = vunpack.c.l.b16 %v340
    %v691 = vunpack.c.l.b16 %v341
    %v692 = vunpack.c.h.b16 %v341
    %v693 = vunpack.c.l.b16 %v342
    %v694 = vunpack.c.h.b16 %v342
    %v695 = vunpack.c.l.b16 %v343
    %v696 = vunpack.c.h.b16 %v343
    %v697 = vunpack.c.l.b16 %v344
    %v698 = vunpack.c.l.b16 %v345
    %v699 = vunpack.c.h.b16 %v345
    %v700 = vunpack.c.l.b16 %v346
    %v701 = vunpack.c.h.b16 %v346
    %v702 = vunpack.c.l.b16 %v347
    %v703 = vunpack.c.h.b16 %v347
    %v704 = vunpack.c.l.b16 %v348
    %v705 = vunpack.c.l.b16 %v349
    %v706 = vunpack.c.h.b16 %v349
    %v707 = vunpack.c.l.b16 %v350
    %v708 = vunpack.c.h.b16 %v350
    %v709 = vunpack.c.l.b16 %v351
    %v710 = vunpack.c.h.b16 %v351
    %v711 = vunpack.c.l.b16 %v352
    %v712 = vunpack.c.l.b16 %v353
    %v713 = vunpack.c.h.b16 %v353
    %v714 = vunpack.c.l.b16 %v354
    %v715 = vunpack.c.h.b16 %v354
    %v716 = vunpack.c.l.b16 %v355
    %v717 = vunpack.c.h.b16 %v355
    %v718 = vunpack.c.l.b16 %v356
    %v719 = vunpack.c.l.b16 %v357
    %v720 = vunpack.c.h.b16 %v357
    %v721 = vunpack.c.l.b16 %v358
    %v722 = vunpack.c.h.b16 %v358
    %v723 = vunpack.c.l.b16 %v359
    %v724 = vunpack.c.h.b16 %v359
    %v725 = vunpack.c.l.b16 %v360
    %v726 = vunpack.c.l.b16 %v361
    %v727 = vunpack.c.h.b16 %v361
    %v728 = vunpack.c.l.b16 %v362
    %v729 = vunpack.c.h.b16 %v362
    %v730 = vunpack.c.l.b16 %v363
    %v731 = vunpack.c.h.b16 %v363
    %v732 = vunpack.c.l.b16 %v364
    %v733 = vunpack.c.l.b16 %v365
    %v734 = vunpack.c.h.b16 %v365
    %v735 = vunpack.c.l.b16 %v366
    %v736 = vunpack.c.h.b16 %v366
    %v737 = vunpack.c.l.b16 %v367
    %v738 = vunpack.c.h.b16 %v367
    %v739 = vunpack.c.l.b16 %v368
    %v740 = vunpack.c.l.b16 %v369
    %v741 = vunpack.c.h.b16 %v369
    %v742 = vunpack.c.l.b16 %v370
    %v743 = vunpack.c.h.b16 %v370
    %v744 = vunpack.c.l.b16 %v371
    %v745 = vunpack.c.h.b16 %v371
    %v746 = vunpack.c.l.b16 %v372
    %v747 = vunpack.c.l.b16 %v373
    %v748 = vunpack.c.h.b16 %v373
    %v749 = vunpack.c.l.b16 %v374
    %v750 = vunpack.c.h.b16 %v374
    %v751 = vunpack.c.l.b16 %v375
    %v752 = vunpack.c.h.b16 %v375
    %v753 = vunpack.c.l.b16 %v376
    %v754 = vunpack.c.l.b16 %v377
    %v755 = vunpack.c.h.b16 %v377
    %v756 = vunpack.c.l.b16 %v378
    %v757 = vunpack.c.h.b16 %v378
    %v758 = vunpack.c.l.b16 %v379
    %v759 = vunpack.c.h.b16 %v379
    %v760 = vunpack.c.l.b16 %v380
    %v761 = vpack.c.b16 %v544, %v537
    %v762 = vpack.c.b16 %v545, %v538
    %v763 = vpack.c.b16 %v546, %v539
    %v764 = vpack.c.b16 %v547, %v540
    %v765 = vpack.c.b16 %v548, %v541
    %v766 = vpack.c.b16 %v549, %v542
    %v767 = vpack.c.b16 %v550, %v543
    %v768 = vpack.c.b16 %v558, %v551
    %v769 = vpack.c.b16 %v559, %v552
    %v770 = vpack.c.b16 %v560, %v553
    %v771 = vpack.c.b16 %v561, %v554
    %v772 = vpack.c.b16 %v562, %v555
    %v773 = vpack.c.b16 %v563, %v556
    %v774 = vpack.c.b16 %v564, %v557
    %v775 = vpack.c.b16 %v572, %v565
    %v776 = vpack.c.b16 %v573, %v566
    %v777 = vpack.c.b16 %v574, %v567
    %v778 = vpack.c.b16 %v575, %v568
    %v779 = vpack.c.b16 %v576, %v569
    %v780 = vpack.c.b16 %v577, %v570
    %v781 = vpack.c.b16 %v578, %v571
    %v782 = vpack.c.b16 %v586, %v579
    %v783 = vpack.c.b16 %v587, %v580
    %v784 = vpack.c.b16 %v588, %v581
    %v785 = vpack.c.b16 %v589, %v582
    %v786 = vpack.c.b16 %v590, %v583
    %v787 = vpack.c.b16 %v591, %v584
    %v788 = vpack.c.b16 %v592, %v585
    %v789 = vpack.c.b16 %v600, %v593
    %v790 = vpack.c.b16 %v601, %v594
    %v791 = vpack.c.b16 %v602, %v595
    %v792 = vpack.c.b16 %v603, %v596
    %v793 = vpack.c.b16 %v604, %v597
    %v794 = vpack.c.b16 %v605, %v598
    %v795 = vpack.c.b16 %v606, %v599
    %v796 = vpack.c.b16 %v614, %v607
    %v797 = vpack.c.b16 %v615, %v608
    %v798 = vpack.c.b16 %v616, %v609
    %v799 = vpack.c.b16 %v617, %v610
    %v800 = vpack.c.b16 %v618, %v611
    %v801 = vpack.c.b16 %v619, %v612
    %v802 = vpack.c.b16 %v620, %v613
    %v803 = vpack.c.b16 %v628, %v621
    %v804 = vpack.c.b16 %v629, %v622
    %v805 = vpack.c.b16 %v630, %v623
    %v806 = vpack.c.b16 %v631, %v624
    %v807 = vpack.c.b16 %v632, %v625
    %v808 = vpack.c.b16 %v633, %v626
    %v809 = vpack.c.b16 %v634, %v627
    %v810 = vpack.c.b16 %v642, %v635
    %v811 = vpack.c.b16 %v643, %v636
    %v812 = vpack.c.b16 %v644, %v637
    %v813 = vpack.c.b16 %v645, %v638
    %v814 = vpack.c.b16 %v646, %v639
    %v815 = vpack.c.b16 %v647, %v640
    %v816 = vpack.c.b16 %v648, %v641
    %v817 = vpack.c.b16 %v656, %v649
    %v818 = vpack.c.b16 %v657, %v650
    %v819 = vpack.c.b16 %v658, %v651
    %v820 = vpack.c.b16 %v659, %v652
    %v821 = vpack.c.b16 %v660, %v653
    %v822 = vpack.c.b16 %v661, %v654
    %v823 = vpack.c.b16 %v662, %v655
    %v824 = vpack.c.b16 %v670, %v663
    %v825 = vpack.c.b16 %v671, %v664
    %v826 = vpack.c.b16 %v672, %v665
    %v827 = vpack.c.b16 %v673, %v666
    %v828 = vpack.c.b16 %v674, %v667
    %v829 = vpack.c.b16 %v675, %v668
    %v830 = vpack.c.b16 %v676, %v669
    %v831 = vpack.c.b16 %v684, %v677
    %v832 = vpack.c.b16 %v685, %v678
    %v833 = vpack.c.b16 %v686, %v679
    %v834 = vpack.c.b16 %v687, %v680
    %v835 = vpack.c.b16 %v688, %v681
    %v836 = vpack.c.b16 %v689, %v682
    %v837 = vpack.c.b16 %v690, %v683
    %v838 = vpack.c.b16 %v698, %v691
    %v839 = vpack.c.b16 %v699, %v692
    %v840 = vpack.c.b16 %v700, %v693
    %v841 = vpack.c.b16 %v701, %v694
    %v842 = vpack.c.b16 %v702, %v695
    %v843 = vpack.c.b16 %v703, %v696
    %v844 = vpack.c.b16 %v704, %v697
    %v845 = vpack.c.b16 %v712, %v705
    %v846 = vpack.c.b16 %v713, %v706
    %v847 = vpack.c.b16 %v714, %v707
    %v848 = vpack.c.b16 %v715, %v708
    %v849 = vpack.c.b16 %v716, %v709
    %v850 = vpack.c.b16 %v717, %v710
    %v851 = vpack.c.b16 %v718, %v711
    %v852 = vpack.c.b16 %v726, %v719
    %v853 = vpack.c.b16 %v727, %v720
    %v854 = vpack.c.b16 %v728, %v721
    %v855 = vpack.c.b16 %v729, %v722
    %v856 = vpack.c.b16 %v730, %v723
    %v857 = vpack.c.b16 %v731, %v724
    %v858 = vpack.c.b16 %v732, %v725
    %v859 = vpack.c.b16 %v740, %v733
    %v860 = vpack.c.b16 %v741, %v734
    %v861 = vpack.c.b16 %v742, %v735
    %v862 = vpack.c.b16 %v743, %v736
    %v863 = vpack.c.b16 %v744, %v737
    %v864 = vpack.c.b16 %v745, %v738
    %v865 = vpack.c.b16 %v746, %v739
    %v866 = vpack.c.b16 %v754, %v747
    %v867 = vpack.c.b16 %v755, %v748
    %v868 = vpack.c.b16 %v756, %v749
    %v869 = vpack.c.b16 %v757, %v750
    %v870 = vpack.c.b16 %v758, %v751
    %v871 = vpack.c.b16 %v759, %v752
    %v872 = vpack.c.b16 %v760, %v753
    %985 = vmatprep.subr.bf16.mxu0 %v762
    %986 = vmatpush1.bf16.msra.mxu0 %v761
    %987 = vmatprep.subr.bf16.mxu0 %v769
    %988 = vmatpush1.bf16.msra.mxu0 %v768
    %989 = vmatprep.subr.bf16.mxu0 %v776
    %990 = vmatpush1.bf16.msra.mxu0 %v775
    %991 = vmatprep.subr.bf16.mxu0 %v783
    %992 = vmatpush1.bf16.msra.mxu0 %v782
    %993 = vmatprep.subr.bf16.mxu0 %v790
    %994 = vmatpush1.bf16.msra.mxu0 %v789
    %995 = vmatprep.subr.bf16.mxu0 %v797
    %996 = vmatpush1.bf16.msra.mxu0 %v796
    %997 = vmatprep.subr.bf16.mxu0 %v804
    %998 = vmatpush1.bf16.msra.mxu0 %v803
    %999 = vmatprep.subr.bf16.mxu0 %v811
    %1000 = vmatpush1.bf16.msra.mxu0 %v810
    %1001 = vmatprep.subr.bf16.mxu0 %v818
    %1002 = vmatpush1.bf16.msra.mxu0 %v817
    %1003 = vmatprep.subr.bf16.mxu0 %v825
    %1004 = vmatpush1.bf16.msra.mxu0 %v824
    %1005 = vmatprep.subr.bf16.mxu0 %v832
    %1006 = vmatpush1.bf16.msra.mxu0 %v831
    %1007 = vmatprep.subr.bf16.mxu0 %v839
    %1008 = vmatpush1.bf16.msra.mxu0 %v838
    %1009 = vmatprep.subr.bf16.mxu0 %v846
    %1010 = vmatpush1.bf16.msra.mxu0 %v845
    %1011 = vmatprep.subr.bf16.mxu0 %v853
    %1012 = vmatpush1.bf16.msra.mxu0 %v852
    %1013 = vmatprep.subr.bf16.mxu0 %v860
    %1014 = vmatpush1.bf16.msra.mxu0 %v859
    %1015 = vmatprep.subr.bf16.mxu0 %v867
    %1016 = vmatpush1.bf16.msra.mxu0 %v866
    %1017 = vmatprep.mubr.bf16.mxu0 %v252
    %1018 = vmatmul.mubr.bf16.gmra.mrb[0].mxu0 %v251
    %v1019 = vpop.f32.mrb[0].mxu0
    %v1020 = vadd.f32 %v384, %v1019
    %v1021 = vpop.f32.mrb[0].mxu0
    %v1022 = vadd.f32 %v388, %v1021
    %v1023 = vpop.f32.mrb[0].mxu0
    %v1024 = vpop.f32.mrb[0].mxu0
    %1025 = vdwg.mxu0
    %1026 = vmatprep.subr.bf16.mxu0 %v764
    %1027 = vmatpush1.bf16.msra.mxu0 %v763
    %1028 = vmatprep.subr.bf16.mxu0 %v771
    %1029 = vmatpush1.bf16.msra.mxu0 %v770
    %1030 = vmatprep.subr.bf16.mxu0 %v778
    %1031 = vmatpush1.bf16.msra.mxu0 %v777
    %1032 = vmatprep.subr.bf16.mxu0 %v785
    %1033 = vmatpush1.bf16.msra.mxu0 %v784
    %1034 = vmatprep.subr.bf16.mxu0 %v792
    %1035 = vmatpush1.bf16.msra.mxu0 %v791
    %1036 = vmatprep.subr.bf16.mxu0 %v799
    %1037 = vmatpush1.bf16.msra.mxu0 %v798
    %1038 = vmatprep.subr.bf16.mxu0 %v806
    %1039 = vmatpush1.bf16.msra.mxu0 %v805
    %1040 = vmatprep.subr.bf16.mxu0 %v813
    %1041 = vmatpush1.bf16.msra.mxu0 %v812
    %1042 = vmatprep.subr.bf16.mxu0 %v820
    %1043 = vmatpush1.bf16.msra.mxu0 %v819
    %1044 = vmatprep.subr.bf16.mxu0 %v827
    %1045 = vmatpush1.bf16.msra.mxu0 %v826
    %1046 = vmatprep.subr.bf16.mxu0 %v834
    %1047 = vmatpush1.bf16.msra.mxu0 %v833
    %1048 = vmatprep.subr.bf16.mxu0 %v841
    %1049 = vmatpush1.bf16.msra.mxu0 %v840
    %1050 = vmatprep.subr.bf16.mxu0 %v848
    %1051 = vmatpush1.bf16.msra.mxu0 %v847
    %1052 = vmatprep.subr.bf16.mxu0 %v855
    %1053 = vmatpush1.bf16.msra.mxu0 %v854
    %1054 = vmatprep.subr.bf16.mxu0 %v862
    %1055 = vmatpush1.bf16.msra.mxu0 %v861
    %1056 = vmatprep.subr.bf16.mxu0 %v869
    %1057 = vmatpush1.bf16.msra.mxu0 %v868
    %1058 = vmatprep.mubr.bf16.mxu0 %v252
    %1059 = vmatmul.mubr.bf16.gmra.mrb[0].mxu0 %v251
    %v1060 = vpop.f32.mrb[0].mxu0
    %v1061 = vadd.f32 %v392, %v1060
    %v1062 = vpop.f32.mrb[0].mxu0
    %v1063 = vadd.f32 %v396, %v1062
    %v1064 = vpop.f32.mrb[0].mxu0
    %v1065 = vpop.f32.mrb[0].mxu0
    %1066 = vdwg.mxu0
    %1067 = vmatprep.subr.bf16.mxu0 %v766
    %1068 = vmatpush1.bf16.msra.mxu0 %v765
    %1069 = vmatprep.subr.bf16.mxu0 %v773
    %1070 = vmatpush1.bf16.msra.mxu0 %v772
    %1071 = vmatprep.subr.bf16.mxu0 %v780
    %1072 = vmatpush1.bf16.msra.mxu0 %v779
    %1073 = vmatprep.subr.bf16.mxu0 %v787
    %1074 = vmatpush1.bf16.msra.mxu0 %v786
    %1075 = vmatprep.subr.bf16.mxu0 %v794
    %1076 = vmatpush1.bf16.msra.mxu0 %v793
    %1077 = vmatprep.subr.bf16.mxu0 %v801
    %1078 = vmatpush1.bf16.msra.mxu0 %v800
    %1079 = vmatprep.subr.bf16.mxu0 %v808
    %1080 = vmatpush1.bf16.msra.mxu0 %v807
    %1081 = vmatprep.subr.bf16.mxu0 %v815
    %1082 = vmatpush1.bf16.msra.mxu0 %v814
    %1083 = vmatprep.subr.bf16.mxu0 %v822
    %1084 = vmatpush1.bf16.msra.mxu0 %v821
    %1085 = vmatprep.subr.bf16.mxu0 %v829
    %1086 = vmatpush1.bf16.msra.mxu0 %v828
    %1087 = vmatprep.subr.bf16.mxu0 %v836
    %1088 = vmatpush1.bf16.msra.mxu0 %v835
    %1089 = vmatprep.subr.bf16.mxu0 %v843
    %1090 = vmatpush1.bf16.msra.mxu0 %v842
    %1091 = vmatprep.subr.bf16.mxu0 %v850
    %1092 = vmatpush1.bf16.msra.mxu0 %v849
    %1093 = vmatprep.subr.bf16.mxu0 %v857
    %1094 = vmatpush1.bf16.msra.mxu0 %v856
    %1095 = vmatprep.subr.bf16.mxu0 %v864
    %1096 = vmatpush1.bf16.msra.mxu0 %v863
    %1097 = vmatprep.subr.bf16.mxu0 %v871
    %1098 = vmatpush1.bf16.msra.mxu0 %v870
    %1099 = vmatprep.mubr.bf16.mxu0 %v252
    %1100 = vmatmul.mubr.bf16.gmra.mrb[0].mxu0 %v251
    %v1101 = vpop.f32.mrb[0].mxu0
    %v1102 = vadd.f32 %v400, %v1101
    %v1103 = vpop.f32.mrb[0].mxu0
    %v1104 = vadd.f32 %v404, %v1103
    %v1105 = vpop.f32.mrb[0].mxu0
    %v1106 = vpop.f32.mrb[0].mxu0
    %1107 = vdwg.mxu0
    %1108 = vmatprep.subr.bf16.mxu0 0
    %1109 = vmatpush1.bf16.msra.mxu0 %v767
    %1110 = vmatprep.subr.bf16.mxu0 0
    %1111 = vmatpush1.bf16.msra.mxu0 %v774
    %1112 = vmatprep.subr.bf16.mxu0 0
    %1113 = vmatpush1.bf16.msra.mxu0 %v781
    %1114 = vmatprep.subr.bf16.mxu0 0
    %1115 = vmatpush1.bf16.msra.mxu0 %v788
    %1116 = vmatprep.subr.bf16.mxu0 0
    %1117 = vmatpush1.bf16.msra.mxu0 %v795
    %1118 = vmatprep.subr.bf16.mxu0 0
    %1119 = vmatpush1.bf16.msra.mxu0 %v802
    %1120 = vmatprep.subr.bf16.mxu0 0
    %1121 = vmatpush1.bf16.msra.mxu0 %v809
    %1122 = vmatprep.subr.bf16.mxu0 0
    %1123 = vmatpush1.bf16.msra.mxu0 %v816
    %1124 = vmatprep.subr.bf16.mxu0 0
    %1125 = vmatpush1.bf16.msra.mxu0 %v823
    %1126 = vmatprep.subr.bf16.mxu0 0
    %1127 = vmatpush1.bf16.msra.mxu0 %v830
    %1128 = vmatprep.subr.bf16.mxu0 0
    %1129 = vmatpush1.bf16.msra.mxu0 %v837
    %1130 = vmatprep.subr.bf16.mxu0 0
    %1131 = vmatpush1.bf16.msra.mxu0 %v844
    %1132 = vmatprep.subr.bf16.mxu0 0
    %1133 = vmatpush1.bf16.msra.mxu0 %v851
    %1134 = vmatprep.subr.bf16.mxu0 0
    %1135 = vmatpush1.bf16.msra.mxu0 %v858
    %1136 = vmatprep.subr.bf16.mxu0 0
    %1137 = vmatpush1.bf16.msra.mxu0 %v865
    %1138 = vmatprep.subr.bf16.mxu0 0
    %1139 = vmatpush1.bf16.msra.mxu0 %v872
    %1140 = vmatprep.mubr.bf16.mxu0 %v252
    %1141 = vmatmul.mubr.bf16.gmra.mrb[0].mxu0 %v251
    %v1142 = vpop.f32.mrb[0].mxu0
    %v1143 = vadd.f32 %v408, %v1142
    %v1144 = vpop.f32.mrb[0].mxu0
    %v1145 = vpop.f32.mrb[0].mxu0
    %v1146 = vpop.f32.mrb[0].mxu0
    %1147 = vdwg.mxu0
    %vm1148 = vcmask 1041408
    %v1149 = vsel %vm1148, %v1020, 0.0
    %v1150 = vrot.slane %v1149, 4
    %v1151 = vadd.f32 %v1149, %v1150
    %v1152 = vrot.slane %v1151, 2
    %v1153 = vadd.f32 %v1151, %v1152
    %v1154 = vrot.slane %v1153, 1
    %v1155 = vadd.f32 %v1153, %v1154
    %v1156 = vsel %vm1148, %v1022, 0.0
    %v1157 = vrot.slane %v1156, 4
    %v1158 = vadd.f32 %v1156, %v1157
    %v1159 = vrot.slane %v1158, 2
    %v1160 = vadd.f32 %v1158, %v1159
    %v1161 = vrot.slane %v1160, 1
    %v1162 = vadd.f32 %v1160, %v1161
    %v1163 = vsel %vm1148, %v1061, 0.0
    %v1164 = vrot.slane %v1163, 4
    %v1165 = vadd.f32 %v1163, %v1164
    %v1166 = vrot.slane %v1165, 2
    %v1167 = vadd.f32 %v1165, %v1166
    %v1168 = vrot.slane %v1167, 1
    %v1169 = vadd.f32 %v1167, %v1168
    %v1170 = vsel %vm1148, %v1063, 0.0
    %v1171 = vrot.slane %v1170, 4
    %v1172 = vadd.f32 %v1170, %v1171
    %v1173 = vrot.slane %v1172, 2
    %v1174 = vadd.f32 %v1172, %v1173
    %v1175 = vrot.slane %v1174, 1
    %v1176 = vadd.f32 %v1174, %v1175
    %v1177 = vsel %vm1148, %v1102, 0.0
    %v1178 = vrot.slane %v1177, 4
    %v1179 = vadd.f32 %v1177, %v1178
    %v1180 = vrot.slane %v1179, 2
    %v1181 = vadd.f32 %v1179, %v1180
    %v1182 = vrot.slane %v1181, 1
    %v1183 = vadd.f32 %v1181, %v1182
    %v1184 = vsel %vm1148, %v1104, 0.0
    %v1185 = vrot.slane %v1184, 4
    %v1186 = vadd.f32 %v1184, %v1185
    %v1187 = vrot.slane %v1186, 2
    %v1188 = vadd.f32 %v1186, %v1187
    %v1189 = vrot.slane %v1188, 1
    %v1190 = vadd.f32 %v1188, %v1189
    %vm1191 = vcmask 254976
    %v1192 = vsel %vm1191, %v1143, 0.0
    %v1193 = vrot.slane %v1192, 4
    %v1194 = vadd.f32 %v1192, %v1193
    %v1195 = vrot.slane %v1194, 2
    %v1196 = vadd.f32 %v1194, %v1195
    %v1197 = vrot.slane %v1196, 1
    %v1198 = vadd.f32 %v1196, %v1197
    %v1199 = vrcp.pop 2.0
    %v1200 = vmul.f32 %v1155, %v1199
    %v1201 = vmul.f32 %v1162, %v1199
    %v1202 = vmul.f32 %v1169, %v1199
    %v1203 = vmul.f32 %v1176, %v1199
    %v1204 = vmul.f32 %v1183, %v1199
    %v1205 = vmul.f32 %v1190, %v1199
    %v1206 = vmul.f32 %v1198, %v1199
    %v1207 = vsub.f32 %v1020, %v1200
    %v1208 = vsub.f32 %v1022, %v1201
    %v1209 = vsub.f32 %v1061, %v1202
    %v1210 = vsub.f32 %v1063, %v1203
    %v1211 = vsub.f32 %v1102, %v1204
    %v1212 = vsub.f32 %v1104, %v1205
    %v1213 = vsub.f32 %v1143, %v1206
    %v1214 = vmul.f32 %v1207, %v1207
    %v1215 = vmul.f32 %v1208, %v1208
    %v1216 = vmul.f32 %v1209, %v1209
    %v1217 = vmul.f32 %v1210, %v1210
    %v1218 = vmul.f32 %v1211, %v1211
    %v1219 = vmul.f32 %v1212, %v1212
    %v1220 = vmul.f32 %v1213, %v1213
    %v1221 = vsel %vm1148, %v1214, 0.0
    %v1222 = vrot.slane %v1221, 4
    %v1223 = vadd.f32 %v1221, %v1222
    %v1224 = vrot.slane %v1223, 2
    %v1225 = vadd.f32 %v1223, %v1224
    %v1226 = vrot.slane %v1225, 1
    %v1227 = vadd.f32 %v1225, %v1226
    %v1228 = vsel %vm1148, %v1215, 0.0
    %v1229 = vrot.slane %v1228, 4
    %v1230 = vadd.f32 %v1228, %v1229
    %v1231 = vrot.slane %v1230, 2
    %v1232 = vadd.f32 %v1230, %v1231
    %v1233 = vrot.slane %v1232, 1
    %v1234 = vadd.f32 %v1232, %v1233
    %v1235 = vsel %vm1148, %v1216, 0.0
    %v1236 = vrot.slane %v1235, 4
    %v1237 = vadd.f32 %v1235, %v1236
    %v1238 = vrot.slane %v1237, 2
    %v1239 = vadd.f32 %v1237, %v1238
    %v1240 = vrot.slane %v1239, 1
    %v1241 = vadd.f32 %v1239, %v1240
    %v1242 = vsel %vm1148, %v1217, 0.0
    %v1243 = vrot.slane %v1242, 4
    %v1244 = vadd.f32 %v1242, %v1243
    %v1245 = vrot.slane %v1244, 2
    %v1246 = vadd.f32 %v1244, %v1245
    %v1247 = vrot.slane %v1246, 1
    %v1248 = vadd.f32 %v1246, %v1247
    %v1249 = vsel %vm1148, %v1218, 0.0
    %v1250 = vrot.slane %v1249, 4
    %v1251 = vadd.f32 %v1249, %v1250
    %v1252 = vrot.slane %v1251, 2
    %v1253 = vadd.f32 %v1251, %v1252
    %v1254 = vrot.slane %v1253, 1
    %v1255 = vadd.f32 %v1253, %v1254
    %v1256 = vsel %vm1148, %v1219, 0.0
    %v1257 = vrot.slane %v1256, 4
    %v1258 = vadd.f32 %v1256, %v1257
    %v1259 = vrot.slane %v1258, 2
    %v1260 = vadd.f32 %v1258, %v1259
    %v1261 = vrot.slane %v1260, 1
    %v1262 = vadd.f32 %v1260, %v1261
    %v1263 = vsel %vm1191, %v1220, 0.0
    %v1264 = vrot.slane %v1263, 4
    %v1265 = vadd.f32 %v1263, %v1264
    %v1266 = vrot.slane %v1265, 2
    %v1267 = vadd.f32 %v1265, %v1266
    %v1268 = vrot.slane %v1267, 1
    %v1269 = vadd.f32 %v1267, %v1268
    %v1270 = vmul.f32 %v1227, %v1199
    %v1271 = vmul.f32 %v1234, %v1199
    %v1272 = vmul.f32 %v1241, %v1199
    %v1273 = vmul.f32 %v1248, %v1199
    %v1274 = vmul.f32 %v1255, %v1199
    %v1275 = vmul.f32 %v1262, %v1199
    %v1276 = vmul.f32 %v1269, %v1199
    %v1277 = vadd.f32 %v1270, 1e-05
    %v1278 = vadd.f32 %v1271, 1e-05
    %v1279 = vadd.f32 %v1272, 1e-05
    %v1280 = vadd.f32 %v1273, 1e-05
    %v1281 = vadd.f32 %v1274, 1e-05
    %v1282 = vadd.f32 %v1275, 1e-05
    %v1283 = vadd.f32 %v1276, 1e-05
    %v1284 = vrsqrt.pop %v1277
    %v1285 = vrsqrt.pop %v1278
    %v1286 = vrsqrt.pop %v1279
    %v1287 = vrsqrt.pop %v1280
    %v1288 = vrsqrt.pop %v1281
    %v1289 = vrsqrt.pop %v1282
    %v1290 = vrsqrt.pop %v1283
    %v1291 = vmul.f32 %v1207, %v1284
    %v1292 = vmul.f32 %v1208, %v1285
    %v1293 = vmul.f32 %v1209, %v1286
    %v1294 = vmul.f32 %v1210, %v1287
    %v1295 = vmul.f32 %v1211, %v1288
    %v1296 = vmul.f32 %v1212, %v1289
    %v1297 = vmul.f32 %v1213, %v1290
    %v1298 = vlaneseq
    %v1299 = vshrl.u32 %v1298, 7
    %v1300 = vsub.s32 1, %v1299
    %v1301 = vrot.slane %v232, %v1300
    %v1302 = vlaneseq
    %v1303 = vshrl.u32 %v1302, 7
    %v1304 = vsub.s32 1, %v1303
    %v1305 = vrot.slane %v233, %v1304
    %v1306 = vlaneseq
    %v1307 = vshrl.u32 %v1306, 7
    %v1308 = vsub.s32 1, %v1307
    %v1309 = vrot.slane %v234, %v1308
    %v1310 = vlaneseq
    %v1311 = vshrl.u32 %v1310, 7
    %v1312 = vsub.s32 1, %v1311
    %v1313 = vrot.slane %v235, %v1312
    %v1314 = vlaneseq
    %v1315 = vshrl.u32 %v1314, 7
    %v1316 = vsub.s32 1, %v1315
    %v1317 = vrot.slane %v236, %v1316
    %v1318 = vlaneseq
    %v1319 = vshrl.u32 %v1318, 7
    %v1320 = vsub.s32 1, %v1319
    %v1321 = vrot.slane %v237, %v1320
    %v1322 = vlaneseq
    %v1323 = vshrl.u32 %v1322, 7
    %v1324 = vsub.s32 1, %v1323
    %v1325 = vrot.slane %v238, %v1324
    %v1326 = vmul.f32 %v1301, %v1291
    %v1327 = vmul.f32 %v1305, %v1292
    %v1328 = vmul.f32 %v1309, %v1293
    %v1329 = vmul.f32 %v1313, %v1294
    %v1330 = vmul.f32 %v1317, %v1295
    %v1331 = vmul.f32 %v1321, %v1296
    %v1332 = vmul.f32 %v1325, %v1297
    %v1333 = vlaneseq
    %v1334 = vshrl.u32 %v1333, 7
    %v1335 = vsub.s32 2, %v1334
    %v1336 = vrot.slane %v232, %v1335
    %v1337 = vlaneseq
    %v1338 = vshrl.u32 %v1337, 7
    %v1339 = vsub.s32 2, %v1338
    %v1340 = vrot.slane %v233, %v1339
    %v1341 = vlaneseq
    %v1342 = vshrl.u32 %v1341, 7
    %v1343 = vsub.s32 2, %v1342
    %v1344 = vrot.slane %v234, %v1343
    %v1345 = vlaneseq
    %v1346 = vshrl.u32 %v1345, 7
    %v1347 = vsub.s32 2, %v1346
    %v1348 = vrot.slane %v235, %v1347
    %v1349 = vlaneseq
    %v1350 = vshrl.u32 %v1349, 7
    %v1351 = vsub.s32 2, %v1350
    %v1352 = vrot.slane %v236, %v1351
    %v1353 = vlaneseq
    %v1354 = vshrl.u32 %v1353, 7
    %v1355 = vsub.s32 2, %v1354
    %v1356 = vrot.slane %v237, %v1355
    %v1357 = vlaneseq
    %v1358 = vshrl.u32 %v1357, 7
    %v1359 = vsub.s32 2, %v1358
    %v1360 = vrot.slane %v238, %v1359
    %v1361 = vadd.f32 %v1326, %v1336
    %v1362 = vadd.f32 %v1327, %v1340
    %v1363 = vadd.f32 %v1328, %v1344
    %v1364 = vadd.f32 %v1329, %v1348
    %v1365 = vadd.f32 %v1330, %v1352
    %v1366 = vadd.f32 %v1331, %v1356
    %v1367 = vadd.f32 %v1332, %v1360
    %v1368 = vmax.f32 %v1361, 0.0
    %v1369 = vmax.f32 %v1362, 0.0
    %v1370 = vmax.f32 %v1363, 0.0
    %v1371 = vmax.f32 %v1364, 0.0
    %v1372 = vmax.f32 %v1365, 0.0
    %v1373 = vmax.f32 %v1366, 0.0
    %v1374 = vmax.f32 %v1367, 0.0
    %v1375 = vpack.c.bf16 %v1368, %v1368
    %v1376 = vpack.c.bf16 %v1369, %v1369
    %v1377 = vpack.c.bf16 %v1370, %v1370
    %v1378 = vpack.c.bf16 %v1371, %v1371
    %v1379 = vpack.c.bf16 %v1372, %v1372
    %v1380 = vpack.c.bf16 %v1373, %v1373
    %v1381 = vpack.c.bf16 %v1374, %v1374
    %v1382 = vld [vmem:[%s4] sm:$0xff]
    %v1383 = vld [vmem:[%s4 + $0x8] sm:$0xff]
    %v1384 = vld [vmem:[%s4 + $0x10] sm:$0xff]
    %v1385 = vld [vmem:[%s4 + $0x18] sm:$0xf]
    %v1386 = vld [vmem:[%s4 + $0x1c] sm:$0xff]
    %v1387 = vld [vmem:[%s4 + $0x24] sm:$0xff]
    %v1388 = vld [vmem:[%s4 + $0x2c] sm:$0xff]
    %v1389 = vld [vmem:[%s4 + $0x34] sm:$0xf]
    %v1390 = vld [vmem:[%s4 + $0x38] sm:$0xff]
    %v1391 = vld [vmem:[%s4 + $0x40] sm:$0xff]
    %v1392 = vld [vmem:[%s4 + $0x48] sm:$0xff]
    %v1393 = vld [vmem:[%s4 + $0x50] sm:$0xf]
    %v1394 = vld [vmem:[%s4 + $0x54] sm:$0xff]
    %v1395 = vld [vmem:[%s4 + $0x5c] sm:$0xff]
    %v1396 = vld [vmem:[%s4 + $0x64] sm:$0xff]
    %v1397 = vld [vmem:[%s4 + $0x6c] sm:$0xf]
    %v1398 = vld [vmem:[%s4 + $0x70] sm:$0xff]
    %v1399 = vld [vmem:[%s4 + $0x78] sm:$0xff]
    %v1400 = vld [vmem:[%s4 + $0x80] sm:$0xff]
    %v1401 = vld [vmem:[%s4 + $0x88] sm:$0xf]
    %v1402 = vld [vmem:[%s4 + $0x8c] sm:$0xff]
    %v1403 = vld [vmem:[%s4 + $0x94] sm:$0xff]
    %v1404 = vld [vmem:[%s4 + $0x9c] sm:$0xff]
    %v1405 = vld [vmem:[%s4 + $0xa4] sm:$0xf]
    %v1406 = vld [vmem:[%s4 + $0xa8] sm:$0xff]
    %v1407 = vld [vmem:[%s4 + $0xb0] sm:$0xff]
    %v1408 = vld [vmem:[%s4 + $0xb8] sm:$0xff]
    %v1409 = vld [vmem:[%s4 + $0xc0] sm:$0xf]
    %v1410 = vld [vmem:[%s4 + $0xc4] sm:$0xff]
    %v1411 = vld [vmem:[%s4 + $0xcc] sm:$0xff]
    %v1412 = vld [vmem:[%s4 + $0xd4] sm:$0xff]
    %v1413 = vld [vmem:[%s4 + $0xdc] sm:$0xf]
    %v1414 = vld [vmem:[%s4 + $0xe0] sm:$0xff]
    %v1415 = vld [vmem:[%s4 + $0xe8] sm:$0xff]
    %v1416 = vld [vmem:[%s4 + $0xf0] sm:$0xff]
    %v1417 = vld [vmem:[%s4 + $0xf8] sm:$0xf]
    %v1418 = vld [vmem:[%s4 + $0xfc] sm:$0xff]
    %v1419 = vld [vmem:[%s4 + $0x104] sm:$0xff]
    %v1420 = vld [vmem:[%s4 + $0x10c] sm:$0xff]
    %v1421 = vld [vmem:[%s4 + $0x114] sm:$0xf]
    %v1422 = vld [vmem:[%s4 + $0x118] sm:$0xff]
    %v1423 = vld [vmem:[%s4 + $0x120] sm:$0xff]
    %v1424 = vld [vmem:[%s4 + $0x128] sm:$0xff]
    %v1425 = vld [vmem:[%s4 + $0x130] sm:$0xf]
    %v1426 = vld [vmem:[%s4 + $0x134] sm:$0xff]
    %v1427 = vld [vmem:[%s4 + $0x13c] sm:$0xff]
    %v1428 = vld [vmem:[%s4 + $0x144] sm:$0xff]
    %v1429 = vld [vmem:[%s4 + $0x14c] sm:$0xf]
    %v1430 = vld [vmem:[%s4 + $0x150] sm:$0xff]
    %v1431 = vld [vmem:[%s4 + $0x158] sm:$0xff]
    %v1432 = vld [vmem:[%s4 + $0x160] sm:$0xff]
    %v1433 = vld [vmem:[%s4 + $0x168] sm:$0xf]
    %v1434 = vld [vmem:[%s4 + $0x16c] sm:$0xff]
    %v1435 = vld [vmem:[%s4 + $0x174] sm:$0xff]
    %v1436 = vld [vmem:[%s4 + $0x17c] sm:$0xff]
    %v1437 = vld [vmem:[%s4 + $0x184] sm:$0xf]
    %v1438 = vld [vmem:[%s4 + $0x188] sm:$0xff]
    %v1439 = vld [vmem:[%s4 + $0x190] sm:$0xff]
    %v1440 = vld [vmem:[%s4 + $0x198] sm:$0xff]
    %v1441 = vld [vmem:[%s4 + $0x1a0] sm:$0xf]
    %v1442 = vld [vmem:[%s4 + $0x1a4] sm:$0xff]
    %v1443 = vld [vmem:[%s4 + $0x1ac] sm:$0xff]
    %v1444 = vld [vmem:[%s4 + $0x1b4] sm:$0xff]
    %v1445 = vld [vmem:[%s4 + $0x1bc] sm:$0xf]
    %v1446 = vld [vmem:[%s4 + $0x1c0] sm:$0xff]
    %v1447 = vld [vmem:[%s4 + $0x1c8] sm:$0xff]
    %v1448 = vld [vmem:[%s4 + $0x1d0] sm:$0xff]
    %v1449 = vld [vmem:[%s4 + $0x1d8] sm:$0xf]
    %v1450 = vld [vmem:[%s4 + $0x1dc] sm:$0xff]
    %v1451 = vld [vmem:[%s4 + $0x1e4] sm:$0xff]
    %v1452 = vld [vmem:[%s4 + $0x1ec] sm:$0xff]
    %v1453 = vld [vmem:[%s4 + $0x1f4] sm:$0xf]
    %v1454 = vld [vmem:[%s4 + $0x1f8] sm:$0xff]
    %v1455 = vld [vmem:[%s4 + $0x200] sm:$0xff]
    %v1456 = vld [vmem:[%s4 + $0x208] sm:$0xff]
    %v1457 = vld [vmem:[%s4 + $0x210] sm:$0xf]
    %v1458 = vld [vmem:[%s4 + $0x214] sm:$0xff]
    %v1459 = vld [vmem:[%s4 + $0x21c] sm:$0xff]
    %v1460 = vld [vmem:[%s4 + $0x224] sm:$0xff]
    %v1461 = vld [vmem:[%s4 + $0x22c] sm:$0xf]
    %v1462 = vld [vmem:[%s4 + $0x230] sm:$0xff]
    %v1463 = vld [vmem:[%s4 + $0x238] sm:$0xff]
    %v1464 = vld [vmem:[%s4 + $0x240] sm:$0xff]
    %v1465 = vld [vmem:[%s4 + $0x248] sm:$0xf]
    %v1466 = vld [vmem:[%s4 + $0x24c] sm:$0xff]
    %v1467 = vld [vmem:[%s4 + $0x254] sm:$0xff]
    %v1468 = vld [vmem:[%s4 + $0x25c] sm:$0xff]
    %v1469 = vld [vmem:[%s4 + $0x264] sm:$0xf]
    %v1470 = vld [vmem:[%s4 + $0x268] sm:$0xff]
    %v1471 = vld [vmem:[%s4 + $0x270] sm:$0xff]
    %v1472 = vld [vmem:[%s4 + $0x278] sm:$0xff]
    %v1473 = vld [vmem:[%s4 + $0x280] sm:$0xf]
    %v1474 = vld [vmem:[%s4 + $0x284] sm:$0xff]
    %v1475 = vld [vmem:[%s4 + $0x28c] sm:$0xff]
    %v1476 = vld [vmem:[%s4 + $0x294] sm:$0xff]
    %v1477 = vld [vmem:[%s4 + $0x29c] sm:$0xf]
    %v1478 = vld [vmem:[%s4 + $0x2a0] sm:$0xff]
    %v1479 = vld [vmem:[%s4 + $0x2a8] sm:$0xff]
    %v1480 = vld [vmem:[%s4 + $0x2b0] sm:$0xff]
    %v1481 = vld [vmem:[%s4 + $0x2b8] sm:$0xf]
    %v1482 = vld [vmem:[%s4 + $0x2bc] sm:$0xff]
    %v1483 = vld [vmem:[%s4 + $0x2c4] sm:$0xff]
    %v1484 = vld [vmem:[%s4 + $0x2cc] sm:$0xff]
    %v1485 = vld [vmem:[%s4 + $0x2d4] sm:$0xf]
    %v1486 = vld [vmem:[%s4 + $0x2d8] sm:$0xff]
    %v1487 = vld [vmem:[%s4 + $0x2e0] sm:$0xff]
    %v1488 = vld [vmem:[%s4 + $0x2e8] sm:$0xff]
    %v1489 = vld [vmem:[%s4 + $0x2f0] sm:$0xf]
    %v1490 = vld [vmem:[%s4 + $0x2f4] sm:$0xff]
    %v1491 = vld [vmem:[%s4 + $0x2fc] sm:$0xff]
    %v1492 = vld [vmem:[%s4 + $0x304] sm:$0xff]
    %v1493 = vld [vmem:[%s4 + $0x30c] sm:$0xf]
    %v1494 = vld [vmem:[%s4 + $0x310] sm:$0xff]
    %v1495 = vld [vmem:[%s4 + $0x318] sm:$0xff]
    %v1496 = vld [vmem:[%s4 + $0x320] sm:$0xff]
    %v1497 = vld [vmem:[%s4 + $0x328] sm:$0xf]
    %v1498 = vld [vmem:[%s4 + $0x32c] sm:$0xff]
    %v1499 = vld [vmem:[%s4 + $0x334] sm:$0xff]
    %v1500 = vld [vmem:[%s4 + $0x33c] sm:$0xff]
    %v1501 = vld [vmem:[%s4 + $0x344] sm:$0xf]
    %v1502 = vld [vmem:[%s4 + $0x348] sm:$0xff]
    %v1503 = vld [vmem:[%s4 + $0x350] sm:$0xff]
    %v1504 = vld [vmem:[%s4 + $0x358] sm:$0xff]
    %v1505 = vld [vmem:[%s4 + $0x360] sm:$0xf]
    %v1506 = vld [vmem:[%s4 + $0x364] sm:$0xff]
    %v1507 = vld [vmem:[%s4 + $0x36c] sm:$0xff]
    %v1508 = vld [vmem:[%s4 + $0x374] sm:$0xff]
    %v1509 = vld [vmem:[%s4 + $0x37c] sm:$0xf]
    %v1510 = vld [vmem:[%s4 + $0x380] sm:$0xff]
    %v1511 = vld [vmem:[%s4 + $0x388] sm:$0xff]
    %v1512 = vld [vmem:[%s4 + $0x390] sm:$0xff]
    %v1513 = vld [vmem:[%s4 + $0x398] sm:$0xf]
    %v1514 = vld [vmem:[%s4 + $0x39c] sm:$0xff]
    %v1515 = vld [vmem:[%s4 + $0x3a4] sm:$0xff]
    %v1516 = vld [vmem:[%s4 + $0x3ac] sm:$0xff]
    %v1517 = vld [vmem:[%s4 + $0x3b4] sm:$0xf]
    %v1518 = vld [vmem:[%s4 + $0x3b8] sm:$0xff]
    %v1519 = vld [vmem:[%s4 + $0x3c0] sm:$0xff]
    %v1520 = vld [vmem:[%s4 + $0x3c8] sm:$0xff]
    %v1521 = vld [vmem:[%s4 + $0x3d0] sm:$0xf]
    %v1522 = vld [vmem:[%s4 + $0x3d4] sm:$0xff]
    %v1523 = vld [vmem:[%s4 + $0x3dc] sm:$0xff]
    %v1524 = vld [vmem:[%s4 + $0x3e4] sm:$0xff]
    %v1525 = vld [vmem:[%s4 + $0x3ec] sm:$0xf]
    %v1526 = vld [vmem:[%s4 + $0x3f0] sm:$0xff]
    %v1527 = vld [vmem:[%s4 + $0x3f8] sm:$0xff]
    %v1528 = vld [vmem:[%s4 + $0x400] sm:$0xff]
    %v1529 = vld [vmem:[%s4 + $0x408] sm:$0xf]
    %v1530 = vld [vmem:[%s4 + $0x40c] sm:$0xff]
    %v1531 = vld [vmem:[%s4 + $0x414] sm:$0xff]
    %v1532 = vld [vmem:[%s4 + $0x41c] sm:$0xff]
    %v1533 = vld [vmem:[%s4 + $0x424] sm:$0xf]
    %v1534 = vld [vmem:[%s4 + $0x428] sm:$0xff]
    %v1535 = vld [vmem:[%s4 + $0x430] sm:$0xff]
    %v1536 = vld [vmem:[%s4 + $0x438] sm:$0xff]
    %v1537 = vld [vmem:[%s4 + $0x440] sm:$0xf]
    %v1538 = vld [vmem:[%s4 + $0x444] sm:$0xff]
    %v1539 = vld [vmem:[%s4 + $0x44c] sm:$0xff]
    %v1540 = vld [vmem:[%s4 + $0x454] sm:$0xff]
    %v1541 = vld [vmem:[%s4 + $0x45c] sm:$0xf]
    %v1542 = vld [vmem:[%s4 + $0x460] sm:$0xff]
    %v1543 = vld [vmem:[%s4 + $0x468] sm:$0xff]
    %v1544 = vld [vmem:[%s4 + $0x470] sm:$0xff]
    %v1545 = vld [vmem:[%s4 + $0x478] sm:$0xf]
    %v1546 = vld [vmem:[%s4 + $0x47c] sm:$0xff]
    %v1547 = vld [vmem:[%s4 + $0x484] sm:$0xff]
    %v1548 = vld [vmem:[%s4 + $0x48c] sm:$0xff]
    %v1549 = vld [vmem:[%s4 + $0x494] sm:$0xf]
    %v1550 = vld [vmem:[%s4 + $0x498] sm:$0xff]
    %v1551 = vld [vmem:[%s4 + $0x4a0] sm:$0xff]
    %v1552 = vld [vmem:[%s4 + $0x4a8] sm:$0xff]
    %v1553 = vld [vmem:[%s4 + $0x4b0] sm:$0xf]
    %v1554 = vld [vmem:[%s4 + $0x4b4] sm:$0xff]
    %v1555 = vld [vmem:[%s4 + $0x4bc] sm:$0xff]
    %v1556 = vld [vmem:[%s4 + $0x4c4] sm:$0xff]
    %v1557 = vld [vmem:[%s4 + $0x4cc] sm:$0xf]
    %v1558 = vld [vmem:[%s4 + $0x4d0] sm:$0xff]
    %v1559 = vld [vmem:[%s4 + $0x4d8] sm:$0xff]
    %v1560 = vld [vmem:[%s4 + $0x4e0] sm:$0xff]
    %v1561 = vld [vmem:[%s4 + $0x4e8] sm:$0xf]
    %v1562 = vld [vmem:[%s4 + $0x4ec] sm:$0xff]
    %v1563 = vld [vmem:[%s4 + $0x4f4] sm:$0xff]
    %v1564 = vld [vmem:[%s4 + $0x4fc] sm:$0xff]
    %v1565 = vld [vmem:[%s4 + $0x504] sm:$0xf]
    %v1566 = vld [vmem:[%s4 + $0x508] sm:$0xff]
    %v1567 = vld [vmem:[%s4 + $0x510] sm:$0xff]
    %v1568 = vld [vmem:[%s4 + $0x518] sm:$0xff]
    %v1569 = vld [vmem:[%s4 + $0x520] sm:$0xf]
    %v1570 = vld [vmem:[%s4 + $0x524] sm:$0xff]
    %v1571 = vld [vmem:[%s4 + $0x52c] sm:$0xff]
    %v1572 = vld [vmem:[%s4 + $0x534] sm:$0xff]
    %v1573 = vld [vmem:[%s4 + $0x53c] sm:$0xf]
    %v1574 = vld [vmem:[%s4 + $0x540] sm:$0xff]
    %v1575 = vld [vmem:[%s4 + $0x548] sm:$0xff]
    %v1576 = vld [vmem:[%s4 + $0x550] sm:$0xff]
    %v1577 = vld [vmem:[%s4 + $0x558] sm:$0xf]
    %v1578 = vld [vmem:[%s4 + $0x55c] sm:$0xff]
    %v1579 = vld [vmem:[%s4 + $0x564] sm:$0xff]
    %v1580 = vld [vmem:[%s4 + $0x56c] sm:$0xff]
    %v1581 = vld [vmem:[%s4 + $0x574] sm:$0xf]
    %v1582 = vld [vmem:[%s4 + $0x578] sm:$0xff]
    %v1583 = vld [vmem:[%s4 + $0x580] sm:$0xff]
    %v1584 = vld [vmem:[%s4 + $0x588] sm:$0xff]
    %v1585 = vld [vmem:[%s4 + $0x590] sm:$0xf]
    %v1586 = vld [vmem:[%s4 + $0x594] sm:$0xff]
    %v1587 = vld [vmem:[%s4 + $0x59c] sm:$0xff]
    %v1588 = vld [vmem:[%s4 + $0x5a4] sm:$0xff]
    %v1589 = vld [vmem:[%s4 + $0x5ac] sm:$0xf]
    %v1590 = vld [vmem:[%s4 + $0x5b0] sm:$0xff]
    %v1591 = vld [vmem:[%s4 + $0x5b8] sm:$0xff]
    %v1592 = vld [vmem:[%s4 + $0x5c0] sm:$0xff]
    %v1593 = vld [vmem:[%s4 + $0x5c8] sm:$0xf]
    %v1594 = vld [vmem:[%s4 + $0x5cc] sm:$0xff]
    %v1595 = vld [vmem:[%s4 + $0x5d4] sm:$0xff]
    %v1596 = vld [vmem:[%s4 + $0x5dc] sm:$0xff]
    %v1597 = vld [vmem:[%s4 + $0x5e4] sm:$0xf]
    %v1598 = vld [vmem:[%s4 + $0x5e8] sm:$0xff]
    %v1599 = vld [vmem:[%s4 + $0x5f0] sm:$0xff]
    %v1600 = vld [vmem:[%s4 + $0x5f8] sm:$0xff]
    %v1601 = vld [vmem:[%s4 + $0x600] sm:$0xf]
    %v1602 = vld [vmem:[%s4 + $0x604] sm:$0xff]
    %v1603 = vld [vmem:[%s4 + $0x60c] sm:$0xff]
    %v1604 = vld [vmem:[%s4 + $0x614] sm:$0xff]
    %v1605 = vld [vmem:[%s4 + $0x61c] sm:$0xf]
    %v1606 = vld [vmem:[%s4 + $0x620] sm:$0xff]
    %v1607 = vld [vmem:[%s4 + $0x628] sm:$0xff]
    %v1608 = vld [vmem:[%s4 + $0x630] sm:$0xff]
    %v1609 = vld [vmem:[%s4 + $0x638] sm:$0xf]
    %v1610 = vld [vmem:[%s4 + $0x63c] sm:$0xff]
    %v1611 = vld [vmem:[%s4 + $0x644] sm:$0xff]
    %v1612 = vld [vmem:[%s4 + $0x64c] sm:$0xff]
    %v1613 = vld [vmem:[%s4 + $0x654] sm:$0xf]
    %v1614 = vld [vmem:[%s4 + $0x658] sm:$0xff]
    %v1615 = vld [vmem:[%s4 + $0x660] sm:$0xff]
    %v1616 = vld [vmem:[%s4 + $0x668] sm:$0xff]
    %v1617 = vld [vmem:[%s4 + $0x670] sm:$0xf]
    %v1618 = vld [vmem:[%s4 + $0x674] sm:$0xff]
    %v1619 = vld [vmem:[%s4 + $0x67c] sm:$0xff]
    %v1620 = vld [vmem:[%s4 + $0x684] sm:$0xff]
    %v1621 = vld [vmem:[%s4 + $0x68c] sm:$0xf]
    %v1622 = vld [vmem:[%s4 + $0x690] sm:$0xff]
    %v1623 = vld [vmem:[%s4 + $0x698] sm:$0xff]
    %v1624 = vld [vmem:[%s4 + $0x6a0] sm:$0xff]
    %v1625 = vld [vmem:[%s4 + $0x6a8] sm:$0xf]
    %v1626 = vld [vmem:[%s4 + $0x6ac] sm:$0xff]
    %v1627 = vld [vmem:[%s4 + $0x6b4] sm:$0xff]
    %v1628 = vld [vmem:[%s4 + $0x6bc] sm:$0xff]
    %v1629 = vld [vmem:[%s4 + $0x6c4] sm:$0xf]
    %v1630 = vld [vmem:[%s4 + $0x6c8] sm:$0xff]
    %v1631 = vld [vmem:[%s4 + $0x6d0] sm:$0xff]
    %v1632 = vld [vmem:[%s4 + $0x6d8] sm:$0xff]
    %v1633 = vld [vmem:[%s4 + $0x6e0] sm:$0xf]
    %v1634 = vld [vmem:[%s4 + $0x6e4] sm:$0xff]
    %v1635 = vld [vmem:[%s4 + $0x6ec] sm:$0xff]
    %v1636 = vld [vmem:[%s4 + $0x6f4] sm:$0xff]
    %v1637 = vld [vmem:[%s4 + $0x6fc] sm:$0xf]
    %v1638 = vld [vmem:[%s4 + $0x700] sm:$0xff]
    %v1639 = vld [vmem:[%s4 + $0x708] sm:$0xff]
    %v1640 = vld [vmem:[%s4 + $0x710] sm:$0xff]
    %v1641 = vld [vmem:[%s4 + $0x718] sm:$0xf]
    %v1642 = vld [vmem:[%s4 + $0x71c] sm:$0xff]
    %v1643 = vld [vmem:[%s4 + $0x724] sm:$0xff]
    %v1644 = vld [vmem:[%s4 + $0x72c] sm:$0xff]
    %v1645 = vld [vmem:[%s4 + $0x734] sm:$0xf]
    %v1646 = vld [vmem:[%s4 + $0x738] sm:$0xff]
    %v1647 = vld [vmem:[%s4 + $0x740] sm:$0xff]
    %v1648 = vld [vmem:[%s4 + $0x748] sm:$0xff]
    %v1649 = vld [vmem:[%s4 + $0x750] sm:$0xf]
    %v1650 = vld [vmem:[%s4 + $0x754] sm:$0xff]
    %v1651 = vld [vmem:[%s4 + $0x75c] sm:$0xff]
    %v1652 = vld [vmem:[%s4 + $0x764] sm:$0xff]
    %v1653 = vld [vmem:[%s4 + $0x76c] sm:$0xf]
    %v1654 = vld [vmem:[%s4 + $0x770] sm:$0xff]
    %v1655 = vld [vmem:[%s4 + $0x778] sm:$0xff]
    %v1656 = vld [vmem:[%s4 + $0x780] sm:$0xff]
    %v1657 = vld [vmem:[%s4 + $0x788] sm:$0xf]
    %v1658 = vld [vmem:[%s4 + $0x78c] sm:$0xff]
    %v1659 = vld [vmem:[%s4 + $0x794] sm:$0xff]
    %v1660 = vld [vmem:[%s4 + $0x79c] sm:$0xff]
    %v1661 = vld [vmem:[%s4 + $0x7a4] sm:$0xf]
    %v1662 = vld [vmem:[%s4 + $0x7a8] sm:$0xff]
    %v1663 = vld [vmem:[%s4 + $0x7b0] sm:$0xff]
    %v1664 = vld [vmem:[%s4 + $0x7b8] sm:$0xff]
    %v1665 = vld [vmem:[%s4 + $0x7c0] sm:$0xf]
    %v1666 = vld [vmem:[%s4 + $0x7c4] sm:$0xff]
    %v1667 = vld [vmem:[%s4 + $0x7cc] sm:$0xff]
    %v1668 = vld [vmem:[%s4 + $0x7d4] sm:$0xff]
    %v1669 = vld [vmem:[%s4 + $0x7dc] sm:$0xf]
    %v1670 = vld [vmem:[%s4 + $0x7e0] sm:$0xff]
    %v1671 = vld [vmem:[%s4 + $0x7e8] sm:$0xff]
    %v1672 = vld [vmem:[%s4 + $0x7f0] sm:$0xff]
    %v1673 = vld [vmem:[%s4 + $0x7f8] sm:$0xf]
    %v1674 = vld [vmem:[%s4 + $0x7fc] sm:$0xff]
    %v1675 = vld [vmem:[%s4 + $0x804] sm:$0xff]
    %v1676 = vld [vmem:[%s4 + $0x80c] sm:$0xff]
    %v1677 = vld [vmem:[%s4 + $0x814] sm:$0xf]
    %v1678 = vld [vmem:[%s4 + $0x818] sm:$0xff]
    %v1679 = vld [vmem:[%s4 + $0x820] sm:$0xff]
    %v1680 = vld [vmem:[%s4 + $0x828] sm:$0xff]
    %v1681 = vld [vmem:[%s4 + $0x830] sm:$0xf]
    %v1682 = vld [vmem:[%s4 + $0x834] sm:$0xff]
    %v1683 = vld [vmem:[%s4 + $0x83c] sm:$0xff]
    %v1684 = vld [vmem:[%s4 + $0x844] sm:$0xff]
    %v1685 = vld [vmem:[%s4 + $0x84c] sm:$0xf]
    %v1686 = vld [vmem:[%s4 + $0x850] sm:$0xff]
    %v1687 = vld [vmem:[%s4 + $0x858] sm:$0xff]
    %v1688 = vld [vmem:[%s4 + $0x860] sm:$0xff]
    %v1689 = vld [vmem:[%s4 + $0x868] sm:$0xf]
    %v1690 = vld [vmem:[%s4 + $0x86c] sm:$0xff]
    %v1691 = vld [vmem:[%s4 + $0x874] sm:$0xff]
    %v1692 = vld [vmem:[%s4 + $0x87c] sm:$0xff]
    %v1693 = vld [vmem:[%s4 + $0x884] sm:$0xf]
    %v1694 = vld [vmem:[%s4 + $0x888] sm:$0xff]
    %v1695 = vld [vmem:[%s4 + $0x890] sm:$0xff]
    %v1696 = vld [vmem:[%s4 + $0x898] sm:$0xff]
    %v1697 = vld [vmem:[%s4 + $0x8a0] sm:$0xf]
    %v1698 = vld [vmem:[%s4 + $0x8a4] sm:$0xff]
    %v1699 = vld [vmem:[%s4 + $0x8ac] sm:$0xff]
    %v1700 = vld [vmem:[%s4 + $0x8b4] sm:$0xff]
    %v1701 = vld [vmem:[%s4 + $0x8bc] sm:$0xf]
    %v1702 = vld [vmem:[%s4 + $0x8c0] sm:$0xff]
    %v1703 = vld [vmem:[%s4 + $0x8c8] sm:$0xff]
    %v1704 = vld [vmem:[%s4 + $0x8d0] sm:$0xff]
    %v1705 = vld [vmem:[%s4 + $0x8d8] sm:$0xf]
    %v1706 = vld [vmem:[%s4 + $0x8dc] sm:$0xff]
    %v1707 = vld [vmem:[%s4 + $0x8e4] sm:$0xff]
    %v1708 = vld [vmem:[%s4 + $0x8ec] sm:$0xff]
    %v1709 = vld [vmem:[%s4 + $0x8f4] sm:$0xf]
    %v1710 = vld [vmem:[%s4 + $0x8f8] sm:$0xff]
    %v1711 = vld [vmem:[%s4 + $0x900] sm:$0xff]
    %v1712 = vld [vmem:[%s4 + $0x908] sm:$0xff]
    %v1713 = vld [vmem:[%s4 + $0x910] sm:$0xf]
    %v1714 = vld [vmem:[%s4 + $0x914] sm:$0xff]
    %v1715 = vld [vmem:[%s4 + $0x91c] sm:$0xff]
    %v1716 = vld [vmem:[%s4 + $0x924] sm:$0xff]
    %v1717 = vld [vmem:[%s4 + $0x92c] sm:$0xf]
    %v1718 = vld [vmem:[%s4 + $0x930] sm:$0xff]
    %v1719 = vld [vmem:[%s4 + $0x938] sm:$0xff]
    %v1720 = vld [vmem:[%s4 + $0x940] sm:$0xff]
    %v1721 = vld [vmem:[%s4 + $0x948] sm:$0xf]
    %v1722 = vld [vmem:[%s4 + $0x94c] sm:$0xff]
    %v1723 = vld [vmem:[%s4 + $0x954] sm:$0xff]
    %v1724 = vld [vmem:[%s4 + $0x95c] sm:$0xff]
    %v1725 = vld [vmem:[%s4 + $0x964] sm:$0xf]
    %v1726 = vld [vmem:[%s4 + $0x968] sm:$0xff]
    %v1727 = vld [vmem:[%s4 + $0x970] sm:$0xff]
    %v1728 = vld [vmem:[%s4 + $0x978] sm:$0xff]
    %v1729 = vld [vmem:[%s4 + $0x980] sm:$0xf]
    %v1730 = vld [vmem:[%s4 + $0x984] sm:$0xff]
    %v1731 = vld [vmem:[%s4 + $0x98c] sm:$0xff]
    %v1732 = vld [vmem:[%s4 + $0x994] sm:$0xff]
    %v1733 = vld [vmem:[%s4 + $0x99c] sm:$0xf]
    %v1734 = vld [vmem:[%s4 + $0x9a0] sm:$0xff]
    %v1735 = vld [vmem:[%s4 + $0x9a8] sm:$0xff]
    %v1736 = vld [vmem:[%s4 + $0x9b0] sm:$0xff]
    %v1737 = vld [vmem:[%s4 + $0x9b8] sm:$0xf]
    %v1738 = vld [vmem:[%s4 + $0x9bc] sm:$0xff]
    %v1739 = vld [vmem:[%s4 + $0x9c4] sm:$0xff]
    %v1740 = vld [vmem:[%s4 + $0x9cc] sm:$0xff]
    %v1741 = vld [vmem:[%s4 + $0x9d4] sm:$0xf]
    %v1742 = vld [vmem:[%s4 + $0x9d8] sm:$0xff]
    %v1743 = vld [vmem:[%s4 + $0x9e0] sm:$0xff]
    %v1744 = vld [vmem:[%s4 + $0x9e8] sm:$0xff]
    %v1745 = vld [vmem:[%s4 + $0x9f0] sm:$0xf]
    %v1746 = vld [vmem:[%s4 + $0x9f4] sm:$0xff]
    %v1747 = vld [vmem:[%s4 + $0x9fc] sm:$0xff]
    %v1748 = vld [vmem:[%s4 + $0xa04] sm:$0xff]
    %v1749 = vld [vmem:[%s4 + $0xa0c] sm:$0xf]
    %v1750 = vld [vmem:[%s4 + $0xa10] sm:$0xff]
    %v1751 = vld [vmem:[%s4 + $0xa18] sm:$0xff]
    %v1752 = vld [vmem:[%s4 + $0xa20] sm:$0xff]
    %v1753 = vld [vmem:[%s4 + $0xa28] sm:$0xf]
    %v1754 = vld [vmem:[%s4 + $0xa2c] sm:$0xff]
    %v1755 = vld [vmem:[%s4 + $0xa34] sm:$0xff]
    %v1756 = vld [vmem:[%s4 + $0xa3c] sm:$0xff]
    %v1757 = vld [vmem:[%s4 + $0xa44] sm:$0xf]
    %v1758 = vld [vmem:[%s4 + $0xa48] sm:$0xff]
    %v1759 = vld [vmem:[%s4 + $0xa50] sm:$0xff]
    %v1760 = vld [vmem:[%s4 + $0xa58] sm:$0xff]
    %v1761 = vld [vmem:[%s4 + $0xa60] sm:$0xf]
    %v1762 = vld [vmem:[%s4 + $0xa64] sm:$0xff]
    %v1763 = vld [vmem:[%s4 + $0xa6c] sm:$0xff]
    %v1764 = vld [vmem:[%s4 + $0xa74] sm:$0xff]
    %v1765 = vld [vmem:[%s4 + $0xa7c] sm:$0xf]
    %v1766 = vld [vmem:[%s4 + $0xa80] sm:$0xff]
    %v1767 = vld [vmem:[%s4 + $0xa88] sm:$0xff]
    %v1768 = vld [vmem:[%s4 + $0xa90] sm:$0xff]
    %v1769 = vld [vmem:[%s4 + $0xa98] sm:$0xf]
    %v1770 = vld [vmem:[%s4 + $0xa9c] sm:$0xff]
    %v1771 = vld [vmem:[%s4 + $0xaa4] sm:$0xff]
    %v1772 = vld [vmem:[%s4 + $0xaac] sm:$0xff]
    %v1773 = vld [vmem:[%s4 + $0xab4] sm:$0xf]
    %v1774 = vld [vmem:[%s4 + $0xab8] sm:$0xff]
    %v1775 = vld [vmem:[%s4 + $0xac0] sm:$0xff]
    %v1776 = vld [vmem:[%s4 + $0xac8] sm:$0xff]
    %v1777 = vld [vmem:[%s4 + $0xad0] sm:$0xf]
    %v1778 = vld [vmem:[%s4 + $0xad4] sm:$0xff]
    %v1779 = vld [vmem:[%s4 + $0xadc] sm:$0xff]
    %v1780 = vld [vmem:[%s4 + $0xae4] sm:$0xff]
    %v1781 = vld [vmem:[%s4 + $0xaec] sm:$0xf]
    %v1782 = vlaneseq
    %v1783 = vshrl.u32 %v1782, 7
    %v1784 = vsub.s32 3, %v1783
    %v1785 = vrot.slane %v232, %v1784
    %v1786 = vlaneseq
    %v1787 = vshrl.u32 %v1786, 7
    %v1788 = vsub.s32 3, %v1787
    %v1789 = vrot.slane %v233, %v1788
    %v1790 = vlaneseq
    %v1791 = vshrl.u32 %v1790, 7
    %v1792 = vsub.s32 3, %v1791
    %v1793 = vrot.slane %v234, %v1792
    %v1794 = vlaneseq
    %v1795 = vshrl.u32 %v1794, 7
    %v1796 = vsub.s32 3, %v1795
    %v1797 = vrot.slane %v235, %v1796
    %v1798 = vlaneseq
    %v1799 = vshrl.u32 %v1798, 7
    %v1800 = vsub.s32 3, %v1799
    %v1801 = vrot.slane %v236, %v1800
    %v1802 = vlaneseq
    %v1803 = vshrl.u32 %v1802, 7
    %v1804 = vsub.s32 3, %v1803
    %v1805 = vrot.slane %v237, %v1804
    %v1806 = vlaneseq
    %v1807 = vshrl.u32 %v1806, 7
    %v1808 = vsub.s32 3, %v1807
    %v1809 = vrot.slane %v238, %v1808
    %v2210 = vunpack.c.l.b16 %v1382
    %v2211 = vunpack.c.h.b16 %v1382
    %v2212 = vunpack.c.l.b16 %v1383
    %v2213 = vunpack.c.h.b16 %v1383
    %v2214 = vunpack.c.l.b16 %v1384
    %v2215 = vunpack.c.h.b16 %v1384
    %v2216 = vunpack.c.l.b16 %v1385
    %v2217 = vunpack.c.l.b16 %v1386
    %v2218 = vunpack.c.h.b16 %v1386
    %v2219 = vunpack.c.l.b16 %v1387
    %v2220 = vunpack.c.h.b16 %v1387
    %v2221 = vunpack.c.l.b16 %v1388
    %v2222 = vunpack.c.h.b16 %v1388
    %v2223 = vunpack.c.l.b16 %v1389
    %v2224 = vunpack.c.l.b16 %v1390
    %v2225 = vunpack.c.h.b16 %v1390
    %v2226 = vunpack.c.l.b16 %v1391
    %v2227 = vunpack.c.h.b16 %v1391
    %v2228 = vunpack.c.l.b16 %v1392
    %v2229 = vunpack.c.h.b16 %v1392
    %v2230 = vunpack.c.l.b16 %v1393
    %v2231 = vunpack.c.l.b16 %v1394
    %v2232 = vunpack.c.h.b16 %v1394
    %v2233 = vunpack.c.l.b16 %v1395
    %v2234 = vunpack.c.h.b16 %v1395
    %v2235 = vunpack.c.l.b16 %v1396
    %v2236 = vunpack.c.h.b16 %v1396
    %v2237 = vunpack.c.l.b16 %v1397
    %v2238 = vunpack.c.l.b16 %v1398
    %v2239 = vunpack.c.h.b16 %v1398
    %v2240 = vunpack.c.l.b16 %v1399
    %v2241 = vunpack.c.h.b16 %v1399
    %v2242 = vunpack.c.l.b16 %v1400
    %v2243 = vunpack.c.h.b16 %v1400
    %v2244 = vunpack.c.l.b16 %v1401
    %v2245 = vunpack.c.l.b16 %v1402
    %v2246 = vunpack.c.h.b16 %v1402
    %v2247 = vunpack.c.l.b16 %v1403
    %v2248 = vunpack.c.h.b16 %v1403
    %v2249 = vunpack.c.l.b16 %v1404
    %v2250 = vunpack.c.h.b16 %v1404
    %v2251 = vunpack.c.l.b16 %v1405
    %v2252 = vunpack.c.l.b16 %v1406
    %v2253 = vunpack.c.h.b16 %v1406
    %v2254 = vunpack.c.l.b16 %v1407
    %v2255 = vunpack.c.h.b16 %v1407
    %v2256 = vunpack.c.l.b16 %v1408
    %v2257 = vunpack.c.h.b16 %v1408
    %v2258 = vunpack.c.l.b16 %v1409
    %v2259 = vunpack.c.l.b16 %v1410
    %v2260 = vunpack.c.h.b16 %v1410
    %v2261 = vunpack.c.l.b16 %v1411
    %v2262 = vunpack.c.h.b16 %v1411
    %v2263 = vunpack.c.l.b16 %v1412
    %v2264 = vunpack.c.h.b16 %v1412
    %v2265 = vunpack.c.l.b16 %v1413
    %v2266 = vunpack.c.l.b16 %v1414
    %v2267 = vunpack.c.h.b16 %v1414
    %v2268 = vunpack.c.l.b16 %v1415
    %v2269 = vunpack.c.h.b16 %v1415
    %v2270 = vunpack.c.l.b16 %v1416
    %v2271 = vunpack.c.h.b16 %v1416
    %v2272 = vunpack.c.l.b16 %v1417
    %v2273 = vunpack.c.l.b16 %v1418
    %v2274 = vunpack.c.h.b16 %v1418
    %v2275 = vunpack.c.l.b16 %v1419
    %v2276 = vunpack.c.h.b16 %v1419
    %v2277 = vunpack.c.l.b16 %v1420
    %v2278 = vunpack.c.h.b16 %v1420
    %v2279 = vunpack.c.l.b16 %v1421
    %v2280 = vunpack.c.l.b16 %v1422
    %v2281 = vunpack.c.h.b16 %v1422
    %v2282 = vunpack.c.l.b16 %v1423
    %v2283 = vunpack.c.h.b16 %v1423
    %v2284 = vunpack.c.l.b16 %v1424
    %v2285 = vunpack.c.h.b16 %v1424
    %v2286 = vunpack.c.l.b16 %v1425
    %v2287 = vunpack.c.l.b16 %v1426
    %v2288 = vunpack.c.h.b16 %v1426
    %v2289 = vunpack.c.l.b16 %v1427
    %v2290 = vunpack.c.h.b16 %v1427
    %v2291 = vunpack.c.l.b16 %v1428
    %v2292 = vunpack.c.h.b16 %v1428
    %v2293 = vunpack.c.l.b16 %v1429
    %v2294 = vunpack.c.l.b16 %v1430
    %v2295 = vunpack.c.h.b16 %v1430
    %v2296 = vunpack.c.l.b16 %v1431
    %v2297 = vunpack.c.h.b16 %v1431
    %v2298 = vunpack.c.l.b16 %v1432
    %v2299 = vunpack.c.h.b16 %v1432
    %v2300 = vunpack.c.l.b16 %v1433
    %v2301 = vunpack.c.l.b16 %v1434
    %v2302 = vunpack.c.h.b16 %v1434
    %v2303 = vunpack.c.l.b16 %v1435
    %v2304 = vunpack.c.h.b16 %v1435
    %v2305 = vunpack.c.l.b16 %v1436
    %v2306 = vunpack.c.h.b16 %v1436
    %v2307 = vunpack.c.l.b16 %v1437
    %v2308 = vunpack.c.l.b16 %v1438
    %v2309 = vunpack.c.h.b16 %v1438
    %v2310 = vunpack.c.l.b16 %v1439
    %v2311 = vunpack.c.h.b16 %v1439
    %v2312 = vunpack.c.l.b16 %v1440
    %v2313 = vunpack.c.h.b16 %v1440
    %v2314 = vunpack.c.l.b16 %v1441
    %v2315 = vunpack.c.l.b16 %v1442
    %v2316 = vunpack.c.h.b16 %v1442
    %v2317 = vunpack.c.l.b16 %v1443
    %v2318 = vunpack.c.h.b16 %v1443
    %v2319 = vunpack.c.l.b16 %v1444
    %v2320 = vunpack.c.h.b16 %v1444
    %v2321 = vunpack.c.l.b16 %v1445
    %v2322 = vunpack.c.l.b16 %v1446
    %v2323 = vunpack.c.h.b16 %v1446
    %v2324 = vunpack.c.l.b16 %v1447
    %v2325 = vunpack.c.h.b16 %v1447
    %v2326 = vunpack.c.l.b16 %v1448
    %v2327 = vunpack.c.h.b16 %v1448
    %v2328 = vunpack.c.l.b16 %v1449
    %v2329 = vunpack.c.l.b16 %v1450
    %v2330 = vunpack.c.h.b16 %v1450
    %v2331 = vunpack.c.l.b16 %v1451
    %v2332 = vunpack.c.h.b16 %v1451
    %v2333 = vunpack.c.l.b16 %v1452
    %v2334 = vunpack.c.h.b16 %v1452
    %v2335 = vunpack.c.l.b16 %v1453
    %v2336 = vunpack.c.l.b16 %v1454
    %v2337 = vunpack.c.h.b16 %v1454
    %v2338 = vunpack.c.l.b16 %v1455
    %v2339 = vunpack.c.h.b16 %v1455
    %v2340 = vunpack.c.l.b16 %v1456
    %v2341 = vunpack.c.h.b16 %v1456
    %v2342 = vunpack.c.l.b16 %v1457
    %v2343 = vunpack.c.l.b16 %v1458
    %v2344 = vunpack.c.h.b16 %v1458
    %v2345 = vunpack.c.l.b16 %v1459
    %v2346 = vunpack.c.h.b16 %v1459
    %v2347 = vunpack.c.l.b16 %v1460
    %v2348 = vunpack.c.h.b16 %v1460
    %v2349 = vunpack.c.l.b16 %v1461
    %v2350 = vunpack.c.l.b16 %v1462
    %v2351 = vunpack.c.h.b16 %v1462
    %v2352 = vunpack.c.l.b16 %v1463
    %v2353 = vunpack.c.h.b16 %v1463
    %v2354 = vunpack.c.l.b16 %v1464
    %v2355 = vunpack.c.h.b16 %v1464
    %v2356 = vunpack.c.l.b16 %v1465
    %v2357 = vunpack.c.l.b16 %v1466
    %v2358 = vunpack.c.h.b16 %v1466
    %v2359 = vunpack.c.l.b16 %v1467
    %v2360 = vunpack.c.h.b16 %v1467
    %v2361 = vunpack.c.l.b16 %v1468
    %v2362 = vunpack.c.h.b16 %v1468
    %v2363 = vunpack.c.l.b16 %v1469
    %v2364 = vunpack.c.l.b16 %v1470
    %v2365 = vunpack.c.h.b16 %v1470
    %v2366 = vunpack.c.l.b16 %v1471
    %v2367 = vunpack.c.h.b16 %v1471
    %v2368 = vunpack.c.l.b16 %v1472
    %v2369 = vunpack.c.h.b16 %v1472
    %v2370 = vunpack.c.l.b16 %v1473
    %v2371 = vunpack.c.l.b16 %v1474
    %v2372 = vunpack.c.h.b16 %v1474
    %v2373 = vunpack.c.l.b16 %v1475
    %v2374 = vunpack.c.h.b16 %v1475
    %v2375 = vunpack.c.l.b16 %v1476
    %v2376 = vunpack.c.h.b16 %v1476
    %v2377 = vunpack.c.l.b16 %v1477
    %v2378 = vunpack.c.l.b16 %v1478
    %v2379 = vunpack.c.h.b16 %v1478
    %v2380 = vunpack.c.l.b16 %v1479
    %v2381 = vunpack.c.h.b16 %v1479
    %v2382 = vunpack.c.l.b16 %v1480
    %v2383 = vunpack.c.h.b16 %v1480
    %v2384 = vunpack.c.l.b16 %v1481
    %v2385 = vunpack.c.l.b16 %v1482
    %v2386 = vunpack.c.h.b16 %v1482
    %v2387 = vunpack.c.l.b16 %v1483
    %v2388 = vunpack.c.h.b16 %v1483
    %v2389 = vunpack.c.l.b16 %v1484
    %v2390 = vunpack.c.h.b16 %v1484
    %v2391 = vunpack.c.l.b16 %v1485
    %v2392 = vunpack.c.l.b16 %v1486
    %v2393 = vunpack.c.h.b16 %v1486
    %v2394 = vunpack.c.l.b16 %v1487
    %v2395 = vunpack.c.h.b16 %v1487
    %v2396 = vunpack.c.l.b16 %v1488
    %v2397 = vunpack.c.h.b16 %v1488
    %v2398 = vunpack.c.l.b16 %v1489
    %v2399 = vunpack.c.l.b16 %v1490
    %v2400 = vunpack.c.h.b16 %v1490
    %v2401 = vunpack.c.l.b16 %v1491
    %v2402 = vunpack.c.h.b16 %v1491
    %v2403 = vunpack.c.l.b16 %v1492
    %v2404 = vunpack.c.h.b16 %v1492
    %v2405 = vunpack.c.l.b16 %v1493
    %v2406 = vunpack.c.l.b16 %v1494
    %v2407 = vunpack.c.h.b16 %v1494
    %v2408 = vunpack.c.l.b16 %v1495
    %v2409 = vunpack.c.h.b16 %v1495
    %v2410 = vunpack.c.l.b16 %v1496
    %v2411 = vunpack.c.h.b16 %v1496
    %v2412 = vunpack.c.l.b16 %v1497
    %v2413 = vunpack.c.l.b16 %v1498
    %v2414 = vunpack.c.h.b16 %v1498
    %v2415 = vunpack.c.l.b16 %v1499
    %v2416 = vunpack.c.h.b16 %v1499
    %v2417 = vunpack.c.l.b16 %v1500
    %v2418 = vunpack.c.h.b16 %v1500
    %v2419 = vunpack.c.l.b16 %v1501
    %v2420 = vunpack.c.l.b16 %v1502
    %v2421 = vunpack.c.h.b16 %v1502
    %v2422 = vunpack.c.l.b16 %v1503
    %v2423 = vunpack.c.h.b16 %v1503
    %v2424 = vunpack.c.l.b16 %v1504
    %v2425 = vunpack.c.h.b16 %v1504
    %v2426 = vunpack.c.l.b16 %v1505
    %v2427 = vunpack.c.l.b16 %v1506
    %v2428 = vunpack.c.h.b16 %v1506
    %v2429 = vunpack.c.l.b16 %v1507
    %v2430 = vunpack.c.h.b16 %v1507
    %v2431 = vunpack.c.l.b16 %v1508
    %v2432 = vunpack.c.h.b16 %v1508
    %v2433 = vunpack.c.l.b16 %v1509
    %v2434 = vunpack.c.l.b16 %v1510
    %v2435 = vunpack.c.h.b16 %v1510
    %v2436 = vunpack.c.l.b16 %v1511
    %v2437 = vunpack.c.h.b16 %v1511
    %v2438 = vunpack.c.l.b16 %v1512
    %v2439 = vunpack.c.h.b16 %v1512
    %v2440 = vunpack.c.l.b16 %v1513
    %v2441 = vunpack.c.l.b16 %v1514
    %v2442 = vunpack.c.h.b16 %v1514
    %v2443 = vunpack.c.l.b16 %v1515
    %v2444 = vunpack.c.h.b16 %v1515
    %v2445 = vunpack.c.l.b16 %v1516
    %v2446 = vunpack.c.h.b16 %v1516
    %v2447 = vunpack.c.l.b16 %v1517
    %v2448 = vunpack.c.l.b16 %v1518
    %v2449 = vunpack.c.h.b16 %v1518
    %v2450 = vunpack.c.l.b16 %v1519
    %v2451 = vunpack.c.h.b16 %v1519
    %v2452 = vunpack.c.l.b16 %v1520
    %v2453 = vunpack.c.h.b16 %v1520
    %v2454 = vunpack.c.l.b16 %v1521
    %v2455 = vunpack.c.l.b16 %v1522
    %v2456 = vunpack.c.h.b16 %v1522
    %v2457 = vunpack.c.l.b16 %v1523
    %v2458 = vunpack.c.h.b16 %v1523
    %v2459 = vunpack.c.l.b16 %v1524
    %v2460 = vunpack.c.h.b16 %v1524
    %v2461 = vunpack.c.l.b16 %v1525
    %v2462 = vunpack.c.l.b16 %v1526
    %v2463 = vunpack.c.h.b16 %v1526
    %v2464 = vunpack.c.l.b16 %v1527
    %v2465 = vunpack.c.h.b16 %v1527
    %v2466 = vunpack.c.l.b16 %v1528
    %v2467 = vunpack.c.h.b16 %v1528
    %v2468 = vunpack.c.l.b16 %v1529
    %v2469 = vunpack.c.l.b16 %v1530
    %v2470 = vunpack.c.h.b16 %v1530
    %v2471 = vunpack.c.l.b16 %v1531
    %v2472 = vunpack.c.h.b16 %v1531
    %v2473 = vunpack.c.l.b16 %v1532
    %v2474 = vunpack.c.h.b16 %v1532
    %v2475 = vunpack.c.l.b16 %v1533
    %v2476 = vunpack.c.l.b16 %v1534
    %v2477 = vunpack.c.h.b16 %v1534
    %v2478 = vunpack.c.l.b16 %v1535
    %v2479 = vunpack.c.h.b16 %v1535
    %v2480 = vunpack.c.l.b16 %v1536
    %v2481 = vunpack.c.h.b16 %v1536
    %v2482 = vunpack.c.l.b16 %v1537
    %v2483 = vunpack.c.l.b16 %v1538
    %v2484 = vunpack.c.h.b16 %v1538
    %v2485 = vunpack.c.l.b16 %v1539
    %v2486 = vunpack.c.h.b16 %v1539
    %v2487 = vunpack.c.l.b16 %v1540
    %v2488 = vunpack.c.h.b16 %v1540
    %v2489 = vunpack.c.l.b16 %v1541
    %v2490 = vunpack.c.l.b16 %v1542
    %v2491 = vunpack.c.h.b16 %v1542
    %v2492 = vunpack.c.l.b16 %v1543
    %v2493 = vunpack.c.h.b16 %v1543
    %v2494 = vunpack.c.l.b16 %v1544
    %v2495 = vunpack.c.h.b16 %v1544
    %v2496 = vunpack.c.l.b16 %v1545
    %v2497 = vunpack.c.l.b16 %v1546
    %v2498 = vunpack.c.h.b16 %v1546
    %v2499 = vunpack.c.l.b16 %v1547
    %v2500 = vunpack.c.h.b16 %v1547
    %v2501 = vunpack.c.l.b16 %v1548
    %v2502 = vunpack.c.h.b16 %v1548
    %v2503 = vunpack.c.l.b16 %v1549
    %v2504 = vunpack.c.l.b16 %v1550
    %v2505 = vunpack.c.h.b16 %v1550
    %v2506 = vunpack.c.l.b16 %v1551
    %v2507 = vunpack.c.h.b16 %v1551
    %v2508 = vunpack.c.l.b16 %v1552
    %v2509 = vunpack.c.h.b16 %v1552
    %v2510 = vunpack.c.l.b16 %v1553
    %v2511 = vunpack.c.l.b16 %v1554
    %v2512 = vunpack.c.h.b16 %v1554
    %v2513 = vunpack.c.l.b16 %v1555
    %v2514 = vunpack.c.h.b16 %v1555
    %v2515 = vunpack.c.l.b16 %v1556
    %v2516 = vunpack.c.h.b16 %v1556
    %v2517 = vunpack.c.l.b16 %v1557
    %v2518 = vunpack.c.l.b16 %v1558
    %v2519 = vunpack.c.h.b16 %v1558
    %v2520 = vunpack.c.l.b16 %v1559
    %v2521 = vunpack.c.h.b16 %v1559
    %v2522 = vunpack.c.l.b16 %v1560
    %v2523 = vunpack.c.h.b16 %v1560
    %v2524 = vunpack.c.l.b16 %v1561
    %v2525 = vunpack.c.l.b16 %v1562
    %v2526 = vunpack.c.h.b16 %v1562
    %v2527 = vunpack.c.l.b16 %v1563
    %v2528 = vunpack.c.h.b16 %v1563
    %v2529 = vunpack.c.l.b16 %v1564
    %v2530 = vunpack.c.h.b16 %v1564
    %v2531 = vunpack.c.l.b16 %v1565
    %v2532 = vunpack.c.l.b16 %v1566
    %v2533 = vunpack.c.h.b16 %v1566
    %v2534 = vunpack.c.l.b16 %v1567
    %v2535 = vunpack.c.h.b16 %v1567
    %v2536 = vunpack.c.l.b16 %v1568
    %v2537 = vunpack.c.h.b16 %v1568
    %v2538 = vunpack.c.l.b16 %v1569
    %v2539 = vunpack.c.l.b16 %v1570
    %v2540 = vunpack.c.h.b16 %v1570
    %v2541 = vunpack.c.l.b16 %v1571
    %v2542 = vunpack.c.h.b16 %v1571
    %v2543 = vunpack.c.l.b16 %v1572
    %v2544 = vunpack.c.h.b16 %v1572
    %v2545 = vunpack.c.l.b16 %v1573
    %v2546 = vunpack.c.l.b16 %v1574
    %v2547 = vunpack.c.h.b16 %v1574
    %v2548 = vunpack.c.l.b16 %v1575
    %v2549 = vunpack.c.h.b16 %v1575
    %v2550 = vunpack.c.l.b16 %v1576
    %v2551 = vunpack.c.h.b16 %v1576
    %v2552 = vunpack.c.l.b16 %v1577
    %v2553 = vunpack.c.l.b16 %v1578
    %v2554 = vunpack.c.h.b16 %v1578
    %v2555 = vunpack.c.l.b16 %v1579
    %v2556 = vunpack.c.h.b16 %v1579
    %v2557 = vunpack.c.l.b16 %v1580
    %v2558 = vunpack.c.h.b16 %v1580
    %v2559 = vunpack.c.l.b16 %v1581
    %v2560 = vunpack.c.l.b16 %v1582
    %v2561 = vunpack.c.h.b16 %v1582
    %v2562 = vunpack.c.l.b16 %v1583
    %v2563 = vunpack.c.h.b16 %v1583
    %v2564 = vunpack.c.l.b16 %v1584
    %v2565 = vunpack.c.h.b16 %v1584
    %v2566 = vunpack.c.l.b16 %v1585
    %v2567 = vunpack.c.l.b16 %v1586
    %v2568 = vunpack.c.h.b16 %v1586
    %v2569 = vunpack.c.l.b16 %v1587
    %v2570 = vunpack.c.h.b16 %v1587
    %v2571 = vunpack.c.l.b16 %v1588
    %v2572 = vunpack.c.h.b16 %v1588
    %v2573 = vunpack.c.l.b16 %v1589
    %v2574 = vunpack.c.l.b16 %v1590
    %v2575 = vunpack.c.h.b16 %v1590
    %v2576 = vunpack.c.l.b16 %v1591
    %v2577 = vunpack.c.h.b16 %v1591
    %v2578 = vunpack.c.l.b16 %v1592
    %v2579 = vunpack.c.h.b16 %v1592
    %v2580 = vunpack.c.l.b16 %v1593
    %v2581 = vunpack.c.l.b16 %v1594
    %v2582 = vunpack.c.h.b16 %v1594
    %v2583 = vunpack.c.l.b16 %v1595
    %v2584 = vunpack.c.h.b16 %v1595
    %v2585 = vunpack.c.l.b16 %v1596
    %v2586 = vunpack.c.h.b16 %v1596
    %v2587 = vunpack.c.l.b16 %v1597
    %v2588 = vunpack.c.l.b16 %v1598
    %v2589 = vunpack.c.h.b16 %v1598
    %v2590 = vunpack.c.l.b16 %v1599
    %v2591 = vunpack.c.h.b16 %v1599
    %v2592 = vunpack.c.l.b16 %v1600
    %v2593 = vunpack.c.h.b16 %v1600
    %v2594 = vunpack.c.l.b16 %v1601
    %v2595 = vunpack.c.l.b16 %v1602
    %v2596 = vunpack.c.h.b16 %v1602
    %v2597 = vunpack.c.l.b16 %v1603
    %v2598 = vunpack.c.h.b16 %v1603
    %v2599 = vunpack.c.l.b16 %v1604
    %v2600 = vunpack.c.h.b16 %v1604
    %v2601 = vunpack.c.l.b16 %v1605
    %v2602 = vunpack.c.l.b16 %v1606
    %v2603 = vunpack.c.h.b16 %v1606
    %v2604 = vunpack.c.l.b16 %v1607
    %v2605 = vunpack.c.h.b16 %v1607
    %v2606 = vunpack.c.l.b16 %v1608
    %v2607 = vunpack.c.h.b16 %v1608
    %v2608 = vunpack.c.l.b16 %v1609
    %v2609 = vunpack.c.l.b16 %v1610
    %v2610 = vunpack.c.h.b16 %v1610
    %v2611 = vunpack.c.l.b16 %v1611
    %v2612 = vunpack.c.h.b16 %v1611
    %v2613 = vunpack.c.l.b16 %v1612
    %v2614 = vunpack.c.h.b16 %v1612
    %v2615 = vunpack.c.l.b16 %v1613
    %v2616 = vunpack.c.l.b16 %v1614
    %v2617 = vunpack.c.h.b16 %v1614
    %v2618 = vunpack.c.l.b16 %v1615
    %v2619 = vunpack.c.h.b16 %v1615
    %v2620 = vunpack.c.l.b16 %v1616
    %v2621 = vunpack.c.h.b16 %v1616
    %v2622 = vunpack.c.l.b16 %v1617
    %v2623 = vunpack.c.l.b16 %v1618
    %v2624 = vunpack.c.h.b16 %v1618
    %v2625 = vunpack.c.l.b16 %v1619
    %v2626 = vunpack.c.h.b16 %v1619
    %v2627 = vunpack.c.l.b16 %v1620
    %v2628 = vunpack.c.h.b16 %v1620
    %v2629 = vunpack.c.l.b16 %v1621
    %v2630 = vunpack.c.l.b16 %v1622
    %v2631 = vunpack.c.h.b16 %v1622
    %v2632 = vunpack.c.l.b16 %v1623
    %v2633 = vunpack.c.h.b16 %v1623
    %v2634 = vunpack.c.l.b16 %v1624
    %v2635 = vunpack.c.h.b16 %v1624
    %v2636 = vunpack.c.l.b16 %v1625
    %v2637 = vunpack.c.l.b16 %v1626
    %v2638 = vunpack.c.h.b16 %v1626
    %v2639 = vunpack.c.l.b16 %v1627
    %v2640 = vunpack.c.h.b16 %v1627
    %v2641 = vunpack.c.l.b16 %v1628
    %v2642 = vunpack.c.h.b16 %v1628
    %v2643 = vunpack.c.l.b16 %v1629
    %v2644 = vunpack.c.l.b16 %v1630
    %v2645 = vunpack.c.h.b16 %v1630
    %v2646 = vunpack.c.l.b16 %v1631
    %v2647 = vunpack.c.h.b16 %v1631
    %v2648 = vunpack.c.l.b16 %v1632
    %v2649 = vunpack.c.h.b16 %v1632
    %v2650 = vunpack.c.l.b16 %v1633
    %v2651 = vunpack.c.l.b16 %v1634
    %v2652 = vunpack.c.h.b16 %v1634
    %v2653 = vunpack.c.l.b16 %v1635
    %v2654 = vunpack.c.h.b16 %v1635
    %v2655 = vunpack.c.l.b16 %v1636
    %v2656 = vunpack.c.h.b16 %v1636
    %v2657 = vunpack.c.l.b16 %v1637
    %v2658 = vunpack.c.l.b16 %v1638
    %v2659 = vunpack.c.h.b16 %v1638
    %v2660 = vunpack.c.l.b16 %v1639
    %v2661 = vunpack.c.h.b16 %v1639
    %v2662 = vunpack.c.l.b16 %v1640
    %v2663 = vunpack.c.h.b16 %v1640
    %v2664 = vunpack.c.l.b16 %v1641
    %v2665 = vunpack.c.l.b16 %v1642
    %v2666 = vunpack.c.h.b16 %v1642
    %v2667 = vunpack.c.l.b16 %v1643
    %v2668 = vunpack.c.h.b16 %v1643
    %v2669 = vunpack.c.l.b16 %v1644
    %v2670 = vunpack.c.h.b16 %v1644
    %v2671 = vunpack.c.l.b16 %v1645
    %v2672 = vunpack.c.l.b16 %v1646
    %v2673 = vunpack.c.h.b16 %v1646
    %v2674 = vunpack.c.l.b16 %v1647
    %v2675 = vunpack.c.h.b16 %v1647
    %v2676 = vunpack.c.l.b16 %v1648
    %v2677 = vunpack.c.h.b16 %v1648
    %v2678 = vunpack.c.l.b16 %v1649
    %v2679 = vunpack.c.l.b16 %v1650
    %v2680 = vunpack.c.h.b16 %v1650
    %v2681 = vunpack.c.l.b16 %v1651
    %v2682 = vunpack.c.h.b16 %v1651
    %v2683 = vunpack.c.l.b16 %v1652
    %v2684 = vunpack.c.h.b16 %v1652
    %v2685 = vunpack.c.l.b16 %v1653
    %v2686 = vunpack.c.l.b16 %v1654
    %v2687 = vunpack.c.h.b16 %v1654
    %v2688 = vunpack.c.l.b16 %v1655
    %v2689 = vunpack.c.h.b16 %v1655
    %v2690 = vunpack.c.l.b16 %v1656
    %v2691 = vunpack.c.h.b16 %v1656
    %v2692 = vunpack.c.l.b16 %v1657
    %v2693 = vunpack.c.l.b16 %v1658
    %v2694 = vunpack.c.h.b16 %v1658
    %v2695 = vunpack.c.l.b16 %v1659
    %v2696 = vunpack.c.h.b16 %v1659
    %v2697 = vunpack.c.l.b16 %v1660
    %v2698 = vunpack.c.h.b16 %v1660
    %v2699 = vunpack.c.l.b16 %v1661
    %v2700 = vunpack.c.l.b16 %v1662
    %v2701 = vunpack.c.h.b16 %v1662
    %v2702 = vunpack.c.l.b16 %v1663
    %v2703 = vunpack.c.h.b16 %v1663
    %v2704 = vunpack.c.l.b16 %v1664
    %v2705 = vunpack.c.h.b16 %v1664
    %v2706 = vunpack.c.l.b16 %v1665
    %v2707 = vunpack.c.l.b16 %v1666
    %v2708 = vunpack.c.h.b16 %v1666
    %v2709 = vunpack.c.l.b16 %v1667
    %v2710 = vunpack.c.h.b16 %v1667
    %v2711 = vunpack.c.l.b16 %v1668
    %v2712 = vunpack.c.h.b16 %v1668
    %v2713 = vunpack.c.l.b16 %v1669
    %v2714 = vunpack.c.l.b16 %v1670
    %v2715 = vunpack.c.h.b16 %v1670
    %v2716 = vunpack.c.l.b16 %v1671
    %v2717 = vunpack.c.h.b16 %v1671
    %v2718 = vunpack.c.l.b16 %v1672
    %v2719 = vunpack.c.h.b16 %v1672
    %v2720 = vunpack.c.l.b16 %v1673
    %v2721 = vunpack.c.l.b16 %v1674
    %v2722 = vunpack.c.h.b16 %v1674
    %v2723 = vunpack.c.l.b16 %v1675
    %v2724 = vunpack.c.h.b16 %v1675
    %v2725 = vunpack.c.l.b16 %v1676
    %v2726 = vunpack.c.h.b16 %v1676
    %v2727 = vunpack.c.l.b16 %v1677
    %v2728 = vunpack.c.l.b16 %v1678
    %v2729 = vunpack.c.h.b16 %v1678
    %v2730 = vunpack.c.l.b16 %v1679
    %v2731 = vunpack.c.h.b16 %v1679
    %v2732 = vunpack.c.l.b16 %v1680
    %v2733 = vunpack.c.h.b16 %v1680
    %v2734 = vunpack.c.l.b16 %v1681
    %v2735 = vunpack.c.l.b16 %v1682
    %v2736 = vunpack.c.h.b16 %v1682
    %v2737 = vunpack.c.l.b16 %v1683
    %v2738 = vunpack.c.h.b16 %v1683
    %v2739 = vunpack.c.l.b16 %v1684
    %v2740 = vunpack.c.h.b16 %v1684
    %v2741 = vunpack.c.l.b16 %v1685
    %v2742 = vunpack.c.l.b16 %v1686
    %v2743 = vunpack.c.h.b16 %v1686
    %v2744 = vunpack.c.l.b16 %v1687
    %v2745 = vunpack.c.h.b16 %v1687
    %v2746 = vunpack.c.l.b16 %v1688
    %v2747 = vunpack.c.h.b16 %v1688
    %v2748 = vunpack.c.l.b16 %v1689
    %v2749 = vunpack.c.l.b16 %v1690
    %v2750 = vunpack.c.h.b16 %v1690
    %v2751 = vunpack.c.l.b16 %v1691
    %v2752 = vunpack.c.h.b16 %v1691
    %v2753 = vunpack.c.l.b16 %v1692
    %v2754 = vunpack.c.h.b16 %v1692
    %v2755 = vunpack.c.l.b16 %v1693
    %v2756 = vunpack.c.l.b16 %v1694
    %v2757 = vunpack.c.h.b16 %v1694
    %v2758 = vunpack.c.l.b16 %v1695
    %v2759 = vunpack.c.h.b16 %v1695
    %v2760 = vunpack.c.l.b16 %v1696
    %v2761 = vunpack.c.h.b16 %v1696
    %v2762 = vunpack.c.l.b16 %v1697
    %v2763 = vunpack.c.l.b16 %v1698
    %v2764 = vunpack.c.h.b16 %v1698
    %v2765 = vunpack.c.l.b16 %v1699
    %v2766 = vunpack.c.h.b16 %v1699
    %v2767 = vunpack.c.l.b16 %v1700
    %v2768 = vunpack.c.h.b16 %v1700
    %v2769 = vunpack.c.l.b16 %v1701
    %v2770 = vunpack.c.l.b16 %v1702
    %v2771 = vunpack.c.h.b16 %v1702
    %v2772 = vunpack.c.l.b16 %v1703
    %v2773 = vunpack.c.h.b16 %v1703
    %v2774 = vunpack.c.l.b16 %v1704
    %v2775 = vunpack.c.h.b16 %v1704
    %v2776 = vunpack.c.l.b16 %v1705
    %v2777 = vunpack.c.l.b16 %v1706
    %v2778 = vunpack.c.h.b16 %v1706
    %v2779 = vunpack.c.l.b16 %v1707
    %v2780 = vunpack.c.h.b16 %v1707
    %v2781 = vunpack.c.l.b16 %v1708
    %v2782 = vunpack.c.h.b16 %v1708
    %v2783 = vunpack.c.l.b16 %v1709
    %v2784 = vunpack.c.l.b16 %v1710
    %v2785 = vunpack.c.h.b16 %v1710
    %v2786 = vunpack.c.l.b16 %v1711
    %v2787 = vunpack.c.h.b16 %v1711
    %v2788 = vunpack.c.l.b16 %v1712
    %v2789 = vunpack.c.h.b16 %v1712
    %v2790 = vunpack.c.l.b16 %v1713
    %v2791 = vunpack.c.l.b16 %v1714
    %v2792 = vunpack.c.h.b16 %v1714
    %v2793 = vunpack.c.l.b16 %v1715
    %v2794 = vunpack.c.h.b16 %v1715
    %v2795 = vunpack.c.l.b16 %v1716
    %v2796 = vunpack.c.h.b16 %v1716
    %v2797 = vunpack.c.l.b16 %v1717
    %v2798 = vunpack.c.l.b16 %v1718
    %v2799 = vunpack.c.h.b16 %v1718
    %v2800 = vunpack.c.l.b16 %v1719
    %v2801 = vunpack.c.h.b16 %v1719
    %v2802 = vunpack.c.l.b16 %v1720
    %v2803 = vunpack.c.h.b16 %v1720
    %v2804 = vunpack.c.l.b16 %v1721
    %v2805 = vunpack.c.l.b16 %v1722
    %v2806 = vunpack.c.h.b16 %v1722
    %v2807 = vunpack.c.l.b16 %v1723
    %v2808 = vunpack.c.h.b16 %v1723
    %v2809 = vunpack.c.l.b16 %v1724
    %v2810 = vunpack.c.h.b16 %v1724
    %v2811 = vunpack.c.l.b16 %v1725
    %v2812 = vunpack.c.l.b16 %v1726
    %v2813 = vunpack.c.h.b16 %v1726
    %v2814 = vunpack.c.l.b16 %v1727
    %v2815 = vunpack.c.h.b16 %v1727
    %v2816 = vunpack.c.l.b16 %v1728
    %v2817 = vunpack.c.h.b16 %v1728
    %v2818 = vunpack.c.l.b16 %v1729
    %v2819 = vunpack.c.l.b16 %v1730
    %v2820 = vunpack.c.h.b16 %v1730
    %v2821 = vunpack.c.l.b16 %v1731
    %v2822 = vunpack.c.h.b16 %v1731
    %v2823 = vunpack.c.l.b16 %v1732
    %v2824 = vunpack.c.h.b16 %v1732
    %v2825 = vunpack.c.l.b16 %v1733
    %v2826 = vunpack.c.l.b16 %v1734
    %v2827 = vunpack.c.h.b16 %v1734
    %v2828 = vunpack.c.l.b16 %v1735
    %v2829 = vunpack.c.h.b16 %v1735
    %v2830 = vunpack.c.l.b16 %v1736
    %v2831 = vunpack.c.h.b16 %v1736
    %v2832 = vunpack.c.l.b16 %v1737
    %v2833 = vunpack.c.l.b16 %v1738
    %v2834 = vunpack.c.h.b16 %v1738
    %v2835 = vunpack.c.l.b16 %v1739
    %v2836 = vunpack.c.h.b16 %v1739
    %v2837 = vunpack.c.l.b16 %v1740
    %v2838 = vunpack.c.h.b16 %v1740
    %v2839 = vunpack.c.l.b16 %v1741
    %v2840 = vunpack.c.l.b16 %v1742
    %v2841 = vunpack.c.h.b16 %v1742
    %v2842 = vunpack.c.l.b16 %v1743
    %v2843 = vunpack.c.h.b16 %v1743
    %v2844 = vunpack.c.l.b16 %v1744
    %v2845 = vunpack.c.h.b16 %v1744
    %v2846 = vunpack.c.l.b16 %v1745
    %v2847 = vunpack.c.l.b16 %v1746
    %v2848 = vunpack.c.h.b16 %v1746
    %v2849 = vunpack.c.l.b16 %v1747
    %v2850 = vunpack.c.h.b16 %v1747
    %v2851 = vunpack.c.l.b16 %v1748
    %v2852 = vunpack.c.h.b16 %v1748
    %v2853 = vunpack.c.l.b16 %v1749
    %v2854 = vunpack.c.l.b16 %v1750
    %v2855 = vunpack.c.h.b16 %v1750
    %v2856 = vunpack.c.l.b16 %v1751
    %v2857 = vunpack.c.h.b16 %v1751
    %v2858 = vunpack.c.l.b16 %v1752
    %v2859 = vunpack.c.h.b16 %v1752
    %v2860 = vunpack.c.l.b16 %v1753
    %v2861 = vunpack.c.l.b16 %v1754
    %v2862 = vunpack.c.h.b16 %v1754
    %v2863 = vunpack.c.l.b16 %v1755
    %v2864 = vunpack.c.h.b16 %v1755
    %v2865 = vunpack.c.l.b16 %v1756
    %v2866 = vunpack.c.h.b16 %v1756
    %v2867 = vunpack.c.l.b16 %v1757
    %v2868 = vunpack.c.l.b16 %v1758
    %v2869 = vunpack.c.h.b16 %v1758
    %v2870 = vunpack.c.l.b16 %v1759
    %v2871 = vunpack.c.h.b16 %v1759
    %v2872 = vunpack.c.l.b16 %v1760
    %v2873 = vunpack.c.h.b16 %v1760
    %v2874 = vunpack.c.l.b16 %v1761
    %v2875 = vunpack.c.l.b16 %v1762
    %v2876 = vunpack.c.h.b16 %v1762
    %v2877 = vunpack.c.l.b16 %v1763
    %v2878 = vunpack.c.h.b16 %v1763
    %v2879 = vunpack.c.l.b16 %v1764
    %v2880 = vunpack.c.h.b16 %v1764
    %v2881 = vunpack.c.l.b16 %v1765
    %v2882 = vunpack.c.l.b16 %v1766
    %v2883 = vunpack.c.h.b16 %v1766
    %v2884 = vunpack.c.l.b16 %v1767
    %v2885 = vunpack.c.h.b16 %v1767
    %v2886 = vunpack.c.l.b16 %v1768
    %v2887 = vunpack.c.h.b16 %v1768
    %v2888 = vunpack.c.l.b16 %v1769
    %v2889 = vunpack.c.l.b16 %v1770
    %v2890 = vunpack.c.h.b16 %v1770
    %v2891 = vunpack.c.l.b16 %v1771
    %v2892 = vunpack.c.h.b16 %v1771
    %v2893 = vunpack.c.l.b16 %v1772
    %v2894 = vunpack.c.h.b16 %v1772
    %v2895 = vunpack.c.l.b16 %v1773
    %v2896 = vunpack.c.l.b16 %v1774
    %v2897 = vunpack.c.h.b16 %v1774
    %v2898 = vunpack.c.l.b16 %v1775
    %v2899 = vunpack.c.h.b16 %v1775
    %v2900 = vunpack.c.l.b16 %v1776
    %v2901 = vunpack.c.h.b16 %v1776
    %v2902 = vunpack.c.l.b16 %v1777
    %v2903 = vunpack.c.l.b16 %v1778
    %v2904 = vunpack.c.h.b16 %v1778
    %v2905 = vunpack.c.l.b16 %v1779
    %v2906 = vunpack.c.h.b16 %v1779
    %v2907 = vunpack.c.l.b16 %v1780
    %v2908 = vunpack.c.h.b16 %v1780
    %v2909 = vunpack.c.l.b16 %v1781
    %v2910 = vpack.c.b16 %v2217, %v2210
    %v2911 = vpack.c.b16 %v2218, %v2211
    %v2912 = vpack.c.b16 %v2219, %v2212
    %v2913 = vpack.c.b16 %v2220, %v2213
    %v2914 = vpack.c.b16 %v2221, %v2214
    %v2915 = vpack.c.b16 %v2222, %v2215
    %v2916 = vpack.c.b16 %v2223, %v2216
    %v2917 = vpack.c.b16 %v2231, %v2224
    %v2918 = vpack.c.b16 %v2232, %v2225
    %v2919 = vpack.c.b16 %v2233, %v2226
    %v2920 = vpack.c.b16 %v2234, %v2227
    %v2921 = vpack.c.b16 %v2235, %v2228
    %v2922 = vpack.c.b16 %v2236, %v2229
    %v2923 = vpack.c.b16 %v2237, %v2230
    %v2924 = vpack.c.b16 %v2245, %v2238
    %v2925 = vpack.c.b16 %v2246, %v2239
    %v2926 = vpack.c.b16 %v2247, %v2240
    %v2927 = vpack.c.b16 %v2248, %v2241
    %v2928 = vpack.c.b16 %v2249, %v2242
    %v2929 = vpack.c.b16 %v2250, %v2243
    %v2930 = vpack.c.b16 %v2251, %v2244
    %v2931 = vpack.c.b16 %v2259, %v2252
    %v2932 = vpack.c.b16 %v2260, %v2253
    %v2933 = vpack.c.b16 %v2261, %v2254
    %v2934 = vpack.c.b16 %v2262, %v2255
    %v2935 = vpack.c.b16 %v2263, %v2256
    %v2936 = vpack.c.b16 %v2264, %v2257
    %v2937 = vpack.c.b16 %v2265, %v2258
    %v2938 = vpack.c.b16 %v2273, %v2266
    %v2939 = vpack.c.b16 %v2274, %v2267
    %v2940 = vpack.c.b16 %v2275, %v2268
    %v2941 = vpack.c.b16 %v2276, %v2269
    %v2942 = vpack.c.b16 %v2277, %v2270
    %v2943 = vpack.c.b16 %v2278, %v2271
    %v2944 = vpack.c.b16 %v2279, %v2272
    %v2945 = vpack.c.b16 %v2287, %v2280
    %v2946 = vpack.c.b16 %v2288, %v2281
    %v2947 = vpack.c.b16 %v2289, %v2282
    %v2948 = vpack.c.b16 %v2290, %v2283
    %v2949 = vpack.c.b16 %v2291, %v2284
    %v2950 = vpack.c.b16 %v2292, %v2285
    %v2951 = vpack.c.b16 %v2293, %v2286
    %v2952 = vpack.c.b16 %v2301, %v2294
    %v2953 = vpack.c.b16 %v2302, %v2295
    %v2954 = vpack.c.b16 %v2303, %v2296
    %v2955 = vpack.c.b16 %v2304, %v2297
    %v2956 = vpack.c.b16 %v2305, %v2298
    %v2957 = vpack.c.b16 %v2306, %v2299
    %v2958 = vpack.c.b16 %v2307, %v2300
    %v2959 = vpack.c.b16 %v2315, %v2308
    %v2960 = vpack.c.b16 %v2316, %v2309
    %v2961 = vpack.c.b16 %v2317, %v2310
    %v2962 = vpack.c.b16 %v2318, %v2311
    %v2963 = vpack.c.b16 %v2319, %v2312
    %v2964 = vpack.c.b16 %v2320, %v2313
    %v2965 = vpack.c.b16 %v2321, %v2314
    %v2966 = vpack.c.b16 %v2329, %v2322
    %v2967 = vpack.c.b16 %v2330, %v2323
    %v2968 = vpack.c.b16 %v2331, %v2324
    %v2969 = vpack.c.b16 %v2332, %v2325
    %v2970 = vpack.c.b16 %v2333, %v2326
    %v2971 = vpack.c.b16 %v2334, %v2327
    %v2972 = vpack.c.b16 %v2335, %v2328
    %v2973 = vpack.c.b16 %v2343, %v2336
    %v2974 = vpack.c.b16 %v2344, %v2337
    %v2975 = vpack.c.b16 %v2345, %v2338
    %v2976 = vpack.c.b16 %v2346, %v2339
    %v2977 = vpack.c.b16 %v2347, %v2340
    %v2978 = vpack.c.b16 %v2348, %v2341
    %v2979 = vpack.c.b16 %v2349, %v2342
    %v2980 = vpack.c.b16 %v2357, %v2350
    %v2981 = vpack.c.b16 %v2358, %v2351
    %v2982 = vpack.c.b16 %v2359, %v2352
    %v2983 = vpack.c.b16 %v2360, %v2353
    %v2984 = vpack.c.b16 %v2361, %v2354
    %v2985 = vpack.c.b16 %v2362, %v2355
    %v2986 = vpack.c.b16 %v2363, %v2356
    %v2987 = vpack.c.b16 %v2371, %v2364
    %v2988 = vpack.c.b16 %v2372, %v2365
    %v2989 = vpack.c.b16 %v2373, %v2366
    %v2990 = vpack.c.b16 %v2374, %v2367
    %v2991 = vpack.c.b16 %v2375, %v2368
    %v2992 = vpack.c.b16 %v2376, %v2369
    %v2993 = vpack.c.b16 %v2377, %v2370
    %v2994 = vpack.c.b16 %v2385, %v2378
    %v2995 = vpack.c.b16 %v2386, %v2379
    %v2996 = vpack.c.b16 %v2387, %v2380
    %v2997 = vpack.c.b16 %v2388, %v2381
    %v2998 = vpack.c.b16 %v2389, %v2382
    %v2999 = vpack.c.b16 %v2390, %v2383
    %v3000 = vpack.c.b16 %v2391, %v2384
    %v3001 = vpack.c.b16 %v2399, %v2392
    %v3002 = vpack.c.b16 %v2400, %v2393
    %v3003 = vpack.c.b16 %v2401, %v2394
    %v3004 = vpack.c.b16 %v2402, %v2395
    %v3005 = vpack.c.b16 %v2403, %v2396
    %v3006 = vpack.c.b16 %v2404, %v2397
    %v3007 = vpack.c.b16 %v2405, %v2398
    %v3008 = vpack.c.b16 %v2413, %v2406
    %v3009 = vpack.c.b16 %v2414, %v2407
    %v3010 = vpack.c.b16 %v2415, %v2408
    %v3011 = vpack.c.b16 %v2416, %v2409
    %v3012 = vpack.c.b16 %v2417, %v2410
    %v3013 = vpack.c.b16 %v2418, %v2411
    %v3014 = vpack.c.b16 %v2419, %v2412
    %v3015 = vpack.c.b16 %v2427, %v2420
    %v3016 = vpack.c.b16 %v2428, %v2421
    %v3017 = vpack.c.b16 %v2429, %v2422
    %v3018 = vpack.c.b16 %v2430, %v2423
    %v3019 = vpack.c.b16 %v2431, %v2424
    %v3020 = vpack.c.b16 %v2432, %v2425
    %v3021 = vpack.c.b16 %v2433, %v2426
    %v3022 = vpack.c.b16 %v2441, %v2434
    %v3023 = vpack.c.b16 %v2442, %v2435
    %v3024 = vpack.c.b16 %v2443, %v2436
    %v3025 = vpack.c.b16 %v2444, %v2437
    %v3026 = vpack.c.b16 %v2445, %v2438
    %v3027 = vpack.c.b16 %v2446, %v2439
    %v3028 = vpack.c.b16 %v2447, %v2440
    %v3029 = vpack.c.b16 %v2455, %v2448
    %v3030 = vpack.c.b16 %v2456, %v2449
    %v3031 = vpack.c.b16 %v2457, %v2450
    %v3032 = vpack.c.b16 %v2458, %v2451
    %v3033 = vpack.c.b16 %v2459, %v2452
    %v3034 = vpack.c.b16 %v2460, %v2453
    %v3035 = vpack.c.b16 %v2461, %v2454
    %v3036 = vpack.c.b16 %v2469, %v2462
    %v3037 = vpack.c.b16 %v2470, %v2463
    %v3038 = vpack.c.b16 %v2471, %v2464
    %v3039 = vpack.c.b16 %v2472, %v2465
    %v3040 = vpack.c.b16 %v2473, %v2466
    %v3041 = vpack.c.b16 %v2474, %v2467
    %v3042 = vpack.c.b16 %v2475, %v2468
    %v3043 = vpack.c.b16 %v2483, %v2476
    %v3044 = vpack.c.b16 %v2484, %v2477
    %v3045 = vpack.c.b16 %v2485, %v2478
    %v3046 = vpack.c.b16 %v2486, %v2479
    %v3047 = vpack.c.b16 %v2487, %v2480
    %v3048 = vpack.c.b16 %v2488, %v2481
    %v3049 = vpack.c.b16 %v2489, %v2482
    %v3050 = vpack.c.b16 %v2497, %v2490
    %v3051 = vpack.c.b16 %v2498, %v2491
    %v3052 = vpack.c.b16 %v2499, %v2492
    %v3053 = vpack.c.b16 %v2500, %v2493
    %v3054 = vpack.c.b16 %v2501, %v2494
    %v3055 = vpack.c.b16 %v2502, %v2495
    %v3056 = vpack.c.b16 %v2503, %v2496
    %v3057 = vpack.c.b16 %v2511, %v2504
    %v3058 = vpack.c.b16 %v2512, %v2505
    %v3059 = vpack.c.b16 %v2513, %v2506
    %v3060 = vpack.c.b16 %v2514, %v2507
    %v3061 = vpack.c.b16 %v2515, %v2508
    %v3062 = vpack.c.b16 %v2516, %v2509
    %v3063 = vpack.c.b16 %v2517, %v2510
    %v3064 = vpack.c.b16 %v2525, %v2518
    %v3065 = vpack.c.b16 %v2526, %v2519
    %v3066 = vpack.c.b16 %v2527, %v2520
    %v3067 = vpack.c.b16 %v2528, %v2521
    %v3068 = vpack.c.b16 %v2529, %v2522
    %v3069 = vpack.c.b16 %v2530, %v2523
    %v3070 = vpack.c.b16 %v2531, %v2524
    %v3071 = vpack.c.b16 %v2539, %v2532
    %v3072 = vpack.c.b16 %v2540, %v2533
    %v3073 = vpack.c.b16 %v2541, %v2534
    %v3074 = vpack.c.b16 %v2542, %v2535
    %v3075 = vpack.c.b16 %v2543, %v2536
    %v3076 = vpack.c.b16 %v2544, %v2537
    %v3077 = vpack.c.b16 %v2545, %v2538
    %v3078 = vpack.c.b16 %v2553, %v2546
    %v3079 = vpack.c.b16 %v2554, %v2547
    %v3080 = vpack.c.b16 %v2555, %v2548
    %v3081 = vpack.c.b16 %v2556, %v2549
    %v3082 = vpack.c.b16 %v2557, %v2550
    %v3083 = vpack.c.b16 %v2558, %v2551
    %v3084 = vpack.c.b16 %v2559, %v2552
    %v3085 = vpack.c.b16 %v2567, %v2560
    %v3086 = vpack.c.b16 %v2568, %v2561
    %v3087 = vpack.c.b16 %v2569, %v2562
    %v3088 = vpack.c.b16 %v2570, %v2563
    %v3089 = vpack.c.b16 %v2571, %v2564
    %v3090 = vpack.c.b16 %v2572, %v2565
    %v3091 = vpack.c.b16 %v2573, %v2566
    %v3092 = vpack.c.b16 %v2581, %v2574
    %v3093 = vpack.c.b16 %v2582, %v2575
    %v3094 = vpack.c.b16 %v2583, %v2576
    %v3095 = vpack.c.b16 %v2584, %v2577
    %v3096 = vpack.c.b16 %v2585, %v2578
    %v3097 = vpack.c.b16 %v2586, %v2579
    %v3098 = vpack.c.b16 %v2587, %v2580
    %v3099 = vpack.c.b16 %v2595, %v2588
    %v3100 = vpack.c.b16 %v2596, %v2589
    %v3101 = vpack.c.b16 %v2597, %v2590
    %v3102 = vpack.c.b16 %v2598, %v2591
    %v3103 = vpack.c.b16 %v2599, %v2592
    %v3104 = vpack.c.b16 %v2600, %v2593
    %v3105 = vpack.c.b16 %v2601, %v2594
    %v3106 = vpack.c.b16 %v2609, %v2602
    %v3107 = vpack.c.b16 %v2610, %v2603
    %v3108 = vpack.c.b16 %v2611, %v2604
    %v3109 = vpack.c.b16 %v2612, %v2605
    %v3110 = vpack.c.b16 %v2613, %v2606
    %v3111 = vpack.c.b16 %v2614, %v2607
    %v3112 = vpack.c.b16 %v2615, %v2608
    %v3113 = vpack.c.b16 %v2623, %v2616
    %v3114 = vpack.c.b16 %v2624, %v2617
    %v3115 = vpack.c.b16 %v2625, %v2618
    %v3116 = vpack.c.b16 %v2626, %v2619
    %v3117 = vpack.c.b16 %v2627, %v2620
    %v3118 = vpack.c.b16 %v2628, %v2621
    %v3119 = vpack.c.b16 %v2629, %v2622
    %v3120 = vpack.c.b16 %v2637, %v2630
    %v3121 = vpack.c.b16 %v2638, %v2631
    %v3122 = vpack.c.b16 %v2639, %v2632
    %v3123 = vpack.c.b16 %v2640, %v2633
    %v3124 = vpack.c.b16 %v2641, %v2634
    %v3125 = vpack.c.b16 %v2642, %v2635
    %v3126 = vpack.c.b16 %v2643, %v2636
    %v3127 = vpack.c.b16 %v2651, %v2644
    %v3128 = vpack.c.b16 %v2652, %v2645
    %v3129 = vpack.c.b16 %v2653, %v2646
    %v3130 = vpack.c.b16 %v2654, %v2647
    %v3131 = vpack.c.b16 %v2655, %v2648
    %v3132 = vpack.c.b16 %v2656, %v2649
    %v3133 = vpack.c.b16 %v2657, %v2650
    %v3134 = vpack.c.b16 %v2665, %v2658
    %v3135 = vpack.c.b16 %v2666, %v2659
    %v3136 = vpack.c.b16 %v2667, %v2660
    %v3137 = vpack.c.b16 %v2668, %v2661
    %v3138 = vpack.c.b16 %v2669, %v2662
    %v3139 = vpack.c.b16 %v2670, %v2663
    %v3140 = vpack.c.b16 %v2671, %v2664
    %v3141 = vpack.c.b16 %v2679, %v2672
    %v3142 = vpack.c.b16 %v2680, %v2673
    %v3143 = vpack.c.b16 %v2681, %v2674
    %v3144 = vpack.c.b16 %v2682, %v2675
    %v3145 = vpack.c.b16 %v2683, %v2676
    %v3146 = vpack.c.b16 %v2684, %v2677
    %v3147 = vpack.c.b16 %v2685, %v2678
    %v3148 = vpack.c.b16 %v2693, %v2686
    %v3149 = vpack.c.b16 %v2694, %v2687
    %v3150 = vpack.c.b16 %v2695, %v2688
    %v3151 = vpack.c.b16 %v2696, %v2689
    %v3152 = vpack.c.b16 %v2697, %v2690
    %v3153 = vpack.c.b16 %v2698, %v2691
    %v3154 = vpack.c.b16 %v2699, %v2692
    %v3155 = vpack.c.b16 %v2707, %v2700
    %v3156 = vpack.c.b16 %v2708, %v2701
    %v3157 = vpack.c.b16 %v2709, %v2702
    %v3158 = vpack.c.b16 %v2710, %v2703
    %v3159 = vpack.c.b16 %v2711, %v2704
    %v3160 = vpack.c.b16 %v2712, %v2705
    %v3161 = vpack.c.b16 %v2713, %v2706
    %v3162 = vpack.c.b16 %v2721, %v2714
    %v3163 = vpack.c.b16 %v2722, %v2715
    %v3164 = vpack.c.b16 %v2723, %v2716
    %v3165 = vpack.c.b16 %v2724, %v2717
    %v3166 = vpack.c.b16 %v2725, %v2718
    %v3167 = vpack.c.b16 %v2726, %v2719
    %v3168 = vpack.c.b16 %v2727, %v2720
    %v3169 = vpack.c.b16 %v2735, %v2728
    %v3170 = vpack.c.b16 %v2736, %v2729
    %v3171 = vpack.c.b16 %v2737, %v2730
    %v3172 = vpack.c.b16 %v2738, %v2731
    %v3173 = vpack.c.b16 %v2739, %v2732
    %v3174 = vpack.c.b16 %v2740, %v2733
    %v3175 = vpack.c.b16 %v2741, %v2734
    %v3176 = vpack.c.b16 %v2749, %v2742
    %v3177 = vpack.c.b16 %v2750, %v2743
    %v3178 = vpack.c.b16 %v2751, %v2744
    %v3179 = vpack.c.b16 %v2752, %v2745
    %v3180 = vpack.c.b16 %v2753, %v2746
    %v3181 = vpack.c.b16 %v2754, %v2747
    %v3182 = vpack.c.b16 %v2755, %v2748
    %v3183 = vpack.c.b16 %v2763, %v2756
    %v3184 = vpack.c.b16 %v2764, %v2757
    %v3185 = vpack.c.b16 %v2765, %v2758
    %v3186 = vpack.c.b16 %v2766, %v2759
    %v3187 = vpack.c.b16 %v2767, %v2760
    %v3188 = vpack.c.b16 %v2768, %v2761
    %v3189 = vpack.c.b16 %v2769, %v2762
    %v3190 = vpack.c.b16 %v2777, %v2770
    %v3191 = vpack.c.b16 %v2778, %v2771
    %v3192 = vpack.c.b16 %v2779, %v2772
    %v3193 = vpack.c.b16 %v2780, %v2773
    %v3194 = vpack.c.b16 %v2781, %v2774
    %v3195 = vpack.c.b16 %v2782, %v2775
    %v3196 = vpack.c.b16 %v2783, %v2776
    %v3197 = vpack.c.b16 %v2791, %v2784
    %v3198 = vpack.c.b16 %v2792, %v2785
    %v3199 = vpack.c.b16 %v2793, %v2786
    %v3200 = vpack.c.b16 %v2794, %v2787
    %v3201 = vpack.c.b16 %v2795, %v2788
    %v3202 = vpack.c.b16 %v2796, %v2789
    %v3203 = vpack.c.b16 %v2797, %v2790
    %v3204 = vpack.c.b16 %v2805, %v2798
    %v3205 = vpack.c.b16 %v2806, %v2799
    %v3206 = vpack.c.b16 %v2807, %v2800
    %v3207 = vpack.c.b16 %v2808, %v2801
    %v3208 = vpack.c.b16 %v2809, %v2802
    %v3209 = vpack.c.b16 %v2810, %v2803
    %v3210 = vpack.c.b16 %v2811, %v2804
    %v3211 = vpack.c.b16 %v2819, %v2812
    %v3212 = vpack.c.b16 %v2820, %v2813
    %v3213 = vpack.c.b16 %v2821, %v2814
    %v3214 = vpack.c.b16 %v2822, %v2815
    %v3215 = vpack.c.b16 %v2823, %v2816
    %v3216 = vpack.c.b16 %v2824, %v2817
    %v3217 = vpack.c.b16 %v2825, %v2818
    %v3218 = vpack.c.b16 %v2833, %v2826
    %v3219 = vpack.c.b16 %v2834, %v2827
    %v3220 = vpack.c.b16 %v2835, %v2828
    %v3221 = vpack.c.b16 %v2836, %v2829
    %v3222 = vpack.c.b16 %v2837, %v2830
    %v3223 = vpack.c.b16 %v2838, %v2831
    %v3224 = vpack.c.b16 %v2839, %v2832
    %v3225 = vpack.c.b16 %v2847, %v2840
    %v3226 = vpack.c.b16 %v2848, %v2841
    %v3227 = vpack.c.b16 %v2849, %v2842
    %v3228 = vpack.c.b16 %v2850, %v2843
    %v3229 = vpack.c.b16 %v2851, %v2844
    %v3230 = vpack.c.b16 %v2852, %v2845
    %v3231 = vpack.c.b16 %v2853, %v2846
    %v3232 = vpack.c.b16 %v2861, %v2854
    %v3233 = vpack.c.b16 %v2862, %v2855
    %v3234 = vpack.c.b16 %v2863, %v2856
    %v3235 = vpack.c.b16 %v2864, %v2857
    %v3236 = vpack.c.b16 %v2865, %v2858
    %v3237 = vpack.c.b16 %v2866, %v2859
    %v3238 = vpack.c.b16 %v2867, %v2860
    %v3239 = vpack.c.b16 %v2875, %v2868
    %v3240 = vpack.c.b16 %v2876, %v2869
    %v3241 = vpack.c.b16 %v2877, %v2870
    %v3242 = vpack.c.b16 %v2878, %v2871
    %v3243 = vpack.c.b16 %v2879, %v2872
    %v3244 = vpack.c.b16 %v2880, %v2873
    %v3245 = vpack.c.b16 %v2881, %v2874
    %v3246 = vpack.c.b16 %v2889, %v2882
    %v3247 = vpack.c.b16 %v2890, %v2883
    %v3248 = vpack.c.b16 %v2891, %v2884
    %v3249 = vpack.c.b16 %v2892, %v2885
    %v3250 = vpack.c.b16 %v2893, %v2886
    %v3251 = vpack.c.b16 %v2894, %v2887
    %v3252 = vpack.c.b16 %v2895, %v2888
    %v3253 = vpack.c.b16 %v2903, %v2896
    %v3254 = vpack.c.b16 %v2904, %v2897
    %v3255 = vpack.c.b16 %v2905, %v2898
    %v3256 = vpack.c.b16 %v2906, %v2899
    %v3257 = vpack.c.b16 %v2907, %v2900
    %v3258 = vpack.c.b16 %v2908, %v2901
    %v3259 = vpack.c.b16 %v2909, %v2902
    %vm3610 = vcmask 261120
    %v3612 = vsel %vm3610, %v1381, 0
    %3614 = vmatprep.subr.bf16.mxu0 %v2911
    %3615 = vmatpush1.bf16.msra.mxu0 %v2910
    %3616 = vmatprep.subr.bf16.mxu0 %v2918
    %3617 = vmatpush1.bf16.msra.mxu0 %v2917
    %3618 = vmatprep.subr.bf16.mxu0 %v2925
    %3619 = vmatpush1.bf16.msra.mxu0 %v2924
    %3620 = vmatprep.subr.bf16.mxu0 %v2932
    %3621 = vmatpush1.bf16.msra.mxu0 %v2931
    %3622 = vmatprep.subr.bf16.mxu0 %v2939
    %3623 = vmatpush1.bf16.msra.mxu0 %v2938
    %3624 = vmatprep.subr.bf16.mxu0 %v2946
    %3625 = vmatpush1.bf16.msra.mxu0 %v2945
    %3626 = vmatprep.subr.bf16.mxu0 %v2953
    %3627 = vmatpush1.bf16.msra.mxu0 %v2952
    %3628 = vmatprep.subr.bf16.mxu0 %v2960
    %3629 = vmatpush1.bf16.msra.mxu0 %v2959
    %3630 = vmatprep.subr.bf16.mxu0 %v2967
    %3631 = vmatpush1.bf16.msra.mxu0 %v2966
    %3632 = vmatprep.subr.bf16.mxu0 %v2974
    %3633 = vmatpush1.bf16.msra.mxu0 %v2973
    %3634 = vmatprep.subr.bf16.mxu0 %v2981
    %3635 = vmatpush1.bf16.msra.mxu0 %v2980
    %3636 = vmatprep.subr.bf16.mxu0 %v2988
    %3637 = vmatpush1.bf16.msra.mxu0 %v2987
    %3638 = vmatprep.subr.bf16.mxu0 %v2995
    %3639 = vmatpush1.bf16.msra.mxu0 %v2994
    %3640 = vmatprep.subr.bf16.mxu0 %v3002
    %3641 = vmatpush1.bf16.msra.mxu0 %v3001
    %3642 = vmatprep.subr.bf16.mxu0 %v3009
    %3643 = vmatpush1.bf16.msra.mxu0 %v3008
    %3644 = vmatprep.subr.bf16.mxu0 %v3016
    %3645 = vmatpush1.bf16.msra.mxu0 %v3015
    %3646 = vmatprep.mubr.bf16.mxu0 %v1376
    %3647 = vmatmul.mubr.bf16.gmra.mrb[0].mxu0 %v1375
    %v3648 = vpop.f32.mrb[0].mxu0
    %v3649 = vadd.f32 %v1785, %v3648
    %v3650 = vpop.f32.mrb[0].mxu0
    %v3651 = vadd.f32 %v1789, %v3650
    %v3652 = vpop.f32.mrb[0].mxu0
    %v3653 = vpop.f32.mrb[0].mxu0
    %3654 = vdwg.mxu0
    %3655 = vmatprep.subr.bf16.mxu0 %v3023
    %3656 = vmatpush1.bf16.msra.mxu0 %v3022
    %3657 = vmatprep.subr.bf16.mxu0 %v3030
    %3658 = vmatpush1.bf16.msra.mxu0 %v3029
    %3659 = vmatprep.subr.bf16.mxu0 %v3037
    %3660 = vmatpush1.bf16.msra.mxu0 %v3036
    %3661 = vmatprep.subr.bf16.mxu0 %v3044
    %3662 = vmatpush1.bf16.msra.mxu0 %v3043
    %3663 = vmatprep.subr.bf16.mxu0 %v3051
    %3664 = vmatpush1.bf16.msra.mxu0 %v3050
    %3665 = vmatprep.subr.bf16.mxu0 %v3058
    %3666 = vmatpush1.bf16.msra.mxu0 %v3057
    %3667 = vmatprep.subr.bf16.mxu0 %v3065
    %3668 = vmatpush1.bf16.msra.mxu0 %v3064
    %3669 = vmatprep.subr.bf16.mxu0 %v3072
    %3670 = vmatpush1.bf16.msra.mxu0 %v3071
    %3671 = vmatprep.subr.bf16.mxu0 %v3079
    %3672 = vmatpush1.bf16.msra.mxu0 %v3078
    %3673 = vmatprep.subr.bf16.mxu0 %v3086
    %3674 = vmatpush1.bf16.msra.mxu0 %v3085
    %3675 = vmatprep.subr.bf16.mxu0 %v3093
    %3676 = vmatpush1.bf16.msra.mxu0 %v3092
    %3677 = vmatprep.subr.bf16.mxu0 %v3100
    %3678 = vmatpush1.bf16.msra.mxu0 %v3099
    %3679 = vmatprep.subr.bf16.mxu0 %v3107
    %3680 = vmatpush1.bf16.msra.mxu0 %v3106
    %3681 = vmatprep.subr.bf16.mxu0 %v3114
    %3682 = vmatpush1.bf16.msra.mxu0 %v3113
    %3683 = vmatprep.subr.bf16.mxu0 %v3121
    %3684 = vmatpush1.bf16.msra.mxu0 %v3120
    %3685 = vmatprep.subr.bf16.mxu0 %v3128
    %3686 = vmatpush1.bf16.msra.mxu0 %v3127
    %3687 = vmatprep.mubr.bf16.mxu0 %v1378
    %3688 = vmatmul.mubr.bf16.gmra.mrb[0].mxu0 %v1377
    %v3689 = vpop.f32.mrb[0].mxu0
    %v3690 = vadd.f32 %v3649, %v3689
    %v3691 = vpop.f32.mrb[0].mxu0
    %v3692 = vadd.f32 %v3651, %v3691
    %v3693 = vpop.f32.mrb[0].mxu0
    %v3694 = vpop.f32.mrb[0].mxu0
    %3695 = vdwg.mxu0
    %3696 = vmatprep.subr.bf16.mxu0 %v3135
    %3697 = vmatpush1.bf16.msra.mxu0 %v3134
    %3698 = vmatprep.subr.bf16.mxu0 %v3142
    %3699 = vmatpush1.bf16.msra.mxu0 %v3141
    %3700 = vmatprep.subr.bf16.mxu0 %v3149
    %3701 = vmatpush1.bf16.msra.mxu0 %v3148
    %3702 = vmatprep.subr.bf16.mxu0 %v3156
    %3703 = vmatpush1.bf16.msra.mxu0 %v3155
    %3704 = vmatprep.subr.bf16.mxu0 %v3163
    %3705 = vmatpush1.bf16.msra.mxu0 %v3162
    %3706 = vmatprep.subr.bf16.mxu0 %v3170
    %3707 = vmatpush1.bf16.msra.mxu0 %v3169
    %3708 = vmatprep.subr.bf16.mxu0 %v3177
    %3709 = vmatpush1.bf16.msra.mxu0 %v3176
    %3710 = vmatprep.subr.bf16.mxu0 %v3184
    %3711 = vmatpush1.bf16.msra.mxu0 %v3183
    %3712 = vmatprep.subr.bf16.mxu0 %v3191
    %3713 = vmatpush1.bf16.msra.mxu0 %v3190
    %3714 = vmatprep.subr.bf16.mxu0 %v3198
    %3715 = vmatpush1.bf16.msra.mxu0 %v3197
    %3716 = vmatprep.subr.bf16.mxu0 %v3205
    %3717 = vmatpush1.bf16.msra.mxu0 %v3204
    %3718 = vmatprep.subr.bf16.mxu0 %v3212
    %3719 = vmatpush1.bf16.msra.mxu0 %v3211
    %3720 = vmatprep.subr.bf16.mxu0 %v3219
    %3721 = vmatpush1.bf16.msra.mxu0 %v3218
    %3722 = vmatprep.subr.bf16.mxu0 %v3226
    %3723 = vmatpush1.bf16.msra.mxu0 %v3225
    %3724 = vmatprep.subr.bf16.mxu0 %v3233
    %3725 = vmatpush1.bf16.msra.mxu0 %v3232
    %3726 = vmatprep.subr.bf16.mxu0 %v3240
    %3727 = vmatpush1.bf16.msra.mxu0 %v3239
    %3728 = vmatprep.mubr.bf16.mxu0 %v1380
    %3729 = vmatmul.mubr.bf16.gmra.mrb[0].mxu0 %v1379
    %v3730 = vpop.f32.mrb[0].mxu0
    %v3731 = vadd.f32 %v3690, %v3730
    %v3732 = vpop.f32.mrb[0].mxu0
    %v3733 = vadd.f32 %v3692, %v3732
    %v3734 = vpop.f32.mrb[0].mxu0
    %v3735 = vpop.f32.mrb[0].mxu0
    %3736 = vdwg.mxu0
    %3737 = vmatprep.subr.bf16.mxu0 %v3247
    %3738 = vmatpush1.bf16.msra.mxu0 %v3246
    %3739 = vmatprep.subr.bf16.mxu0 %v3254
    %3740 = vmatpush1.bf16.msra.mxu0 %v3253
    %3741 = vmatprep.subr.bf16.mxu0 0
    %3742 = vmatpush1.bf16.msra.mxu0 0
    %3743 = vmatprep.subr.bf16.mxu0 0
    %3744 = vmatpush1.bf16.msra.mxu0 0
    %3745 = vmatprep.subr.bf16.mxu0 0
    %3746 = vmatpush1.bf16.msra.mxu0 0
    %3747 = vmatprep.subr.bf16.mxu0 0
    %3748 = vmatpush1.bf16.msra.mxu0 0
    %3749 = vmatprep.subr.bf16.mxu0 0
    %3750 = vmatpush1.bf16.msra.mxu0 0
    %3751 = vmatprep.subr.bf16.mxu0 0
    %3752 = vmatpush1.bf16.msra.mxu0 0
    %3753 = vmatprep.subr.bf16.mxu0 0
    %3754 = vmatpush1.bf16.msra.mxu0 0
    %3755 = vmatprep.subr.bf16.mxu0 0
    %3756 = vmatpush1.bf16.msra.mxu0 0
    %3757 = vmatprep.subr.bf16.mxu0 0
    %3758 = vmatpush1.bf16.msra.mxu0 0
    %3759 = vmatprep.subr.bf16.mxu0 0
    %3760 = vmatpush1.bf16.msra.mxu0 0
    %3761 = vmatprep.subr.bf16.mxu0 0
    %3762 = vmatpush1.bf16.msra.mxu0 0
    %3763 = vmatprep.subr.bf16.mxu0 0
    %3764 = vmatpush1.bf16.msra.mxu0 0
    %3765 = vmatprep.subr.bf16.mxu0 0
    %3766 = vmatpush1.bf16.msra.mxu0 0
    %3767 = vmatprep.subr.bf16.mxu0 0
    %3768 = vmatpush1.bf16.msra.mxu0 0
    %3769 = vmatprep.mubr.bf16.mxu0 0
    %3770 = vmatmul.mubr.bf16.gmra.mrb[0].mxu0 %v3612
    %v3771 = vpop.f32.mrb[0].mxu0
    %v3772 = vadd.f32 %v3731, %v3771
    %v3773 = vpop.f32.mrb[0].mxu0
    %v3774 = vadd.f32 %v3733, %v3773
    %v3775 = vpop.f32.mrb[0].mxu0
    %v3776 = vpop.f32.mrb[0].mxu0
    %3777 = vdwg.mxu0
    %3778 = vmatprep.subr.bf16.mxu0 %v2913
    %3779 = vmatpush1.bf16.msra.mxu0 %v2912
    %3780 = vmatprep.subr.bf16.mxu0 %v2920
    %3781 = vmatpush1.bf16.msra.mxu0 %v2919
    %3782 = vmatprep.subr.bf16.mxu0 %v2927
    %3783 = vmatpush1.bf16.msra.mxu0 %v2926
    %3784 = vmatprep.subr.bf16.mxu0 %v2934
    %3785 = vmatpush1.bf16.msra.mxu0 %v2933
    %3786 = vmatprep.subr.bf16.mxu0 %v2941
    %3787 = vmatpush1.bf16.msra.mxu0 %v2940
    %3788 = vmatprep.subr.bf16.mxu0 %v2948
    %3789 = vmatpush1.bf16.msra.mxu0 %v2947
    %3790 = vmatprep.subr.bf16.mxu0 %v2955
    %3791 = vmatpush1.bf16.msra.mxu0 %v2954
    %3792 = vmatprep.subr.bf16.mxu0 %v2962
    %3793 = vmatpush1.bf16.msra.mxu0 %v2961
    %3794 = vmatprep.subr.bf16.mxu0 %v2969
    %3795 = vmatpush1.bf16.msra.mxu0 %v2968
    %3796 = vmatprep.subr.bf16.mxu0 %v2976
    %3797 = vmatpush1.bf16.msra.mxu0 %v2975
    %3798 = vmatprep.subr.bf16.mxu0 %v2983
    %3799 = vmatpush1.bf16.msra.mxu0 %v2982
    %3800 = vmatprep.subr.bf16.mxu0 %v2990
    %3801 = vmatpush1.bf16.msra.mxu0 %v2989
    %3802 = vmatprep.subr.bf16.mxu0 %v2997
    %3803 = vmatpush1.bf16.msra.mxu0 %v2996
    %3804 = vmatprep.subr.bf16.mxu0 %v3004
    %3805 = vmatpush1.bf16.msra.mxu0 %v3003
    %3806 = vmatprep.subr.bf16.mxu0 %v3011
    %3807 = vmatpush1.bf16.msra.mxu0 %v3010
    %3808 = vmatprep.subr.bf16.mxu0 %v3018
    %3809 = vmatpush1.bf16.msra.mxu0 %v3017
    %3810 = vmatprep.mubr.bf16.mxu0 %v1376
    %3811 = vmatmul.mubr.bf16.gmra.mrb[0].mxu0 %v1375
    %v3812 = vpop.f32.mrb[0].mxu0
    %v3813 = vadd.f32 %v1793, %v3812
    %v3814 = vpop.f32.mrb[0].mxu0
    %v3815 = vadd.f32 %v1797, %v3814
    %v3816 = vpop.f32.mrb[0].mxu0
    %v3817 = vpop.f32.mrb[0].mxu0
    %3818 = vdwg.mxu0
    %3819 = vmatprep.subr.bf16.mxu0 %v3025
    %3820 = vmatpush1.bf16.msra.mxu0 %v3024
    %3821 = vmatprep.subr.bf16.mxu0 %v3032
    %3822 = vmatpush1.bf16.msra.mxu0 %v3031
    %3823 = vmatprep.subr.bf16.mxu0 %v3039
    %3824 = vmatpush1.bf16.msra.mxu0 %v3038
    %3825 = vmatprep.subr.bf16.mxu0 %v3046
    %3826 = vmatpush1.bf16.msra.mxu0 %v3045
    %3827 = vmatprep.subr.bf16.mxu0 %v3053
    %3828 = vmatpush1.bf16.msra.mxu0 %v3052
    %3829 = vmatprep.subr.bf16.mxu0 %v3060
    %3830 = vmatpush1.bf16.msra.mxu0 %v3059
    %3831 = vmatprep.subr.bf16.mxu0 %v3067
    %3832 = vmatpush1.bf16.msra.mxu0 %v3066
    %3833 = vmatprep.subr.bf16.mxu0 %v3074
    %3834 = vmatpush1.bf16.msra.mxu0 %v3073
    %3835 = vmatprep.subr.bf16.mxu0 %v3081
    %3836 = vmatpush1.bf16.msra.mxu0 %v3080
    %3837 = vmatprep.subr.bf16.mxu0 %v3088
    %3838 = vmatpush1.bf16.msra.mxu0 %v3087
    %3839 = vmatprep.subr.bf16.mxu0 %v3095
    %3840 = vmatpush1.bf16.msra.mxu0 %v3094
    %3841 = vmatprep.subr.bf16.mxu0 %v3102
    %3842 = vmatpush1.bf16.msra.mxu0 %v3101
    %3843 = vmatprep.subr.bf16.mxu0 %v3109
    %3844 = vmatpush1.bf16.msra.mxu0 %v3108
    %3845 = vmatprep.subr.bf16.mxu0 %v3116
    %3846 = vmatpush1.bf16.msra.mxu0 %v3115
    %3847 = vmatprep.subr.bf16.mxu0 %v3123
    %3848 = vmatpush1.bf16.msra.mxu0 %v3122
    %3849 = vmatprep.subr.bf16.mxu0 %v3130
    %3850 = vmatpush1.bf16.msra.mxu0 %v3129
    %3851 = vmatprep.mubr.bf16.mxu0 %v1378
    %3852 = vmatmul.mubr.bf16.gmra.mrb[0].mxu0 %v1377
    %v3853 = vpop.f32.mrb[0].mxu0
    %v3854 = vadd.f32 %v3813, %v3853
    %v3855 = vpop.f32.mrb[0].mxu0
    %v3856 = vadd.f32 %v3815, %v3855
    %v3857 = vpop.f32.mrb[0].mxu0
    %v3858 = vpop.f32.mrb[0].mxu0
    %3859 = vdwg.mxu0
    %3860 = vmatprep.subr.bf16.mxu0 %v3137
    %3861 = vmatpush1.bf16.msra.mxu0 %v3136
    %3862 = vmatprep.subr.bf16.mxu0 %v3144
    %3863 = vmatpush1.bf16.msra.mxu0 %v3143
    %3864 = vmatprep.subr.bf16.mxu0 %v3151
    %3865 = vmatpush1.bf16.msra.mxu0 %v3150
    %3866 = vmatprep.subr.bf16.mxu0 %v3158
    %3867 = vmatpush1.bf16.msra.mxu0 %v3157
    %3868 = vmatprep.subr.bf16.mxu0 %v3165
    %3869 = vmatpush1.bf16.msra.mxu0 %v3164
    %3870 = vmatprep.subr.bf16.mxu0 %v3172
    %3871 = vmatpush1.bf16.msra.mxu0 %v3171
    %3872 = vmatprep.subr.bf16.mxu0 %v3179
    %3873 = vmatpush1.bf16.msra.mxu0 %v3178
    %3874 = vmatprep.subr.bf16.mxu0 %v3186
    %3875 = vmatpush1.bf16.msra.mxu0 %v3185
    %3876 = vmatprep.subr.bf16.mxu0 %v3193
    %3877 = vmatpush1.bf16.msra.mxu0 %v3192
    %3878 = vmatprep.subr.bf16.mxu0 %v3200
    %3879 = vmatpush1.bf16.msra.mxu0 %v3199
    %3880 = vmatprep.subr.bf16.mxu0 %v3207
    %3881 = vmatpush1.bf16.msra.mxu0 %v3206
    %3882 = vmatprep.subr.bf16.mxu0 %v3214
    %3883 = vmatpush1.bf16.msra.mxu0 %v3213
    %3884 = vmatprep.subr.bf16.mxu0 %v3221
    %3885 = vmatpush1.bf16.msra.mxu0 %v3220
    %3886 = vmatprep.subr.bf16.mxu0 %v3228
    %3887 = vmatpush1.bf16.msra.mxu0 %v3227
    %3888 = vmatprep.subr.bf16.mxu0 %v3235
    %3889 = vmatpush1.bf16.msra.mxu0 %v3234
    %3890 = vmatprep.subr.bf16.mxu0 %v3242
    %3891 = vmatpush1.bf16.msra.mxu0 %v3241
    %3892 = vmatprep.mubr.bf16.mxu0 %v1380
    %3893 = vmatmul.mubr.bf16.gmra.mrb[0].mxu0 %v1379
    %v3894 = vpop.f32.mrb[0].mxu0
    %v3895 = vadd.f32 %v3854, %v3894
    %v3896 = vpop.f32.mrb[0].mxu0
    %v3897 = vadd.f32 %v3856, %v3896
    %v3898 = vpop.f32.mrb[0].mxu0
    %v3899 = vpop.f32.mrb[0].mxu0
    %3900 = vdwg.mxu0
    %3901 = vmatprep.subr.bf16.mxu0 %v3249
    %3902 = vmatpush1.bf16.msra.mxu0 %v3248
    %3903 = vmatprep.subr.bf16.mxu0 %v3256
    %3904 = vmatpush1.bf16.msra.mxu0 %v3255
    %3905 = vmatprep.subr.bf16.mxu0 0
    %3906 = vmatpush1.bf16.msra.mxu0 0
    %3907 = vmatprep.subr.bf16.mxu0 0
    %3908 = vmatpush1.bf16.msra.mxu0 0
    %3909 = vmatprep.subr.bf16.mxu0 0
    %3910 = vmatpush1.bf16.msra.mxu0 0
    %3911 = vmatprep.subr.bf16.mxu0 0
    %3912 = vmatpush1.bf16.msra.mxu0 0
    %3913 = vmatprep.subr.bf16.mxu0 0
    %3914 = vmatpush1.bf16.msra.mxu0 0
    %3915 = vmatprep.subr.bf16.mxu0 0
    %3916 = vmatpush1.bf16.msra.mxu0 0
    %3917 = vmatprep.subr.bf16.mxu0 0
    %3918 = vmatpush1.bf16.msra.mxu0 0
    %3919 = vmatprep.subr.bf16.mxu0 0
    %3920 = vmatpush1.bf16.msra.mxu0 0
    %3921 = vmatprep.subr.bf16.mxu0 0
    %3922 = vmatpush1.bf16.msra.mxu0 0
    %3923 = vmatprep.subr.bf16.mxu0 0
    %3924 = vmatpush1.bf16.msra.mxu0 0
    %3925 = vmatprep.subr.bf16.mxu0 0
    %3926 = vmatpush1.bf16.msra.mxu0 0
    %3927 = vmatprep.subr.bf16.mxu0 0
    %3928 = vmatpush1.bf16.msra.mxu0 0
    %3929 = vmatprep.subr.bf16.mxu0 0
    %3930 = vmatpush1.bf16.msra.mxu0 0
    %3931 = vmatprep.subr.bf16.mxu0 0
    %3932 = vmatpush1.bf16.msra.mxu0 0
    %3933 = vmatprep.mubr.bf16.mxu0 0
    %3934 = vmatmul.mubr.bf16.gmra.mrb[0].mxu0 %v3612
    %v3935 = vpop.f32.mrb[0].mxu0
    %v3936 = vadd.f32 %v3895, %v3935
    %v3937 = vpop.f32.mrb[0].mxu0
    %v3938 = vadd.f32 %v3897, %v3937
    %v3939 = vpop.f32.mrb[0].mxu0
    %v3940 = vpop.f32.mrb[0].mxu0
    %3941 = vdwg.mxu0
    %3942 = vmatprep.subr.bf16.mxu0 %v2915
    %3943 = vmatpush1.bf16.msra.mxu0 %v2914
    %3944 = vmatprep.subr.bf16.mxu0 %v2922
    %3945 = vmatpush1.bf16.msra.mxu0 %v2921
    %3946 = vmatprep.subr.bf16.mxu0 %v2929
    %3947 = vmatpush1.bf16.msra.mxu0 %v2928
    %3948 = vmatprep.subr.bf16.mxu0 %v2936
    %3949 = vmatpush1.bf16.msra.mxu0 %v2935
    %3950 = vmatprep.subr.bf16.mxu0 %v2943
    %3951 = vmatpush1.bf16.msra.mxu0 %v2942
    %3952 = vmatprep.subr.bf16.mxu0 %v2950
    %3953 = vmatpush1.bf16.msra.mxu0 %v2949
    %3954 = vmatprep.subr.bf16.mxu0 %v2957
    %3955 = vmatpush1.bf16.msra.mxu0 %v2956
    %3956 = vmatprep.subr.bf16.mxu0 %v2964
    %3957 = vmatpush1.bf16.msra.mxu0 %v2963
    %3958 = vmatprep.subr.bf16.mxu0 %v2971
    %3959 = vmatpush1.bf16.msra.mxu0 %v2970
    %3960 = vmatprep.subr.bf16.mxu0 %v2978
    %3961 = vmatpush1.bf16.msra.mxu0 %v2977
    %3962 = vmatprep.subr.bf16.mxu0 %v2985
    %3963 = vmatpush1.bf16.msra.mxu0 %v2984
    %3964 = vmatprep.subr.bf16.mxu0 %v2992
    %3965 = vmatpush1.bf16.msra.mxu0 %v2991
    %3966 = vmatprep.subr.bf16.mxu0 %v2999
    %3967 = vmatpush1.bf16.msra.mxu0 %v2998
    %3968 = vmatprep.subr.bf16.mxu0 %v3006
    %3969 = vmatpush1.bf16.msra.mxu0 %v3005
    %3970 = vmatprep.subr.bf16.mxu0 %v3013
    %3971 = vmatpush1.bf16.msra.mxu0 %v3012
    %3972 = vmatprep.subr.bf16.mxu0 %v3020
    %3973 = vmatpush1.bf16.msra.mxu0 %v3019
    %3974 = vmatprep.mubr.bf16.mxu0 %v1376
    %3975 = vmatmul.mubr.bf16.gmra.mrb[0].mxu0 %v1375
    %v3976 = vpop.f32.mrb[0].mxu0
    %v3977 = vadd.f32 %v1801, %v3976
    %v3978 = vpop.f32.mrb[0].mxu0
    %v3979 = vadd.f32 %v1805, %v3978
    %v3980 = vpop.f32.mrb[0].mxu0
    %v3981 = vpop.f32.mrb[0].mxu0
    %3982 = vdwg.mxu0
    %3983 = vmatprep.subr.bf16.mxu0 %v3027
    %3984 = vmatpush1.bf16.msra.mxu0 %v3026
    %3985 = vmatprep.subr.bf16.mxu0 %v3034
    %3986 = vmatpush1.bf16.msra.mxu0 %v3033
    %3987 = vmatprep.subr.bf16.mxu0 %v3041
    %3988 = vmatpush1.bf16.msra.mxu0 %v3040
    %3989 = vmatprep.subr.bf16.mxu0 %v3048
    %3990 = vmatpush1.bf16.msra.mxu0 %v3047
    %3991 = vmatprep.subr.bf16.mxu0 %v3055
    %3992 = vmatpush1.bf16.msra.mxu0 %v3054
    %3993 = vmatprep.subr.bf16.mxu0 %v3062
    %3994 = vmatpush1.bf16.msra.mxu0 %v3061
    %3995 = vmatprep.subr.bf16.mxu0 %v3069
    %3996 = vmatpush1.bf16.msra.mxu0 %v3068
    %3997 = vmatprep.subr.bf16.mxu0 %v3076
    %3998 = vmatpush1.bf16.msra.mxu0 %v3075
    %3999 = vmatprep.subr.bf16.mxu0 %v3083
    %4000 = vmatpush1.bf16.msra.mxu0 %v3082
    %4001 = vmatprep.subr.bf16.mxu0 %v3090
    %4002 = vmatpush1.bf16.msra.mxu0 %v3089
    %4003 = vmatprep.subr.bf16.mxu0 %v3097
    %4004 = vmatpush1.bf16.msra.mxu0 %v3096
    %4005 = vmatprep.subr.bf16.mxu0 %v3104
    %4006 = vmatpush1.bf16.msra.mxu0 %v3103
    %4007 = vmatprep.subr.bf16.mxu0 %v3111
    %4008 = vmatpush1.bf16.msra.mxu0 %v3110
    %4009 = vmatprep.subr.bf16.mxu0 %v3118
    %4010 = vmatpush1.bf16.msra.mxu0 %v3117
    %4011 = vmatprep.subr.bf16.mxu0 %v3125
    %4012 = vmatpush1.bf16.msra.mxu0 %v3124
    %4013 = vmatprep.subr.bf16.mxu0 %v3132
    %4014 = vmatpush1.bf16.msra.mxu0 %v3131
    %4015 = vmatprep.mubr.bf16.mxu0 %v1378
    %4016 = vmatmul.mubr.bf16.gmra.mrb[0].mxu0 %v1377
    %v4017 = vpop.f32.mrb[0].mxu0
    %v4018 = vadd.f32 %v3977, %v4017
    %v4019 = vpop.f32.mrb[0].mxu0
    %v4020 = vadd.f32 %v3979, %v4019
    %v4021 = vpop.f32.mrb[0].mxu0
    %v4022 = vpop.f32.mrb[0].mxu0
    %4023 = vdwg.mxu0
    %4024 = vmatprep.subr.bf16.mxu0 %v3139
    %4025 = vmatpush1.bf16.msra.mxu0 %v3138
    %4026 = vmatprep.subr.bf16.mxu0 %v3146
    %4027 = vmatpush1.bf16.msra.mxu0 %v3145
    %4028 = vmatprep.subr.bf16.mxu0 %v3153
    %4029 = vmatpush1.bf16.msra.mxu0 %v3152
    %4030 = vmatprep.subr.bf16.mxu0 %v3160
    %4031 = vmatpush1.bf16.msra.mxu0 %v3159
    %4032 = vmatprep.subr.bf16.mxu0 %v3167
    %4033 = vmatpush1.bf16.msra.mxu0 %v3166
    %4034 = vmatprep.subr.bf16.mxu0 %v3174
    %4035 = vmatpush1.bf16.msra.mxu0 %v3173
    %4036 = vmatprep.subr.bf16.mxu0 %v3181
    %4037 = vmatpush1.bf16.msra.mxu0 %v3180
    %4038 = vmatprep.subr.bf16.mxu0 %v3188
    %4039 = vmatpush1.bf16.msra.mxu0 %v3187
    %4040 = vmatprep.subr.bf16.mxu0 %v3195
    %4041 = vmatpush1.bf16.msra.mxu0 %v3194
    %4042 = vmatprep.subr.bf16.mxu0 %v3202
    %4043 = vmatpush1.bf16.msra.mxu0 %v3201
    %4044 = vmatprep.subr.bf16.mxu0 %v3209
    %4045 = vmatpush1.bf16.msra.mxu0 %v3208
    %4046 = vmatprep.subr.bf16.mxu0 %v3216
    %4047 = vmatpush1.bf16.msra.mxu0 %v3215
    %4048 = vmatprep.subr.bf16.mxu0 %v3223
    %4049 = vmatpush1.bf16.msra.mxu0 %v3222
    %4050 = vmatprep.subr.bf16.mxu0 %v3230
    %4051 = vmatpush1.bf16.msra.mxu0 %v3229
    %4052 = vmatprep.subr.bf16.mxu0 %v3237
    %4053 = vmatpush1.bf16.msra.mxu0 %v3236
    %4054 = vmatprep.subr.bf16.mxu0 %v3244
    %4055 = vmatpush1.bf16.msra.mxu0 %v3243
    %4056 = vmatprep.mubr.bf16.mxu0 %v1380
    %4057 = vmatmul.mubr.bf16.gmra.mrb[0].mxu0 %v1379
    %v4058 = vpop.f32.mrb[0].mxu0
    %v4059 = vadd.f32 %v4018, %v4058
    %v4060 = vpop.f32.mrb[0].mxu0
    %v4061 = vadd.f32 %v4020, %v4060
    %v4062 = vpop.f32.mrb[0].mxu0
    %v4063 = vpop.f32.mrb[0].mxu0
    %4064 = vdwg.mxu0
    %4065 = vmatprep.subr.bf16.mxu0 %v3251
    %4066 = vmatpush1.bf16.msra.mxu0 %v3250
    %4067 = vmatprep.subr.bf16.mxu0 %v3258
    %4068 = vmatpush1.bf16.msra.mxu0 %v3257
    %4069 = vmatprep.subr.bf16.mxu0 0
    %4070 = vmatpush1.bf16.msra.mxu0 0
    %4071 = vmatprep.subr.bf16.mxu0 0
    %4072 = vmatpush1.bf16.msra.mxu0 0
    %4073 = vmatprep.subr.bf16.mxu0 0
    %4074 = vmatpush1.bf16.msra.mxu0 0
    %4075 = vmatprep.subr.bf16.mxu0 0
    %4076 = vmatpush1.bf16.msra.mxu0 0
    %4077 = vmatprep.subr.bf16.mxu0 0
    %4078 = vmatpush1.bf16.msra.mxu0 0
    %4079 = vmatprep.subr.bf16.mxu0 0
    %4080 = vmatpush1.bf16.msra.mxu0 0
    %4081 = vmatprep.subr.bf16.mxu0 0
    %4082 = vmatpush1.bf16.msra.mxu0 0
    %4083 = vmatprep.subr.bf16.mxu0 0
    %4084 = vmatpush1.bf16.msra.mxu0 0
    %4085 = vmatprep.subr.bf16.mxu0 0
    %4086 = vmatpush1.bf16.msra.mxu0 0
    %4087 = vmatprep.subr.bf16.mxu0 0
    %4088 = vmatpush1.bf16.msra.mxu0 0
    %4089 = vmatprep.subr.bf16.mxu0 0
    %4090 = vmatpush1.bf16.msra.mxu0 0
    %4091 = vmatprep.subr.bf16.mxu0 0
    %4092 = vmatpush1.bf16.msra.mxu0 0
    %4093 = vmatprep.subr.bf16.mxu0 0
    %4094 = vmatpush1.bf16.msra.mxu0 0
    %4095 = vmatprep.subr.bf16.mxu0 0
    %4096 = vmatpush1.bf16.msra.mxu0 0
    %4097 = vmatprep.mubr.bf16.mxu0 0
    %4098 = vmatmul.mubr.bf16.gmra.mrb[0].mxu0 %v3612
    %v4099 = vpop.f32.mrb[0].mxu0
    %v4100 = vadd.f32 %v4059, %v4099
    %v4101 = vpop.f32.mrb[0].mxu0
    %v4102 = vadd.f32 %v4061, %v4101
    %v4103 = vpop.f32.mrb[0].mxu0
    %v4104 = vpop.f32.mrb[0].mxu0
    %4105 = vdwg.mxu0
    %4106 = vmatprep.subr.bf16.mxu0 0
    %4107 = vmatpush1.bf16.msra.mxu0 %v2916
    %4108 = vmatprep.subr.bf16.mxu0 0
    %4109 = vmatpush1.bf16.msra.mxu0 %v2923
    %4110 = vmatprep.subr.bf16.mxu0 0
    %4111 = vmatpush1.bf16.msra.mxu0 %v2930
    %4112 = vmatprep.subr.bf16.mxu0 0
    %4113 = vmatpush1.bf16.msra.mxu0 %v2937
    %4114 = vmatprep.subr.bf16.mxu0 0
    %4115 = vmatpush1.bf16.msra.mxu0 %v2944
    %4116 = vmatprep.subr.bf16.mxu0 0
    %4117 = vmatpush1.bf16.msra.mxu0 %v2951
    %4118 = vmatprep.subr.bf16.mxu0 0
    %4119 = vmatpush1.bf16.msra.mxu0 %v2958
    %4120 = vmatprep.subr.bf16.mxu0 0
    %4121 = vmatpush1.bf16.msra.mxu0 %v2965
    %4122 = vmatprep.subr.bf16.mxu0 0
    %4123 = vmatpush1.bf16.msra.mxu0 %v2972
    %4124 = vmatprep.subr.bf16.mxu0 0
    %4125 = vmatpush1.bf16.msra.mxu0 %v2979
    %4126 = vmatprep.subr.bf16.mxu0 0
    %4127 = vmatpush1.bf16.msra.mxu0 %v2986
    %4128 = vmatprep.subr.bf16.mxu0 0
    %4129 = vmatpush1.bf16.msra.mxu0 %v2993
    %4130 = vmatprep.subr.bf16.mxu0 0
    %4131 = vmatpush1.bf16.msra.mxu0 %v3000
    %4132 = vmatprep.subr.bf16.mxu0 0
    %4133 = vmatpush1.bf16.msra.mxu0 %v3007
    %4134 = vmatprep.subr.bf16.mxu0 0
    %4135 = vmatpush1.bf16.msra.mxu0 %v3014
    %4136 = vmatprep.subr.bf16.mxu0 0
    %4137 = vmatpush1.bf16.msra.mxu0 %v3021
    %4138 = vmatprep.mubr.bf16.mxu0 %v1376
    %4139 = vmatmul.mubr.bf16.gmra.mrb[0].mxu0 %v1375
    %v4140 = vpop.f32.mrb[0].mxu0
    %v4141 = vadd.f32 %v1809, %v4140
    %v4142 = vpop.f32.mrb[0].mxu0
    %v4143 = vpop.f32.mrb[0].mxu0
    %v4144 = vpop.f32.mrb[0].mxu0
    %4145 = vdwg.mxu0
    %4146 = vmatprep.subr.bf16.mxu0 0
    %4147 = vmatpush1.bf16.msra.mxu0 %v3028
    %4148 = vmatprep.subr.bf16.mxu0 0
    %4149 = vmatpush1.bf16.msra.mxu0 %v3035
    %4150 = vmatprep.subr.bf16.mxu0 0
    %4151 = vmatpush1.bf16.msra.mxu0 %v3042
    %4152 = vmatprep.subr.bf16.mxu0 0
    %4153 = vmatpush1.bf16.msra.mxu0 %v3049
    %4154 = vmatprep.subr.bf16.mxu0 0
    %4155 = vmatpush1.bf16.msra.mxu0 %v3056
    %4156 = vmatprep.subr.bf16.mxu0 0
    %4157 = vmatpush1.bf16.msra.mxu0 %v3063
    %4158 = vmatprep.subr.bf16.mxu0 0
    %4159 = vmatpush1.bf16.msra.mxu0 %v3070
    %4160 = vmatprep.subr.bf16.mxu0 0
    %4161 = vmatpush1.bf16.msra.mxu0 %v3077
    %4162 = vmatprep.subr.bf16.mxu0 0
    %4163 = vmatpush1.bf16.msra.mxu0 %v3084
    %4164 = vmatprep.subr.bf16.mxu0 0
    %4165 = vmatpush1.bf16.msra.mxu0 %v3091
    %4166 = vmatprep.subr.bf16.mxu0 0
    %4167 = vmatpush1.bf16.msra.mxu0 %v3098
    %4168 = vmatprep.subr.bf16.mxu0 0
    %4169 = vmatpush1.bf16.msra.mxu0 %v3105
    %4170 = vmatprep.subr.bf16.mxu0 0
    %4171 = vmatpush1.bf16.msra.mxu0 %v3112
    %4172 = vmatprep.subr.bf16.mxu0 0
    %4173 = vmatpush1.bf16.msra.mxu0 %v3119
    %4174 = vmatprep.subr.bf16.mxu0 0
    %4175 = vmatpush1.bf16.msra.mxu0 %v3126
    %4176 = vmatprep.subr.bf16.mxu0 0
    %4177 = vmatpush1.bf16.msra.mxu0 %v3133
    %4178 = vmatprep.mubr.bf16.mxu0 %v1378
    %4179 = vmatmul.mubr.bf16.gmra.mrb[0].mxu0 %v1377
    %v4180 = vpop.f32.mrb[0].mxu0
    %v4181 = vadd.f32 %v4141, %v4180
    %v4182 = vpop.f32.mrb[0].mxu0
    %v4183 = vpop.f32.mrb[0].mxu0
    %v4184 = vpop.f32.mrb[0].mxu0
    %4185 = vdwg.mxu0
    %4186 = vmatprep.subr.bf16.mxu0 0
    %4187 = vmatpush1.bf16.msra.mxu0 %v3140
    %4188 = vmatprep.subr.bf16.mxu0 0
    %4189 = vmatpush1.bf16.msra.mxu0 %v3147
    %4190 = vmatprep.subr.bf16.mxu0 0
    %4191 = vmatpush1.bf16.msra.mxu0 %v3154
    %4192 = vmatprep.subr.bf16.mxu0 0
    %4193 = vmatpush1.bf16.msra.mxu0 %v3161
    %4194 = vmatprep.subr.bf16.mxu0 0
    %4195 = vmatpush1.bf16.msra.mxu0 %v3168
    %4196 = vmatprep.subr.bf16.mxu0 0
    %4197 = vmatpush1.bf16.msra.mxu0 %v3175
    %4198 = vmatprep.subr.bf16.mxu0 0
    %4199 = vmatpush1.bf16.msra.mxu0 %v3182
    %4200 = vmatprep.subr.bf16.mxu0 0
    %4201 = vmatpush1.bf16.msra.mxu0 %v3189
    %4202 = vmatprep.subr.bf16.mxu0 0
    %4203 = vmatpush1.bf16.msra.mxu0 %v3196
    %4204 = vmatprep.subr.bf16.mxu0 0
    %4205 = vmatpush1.bf16.msra.mxu0 %v3203
    %4206 = vmatprep.subr.bf16.mxu0 0
    %4207 = vmatpush1.bf16.msra.mxu0 %v3210
    %4208 = vmatprep.subr.bf16.mxu0 0
    %4209 = vmatpush1.bf16.msra.mxu0 %v3217
    %4210 = vmatprep.subr.bf16.mxu0 0
    %4211 = vmatpush1.bf16.msra.mxu0 %v3224
    %4212 = vmatprep.subr.bf16.mxu0 0
    %4213 = vmatpush1.bf16.msra.mxu0 %v3231
    %4214 = vmatprep.subr.bf16.mxu0 0
    %4215 = vmatpush1.bf16.msra.mxu0 %v3238
    %4216 = vmatprep.subr.bf16.mxu0 0
    %4217 = vmatpush1.bf16.msra.mxu0 %v3245
    %4218 = vmatprep.mubr.bf16.mxu0 %v1380
    %4219 = vmatmul.mubr.bf16.gmra.mrb[0].mxu0 %v1379
    %v4220 = vpop.f32.mrb[0].mxu0
    %v4221 = vadd.f32 %v4181, %v4220
    %v4222 = vpop.f32.mrb[0].mxu0
    %v4223 = vpop.f32.mrb[0].mxu0
    %v4224 = vpop.f32.mrb[0].mxu0
    %4225 = vdwg.mxu0
    %4226 = vmatprep.subr.bf16.mxu0 0
    %4227 = vmatpush1.bf16.msra.mxu0 %v3252
    %4228 = vmatprep.subr.bf16.mxu0 0
    %4229 = vmatpush1.bf16.msra.mxu0 %v3259
    %4230 = vmatprep.subr.bf16.mxu0 0
    %4231 = vmatpush1.bf16.msra.mxu0 0
    %4232 = vmatprep.subr.bf16.mxu0 0
    %4233 = vmatpush1.bf16.msra.mxu0 0
    %4234 = vmatprep.subr.bf16.mxu0 0
    %4235 = vmatpush1.bf16.msra.mxu0 0
    %4236 = vmatprep.subr.bf16.mxu0 0
    %4237 = vmatpush1.bf16.msra.mxu0 0
    %4238 = vmatprep.subr.bf16.mxu0 0
    %4239 = vmatpush1.bf16.msra.mxu0 0
    %4240 = vmatprep.subr.bf16.mxu0 0
    %4241 = vmatpush1.bf16.msra.mxu0 0
    %4242 = vmatprep.subr.bf16.mxu0 0
    %4243 = vmatpush1.bf16.msra.mxu0 0
    %4244 = vmatprep.subr.bf16.mxu0 0
    %4245 = vmatpush1.bf16.msra.mxu0 0
    %4246 = vmatprep.subr.bf16.mxu0 0
    %4247 = vmatpush1.bf16.msra.mxu0 0
    %4248 = vmatprep.subr.bf16.mxu0 0
    %4249 = vmatpush1.bf16.msra.mxu0 0
    %4250 = vmatprep.subr.bf16.mxu0 0
    %4251 = vmatpush1.bf16.msra.mxu0 0
    %4252 = vmatprep.subr.bf16.mxu0 0
    %4253 = vmatpush1.bf16.msra.mxu0 0
    %4254 = vmatprep.subr.bf16.mxu0 0
    %4255 = vmatpush1.bf16.msra.mxu0 0
    %4256 = vmatprep.subr.bf16.mxu0 0
    %4257 = vmatpush1.bf16.msra.mxu0 0
    %4258 = vmatprep.mubr.bf16.mxu0 0
    %4259 = vmatmul.mubr.bf16.gmra.mrb[0].mxu0 %v3612
    %v4260 = vpop.f32.mrb[0].mxu0
    %v4261 = vadd.f32 %v4221, %v4260
    %v4262 = vpop.f32.mrb[0].mxu0
    %v4263 = vpop.f32.mrb[0].mxu0
    %v4264 = vpop.f32.mrb[0].mxu0
    %4265 = vdwg.mxu0
    %v4266 = vsel %vm1148, %v3772, 0.0
    %v4267 = vrot.slane %v4266, 4
    %v4268 = vadd.f32 %v4266, %v4267
    %v4269 = vrot.slane %v4268, 2
    %v4270 = vadd.f32 %v4268, %v4269
    %v4271 = vrot.slane %v4270, 1
    %v4272 = vadd.f32 %v4270, %v4271
    %v4273 = vsel %vm1148, %v3774, 0.0
    %v4274 = vrot.slane %v4273, 4
    %v4275 = vadd.f32 %v4273, %v4274
    %v4276 = vrot.slane %v4275, 2
    %v4277 = vadd.f32 %v4275, %v4276
    %v4278 = vrot.slane %v4277, 1
    %v4279 = vadd.f32 %v4277, %v4278
    %v4280 = vsel %vm1148, %v3936, 0.0
    %v4281 = vrot.slane %v4280, 4
    %v4282 = vadd.f32 %v4280, %v4281
    %v4283 = vrot.slane %v4282, 2
    %v4284 = vadd.f32 %v4282, %v4283
    %v4285 = vrot.slane %v4284, 1
    %v4286 = vadd.f32 %v4284, %v4285
    %v4287 = vsel %vm1148, %v3938, 0.0
    %v4288 = vrot.slane %v4287, 4
    %v4289 = vadd.f32 %v4287, %v4288
    %v4290 = vrot.slane %v4289, 2
    %v4291 = vadd.f32 %v4289, %v4290
    %v4292 = vrot.slane %v4291, 1
    %v4293 = vadd.f32 %v4291, %v4292
    %v4294 = vsel %vm1148, %v4100, 0.0
    %v4295 = vrot.slane %v4294, 4
    %v4296 = vadd.f32 %v4294, %v4295
    %v4297 = vrot.slane %v4296, 2
    %v4298 = vadd.f32 %v4296, %v4297
    %v4299 = vrot.slane %v4298, 1
    %v4300 = vadd.f32 %v4298, %v4299
    %v4301 = vsel %vm1148, %v4102, 0.0
    %v4302 = vrot.slane %v4301, 4
    %v4303 = vadd.f32 %v4301, %v4302
    %v4304 = vrot.slane %v4303, 2
    %v4305 = vadd.f32 %v4303, %v4304
    %v4306 = vrot.slane %v4305, 1
    %v4307 = vadd.f32 %v4305, %v4306
    %v4308 = vsel %vm1191, %v4261, 0.0
    %v4309 = vrot.slane %v4308, 4
    %v4310 = vadd.f32 %v4308, %v4309
    %v4311 = vrot.slane %v4310, 2
    %v4312 = vadd.f32 %v4310, %v4311
    %v4313 = vrot.slane %v4312, 1
    %v4314 = vadd.f32 %v4312, %v4313
    %v4315 = vmul.f32 %v4272, %v1199
    %v4316 = vmul.f32 %v4279, %v1199
    %v4317 = vmul.f32 %v4286, %v1199
    %v4318 = vmul.f32 %v4293, %v1199
    %v4319 = vmul.f32 %v4300, %v1199
    %v4320 = vmul.f32 %v4307, %v1199
    %v4321 = vmul.f32 %v4314, %v1199
    %v4322 = vsub.f32 %v3772, %v4315
    %v4323 = vsub.f32 %v3774, %v4316
    %v4324 = vsub.f32 %v3936, %v4317
    %v4325 = vsub.f32 %v3938, %v4318
    %v4326 = vsub.f32 %v4100, %v4319
    %v4327 = vsub.f32 %v4102, %v4320
    %v4328 = vsub.f32 %v4261, %v4321
    %v4329 = vmul.f32 %v4322, %v4322
    %v4330 = vmul.f32 %v4323, %v4323
    %v4331 = vmul.f32 %v4324, %v4324
    %v4332 = vmul.f32 %v4325, %v4325
    %v4333 = vmul.f32 %v4326, %v4326
    %v4334 = vmul.f32 %v4327, %v4327
    %v4335 = vmul.f32 %v4328, %v4328
    %v4336 = vsel %vm1148, %v4329, 0.0
    %v4337 = vrot.slane %v4336, 4
    %v4338 = vadd.f32 %v4336, %v4337
    %v4339 = vrot.slane %v4338, 2
    %v4340 = vadd.f32 %v4338, %v4339
    %v4341 = vrot.slane %v4340, 1
    %v4342 = vadd.f32 %v4340, %v4341
    %v4343 = vsel %vm1148, %v4330, 0.0
    %v4344 = vrot.slane %v4343, 4
    %v4345 = vadd.f32 %v4343, %v4344
    %v4346 = vrot.slane %v4345, 2
    %v4347 = vadd.f32 %v4345, %v4346
    %v4348 = vrot.slane %v4347, 1
    %v4349 = vadd.f32 %v4347, %v4348
    %v4350 = vsel %vm1148, %v4331, 0.0
    %v4351 = vrot.slane %v4350, 4
    %v4352 = vadd.f32 %v4350, %v4351
    %v4353 = vrot.slane %v4352, 2
    %v4354 = vadd.f32 %v4352, %v4353
    %v4355 = vrot.slane %v4354, 1
    %v4356 = vadd.f32 %v4354, %v4355
    %v4357 = vsel %vm1148, %v4332, 0.0
    %v4358 = vrot.slane %v4357, 4
    %v4359 = vadd.f32 %v4357, %v4358
    %v4360 = vrot.slane %v4359, 2
    %v4361 = vadd.f32 %v4359, %v4360
    %v4362 = vrot.slane %v4361, 1
    %v4363 = vadd.f32 %v4361, %v4362
    %v4364 = vsel %vm1148, %v4333, 0.0
    %v4365 = vrot.slane %v4364, 4
    %v4366 = vadd.f32 %v4364, %v4365
    %v4367 = vrot.slane %v4366, 2
    %v4368 = vadd.f32 %v4366, %v4367
    %v4369 = vrot.slane %v4368, 1
    %v4370 = vadd.f32 %v4368, %v4369
    %v4371 = vsel %vm1148, %v4334, 0.0
    %v4372 = vrot.slane %v4371, 4
    %v4373 = vadd.f32 %v4371, %v4372
    %v4374 = vrot.slane %v4373, 2
    %v4375 = vadd.f32 %v4373, %v4374
    %v4376 = vrot.slane %v4375, 1
    %v4377 = vadd.f32 %v4375, %v4376
    %v4378 = vsel %vm1191, %v4335, 0.0
    %v4379 = vrot.slane %v4378, 4
    %v4380 = vadd.f32 %v4378, %v4379
    %v4381 = vrot.slane %v4380, 2
    %v4382 = vadd.f32 %v4380, %v4381
    %v4383 = vrot.slane %v4382, 1
    %v4384 = vadd.f32 %v4382, %v4383
    %v4385 = vmul.f32 %v4342, %v1199
    %v4386 = vmul.f32 %v4349, %v1199
    %v4387 = vmul.f32 %v4356, %v1199
    %v4388 = vmul.f32 %v4363, %v1199
    %v4389 = vmul.f32 %v4370, %v1199
    %v4390 = vmul.f32 %v4377, %v1199
    %v4391 = vmul.f32 %v4384, %v1199
    %v4392 = vadd.f32 %v4385, 1e-05
    %v4393 = vadd.f32 %v4386, 1e-05
    %v4394 = vadd.f32 %v4387, 1e-05
    %v4395 = vadd.f32 %v4388, 1e-05
    %v4396 = vadd.f32 %v4389, 1e-05
    %v4397 = vadd.f32 %v4390, 1e-05
    %v4398 = vadd.f32 %v4391, 1e-05
    %v4399 = vrsqrt.pop %v4392
    %v4400 = vrsqrt.pop %v4393
    %v4401 = vrsqrt.pop %v4394
    %v4402 = vrsqrt.pop %v4395
    %v4403 = vrsqrt.pop %v4396
    %v4404 = vrsqrt.pop %v4397
    %v4405 = vrsqrt.pop %v4398
    %v4406 = vmul.f32 %v4322, %v4399
    %v4407 = vmul.f32 %v4323, %v4400
    %v4408 = vmul.f32 %v4324, %v4401
    %v4409 = vmul.f32 %v4325, %v4402
    %v4410 = vmul.f32 %v4326, %v4403
    %v4411 = vmul.f32 %v4327, %v4404
    %v4412 = vmul.f32 %v4328, %v4405
    %v4413 = vlaneseq
    %v4414 = vshrl.u32 %v4413, 7
    %v4415 = vsub.s32 4, %v4414
    %v4416 = vrot.slane %v232, %v4415
    %v4417 = vlaneseq
    %v4418 = vshrl.u32 %v4417, 7
    %v4419 = vsub.s32 4, %v4418
    %v4420 = vrot.slane %v233, %v4419
    %v4421 = vlaneseq
    %v4422 = vshrl.u32 %v4421, 7
    %v4423 = vsub.s32 4, %v4422
    %v4424 = vrot.slane %v234, %v4423
    %v4425 = vlaneseq
    %v4426 = vshrl.u32 %v4425, 7
    %v4427 = vsub.s32 4, %v4426
    %v4428 = vrot.slane %v235, %v4427
    %v4429 = vlaneseq
    %v4430 = vshrl.u32 %v4429, 7
    %v4431 = vsub.s32 4, %v4430
    %v4432 = vrot.slane %v236, %v4431
    %v4433 = vlaneseq
    %v4434 = vshrl.u32 %v4433, 7
    %v4435 = vsub.s32 4, %v4434
    %v4436 = vrot.slane %v237, %v4435
    %v4437 = vlaneseq
    %v4438 = vshrl.u32 %v4437, 7
    %v4439 = vsub.s32 4, %v4438
    %v4440 = vrot.slane %v238, %v4439
    %v4441 = vmul.f32 %v4416, %v4406
    %v4442 = vmul.f32 %v4420, %v4407
    %v4443 = vmul.f32 %v4424, %v4408
    %v4444 = vmul.f32 %v4428, %v4409
    %v4445 = vmul.f32 %v4432, %v4410
    %v4446 = vmul.f32 %v4436, %v4411
    %v4447 = vmul.f32 %v4440, %v4412
    %v4448 = vlaneseq
    %v4449 = vshrl.u32 %v4448, 7
    %v4450 = vsub.s32 5, %v4449
    %v4451 = vrot.slane %v232, %v4450
    %v4452 = vlaneseq
    %v4453 = vshrl.u32 %v4452, 7
    %v4454 = vsub.s32 5, %v4453
    %v4455 = vrot.slane %v233, %v4454
    %v4456 = vlaneseq
    %v4457 = vshrl.u32 %v4456, 7
    %v4458 = vsub.s32 5, %v4457
    %v4459 = vrot.slane %v234, %v4458
    %v4460 = vlaneseq
    %v4461 = vshrl.u32 %v4460, 7
    %v4462 = vsub.s32 5, %v4461
    %v4463 = vrot.slane %v235, %v4462
    %v4464 = vlaneseq
    %v4465 = vshrl.u32 %v4464, 7
    %v4466 = vsub.s32 5, %v4465
    %v4467 = vrot.slane %v236, %v4466
    %v4468 = vlaneseq
    %v4469 = vshrl.u32 %v4468, 7
    %v4470 = vsub.s32 5, %v4469
    %v4471 = vrot.slane %v237, %v4470
    %v4472 = vlaneseq
    %v4473 = vshrl.u32 %v4472, 7
    %v4474 = vsub.s32 5, %v4473
    %v4475 = vrot.slane %v238, %v4474
    %v4476 = vadd.f32 %v4441, %v4451
    %v4477 = vadd.f32 %v4442, %v4455
    %v4478 = vadd.f32 %v4443, %v4459
    %v4479 = vadd.f32 %v4444, %v4463
    %v4480 = vadd.f32 %v4445, %v4467
    %v4481 = vadd.f32 %v4446, %v4471
    %v4482 = vadd.f32 %v4447, %v4475
    %v4483 = vmax.f32 %v4476, 0.0
    %v4484 = vmax.f32 %v4477, 0.0
    %v4485 = vmax.f32 %v4478, 0.0
    %v4486 = vmax.f32 %v4479, 0.0
    %v4487 = vmax.f32 %v4480, 0.0
    %v4488 = vmax.f32 %v4481, 0.0
    %v4489 = vmax.f32 %v4482, 0.0
    %v4490 = vpack.c.bf16 %v4483, %v4483
    %v4491 = vpack.c.bf16 %v4484, %v4484
    %v4492 = vpack.c.bf16 %v4485, %v4485
    %v4493 = vpack.c.bf16 %v4486, %v4486
    %v4494 = vpack.c.bf16 %v4487, %v4487
    %v4495 = vpack.c.bf16 %v4488, %v4488
    %v4496 = vpack.c.bf16 %v4489, %v4489
    %v4497 = vld [vmem:[%s5] sm:$0xf]
    %v4498 = vld [vmem:[%s5 + $0x4] sm:$0xf]
    %v4499 = vld [vmem:[%s5 + $0x8] sm:$0xf]
    %v4500 = vld [vmem:[%s5 + $0xc] sm:$0xf]
    %v4501 = vld [vmem:[%s5 + $0x10] sm:$0xf]
    %v4502 = vld [vmem:[%s5 + $0x14] sm:$0xf]
    %v4503 = vld [vmem:[%s5 + $0x18] sm:$0xf]
    %v4504 = vld [vmem:[%s5 + $0x1c] sm:$0xf]
    %v4505 = vld [vmem:[%s5 + $0x20] sm:$0xf]
    %v4506 = vld [vmem:[%s5 + $0x24] sm:$0xf]
    %v4507 = vld [vmem:[%s5 + $0x28] sm:$0xf]
    %v4508 = vld [vmem:[%s5 + $0x2c] sm:$0xf]
    %v4509 = vld [vmem:[%s5 + $0x30] sm:$0xf]
    %v4510 = vld [vmem:[%s5 + $0x34] sm:$0xf]
    %v4511 = vld [vmem:[%s5 + $0x38] sm:$0xf]
    %v4512 = vld [vmem:[%s5 + $0x3c] sm:$0xf]
    %v4513 = vld [vmem:[%s5 + $0x40] sm:$0xf]
    %v4514 = vld [vmem:[%s5 + $0x44] sm:$0xf]
    %v4515 = vld [vmem:[%s5 + $0x48] sm:$0xf]
    %v4516 = vld [vmem:[%s5 + $0x4c] sm:$0xf]
    %v4517 = vld [vmem:[%s5 + $0x50] sm:$0xf]
    %v4518 = vld [vmem:[%s5 + $0x54] sm:$0xf]
    %v4519 = vld [vmem:[%s5 + $0x58] sm:$0xf]
    %v4520 = vld [vmem:[%s5 + $0x5c] sm:$0xf]
    %v4521 = vld [vmem:[%s5 + $0x60] sm:$0xf]
    %v4522 = vld [vmem:[%s5 + $0x64] sm:$0xf]
    %v4523 = vld [vmem:[%s5 + $0x68] sm:$0xf]
    %v4524 = vld [vmem:[%s5 + $0x6c] sm:$0xf]
    %v4525 = vld [vmem:[%s5 + $0x70] sm:$0xf]
    %v4526 = vld [vmem:[%s5 + $0x74] sm:$0xf]
    %v4527 = vld [vmem:[%s5 + $0x78] sm:$0xf]
    %v4528 = vld [vmem:[%s5 + $0x7c] sm:$0xf]
    %v4529 = vld [vmem:[%s5 + $0x80] sm:$0xf]
    %v4530 = vld [vmem:[%s5 + $0x84] sm:$0xf]
    %v4531 = vld [vmem:[%s5 + $0x88] sm:$0xf]
    %v4532 = vld [vmem:[%s5 + $0x8c] sm:$0xf]
    %v4533 = vld [vmem:[%s5 + $0x90] sm:$0xf]
    %v4534 = vld [vmem:[%s5 + $0x94] sm:$0xf]
    %v4535 = vld [vmem:[%s5 + $0x98] sm:$0xf]
    %v4536 = vld [vmem:[%s5 + $0x9c] sm:$0xf]
    %v4537 = vld [vmem:[%s5 + $0xa0] sm:$0xf]
    %v4538 = vld [vmem:[%s5 + $0xa4] sm:$0xf]
    %v4539 = vld [vmem:[%s5 + $0xa8] sm:$0xf]
    %v4540 = vld [vmem:[%s5 + $0xac] sm:$0xf]
    %v4541 = vld [vmem:[%s5 + $0xb0] sm:$0xf]
    %v4542 = vld [vmem:[%s5 + $0xb4] sm:$0xf]
    %v4543 = vld [vmem:[%s5 + $0xb8] sm:$0xf]
    %v4544 = vld [vmem:[%s5 + $0xbc] sm:$0xf]
    %v4545 = vld [vmem:[%s5 + $0xc0] sm:$0xf]
    %v4546 = vld [vmem:[%s5 + $0xc4] sm:$0xf]
    %v4547 = vld [vmem:[%s5 + $0xc8] sm:$0xf]
    %v4548 = vld [vmem:[%s5 + $0xcc] sm:$0xf]
    %v4549 = vld [vmem:[%s5 + $0xd0] sm:$0xf]
    %v4550 = vld [vmem:[%s5 + $0xd4] sm:$0xf]
    %v4551 = vld [vmem:[%s5 + $0xd8] sm:$0xf]
    %v4552 = vld [vmem:[%s5 + $0xdc] sm:$0xf]
    %v4553 = vld [vmem:[%s5 + $0xe0] sm:$0xf]
    %v4554 = vld [vmem:[%s5 + $0xe4] sm:$0xf]
    %v4555 = vld [vmem:[%s5 + $0xe8] sm:$0xf]
    %v4556 = vld [vmem:[%s5 + $0xec] sm:$0xf]
    %v4557 = vld [vmem:[%s5 + $0xf0] sm:$0xf]
    %v4558 = vld [vmem:[%s5 + $0xf4] sm:$0xf]
    %v4559 = vld [vmem:[%s5 + $0xf8] sm:$0xf]
    %v4560 = vld [vmem:[%s5 + $0xfc] sm:$0xf]
    %v4561 = vld [vmem:[%s5 + $0x100] sm:$0xf]
    %v4562 = vld [vmem:[%s5 + $0x104] sm:$0xf]
    %v4563 = vld [vmem:[%s5 + $0x108] sm:$0xf]
    %v4564 = vld [vmem:[%s5 + $0x10c] sm:$0xf]
    %v4565 = vld [vmem:[%s5 + $0x110] sm:$0xf]
    %v4566 = vld [vmem:[%s5 + $0x114] sm:$0xf]
    %v4567 = vld [vmem:[%s5 + $0x118] sm:$0xf]
    %v4568 = vld [vmem:[%s5 + $0x11c] sm:$0xf]
    %v4569 = vld [vmem:[%s5 + $0x120] sm:$0xf]
    %v4570 = vld [vmem:[%s5 + $0x124] sm:$0xf]
    %v4571 = vld [vmem:[%s5 + $0x128] sm:$0xf]
    %v4572 = vld [vmem:[%s5 + $0x12c] sm:$0xf]
    %v4573 = vld [vmem:[%s5 + $0x130] sm:$0xf]
    %v4574 = vld [vmem:[%s5 + $0x134] sm:$0xf]
    %v4575 = vld [vmem:[%s5 + $0x138] sm:$0xf]
    %v4576 = vld [vmem:[%s5 + $0x13c] sm:$0xf]
    %v4577 = vld [vmem:[%s5 + $0x140] sm:$0xf]
    %v4578 = vld [vmem:[%s5 + $0x144] sm:$0xf]
    %v4579 = vld [vmem:[%s5 + $0x148] sm:$0xf]
    %v4580 = vld [vmem:[%s5 + $0x14c] sm:$0xf]
    %v4581 = vld [vmem:[%s5 + $0x150] sm:$0xf]
    %v4582 = vld [vmem:[%s5 + $0x154] sm:$0xf]
    %v4583 = vld [vmem:[%s5 + $0x158] sm:$0xf]
    %v4584 = vld [vmem:[%s5 + $0x15c] sm:$0xf]
    %v4585 = vld [vmem:[%s5 + $0x160] sm:$0xf]
    %v4586 = vld [vmem:[%s5 + $0x164] sm:$0xf]
    %v4587 = vld [vmem:[%s5 + $0x168] sm:$0xf]
    %v4588 = vld [vmem:[%s5 + $0x16c] sm:$0xf]
    %v4589 = vld [vmem:[%s5 + $0x170] sm:$0xf]
    %v4590 = vld [vmem:[%s5 + $0x174] sm:$0xf]
    %v4591 = vld [vmem:[%s5 + $0x178] sm:$0xf]
    %v4592 = vld [vmem:[%s5 + $0x17c] sm:$0xf]
    %v4593 = vld [vmem:[%s5 + $0x180] sm:$0xf]
    %v4594 = vld [vmem:[%s5 + $0x184] sm:$0xf]
    %v4595 = vld [vmem:[%s5 + $0x188] sm:$0xf]
    %v4596 = vld [vmem:[%s5 + $0x18c] sm:$0xf]
    %v4597 = vlaneseq
    %v4598 = vshrl.u32 %v4597, 7
    %v4599 = vsub.s32 6, %v4598
    %v4600 = vrot.slane %v232, %v4599
    %v4701 = vunpack.c.l.b16 %v4497
    %v4702 = vunpack.c.l.b16 %v4498
    %v4703 = vunpack.c.l.b16 %v4499
    %v4704 = vunpack.c.l.b16 %v4500
    %v4705 = vunpack.c.l.b16 %v4501
    %v4706 = vunpack.c.l.b16 %v4502
    %v4707 = vunpack.c.l.b16 %v4503
    %v4708 = vunpack.c.l.b16 %v4504
    %v4709 = vunpack.c.l.b16 %v4505
    %v4710 = vunpack.c.l.b16 %v4506
    %v4711 = vunpack.c.l.b16 %v4507
    %v4712 = vunpack.c.l.b16 %v4508
    %v4713 = vunpack.c.l.b16 %v4509
    %v4714 = vunpack.c.l.b16 %v4510
    %v4715 = vunpack.c.l.b16 %v4511
    %v4716 = vunpack.c.l.b16 %v4512
    %v4717 = vunpack.c.l.b16 %v4513
    %v4718 = vunpack.c.l.b16 %v4514
    %v4719 = vunpack.c.l.b16 %v4515
    %v4720 = vunpack.c.l.b16 %v4516
    %v4721 = vunpack.c.l.b16 %v4517
    %v4722 = vunpack.c.l.b16 %v4518
    %v4723 = vunpack.c.l.b16 %v4519
    %v4724 = vunpack.c.l.b16 %v4520
    %v4725 = vunpack.c.l.b16 %v4521
    %v4726 = vunpack.c.l.b16 %v4522
    %v4727 = vunpack.c.l.b16 %v4523
    %v4728 = vunpack.c.l.b16 %v4524
    %v4729 = vunpack.c.l.b16 %v4525
    %v4730 = vunpack.c.l.b16 %v4526
    %v4731 = vunpack.c.l.b16 %v4527
    %v4732 = vunpack.c.l.b16 %v4528
    %v4733 = vunpack.c.l.b16 %v4529
    %v4734 = vunpack.c.l.b16 %v4530
    %v4735 = vunpack.c.l.b16 %v4531
    %v4736 = vunpack.c.l.b16 %v4532
    %v4737 = vunpack.c.l.b16 %v4533
    %v4738 = vunpack.c.l.b16 %v4534
    %v4739 = vunpack.c.l.b16 %v4535
    %v4740 = vunpack.c.l.b16 %v4536
    %v4741 = vunpack.c.l.b16 %v4537
    %v4742 = vunpack.c.l.b16 %v4538
    %v4743 = vunpack.c.l.b16 %v4539
    %v4744 = vunpack.c.l.b16 %v4540
    %v4745 = vunpack.c.l.b16 %v4541
    %v4746 = vunpack.c.l.b16 %v4542
    %v4747 = vunpack.c.l.b16 %v4543
    %v4748 = vunpack.c.l.b16 %v4544
    %v4749 = vunpack.c.l.b16 %v4545
    %v4750 = vunpack.c.l.b16 %v4546
    %v4751 = vunpack.c.l.b16 %v4547
    %v4752 = vunpack.c.l.b16 %v4548
    %v4753 = vunpack.c.l.b16 %v4549
    %v4754 = vunpack.c.l.b16 %v4550
    %v4755 = vunpack.c.l.b16 %v4551
    %v4756 = vunpack.c.l.b16 %v4552
    %v4757 = vunpack.c.l.b16 %v4553
    %v4758 = vunpack.c.l.b16 %v4554
    %v4759 = vunpack.c.l.b16 %v4555
    %v4760 = vunpack.c.l.b16 %v4556
    %v4761 = vunpack.c.l.b16 %v4557
    %v4762 = vunpack.c.l.b16 %v4558
    %v4763 = vunpack.c.l.b16 %v4559
    %v4764 = vunpack.c.l.b16 %v4560
    %v4765 = vunpack.c.l.b16 %v4561
    %v4766 = vunpack.c.l.b16 %v4562
    %v4767 = vunpack.c.l.b16 %v4563
    %v4768 = vunpack.c.l.b16 %v4564
    %v4769 = vunpack.c.l.b16 %v4565
    %v4770 = vunpack.c.l.b16 %v4566
    %v4771 = vunpack.c.l.b16 %v4567
    %v4772 = vunpack.c.l.b16 %v4568
    %v4773 = vunpack.c.l.b16 %v4569
    %v4774 = vunpack.c.l.b16 %v4570
    %v4775 = vunpack.c.l.b16 %v4571
    %v4776 = vunpack.c.l.b16 %v4572
    %v4777 = vunpack.c.l.b16 %v4573
    %v4778 = vunpack.c.l.b16 %v4574
    %v4779 = vunpack.c.l.b16 %v4575
    %v4780 = vunpack.c.l.b16 %v4576
    %v4781 = vunpack.c.l.b16 %v4577
    %v4782 = vunpack.c.l.b16 %v4578
    %v4783 = vunpack.c.l.b16 %v4579
    %v4784 = vunpack.c.l.b16 %v4580
    %v4785 = vunpack.c.l.b16 %v4581
    %v4786 = vunpack.c.l.b16 %v4582
    %v4787 = vunpack.c.l.b16 %v4583
    %v4788 = vunpack.c.l.b16 %v4584
    %v4789 = vunpack.c.l.b16 %v4585
    %v4790 = vunpack.c.l.b16 %v4586
    %v4791 = vunpack.c.l.b16 %v4587
    %v4792 = vunpack.c.l.b16 %v4588
    %v4793 = vunpack.c.l.b16 %v4589
    %v4794 = vunpack.c.l.b16 %v4590
    %v4795 = vunpack.c.l.b16 %v4591
    %v4796 = vunpack.c.l.b16 %v4592
    %v4797 = vunpack.c.l.b16 %v4593
    %v4798 = vunpack.c.l.b16 %v4594
    %v4799 = vunpack.c.l.b16 %v4595
    %v4800 = vunpack.c.l.b16 %v4596
    %v4801 = vpack.c.b16 %v4702, %v4701
    %v4802 = vpack.c.b16 %v4704, %v4703
    %v4803 = vpack.c.b16 %v4706, %v4705
    %v4804 = vpack.c.b16 %v4708, %v4707
    %v4805 = vpack.c.b16 %v4710, %v4709
    %v4806 = vpack.c.b16 %v4712, %v4711
    %v4807 = vpack.c.b16 %v4714, %v4713
    %v4808 = vpack.c.b16 %v4716, %v4715
    %v4809 = vpack.c.b16 %v4718, %v4717
    %v4810 = vpack.c.b16 %v4720, %v4719
    %v4811 = vpack.c.b16 %v4722, %v4721
    %v4812 = vpack.c.b16 %v4724, %v4723
    %v4813 = vpack.c.b16 %v4726, %v4725
    %v4814 = vpack.c.b16 %v4728, %v4727
    %v4815 = vpack.c.b16 %v4730, %v4729
    %v4816 = vpack.c.b16 %v4732, %v4731
    %v4817 = vpack.c.b16 %v4734, %v4733
    %v4818 = vpack.c.b16 %v4736, %v4735
    %v4819 = vpack.c.b16 %v4738, %v4737
    %v4820 = vpack.c.b16 %v4740, %v4739
    %v4821 = vpack.c.b16 %v4742, %v4741
    %v4822 = vpack.c.b16 %v4744, %v4743
    %v4823 = vpack.c.b16 %v4746, %v4745
    %v4824 = vpack.c.b16 %v4748, %v4747
    %v4825 = vpack.c.b16 %v4750, %v4749
    %v4826 = vpack.c.b16 %v4752, %v4751
    %v4827 = vpack.c.b16 %v4754, %v4753
    %v4828 = vpack.c.b16 %v4756, %v4755
    %v4829 = vpack.c.b16 %v4758, %v4757
    %v4830 = vpack.c.b16 %v4760, %v4759
    %v4831 = vpack.c.b16 %v4762, %v4761
    %v4832 = vpack.c.b16 %v4764, %v4763
    %v4833 = vpack.c.b16 %v4766, %v4765
    %v4834 = vpack.c.b16 %v4768, %v4767
    %v4835 = vpack.c.b16 %v4770, %v4769
    %v4836 = vpack.c.b16 %v4772, %v4771
    %v4837 = vpack.c.b16 %v4774, %v4773
    %v4838 = vpack.c.b16 %v4776, %v4775
    %v4839 = vpack.c.b16 %v4778, %v4777
    %v4840 = vpack.c.b16 %v4780, %v4779
    %v4841 = vpack.c.b16 %v4782, %v4781
    %v4842 = vpack.c.b16 %v4784, %v4783
    %v4843 = vpack.c.b16 %v4786, %v4785
    %v4844 = vpack.c.b16 %v4788, %v4787
    %v4845 = vpack.c.b16 %v4790, %v4789
    %v4846 = vpack.c.b16 %v4792, %v4791
    %v4847 = vpack.c.b16 %v4794, %v4793
    %v4848 = vpack.c.b16 %v4796, %v4795
    %v4849 = vpack.c.b16 %v4798, %v4797
    %v4850 = vpack.c.b16 %v4800, %v4799
    %v4902 = vsel %vm3610, %v4496, 0
    %4904 = vmatprep.subr.bf16.mxu0 0
    %4905 = vmatpush1.bf16.msra.mxu0 %v4801
    %4906 = vmatprep.subr.bf16.mxu0 0
    %4907 = vmatpush1.bf16.msra.mxu0 %v4802
    %4908 = vmatprep.subr.bf16.mxu0 0
    %4909 = vmatpush1.bf16.msra.mxu0 %v4803
    %4910 = vmatprep.subr.bf16.mxu0 0
    %4911 = vmatpush1.bf16.msra.mxu0 %v4804
    %4912 = vmatprep.subr.bf16.mxu0 0
    %4913 = vmatpush1.bf16.msra.mxu0 %v4805
    %4914 = vmatprep.subr.bf16.mxu0 0
    %4915 = vmatpush1.bf16.msra.mxu0 %v4806
    %4916 = vmatprep.subr.bf16.mxu0 0
    %4917 = vmatpush1.bf16.msra.mxu0 %v4807
    %4918 = vmatprep.subr.bf16.mxu0 0
    %4919 = vmatpush1.bf16.msra.mxu0 %v4808
    %4920 = vmatprep.subr.bf16.mxu0 0
    %4921 = vmatpush1.bf16.msra.mxu0 %v4809
    %4922 = vmatprep.subr.bf16.mxu0 0
    %4923 = vmatpush1.bf16.msra.mxu0 %v4810
    %4924 = vmatprep.subr.bf16.mxu0 0
    %4925 = vmatpush1.bf16.msra.mxu0 %v4811
    %4926 = vmatprep.subr.bf16.mxu0 0
    %4927 = vmatpush1.bf16.msra.mxu0 %v4812
    %4928 = vmatprep.subr.bf16.mxu0 0
    %4929 = vmatpush1.bf16.msra.mxu0 %v4813
    %4930 = vmatprep.subr.bf16.mxu0 0
    %4931 = vmatpush1.bf16.msra.mxu0 %v4814
    %4932 = vmatprep.subr.bf16.mxu0 0
    %4933 = vmatpush1.bf16.msra.mxu0 %v4815
    %4934 = vmatprep.subr.bf16.mxu0 0
    %4935 = vmatpush1.bf16.msra.mxu0 %v4816
    %4936 = vmatprep.mubr.bf16.mxu0 %v4491
    %4937 = vmatmul.mubr.bf16.gmra.mrb[0].mxu0 %v4490
    %v4938 = vpop.f32.mrb[0].mxu0
    %v4939 = vadd.f32 %v4600, %v4938
    %v4940 = vpop.f32.mrb[0].mxu0
    %v4941 = vpop.f32.mrb[0].mxu0
    %v4942 = vpop.f32.mrb[0].mxu0
    %4943 = vdwg.mxu0
    %4944 = vmatprep.subr.bf16.mxu0 0
    %4945 = vmatpush1.bf16.msra.mxu0 %v4817
    %4946 = vmatprep.subr.bf16.mxu0 0
    %4947 = vmatpush1.bf16.msra.mxu0 %v4818
    %4948 = vmatprep.subr.bf16.mxu0 0
    %4949 = vmatpush1.bf16.msra.mxu0 %v4819
    %4950 = vmatprep.subr.bf16.mxu0 0
    %4951 = vmatpush1.bf16.msra.mxu0 %v4820
    %4952 = vmatprep.subr.bf16.mxu0 0
    %4953 = vmatpush1.bf16.msra.mxu0 %v4821
    %4954 = vmatprep.subr.bf16.mxu0 0
    %4955 = vmatpush1.bf16.msra.mxu0 %v4822
    %4956 = vmatprep.subr.bf16.mxu0 0
    %4957 = vmatpush1.bf16.msra.mxu0 %v4823
    %4958 = vmatprep.subr.bf16.mxu0 0
    %4959 = vmatpush1.bf16.msra.mxu0 %v4824
    %4960 = vmatprep.subr.bf16.mxu0 0
    %4961 = vmatpush1.bf16.msra.mxu0 %v4825
    %4962 = vmatprep.subr.bf16.mxu0 0
    %4963 = vmatpush1.bf16.msra.mxu0 %v4826
    %4964 = vmatprep.subr.bf16.mxu0 0
    %4965 = vmatpush1.bf16.msra.mxu0 %v4827
    %4966 = vmatprep.subr.bf16.mxu0 0
    %4967 = vmatpush1.bf16.msra.mxu0 %v4828
    %4968 = vmatprep.subr.bf16.mxu0 0
    %4969 = vmatpush1.bf16.msra.mxu0 %v4829
    %4970 = vmatprep.subr.bf16.mxu0 0
    %4971 = vmatpush1.bf16.msra.mxu0 %v4830
    %4972 = vmatprep.subr.bf16.mxu0 0
    %4973 = vmatpush1.bf16.msra.mxu0 %v4831
    %4974 = vmatprep.subr.bf16.mxu0 0
    %4975 = vmatpush1.bf16.msra.mxu0 %v4832
    %4976 = vmatprep.mubr.bf16.mxu0 %v4493
    %4977 = vmatmul.mubr.bf16.gmra.mrb[0].mxu0 %v4492
    %v4978 = vpop.f32.mrb[0].mxu0
    %v4979 = vadd.f32 %v4939, %v4978
    %v4980 = vpop.f32.mrb[0].mxu0
    %v4981 = vpop.f32.mrb[0].mxu0
    %v4982 = vpop.f32.mrb[0].mxu0
    %4983 = vdwg.mxu0
    %4984 = vmatprep.subr.bf16.mxu0 0
    %4985 = vmatpush1.bf16.msra.mxu0 %v4833
    %4986 = vmatprep.subr.bf16.mxu0 0
    %4987 = vmatpush1.bf16.msra.mxu0 %v4834
    %4988 = vmatprep.subr.bf16.mxu0 0
    %4989 = vmatpush1.bf16.msra.mxu0 %v4835
    %4990 = vmatprep.subr.bf16.mxu0 0
    %4991 = vmatpush1.bf16.msra.mxu0 %v4836
    %4992 = vmatprep.subr.bf16.mxu0 0
    %4993 = vmatpush1.bf16.msra.mxu0 %v4837
    %4994 = vmatprep.subr.bf16.mxu0 0
    %4995 = vmatpush1.bf16.msra.mxu0 %v4838
    %4996 = vmatprep.subr.bf16.mxu0 0
    %4997 = vmatpush1.bf16.msra.mxu0 %v4839
    %4998 = vmatprep.subr.bf16.mxu0 0
    %4999 = vmatpush1.bf16.msra.mxu0 %v4840
    %5000 = vmatprep.subr.bf16.mxu0 0
    %5001 = vmatpush1.bf16.msra.mxu0 %v4841
    %5002 = vmatprep.subr.bf16.mxu0 0
    %5003 = vmatpush1.bf16.msra.mxu0 %v4842
    %5004 = vmatprep.subr.bf16.mxu0 0
    %5005 = vmatpush1.bf16.msra.mxu0 %v4843
    %5006 = vmatprep.subr.bf16.mxu0 0
    %5007 = vmatpush1.bf16.msra.mxu0 %v4844
    %5008 = vmatprep.subr.bf16.mxu0 0
    %5009 = vmatpush1.bf16.msra.mxu0 %v4845
    %5010 = vmatprep.subr.bf16.mxu0 0
    %5011 = vmatpush1.bf16.msra.mxu0 %v4846
    %5012 = vmatprep.subr.bf16.mxu0 0
    %5013 = vmatpush1.bf16.msra.mxu0 %v4847
    %5014 = vmatprep.subr.bf16.mxu0 0
    %5015 = vmatpush1.bf16.msra.mxu0 %v4848
    %5016 = vmatprep.mubr.bf16.mxu0 %v4495
    %5017 = vmatmul.mubr.bf16.gmra.mrb[0].mxu0 %v4494
    %v5018 = vpop.f32.mrb[0].mxu0
    %v5019 = vadd.f32 %v4979, %v5018
    %v5020 = vpop.f32.mrb[0].mxu0
    %v5021 = vpop.f32.mrb[0].mxu0
    %v5022 = vpop.f32.mrb[0].mxu0
    %5023 = vdwg.mxu0
    %5024 = vmatprep.subr.bf16.mxu0 0
    %5025 = vmatpush1.bf16.msra.mxu0 %v4849
    %5026 = vmatprep.subr.bf16.mxu0 0
    %5027 = vmatpush1.bf16.msra.mxu0 %v4850
    %5028 = vmatprep.subr.bf16.mxu0 0
    %5029 = vmatpush1.bf16.msra.mxu0 0
    %5030 = vmatprep.subr.bf16.mxu0 0
    %5031 = vmatpush1.bf16.msra.mxu0 0
    %5032 = vmatprep.subr.bf16.mxu0 0
    %5033 = vmatpush1.bf16.msra.mxu0 0
    %5034 = vmatprep.subr.bf16.mxu0 0
    %5035 = vmatpush1.bf16.msra.mxu0 0
    %5036 = vmatprep.subr.bf16.mxu0 0
    %5037 = vmatpush1.bf16.msra.mxu0 0
    %5038 = vmatprep.subr.bf16.mxu0 0
    %5039 = vmatpush1.bf16.msra.mxu0 0
    %5040 = vmatprep.subr.bf16.mxu0 0
    %5041 = vmatpush1.bf16.msra.mxu0 0
    %5042 = vmatprep.subr.bf16.mxu0 0
    %5043 = vmatpush1.bf16.msra.mxu0 0
    %5044 = vmatprep.subr.bf16.mxu0 0
    %5045 = vmatpush1.bf16.msra.mxu0 0
    %5046 = vmatprep.subr.bf16.mxu0 0
    %5047 = vmatpush1.bf16.msra.mxu0 0
    %5048 = vmatprep.subr.bf16.mxu0 0
    %5049 = vmatpush1.bf16.msra.mxu0 0
    %5050 = vmatprep.subr.bf16.mxu0 0
    %5051 = vmatpush1.bf16.msra.mxu0 0
    %5052 = vmatprep.subr.bf16.mxu0 0
    %5053 = vmatpush1.bf16.msra.mxu0 0
    %5054 = vmatprep.subr.bf16.mxu0 0
    %5055 = vmatpush1.bf16.msra.mxu0 0
    %5056 = vmatprep.mubr.bf16.mxu0 0
    %5057 = vmatmul.mubr.bf16.gmra.mrb[0].mxu0 %v4902
    %v5058 = vpop.f32.mrb[0].mxu0
    %v5059 = vadd.f32 %v5019, %v5058
    %v5060 = vpop.f32.mrb[0].mxu0
    %v5061 = vpop.f32.mrb[0].mxu0
    %v5062 = vpop.f32.mrb[0].mxu0
    %5063 = vdwg.mxu0
    %s5064 = sld [smem:[#allocation7]]
    %v5065 = vmul.f32 %v5059, 0.5
    %v5066 = vmul.f32 %v5065, 1.442695
    %v5067 = vpow.pop %v5066
    %v5068 = vstv %s5064
    %v5069 = vmul.f32 %v5068, %v5067
    %5071 = vrot.lane.b32.xlu0 %v5069, 120
    %v5072 = vpop.permute.xlu0 %5071
    %v5074 = vadd.f32 %v5059, %v5072
    %v5075 = vld [vmem:[#allocation14] sm:$0xff]
    %v5076 = vpack.c.bf16 %v5074, %v5074
    %v5077 = vld [vmem:[#allocation11] sm:$0xf]
    %v5078 = vlaneseq
    %v5079 = vshrl.u32 %v5078, 7
    %v5080 = vsub.s32 0, %v5079
    %v5081 = vrot.slane %v5075, %v5080
    %vm5082 = vcmask 64512
    %v5084 = vsel %vm5082, %v5076, 0
    %vm5086 = vcmask 1043456
    %v5088 = vsel %vm5086, %v5077, 0
    %5090 = vmatprep.subr.bf16.mxu0 0
    %5091 = vmatpush1.bf16.msra.mxu0 %v5088
    %5092 = vmatprep.subr.bf16.mxu0 0
    %5093 = vmatpush1.bf16.msra.mxu0 0
    %5094 = vmatprep.subr.bf16.mxu0 0
    %5095 = vmatpush1.bf16.msra.mxu0 0
    %5096 = vmatprep.subr.bf16.mxu0 0
    %5097 = vmatpush1.bf16.msra.mxu0 0
    %5098 = vmatprep.subr.bf16.mxu0 0
    %5099 = vmatpush1.bf16.msra.mxu0 0
    %5100 = vmatprep.subr.bf16.mxu0 0
    %5101 = vmatpush1.bf16.msra.mxu0 0
    %5102 = vmatprep.subr.bf16.mxu0 0
    %5103 = vmatpush1.bf16.msra.mxu0 0
    %5104 = vmatprep.subr.bf16.mxu0 0
    %5105 = vmatpush1.bf16.msra.mxu0 0
    %5106 = vmatprep.subr.bf16.mxu0 0
    %5107 = vmatpush1.bf16.msra.mxu0 0
    %5108 = vmatprep.subr.bf16.mxu0 0
    %5109 = vmatpush1.bf16.msra.mxu0 0
    %5110 = vmatprep.subr.bf16.mxu0 0
    %5111 = vmatpush1.bf16.msra.mxu0 0
    %5112 = vmatprep.subr.bf16.mxu0 0
    %5113 = vmatpush1.bf16.msra.mxu0 0
    %5114 = vmatprep.subr.bf16.mxu0 0
    %5115 = vmatpush1.bf16.msra.mxu0 0
    %5116 = vmatprep.subr.bf16.mxu0 0
    %5117 = vmatpush1.bf16.msra.mxu0 0
    %5118 = vmatprep.subr.bf16.mxu0 0
    %5119 = vmatpush1.bf16.msra.mxu0 0
    %5120 = vmatprep.subr.bf16.mxu0 0
    %5121 = vmatpush1.bf16.msra.mxu0 0
    %5122 = vmatprep.mubr.bf16.mxu0 0
    %5123 = vmatmul.mubr.bf16.gmra.mrb[0].mxu0 %v5084
    %v5124 = vpop.f32.mrb[0].mxu0
    %v5125 = vadd.f32 %v5081, %v5124
    %v5126 = vpop.f32.mrb[0].mxu0
    %v5127 = vpop.f32.mrb[0].mxu0
    %v5128 = vpop.f32.mrb[0].mxu0
    %5129 = vdwg.mxu0
    %v5130 = vsel %vm1148, %v5125, 0.0
    %v5131 = vrot.slane %v5130, 4
    %v5132 = vadd.f32 %v5130, %v5131
    %v5133 = vrot.slane %v5132, 2
    %v5134 = vadd.f32 %v5132, %v5133
    %v5135 = vrot.slane %v5134, 1
    %v5136 = vadd.f32 %v5134, %v5135
    %v5137 = vmul.f32 %v5136, %v1199
    %v5138 = vsub.f32 %v5125, %v5137
    %v5139 = vmul.f32 %v5138, %v5138
    %v5140 = vsel %vm1148, %v5139, 0.0
    %v5141 = vrot.slane %v5140, 4
    %v5142 = vadd.f32 %v5140, %v5141
    %v5143 = vrot.slane %v5142, 2
    %v5144 = vadd.f32 %v5142, %v5143
    %v5145 = vrot.slane %v5144, 1
    %v5146 = vadd.f32 %v5144, %v5145
    %v5147 = vmul.f32 %v5146, %v1199
    %v5148 = vadd.f32 %v5147, 1e-05
    %v5149 = vrsqrt.pop %v5148
    %v5150 = vmul.f32 %v5138, %v5149
    %v5151 = vlaneseq
    %v5152 = vshrl.u32 %v5151, 7
    %v5153 = vsub.s32 1, %v5152
    %v5154 = vrot.slane %v5075, %v5153
    %v5155 = vmul.f32 %v5154, %v5150
    %v5156 = vlaneseq
    %v5157 = vshrl.u32 %v5156, 7
    %v5158 = vsub.s32 2, %v5157
    %v5159 = vrot.slane %v5075, %v5158
    %v5160 = vadd.f32 %v5155, %v5159
    %v5161 = vmax.f32 %v5160, 0.0
    %v5162 = vpack.c.bf16 %v5161, %v5161
    %v5163 = vld [vmem:[%s8] sm:$0xf]
    %v5164 = vld [vmem:[%s8 + $0x4] sm:$0xf]
    %v5165 = vld [vmem:[%s8 + $0x8] sm:$0xf]
    %v5166 = vld [vmem:[%s8 + $0xc] sm:$0xf]
    %v5167 = vld [vmem:[%s8 + $0x10] sm:$0xf]
    %v5168 = vld [vmem:[%s8 + $0x14] sm:$0xf]
    %v5169 = vld [vmem:[%s8 + $0x18] sm:$0xf]
    %v5170 = vld [vmem:[%s8 + $0x1c] sm:$0xf]
    %v5171 = vld [vmem:[%s8 + $0x20] sm:$0xf]
    %v5172 = vld [vmem:[%s8 + $0x24] sm:$0xf]
    %v5173 = vld [vmem:[%s8 + $0x28] sm:$0xf]
    %v5174 = vld [vmem:[%s8 + $0x2c] sm:$0xf]
    %v5175 = vld [vmem:[%s8 + $0x30] sm:$0xf]
    %v5176 = vld [vmem:[%s8 + $0x34] sm:$0xf]
    %v5177 = vld [vmem:[%s8 + $0x38] sm:$0xf]
    %v5178 = vld [vmem:[%s8 + $0x3c] sm:$0xf]
    %v5179 = vlaneseq
    %v5180 = vshrl.u32 %v5179, 7
    %v5181 = vsub.s32 3, %v5180
    %v5182 = vrot.slane %v5075, %v5181
    %v5199 = vunpack.c.l.b16 %v5163
    %v5200 = vunpack.c.l.b16 %v5164
    %v5201 = vunpack.c.l.b16 %v5165
    %v5202 = vunpack.c.l.b16 %v5166
    %v5203 = vunpack.c.l.b16 %v5167
    %v5204 = vunpack.c.l.b16 %v5168
    %v5205 = vunpack.c.l.b16 %v5169
    %v5206 = vunpack.c.l.b16 %v5170
    %v5207 = vunpack.c.l.b16 %v5171
    %v5208 = vunpack.c.l.b16 %v5172
    %v5209 = vunpack.c.l.b16 %v5173
    %v5210 = vunpack.c.l.b16 %v5174
    %v5211 = vunpack.c.l.b16 %v5175
    %v5212 = vunpack.c.l.b16 %v5176
    %v5213 = vunpack.c.l.b16 %v5177
    %v5214 = vunpack.c.l.b16 %v5178
    %v5215 = vpack.c.b16 %v5200, %v5199
    %v5216 = vpack.c.b16 %v5202, %v5201
    %v5217 = vpack.c.b16 %v5204, %v5203
    %v5218 = vpack.c.b16 %v5206, %v5205
    %v5219 = vpack.c.b16 %v5208, %v5207
    %v5220 = vpack.c.b16 %v5210, %v5209
    %v5221 = vpack.c.b16 %v5212, %v5211
    %v5222 = vpack.c.b16 %v5214, %v5213
    %5231 = vmatprep.subr.bf16.mxu0 0
    %5232 = vmatpush1.bf16.msra.mxu0 %v5215
    %5233 = vmatprep.subr.bf16.mxu0 0
    %5234 = vmatpush1.bf16.msra.mxu0 %v5216
    %5235 = vmatprep.subr.bf16.mxu0 0
    %5236 = vmatpush1.bf16.msra.mxu0 %v5217
    %5237 = vmatprep.subr.bf16.mxu0 0
    %5238 = vmatpush1.bf16.msra.mxu0 %v5218
    %5239 = vmatprep.subr.bf16.mxu0 0
    %5240 = vmatpush1.bf16.msra.mxu0 %v5219
    %5241 = vmatprep.subr.bf16.mxu0 0
    %5242 = vmatpush1.bf16.msra.mxu0 %v5220
    %5243 = vmatprep.subr.bf16.mxu0 0
    %5244 = vmatpush1.bf16.msra.mxu0 %v5221
    %5245 = vmatprep.subr.bf16.mxu0 0
    %5246 = vmatpush1.bf16.msra.mxu0 %v5222
    %5247 = vmatprep.subr.bf16.mxu0 0
    %5248 = vmatpush1.bf16.msra.mxu0 0
    %5249 = vmatprep.subr.bf16.mxu0 0
    %5250 = vmatpush1.bf16.msra.mxu0 0
    %5251 = vmatprep.subr.bf16.mxu0 0
    %5252 = vmatpush1.bf16.msra.mxu0 0
    %5253 = vmatprep.subr.bf16.mxu0 0
    %5254 = vmatpush1.bf16.msra.mxu0 0
    %5255 = vmatprep.subr.bf16.mxu0 0
    %5256 = vmatpush1.bf16.msra.mxu0 0
    %5257 = vmatprep.subr.bf16.mxu0 0
    %5258 = vmatpush1.bf16.msra.mxu0 0
    %5259 = vmatprep.subr.bf16.mxu0 0
    %5260 = vmatpush1.bf16.msra.mxu0 0
    %5261 = vmatprep.subr.bf16.mxu0 0
    %5262 = vmatpush1.bf16.msra.mxu0 0
    %5263 = vmatprep.mubr.bf16.mxu0 0
    %5264 = vmatmul.mubr.bf16.gmra.mrb[0].mxu0 %v5162
    %v5265 = vpop.f32.mrb[0].mxu0
    %v5266 = vadd.f32 %v5182, %v5265
    %v5267 = vpop.f32.mrb[0].mxu0
    %v5268 = vpop.f32.mrb[0].mxu0
    %v5269 = vpop.f32.mrb[0].mxu0
    %5270 = vdwg.mxu0
    %v5271 = vsel %vm1148, %v5266, 0.0
    %v5272 = vrot.slane %v5271, 4
    %v5273 = vadd.f32 %v5271, %v5272
    %v5274 = vrot.slane %v5273, 2
    %v5275 = vadd.f32 %v5273, %v5274
    %v5276 = vrot.slane %v5275, 1
    %v5277 = vadd.f32 %v5275, %v5276
    %v5278 = vmul.f32 %v5277, %v1199
    %v5279 = vsub.f32 %v5266, %v5278
    %v5280 = vmul.f32 %v5279, %v5279
    %v5281 = vsel %vm1148, %v5280, 0.0
    %v5282 = vrot.slane %v5281, 4
    %v5283 = vadd.f32 %v5281, %v5282
    %v5284 = vrot.slane %v5283, 2
    %v5285 = vadd.f32 %v5283, %v5284
    %v5286 = vrot.slane %v5285, 1
    %v5287 = vadd.f32 %v5285, %v5286
    %v5288 = vmul.f32 %v5287, %v1199
    %v5289 = vadd.f32 %v5288, 1e-05
    %v5290 = vrsqrt.pop %v5289
    %v5291 = vmul.f32 %v5279, %v5290
    %v5292 = vlaneseq
    %v5293 = vshrl.u32 %v5292, 7
    %v5294 = vsub.s32 4, %v5293
    %v5295 = vrot.slane %v5075, %v5294
    %v5296 = vmul.f32 %v5295, %v5291
    %v5297 = vlaneseq
    %v5298 = vshrl.u32 %v5297, 7
    %v5299 = vsub.s32 5, %v5298
    %v5300 = vrot.slane %v5075, %v5299
    %v5301 = vadd.f32 %v5296, %v5300
    %v5302 = vmax.f32 %v5301, 0.0
    %v5303 = vpack.c.bf16 %v5302, %v5302
    %v5304 = vld [vmem:[%s9] sm:$0xf]
    %v5305 = vld [vmem:[%s9 + $0x4] sm:$0xf]
    %v5306 = vld [vmem:[%s9 + $0x8] sm:$0xf]
    %v5307 = vld [vmem:[%s9 + $0xc] sm:$0xf]
    %v5308 = vld [vmem:[%s9 + $0x10] sm:$0xf]
    %v5309 = vld [vmem:[%s9 + $0x14] sm:$0xf]
    %v5310 = vld [vmem:[%s9 + $0x18] sm:$0xf]
    %v5311 = vld [vmem:[%s9 + $0x1c] sm:$0xf]
    %v5312 = vld [vmem:[%s9 + $0x20] sm:$0xf]
    %v5313 = vld [vmem:[%s9 + $0x24] sm:$0xf]
    %v5314 = vld [vmem:[%s9 + $0x28] sm:$0xf]
    %v5315 = vld [vmem:[%s9 + $0x2c] sm:$0xf]
    %v5316 = vld [vmem:[%s9 + $0x30] sm:$0xf]
    %v5317 = vld [vmem:[%s9 + $0x34] sm:$0xf]
    %v5318 = vld [vmem:[%s9 + $0x38] sm:$0xf]
    %v5319 = vld [vmem:[%s9 + $0x3c] sm:$0xf]
    %v5320 = vlaneseq
    %v5321 = vshrl.u32 %v5320, 7
    %v5322 = vsub.s32 6, %v5321
    %v5323 = vrot.slane %v5075, %v5322
    %v5340 = vunpack.c.l.b16 %v5304
    %v5341 = vunpack.c.l.b16 %v5305
    %v5342 = vunpack.c.l.b16 %v5306
    %v5343 = vunpack.c.l.b16 %v5307
    %v5344 = vunpack.c.l.b16 %v5308
    %v5345 = vunpack.c.l.b16 %v5309
    %v5346 = vunpack.c.l.b16 %v5310
    %v5347 = vunpack.c.l.b16 %v5311
    %v5348 = vunpack.c.l.b16 %v5312
    %v5349 = vunpack.c.l.b16 %v5313
    %v5350 = vunpack.c.l.b16 %v5314
    %v5351 = vunpack.c.l.b16 %v5315
    %v5352 = vunpack.c.l.b16 %v5316
    %v5353 = vunpack.c.l.b16 %v5317
    %v5354 = vunpack.c.l.b16 %v5318
    %v5355 = vunpack.c.l.b16 %v5319
    %v5356 = vpack.c.b16 %v5341, %v5340
    %v5357 = vpack.c.b16 %v5343, %v5342
    %v5358 = vpack.c.b16 %v5345, %v5344
    %v5359 = vpack.c.b16 %v5347, %v5346
    %v5360 = vpack.c.b16 %v5349, %v5348
    %v5361 = vpack.c.b16 %v5351, %v5350
    %v5362 = vpack.c.b16 %v5353, %v5352
    %v5363 = vpack.c.b16 %v5355, %v5354
    %5372 = vmatprep.subr.bf16.mxu0 0
    %5373 = vmatpush1.bf16.msra.mxu0 %v5356
    %5374 = vmatprep.subr.bf16.mxu0 0
    %5375 = vmatpush1.bf16.msra.mxu0 %v5357
    %5376 = vmatprep.subr.bf16.mxu0 0
    %5377 = vmatpush1.bf16.msra.mxu0 %v5358
    %5378 = vmatprep.subr.bf16.mxu0 0
    %5379 = vmatpush1.bf16.msra.mxu0 %v5359
    %5380 = vmatprep.subr.bf16.mxu0 0
    %5381 = vmatpush1.bf16.msra.mxu0 %v5360
    %5382 = vmatprep.subr.bf16.mxu0 0
    %5383 = vmatpush1.bf16.msra.mxu0 %v5361
    %5384 = vmatprep.subr.bf16.mxu0 0
    %5385 = vmatpush1.bf16.msra.mxu0 %v5362
    %5386 = vmatprep.subr.bf16.mxu0 0
    %5387 = vmatpush1.bf16.msra.mxu0 %v5363
    %5388 = vmatprep.subr.bf16.mxu0 0
    %5389 = vmatpush1.bf16.msra.mxu0 0
    %5390 = vmatprep.subr.bf16.mxu0 0
    %5391 = vmatpush1.bf16.msra.mxu0 0
    %5392 = vmatprep.subr.bf16.mxu0 0
    %5393 = vmatpush1.bf16.msra.mxu0 0
    %5394 = vmatprep.subr.bf16.mxu0 0
    %5395 = vmatpush1.bf16.msra.mxu0 0
    %5396 = vmatprep.subr.bf16.mxu0 0
    %5397 = vmatpush1.bf16.msra.mxu0 0
    %5398 = vmatprep.subr.bf16.mxu0 0
    %5399 = vmatpush1.bf16.msra.mxu0 0
    %5400 = vmatprep.subr.bf16.mxu0 0
    %5401 = vmatpush1.bf16.msra.mxu0 0
    %5402 = vmatprep.subr.bf16.mxu0 0
    %5403 = vmatpush1.bf16.msra.mxu0 0
    %5404 = vmatprep.mubr.bf16.mxu0 0
    %5405 = vmatmul.mubr.bf16.gmra.mrb[0].mxu0 %v5303
    %v5406 = vpop.f32.mrb[0].mxu0
    %v5407 = vadd.f32 %v5323, %v5406
    %v5408 = vpop.f32.mrb[0].mxu0
    %v5409 = vpop.f32.mrb[0].mxu0
    %v5410 = vpop.f32.mrb[0].mxu0
    %5411 = vdwg.mxu0
    %5413 = vrot.lane.b32.xlu0 %v5074, 8
    %v5414 = vpop.permute.xlu0 %5413
    %v5416 = vmul.f32 %v5407, %v5414
    %5418 = vrot.lane.b32.xlu0 %v5416, 120
    %v5419 = vpop.permute.xlu0 %5418
    %vm5421 = vcmask 58368
    %v5422 = vsel %vm5421, %v5419, 0.0
    %5423 = vadd.xlane.f32.xlu0 %v5422
    %v5424 = vpop.xlane.xlu0 %5423
    %v5425 = vmul.f32 %v5407, %v5424
    %v5426 = vadd.f32 %v5074, %v5425
    %v5427 = vld [vmem:[#allocation13] sm:$0xf]
    %v5428 = vlaneseq
    %v5429 = vshrl.u32 %v5428, 7
    %v5430 = vsub.s32 7, %v5429
    %v5431 = vrot.slane %v5075, %v5430
    %v5433 = vsel %vm5086, %v5427, 0
    %5435 = vmatprep.subr.bf16.mxu0 0
    %5436 = vmatpush1.bf16.msra.mxu0 %v5433
    %5437 = vmatprep.subr.bf16.mxu0 0
    %5438 = vmatpush1.bf16.msra.mxu0 0
    %5439 = vmatprep.subr.bf16.mxu0 0
    %5440 = vmatpush1.bf16.msra.mxu0 0
    %5441 = vmatprep.subr.bf16.mxu0 0
    %5442 = vmatpush1.bf16.msra.mxu0 0
    %5443 = vmatprep.subr.bf16.mxu0 0
    %5444 = vmatpush1.bf16.msra.mxu0 0
    %5445 = vmatprep.subr.bf16.mxu0 0
    %5446 = vmatpush1.bf16.msra.mxu0 0
    %5447 = vmatprep.subr.bf16.mxu0 0
    %5448 = vmatpush1.bf16.msra.mxu0 0
    %5449 = vmatprep.subr.bf16.mxu0 0
    %5450 = vmatpush1.bf16.msra.mxu0 0
    %5451 = vmatprep.subr.bf16.mxu0 0
    %5452 = vmatpush1.bf16.msra.mxu0 0
    %5453 = vmatprep.subr.bf16.mxu0 0
    %5454 = vmatpush1.bf16.msra.mxu0 0
    %5455 = vmatprep.subr.bf16.mxu0 0
    %5456 = vmatpush1.bf16.msra.mxu0 0
    %5457 = vmatprep.subr.bf16.mxu0 0
    %5458 = vmatpush1.bf16.msra.mxu0 0
    %5459 = vmatprep.subr.bf16.mxu0 0
    %5460 = vmatpush1.bf16.msra.mxu0 0
    %5461 = vmatprep.subr.bf16.mxu0 0
    %5462 = vmatpush1.bf16.msra.mxu0 0
    %5463 = vmatprep.subr.bf16.mxu0 0
    %5464 = vmatpush1.bf16.msra.mxu0 0
    %5465 = vmatprep.subr.bf16.mxu0 0
    %5466 = vmatpush1.bf16.msra.mxu0 0
    %5467 = vmatprep.mubr.bf16.mxu0 0
    %5468 = vmatmul.mubr.bf16.gmra.mrb[0].mxu0 %v5084
    %v5469 = vpop.f32.mrb[0].mxu0
    %v5470 = vadd.f32 %v5431, %v5469
    %v5471 = vpop.f32.mrb[0].mxu0
    %v5472 = vpop.f32.mrb[0].mxu0
    %v5473 = vpop.f32.mrb[0].mxu0
    %5474 = vdwg.mxu0
    %v5475 = vld [vmem:[#allocation8] sm:$0x3]
    %5477 = vset.pattern.permute.xlu0 0
    %5478 = vperm.xlu0 %5477, %v5475
    %v5479 = vpop.permute.xlu0 %5478
    %v5481 = vmul.f32 %v5470, %v5479
    %v5482 = vadd.f32 %v5481, 0.0
    %5483 = vset.pattern.permute.xlu0 1
    %5484 = vperm.xlu0 %5483, %v5475
    %v5485 = vpop.permute.xlu0 %5484
    %v5487 = vmul.f32 %v5470, %v5485
    %5489 = vrot.lane.b32.xlu0 %v5487, 120
    %v5490 = vpop.permute.xlu0 %5489
    %v5492 = vadd.f32 %v5482, %v5490
    %v5493 = vadd.f32 %v5426, %v5492
    %5495 = vrot.lane.b32.xlu0 %v5470, 112
    %v5496 = vpop.permute.xlu0 %5495
    %v5498 = vadd.f32 %v5493, %v5496
    %s5499 = smul.u32 4, 1
    %s5500 = smul.u32 %s5499, 7
    %s5501 = sshll.u32 %s5500, 4
    %5502 = dma.done [#allocation6], %s5501
    %s5503 = smul.u32 4, 100
    %s5504 = smul.u32 %s5503, 7
    %s5505 = sshll.u32 %s5504, 4
    %5506 = dma.done %s106, %s5505
    %s5507 = smul.u32 %s5503, 2
    %s5508 = sshll.u32 %s5507, 4
    %5509 = dma.done %s142, %s5508
    %s5510 = smul.u32 8, 1
    %s5511 = smul.u32 %s5510, 7
    %s5512 = sshll.u32 %s5511, 4
    %5513 = dma.done %s177, %s5512
    %v5514 = vld [vmem:[#allocation5] sm:$0xff]
    %v5515 = vld [vmem:[#allocation5 + $0x8] sm:$0xff]
    %v5516 = vld [vmem:[#allocation5 + $0x10] sm:$0xff]
    %v5517 = vld [vmem:[#allocation5 + $0x18] sm:$0xff]
    %v5518 = vld [vmem:[#allocation5 + $0x20] sm:$0xff]
    %v5519 = vld [vmem:[#allocation5 + $0x28] sm:$0xff]
    %v5520 = vld [vmem:[#allocation5 + $0x30] sm:$0xff]
    %v5521 = vpack.c.bf16 %v5498, %v5498
    %v5522 = vld [vmem:[#allocation2] sm:$0xff]
    %v5523 = vld [vmem:[#allocation2 + $0x8] sm:$0xff]
    %v5524 = vld [vmem:[#allocation2 + $0x10] sm:$0xff]
    %v5525 = vld [vmem:[#allocation2 + $0x18] sm:$0xf]
    %v5526 = vlaneseq
    %v5527 = vshrl.u32 %v5526, 7
    %v5528 = vsub.s32 0, %v5527
    %v5529 = vrot.slane %v5514, %v5528
    %v5530 = vlaneseq
    %v5531 = vshrl.u32 %v5530, 7
    %v5532 = vsub.s32 0, %v5531
    %v5533 = vrot.slane %v5515, %v5532
    %v5534 = vlaneseq
    %v5535 = vshrl.u32 %v5534, 7
    %v5536 = vsub.s32 0, %v5535
    %v5537 = vrot.slane %v5516, %v5536
    %v5538 = vlaneseq
    %v5539 = vshrl.u32 %v5538, 7
    %v5540 = vsub.s32 0, %v5539
    %v5541 = vrot.slane %v5517, %v5540
    %v5542 = vlaneseq
    %v5543 = vshrl.u32 %v5542, 7
    %v5544 = vsub.s32 0, %v5543
    %v5545 = vrot.slane %v5518, %v5544
    %v5546 = vlaneseq
    %v5547 = vshrl.u32 %v5546, 7
    %v5548 = vsub.s32 0, %v5547
    %v5549 = vrot.slane %v5519, %v5548
    %v5550 = vlaneseq
    %v5551 = vshrl.u32 %v5550, 7
    %v5552 = vsub.s32 0, %v5551
    %v5553 = vrot.slane %v5520, %v5552
    %v5558 = vunpack.c.l.b16 %v5522
    %v5559 = vunpack.c.h.b16 %v5522
    %v5560 = vunpack.c.l.b16 %v5523
    %v5561 = vunpack.c.h.b16 %v5523
    %v5562 = vunpack.c.l.b16 %v5524
    %v5563 = vunpack.c.h.b16 %v5524
    %v5564 = vunpack.c.l.b16 %v5525
    %v5565 = vpack.c.b16 %v5558, %v5558
    %v5566 = vpack.c.b16 %v5559, %v5559
    %v5567 = vpack.c.b16 %v5560, %v5560
    %v5568 = vpack.c.b16 %v5561, %v5561
    %v5569 = vpack.c.b16 %v5562, %v5562
    %v5570 = vpack.c.b16 %v5563, %v5563
    %v5571 = vpack.c.b16 %v5564, %v5564
    %v5573 = vsel %vm5082, %v5521, 0
    %v5576 = vsel %vm5086, %v5565, 0
    %v5579 = vsel %vm5086, %v5566, 0
    %v5582 = vsel %vm5086, %v5567, 0
    %v5585 = vsel %vm5086, %v5568, 0
    %v5588 = vsel %vm5086, %v5569, 0
    %v5591 = vsel %vm5086, %v5570, 0
    %v5594 = vsel %vm5086, %v5571, 0
    %5596 = vmatprep.subr.bf16.mxu0 %v5579
    %5597 = vmatpush1.bf16.msra.mxu0 %v5576
    %5598 = vmatprep.subr.bf16.mxu0 0
    %5599 = vmatpush1.bf16.msra.mxu0 0
    %5600 = vmatprep.subr.bf16.mxu0 0
    %5601 = vmatpush1.bf16.msra.mxu0 0
    %5602 = vmatprep.subr.bf16.mxu0 0
    %5603 = vmatpush1.bf16.msra.mxu0 0
    %5604 = vmatprep.subr.bf16.mxu0 0
    %5605 = vmatpush1.bf16.msra.mxu0 0
    %5606 = vmatprep.subr.bf16.mxu0 0
    %5607 = vmatpush1.bf16.msra.mxu0 0
    %5608 = vmatprep.subr.bf16.mxu0 0
    %5609 = vmatpush1.bf16.msra.mxu0 0
    %5610 = vmatprep.subr.bf16.mxu0 0
    %5611 = vmatpush1.bf16.msra.mxu0 0
    %5612 = vmatprep.subr.bf16.mxu0 0
    %5613 = vmatpush1.bf16.msra.mxu0 0
    %5614 = vmatprep.subr.bf16.mxu0 0
    %5615 = vmatpush1.bf16.msra.mxu0 0
    %5616 = vmatprep.subr.bf16.mxu0 0
    %5617 = vmatpush1.bf16.msra.mxu0 0
    %5618 = vmatprep.subr.bf16.mxu0 0
    %5619 = vmatpush1.bf16.msra.mxu0 0
    %5620 = vmatprep.subr.bf16.mxu0 0
    %5621 = vmatpush1.bf16.msra.mxu0 0
    %5622 = vmatprep.subr.bf16.mxu0 0
    %5623 = vmatpush1.bf16.msra.mxu0 0
    %5624 = vmatprep.subr.bf16.mxu0 0
    %5625 = vmatpush1.bf16.msra.mxu0 0
    %5626 = vmatprep.subr.bf16.mxu0 0
    %5627 = vmatpush1.bf16.msra.mxu0 0
    %5628 = vmatprep.mubr.bf16.mxu0 0
    %5629 = vmatmul.mubr.bf16.gmra.mrb[0].mxu0 %v5573
    %v5630 = vpop.f32.mrb[0].mxu0
    %v5631 = vadd.f32 %v5529, %v5630
    %v5632 = vpop.f32.mrb[0].mxu0
    %v5633 = vadd.f32 %v5533, %v5632
    %v5634 = vpop.f32.mrb[0].mxu0
    %v5635 = vpop.f32.mrb[0].mxu0
    %5636 = vdwg.mxu0
    %5637 = vmatprep.subr.bf16.mxu0 %v5585
    %5638 = vmatpush1.bf16.msra.mxu0 %v5582
    %5639 = vmatprep.subr.bf16.mxu0 0
    %5640 = vmatpush1.bf16.msra.mxu0 0
    %5641 = vmatprep.subr.bf16.mxu0 0
    %5642 = vmatpush1.bf16.msra.mxu0 0
    %5643 = vmatprep.subr.bf16.mxu0 0
    %5644 = vmatpush1.bf16.msra.mxu0 0
    %5645 = vmatprep.subr.bf16.mxu0 0
    %5646 = vmatpush1.bf16.msra.mxu0 0
    %5647 = vmatprep.subr.bf16.mxu0 0
    %5648 = vmatpush1.bf16.msra.mxu0 0
    %5649 = vmatprep.subr.bf16.mxu0 0
    %5650 = vmatpush1.bf16.msra.mxu0 0
    %5651 = vmatprep.subr.bf16.mxu0 0
    %5652 = vmatpush1.bf16.msra.mxu0 0
    %5653 = vmatprep.subr.bf16.mxu0 0
    %5654 = vmatpush1.bf16.msra.mxu0 0
    %5655 = vmatprep.subr.bf16.mxu0 0
    %5656 = vmatpush1.bf16.msra.mxu0 0
    %5657 = vmatprep.subr.bf16.mxu0 0
    %5658 = vmatpush1.bf16.msra.mxu0 0
    %5659 = vmatprep.subr.bf16.mxu0 0
    %5660 = vmatpush1.bf16.msra.mxu0 0
    %5661 = vmatprep.subr.bf16.mxu0 0
    %5662 = vmatpush1.bf16.msra.mxu0 0
    %5663 = vmatprep.subr.bf16.mxu0 0
    %5664 = vmatpush1.bf16.msra.mxu0 0
    %5665 = vmatprep.subr.bf16.mxu0 0
    %5666 = vmatpush1.bf16.msra.mxu0 0
    %5667 = vmatprep.subr.bf16.mxu0 0
    %5668 = vmatpush1.bf16.msra.mxu0 0
    %5669 = vmatprep.mubr.bf16.mxu0 0
    %5670 = vmatmul.mubr.bf16.gmra.mrb[0].mxu0 %v5573
    %v5671 = vpop.f32.mrb[0].mxu0
    %v5672 = vadd.f32 %v5537, %v5671
    %v5673 = vpop.f32.mrb[0].mxu0
    %v5674 = vadd.f32 %v5541, %v5673
    %v5675 = vpop.f32.mrb[0].mxu0
    %v5676 = vpop.f32.mrb[0].mxu0
    %5677 = vdwg.mxu0
    %5678 = vmatprep.subr.bf16.mxu0 %v5591
    %5679 = vmatpush1.bf16.msra.mxu0 %v5588
    %5680 = vmatprep.subr.bf16.mxu0 0
    %5681 = vmatpush1.bf16.msra.mxu0 0
    %5682 = vmatprep.subr.bf16.mxu0 0
    %5683 = vmatpush1.bf16.msra.mxu0 0
    %5684 = vmatprep.subr.bf16.mxu0 0
    %5685 = vmatpush1.bf16.msra.mxu0 0
    %5686 = vmatprep.subr.bf16.mxu0 0
    %5687 = vmatpush1.bf16.msra.mxu0 0
    %5688 = vmatprep.subr.bf16.mxu0 0
    %5689 = vmatpush1.bf16.msra.mxu0 0
    %5690 = vmatprep.subr.bf16.mxu0 0
    %5691 = vmatpush1.bf16.msra.mxu0 0
    %5692 = vmatprep.subr.bf16.mxu0 0
    %5693 = vmatpush1.bf16.msra.mxu0 0
    %5694 = vmatprep.subr.bf16.mxu0 0
    %5695 = vmatpush1.bf16.msra.mxu0 0
    %5696 = vmatprep.subr.bf16.mxu0 0
    %5697 = vmatpush1.bf16.msra.mxu0 0
    %5698 = vmatprep.subr.bf16.mxu0 0
    %5699 = vmatpush1.bf16.msra.mxu0 0
    %5700 = vmatprep.subr.bf16.mxu0 0
    %5701 = vmatpush1.bf16.msra.mxu0 0
    %5702 = vmatprep.subr.bf16.mxu0 0
    %5703 = vmatpush1.bf16.msra.mxu0 0
    %5704 = vmatprep.subr.bf16.mxu0 0
    %5705 = vmatpush1.bf16.msra.mxu0 0
    %5706 = vmatprep.subr.bf16.mxu0 0
    %5707 = vmatpush1.bf16.msra.mxu0 0
    %5708 = vmatprep.subr.bf16.mxu0 0
    %5709 = vmatpush1.bf16.msra.mxu0 0
    %5710 = vmatprep.mubr.bf16.mxu0 0
    %5711 = vmatmul.mubr.bf16.gmra.mrb[0].mxu0 %v5573
    %v5712 = vpop.f32.mrb[0].mxu0
    %v5713 = vadd.f32 %v5545, %v5712
    %v5714 = vpop.f32.mrb[0].mxu0
    %v5715 = vadd.f32 %v5549, %v5714
    %v5716 = vpop.f32.mrb[0].mxu0
    %v5717 = vpop.f32.mrb[0].mxu0
    %5718 = vdwg.mxu0
    %5719 = vmatprep.subr.bf16.mxu0 0
    %5720 = vmatpush1.bf16.msra.mxu0 %v5594
    %5721 = vmatprep.subr.bf16.mxu0 0
    %5722 = vmatpush1.bf16.msra.mxu0 0
    %5723 = vmatprep.subr.bf16.mxu0 0
    %5724 = vmatpush1.bf16.msra.mxu0 0
    %5725 = vmatprep.subr.bf16.mxu0 0
    %5726 = vmatpush1.bf16.msra.mxu0 0
    %5727 = vmatprep.subr.bf16.mxu0 0
    %5728 = vmatpush1.bf16.msra.mxu0 0
    %5729 = vmatprep.subr.bf16.mxu0 0
    %5730 = vmatpush1.bf16.msra.mxu0 0
    %5731 = vmatprep.subr.bf16.mxu0 0
    %5732 = vmatpush1.bf16.msra.mxu0 0
    %5733 = vmatprep.subr.bf16.mxu0 0
    %5734 = vmatpush1.bf16.msra.mxu0 0
    %5735 = vmatprep.subr.bf16.mxu0 0
    %5736 = vmatpush1.bf16.msra.mxu0 0
    %5737 = vmatprep.subr.bf16.mxu0 0
    %5738 = vmatpush1.bf16.msra.mxu0 0
    %5739 = vmatprep.subr.bf16.mxu0 0
    %5740 = vmatpush1.bf16.msra.mxu0 0
    %5741 = vmatprep.subr.bf16.mxu0 0
    %5742 = vmatpush1.bf16.msra.mxu0 0
    %5743 = vmatprep.subr.bf16.mxu0 0
    %5744 = vmatpush1.bf16.msra.mxu0 0
    %5745 = vmatprep.subr.bf16.mxu0 0
    %5746 = vmatpush1.bf16.msra.mxu0 0
    %5747 = vmatprep.subr.bf16.mxu0 0
    %5748 = vmatpush1.bf16.msra.mxu0 0
    %5749 = vmatprep.subr.bf16.mxu0 0
    %5750 = vmatpush1.bf16.msra.mxu0 0
    %5751 = vmatprep.mubr.bf16.mxu0 0
    %5752 = vmatmul.mubr.bf16.gmra.mrb[0].mxu0 %v5573
    %v5753 = vpop.f32.mrb[0].mxu0
    %v5754 = vadd.f32 %v5553, %v5753
    %v5755 = vpop.f32.mrb[0].mxu0
    %v5756 = vpop.f32.mrb[0].mxu0
    %v5757 = vpop.f32.mrb[0].mxu0
    %5758 = vdwg.mxu0
    %v5759 = vsel %vm1148, %v5631, 0.0
    %v5760 = vrot.slane %v5759, 4
    %v5761 = vadd.f32 %v5759, %v5760
    %v5762 = vrot.slane %v5761, 2
    %v5763 = vadd.f32 %v5761, %v5762
    %v5764 = vrot.slane %v5763, 1
    %v5765 = vadd.f32 %v5763, %v5764
    %v5766 = vsel %vm1148, %v5633, 0.0
    %v5767 = vrot.slane %v5766, 4
    %v5768 = vadd.f32 %v5766, %v5767
    %v5769 = vrot.slane %v5768, 2
    %v5770 = vadd.f32 %v5768, %v5769
    %v5771 = vrot.slane %v5770, 1
    %v5772 = vadd.f32 %v5770, %v5771
    %v5773 = vsel %vm1148, %v5672, 0.0
    %v5774 = vrot.slane %v5773, 4
    %v5775 = vadd.f32 %v5773, %v5774
    %v5776 = vrot.slane %v5775, 2
    %v5777 = vadd.f32 %v5775, %v5776
    %v5778 = vrot.slane %v5777, 1
    %v5779 = vadd.f32 %v5777, %v5778
    %v5780 = vsel %vm1148, %v5674, 0.0
    %v5781 = vrot.slane %v5780, 4
    %v5782 = vadd.f32 %v5780, %v5781
    %v5783 = vrot.slane %v5782, 2
    %v5784 = vadd.f32 %v5782, %v5783
    %v5785 = vrot.slane %v5784, 1
    %v5786 = vadd.f32 %v5784, %v5785
    %v5787 = vsel %vm1148, %v5713, 0.0
    %v5788 = vrot.slane %v5787, 4
    %v5789 = vadd.f32 %v5787, %v5788
    %v5790 = vrot.slane %v5789, 2
    %v5791 = vadd.f32 %v5789, %v5790
    %v5792 = vrot.slane %v5791, 1
    %v5793 = vadd.f32 %v5791, %v5792
    %v5794 = vsel %vm1148, %v5715, 0.0
    %v5795 = vrot.slane %v5794, 4
    %v5796 = vadd.f32 %v5794, %v5795
    %v5797 = vrot.slane %v5796, 2
    %v5798 = vadd.f32 %v5796, %v5797
    %v5799 = vrot.slane %v5798, 1
    %v5800 = vadd.f32 %v5798, %v5799
    %v5801 = vsel %vm1191, %v5754, 0.0
    %v5802 = vrot.slane %v5801, 4
    %v5803 = vadd.f32 %v5801, %v5802
    %v5804 = vrot.slane %v5803, 2
    %v5805 = vadd.f32 %v5803, %v5804
    %v5806 = vrot.slane %v5805, 1
    %v5807 = vadd.f32 %v5805, %v5806
    %v5808 = vmul.f32 %v5765, %v1199
    %v5809 = vmul.f32 %v5772, %v1199
    %v5810 = vmul.f32 %v5779, %v1199
    %v5811 = vmul.f32 %v5786, %v1199
    %v5812 = vmul.f32 %v5793, %v1199
    %v5813 = vmul.f32 %v5800, %v1199
    %v5814 = vmul.f32 %v5807, %v1199
    %v5815 = vsub.f32 %v5631, %v5808
    %v5816 = vsub.f32 %v5633, %v5809
    %v5817 = vsub.f32 %v5672, %v5810
    %v5818 = vsub.f32 %v5674, %v5811
    %v5819 = vsub.f32 %v5713, %v5812
    %v5820 = vsub.f32 %v5715, %v5813
    %v5821 = vsub.f32 %v5754, %v5814
    %v5822 = vmul.f32 %v5815, %v5815
    %v5823 = vmul.f32 %v5816, %v5816
    %v5824 = vmul.f32 %v5817, %v5817
    %v5825 = vmul.f32 %v5818, %v5818
    %v5826 = vmul.f32 %v5819, %v5819
    %v5827 = vmul.f32 %v5820, %v5820
    %v5828 = vmul.f32 %v5821, %v5821
    %v5829 = vsel %vm1148, %v5822, 0.0
    %v5830 = vrot.slane %v5829, 4
    %v5831 = vadd.f32 %v5829, %v5830
    %v5832 = vrot.slane %v5831, 2
    %v5833 = vadd.f32 %v5831, %v5832
    %v5834 = vrot.slane %v5833, 1
    %v5835 = vadd.f32 %v5833, %v5834
    %v5836 = vsel %vm1148, %v5823, 0.0
    %v5837 = vrot.slane %v5836, 4
    %v5838 = vadd.f32 %v5836, %v5837
    %v5839 = vrot.slane %v5838, 2
    %v5840 = vadd.f32 %v5838, %v5839
    %v5841 = vrot.slane %v5840, 1
    %v5842 = vadd.f32 %v5840, %v5841
    %v5843 = vsel %vm1148, %v5824, 0.0
    %v5844 = vrot.slane %v5843, 4
    %v5845 = vadd.f32 %v5843, %v5844
    %v5846 = vrot.slane %v5845, 2
    %v5847 = vadd.f32 %v5845, %v5846
    %v5848 = vrot.slane %v5847, 1
    %v5849 = vadd.f32 %v5847, %v5848
    %v5850 = vsel %vm1148, %v5825, 0.0
    %v5851 = vrot.slane %v5850, 4
    %v5852 = vadd.f32 %v5850, %v5851
    %v5853 = vrot.slane %v5852, 2
    %v5854 = vadd.f32 %v5852, %v5853
    %v5855 = vrot.slane %v5854, 1
    %v5856 = vadd.f32 %v5854, %v5855
    %v5857 = vsel %vm1148, %v5826, 0.0
    %v5858 = vrot.slane %v5857, 4
    %v5859 = vadd.f32 %v5857, %v5858
    %v5860 = vrot.slane %v5859, 2
    %v5861 = vadd.f32 %v5859, %v5860
    %v5862 = vrot.slane %v5861, 1
    %v5863 = vadd.f32 %v5861, %v5862
    %v5864 = vsel %vm1148, %v5827, 0.0
    %v5865 = vrot.slane %v5864, 4
    %v5866 = vadd.f32 %v5864, %v5865
    %v5867 = vrot.slane %v5866, 2
    %v5868 = vadd.f32 %v5866, %v5867
    %v5869 = vrot.slane %v5868, 1
    %v5870 = vadd.f32 %v5868, %v5869
    %v5871 = vsel %vm1191, %v5828, 0.0
    %v5872 = vrot.slane %v5871, 4
    %v5873 = vadd.f32 %v5871, %v5872
    %v5874 = vrot.slane %v5873, 2
    %v5875 = vadd.f32 %v5873, %v5874
    %v5876 = vrot.slane %v5875, 1
    %v5877 = vadd.f32 %v5875, %v5876
    %v5878 = vmul.f32 %v5835, %v1199
    %v5879 = vmul.f32 %v5842, %v1199
    %v5880 = vmul.f32 %v5849, %v1199
    %v5881 = vmul.f32 %v5856, %v1199
    %v5882 = vmul.f32 %v5863, %v1199
    %v5883 = vmul.f32 %v5870, %v1199
    %v5884 = vmul.f32 %v5877, %v1199
    %v5885 = vadd.f32 %v5878, 1e-05
    %v5886 = vadd.f32 %v5879, 1e-05
    %v5887 = vadd.f32 %v5880, 1e-05
    %v5888 = vadd.f32 %v5881, 1e-05
    %v5889 = vadd.f32 %v5882, 1e-05
    %v5890 = vadd.f32 %v5883, 1e-05
    %v5891 = vadd.f32 %v5884, 1e-05
    %v5892 = vrsqrt.pop %v5885
    %v5893 = vrsqrt.pop %v5886
    %v5894 = vrsqrt.pop %v5887
    %v5895 = vrsqrt.pop %v5888
    %v5896 = vrsqrt.pop %v5889
    %v5897 = vrsqrt.pop %v5890
    %v5898 = vrsqrt.pop %v5891
    %v5899 = vmul.f32 %v5815, %v5892
    %v5900 = vmul.f32 %v5816, %v5893
    %v5901 = vmul.f32 %v5817, %v5894
    %v5902 = vmul.f32 %v5818, %v5895
    %v5903 = vmul.f32 %v5819, %v5896
    %v5904 = vmul.f32 %v5820, %v5897
    %v5905 = vmul.f32 %v5821, %v5898
    %v5906 = vlaneseq
    %v5907 = vshrl.u32 %v5906, 7
    %v5908 = vsub.s32 1, %v5907
    %v5909 = vrot.slane %v5514, %v5908
    %v5910 = vlaneseq
    %v5911 = vshrl.u32 %v5910, 7
    %v5912 = vsub.s32 1, %v5911
    %v5913 = vrot.slane %v5515, %v5912
    %v5914 = vlaneseq
    %v5915 = vshrl.u32 %v5914, 7
    %v5916 = vsub.s32 1, %v5915
    %v5917 = vrot.slane %v5516, %v5916
    %v5918 = vlaneseq
    %v5919 = vshrl.u32 %v5918, 7
    %v5920 = vsub.s32 1, %v5919
    %v5921 = vrot.slane %v5517, %v5920
    %v5922 = vlaneseq
    %v5923 = vshrl.u32 %v5922, 7
    %v5924 = vsub.s32 1, %v5923
    %v5925 = vrot.slane %v5518, %v5924
    %v5926 = vlaneseq
    %v5927 = vshrl.u32 %v5926, 7
    %v5928 = vsub.s32 1, %v5927
    %v5929 = vrot.slane %v5519, %v5928
    %v5930 = vlaneseq
    %v5931 = vshrl.u32 %v5930, 7
    %v5932 = vsub.s32 1, %v5931
    %v5933 = vrot.slane %v5520, %v5932
    %v5934 = vmul.f32 %v5909, %v5899
    %v5935 = vmul.f32 %v5913, %v5900
    %v5936 = vmul.f32 %v5917, %v5901
    %v5937 = vmul.f32 %v5921, %v5902
    %v5938 = vmul.f32 %v5925, %v5903
    %v5939 = vmul.f32 %v5929, %v5904
    %v5940 = vmul.f32 %v5933, %v5905
    %v5941 = vlaneseq
    %v5942 = vshrl.u32 %v5941, 7
    %v5943 = vsub.s32 2, %v5942
    %v5944 = vrot.slane %v5514, %v5943
    %v5945 = vlaneseq
    %v5946 = vshrl.u32 %v5945, 7
    %v5947 = vsub.s32 2, %v5946
    %v5948 = vrot.slane %v5515, %v5947
    %v5949 = vlaneseq
    %v5950 = vshrl.u32 %v5949, 7
    %v5951 = vsub.s32 2, %v5950
    %v5952 = vrot.slane %v5516, %v5951
    %v5953 = vlaneseq
    %v5954 = vshrl.u32 %v5953, 7
    %v5955 = vsub.s32 2, %v5954
    %v5956 = vrot.slane %v5517, %v5955
    %v5957 = vlaneseq
    %v5958 = vshrl.u32 %v5957, 7
    %v5959 = vsub.s32 2, %v5958
    %v5960 = vrot.slane %v5518, %v5959
    %v5961 = vlaneseq
    %v5962 = vshrl.u32 %v5961, 7
    %v5963 = vsub.s32 2, %v5962
    %v5964 = vrot.slane %v5519, %v5963
    %v5965 = vlaneseq
    %v5966 = vshrl.u32 %v5965, 7
    %v5967 = vsub.s32 2, %v5966
    %v5968 = vrot.slane %v5520, %v5967
    %v5969 = vadd.f32 %v5934, %v5944
    %v5970 = vadd.f32 %v5935, %v5948
    %v5971 = vadd.f32 %v5936, %v5952
    %v5972 = vadd.f32 %v5937, %v5956
    %v5973 = vadd.f32 %v5938, %v5960
    %v5974 = vadd.f32 %v5939, %v5964
    %v5975 = vadd.f32 %v5940, %v5968
    %v5976 = vmax.f32 %v5969, 0.0
    %v5977 = vmax.f32 %v5970, 0.0
    %v5978 = vmax.f32 %v5971, 0.0
    %v5979 = vmax.f32 %v5972, 0.0
    %v5980 = vmax.f32 %v5973, 0.0
    %v5981 = vmax.f32 %v5974, 0.0
    %v5982 = vmax.f32 %v5975, 0.0
    %v5983 = vpack.c.bf16 %v5976, %v5976
    %v5984 = vpack.c.bf16 %v5977, %v5977
    %v5985 = vpack.c.bf16 %v5978, %v5978
    %v5986 = vpack.c.bf16 %v5979, %v5979
    %v5987 = vpack.c.bf16 %v5980, %v5980
    %v5988 = vpack.c.bf16 %v5981, %v5981
    %v5989 = vpack.c.bf16 %v5982, %v5982
    %v5990 = vld [vmem:[#allocation3] sm:$0xff]
    %v5991 = vld [vmem:[#allocation3 + $0x8] sm:$0xff]
    %v5992 = vld [vmem:[#allocation3 + $0x10] sm:$0xff]
    %v5993 = vld [vmem:[#allocation3 + $0x18] sm:$0xff]
    %v5994 = vld [vmem:[#allocation3 + $0x20] sm:$0xff]
    %v5995 = vld [vmem:[#allocation3 + $0x28] sm:$0xff]
    %v5996 = vld [vmem:[#allocation3 + $0x30] sm:$0xff]
    %v5997 = vld [vmem:[#allocation3 + $0x38] sm:$0xff]
    %v5998 = vld [vmem:[#allocation3 + $0x40] sm:$0xff]
    %v5999 = vld [vmem:[#allocation3 + $0x48] sm:$0xff]
    %v6000 = vld [vmem:[#allocation3 + $0x50] sm:$0xff]
    %v6001 = vld [vmem:[#allocation3 + $0x58] sm:$0xff]
    %v6002 = vld [vmem:[#allocation3 + $0x60] sm:$0xff]
    %v6003 = vld [vmem:[#allocation3 + $0x68] sm:$0xff]
    %v6004 = vld [vmem:[#allocation3 + $0x70] sm:$0xff]
    %v6005 = vld [vmem:[#allocation3 + $0x78] sm:$0xff]
    %v6006 = vld [vmem:[#allocation3 + $0x80] sm:$0xff]
    %v6007 = vld [vmem:[#allocation3 + $0x88] sm:$0xff]
    %v6008 = vld [vmem:[#allocation3 + $0x90] sm:$0xff]
    %v6009 = vld [vmem:[#allocation3 + $0x98] sm:$0xff]
    %v6010 = vld [vmem:[#allocation3 + $0xa0] sm:$0xff]
    %v6011 = vld [vmem:[#allocation3 + $0xa8] sm:$0xff]
    %v6012 = vld [vmem:[#allocation3 + $0xb0] sm:$0xff]
    %v6013 = vld [vmem:[#allocation3 + $0xb8] sm:$0xff]
    %v6014 = vld [vmem:[#allocation3 + $0xc0] sm:$0xff]
    %v6015 = vld [vmem:[#allocation3 + $0xc8] sm:$0xff]
    %v6016 = vld [vmem:[#allocation3 + $0xd0] sm:$0xff]
    %v6017 = vld [vmem:[#allocation3 + $0xd8] sm:$0xff]
    %v6018 = vld [vmem:[#allocation3 + $0xe0] sm:$0xff]
    %v6019 = vld [vmem:[#allocation3 + $0xe8] sm:$0xff]
    %v6020 = vld [vmem:[#allocation3 + $0xf0] sm:$0xff]
    %v6021 = vld [vmem:[#allocation3 + $0xf8] sm:$0xff]
    %v6022 = vld [vmem:[#allocation3 + $0x100] sm:$0xff]
    %v6023 = vld [vmem:[#allocation3 + $0x108] sm:$0xff]
    %v6024 = vld [vmem:[#allocation3 + $0x110] sm:$0xff]
    %v6025 = vld [vmem:[#allocation3 + $0x118] sm:$0xff]
    %v6026 = vld [vmem:[#allocation3 + $0x120] sm:$0xff]
    %v6027 = vld [vmem:[#allocation3 + $0x128] sm:$0xff]
    %v6028 = vld [vmem:[#allocation3 + $0x130] sm:$0xff]
    %v6029 = vld [vmem:[#allocation3 + $0x138] sm:$0xff]
    %v6030 = vld [vmem:[#allocation3 + $0x140] sm:$0xff]
    %v6031 = vld [vmem:[#allocation3 + $0x148] sm:$0xff]
    %v6032 = vld [vmem:[#allocation3 + $0x150] sm:$0xff]
    %v6033 = vld [vmem:[#allocation3 + $0x158] sm:$0xff]
    %v6034 = vld [vmem:[#allocation3 + $0x160] sm:$0xff]
    %v6035 = vld [vmem:[#allocation3 + $0x168] sm:$0xff]
    %v6036 = vld [vmem:[#allocation3 + $0x170] sm:$0xff]
    %v6037 = vld [vmem:[#allocation3 + $0x178] sm:$0xff]
    %v6038 = vld [vmem:[#allocation3 + $0x180] sm:$0xff]
    %v6039 = vld [vmem:[#allocation3 + $0x188] sm:$0xff]
    %v6040 = vld [vmem:[#allocation3 + $0x190] sm:$0xff]
    %v6041 = vld [vmem:[#allocation3 + $0x198] sm:$0xff]
    %v6042 = vld [vmem:[#allocation3 + $0x1a0] sm:$0xff]
    %v6043 = vld [vmem:[#allocation3 + $0x1a8] sm:$0xff]
    %v6044 = vld [vmem:[#allocation3 + $0x1b0] sm:$0xff]
    %v6045 = vld [vmem:[#allocation3 + $0x1b8] sm:$0xff]
    %v6046 = vld [vmem:[#allocation3 + $0x1c0] sm:$0xff]
    %v6047 = vld [vmem:[#allocation3 + $0x1c8] sm:$0xff]
    %v6048 = vld [vmem:[#allocation3 + $0x1d0] sm:$0xff]
    %v6049 = vld [vmem:[#allocation3 + $0x1d8] sm:$0xff]
    %v6050 = vld [vmem:[#allocation3 + $0x1e0] sm:$0xff]
    %v6051 = vld [vmem:[#allocation3 + $0x1e8] sm:$0xff]
    %v6052 = vld [vmem:[#allocation3 + $0x1f0] sm:$0xff]
    %v6053 = vld [vmem:[#allocation3 + $0x1f8] sm:$0xff]
    %v6054 = vld [vmem:[#allocation3 + $0x200] sm:$0xff]
    %v6055 = vld [vmem:[#allocation3 + $0x208] sm:$0xff]
    %v6056 = vld [vmem:[#allocation3 + $0x210] sm:$0xff]
    %v6057 = vld [vmem:[#allocation3 + $0x218] sm:$0xff]
    %v6058 = vld [vmem:[#allocation3 + $0x220] sm:$0xff]
    %v6059 = vld [vmem:[#allocation3 + $0x228] sm:$0xff]
    %v6060 = vld [vmem:[#allocation3 + $0x230] sm:$0xff]
    %v6061 = vld [vmem:[#allocation3 + $0x238] sm:$0xff]
    %v6062 = vld [vmem:[#allocation3 + $0x240] sm:$0xff]
    %v6063 = vld [vmem:[#allocation3 + $0x248] sm:$0xff]
    %v6064 = vld [vmem:[#allocation3 + $0x250] sm:$0xff]
    %v6065 = vld [vmem:[#allocation3 + $0x258] sm:$0xff]
    %v6066 = vld [vmem:[#allocation3 + $0x260] sm:$0xff]
    %v6067 = vld [vmem:[#allocation3 + $0x268] sm:$0xff]
    %v6068 = vld [vmem:[#allocation3 + $0x270] sm:$0xff]
    %v6069 = vld [vmem:[#allocation3 + $0x278] sm:$0xff]
    %v6070 = vld [vmem:[#allocation3 + $0x280] sm:$0xff]
    %v6071 = vld [vmem:[#allocation3 + $0x288] sm:$0xff]
    %v6072 = vld [vmem:[#allocation3 + $0x290] sm:$0xff]
    %v6073 = vld [vmem:[#allocation3 + $0x298] sm:$0xff]
    %v6074 = vld [vmem:[#allocation3 + $0x2a0] sm:$0xff]
    %v6075 = vld [vmem:[#allocation3 + $0x2a8] sm:$0xff]
    %v6076 = vld [vmem:[#allocation3 + $0x2b0] sm:$0xff]
    %v6077 = vld [vmem:[#allocation3 + $0x2b8] sm:$0xff]
    %v6078 = vld [vmem:[#allocation3 + $0x2c0] sm:$0xff]
    %v6079 = vld [vmem:[#allocation3 + $0x2c8] sm:$0xff]
    %v6080 = vld [vmem:[#allocation3 + $0x2d0] sm:$0xff]
    %v6081 = vld [vmem:[#allocation3 + $0x2d8] sm:$0xff]
    %v6082 = vld [vmem:[#allocation3 + $0x2e0] sm:$0xff]
    %v6083 = vld [vmem:[#allocation3 + $0x2e8] sm:$0xff]
    %v6084 = vld [vmem:[#allocation3 + $0x2f0] sm:$0xff]
    %v6085 = vld [vmem:[#allocation3 + $0x2f8] sm:$0xff]
    %v6086 = vld [vmem:[#allocation3 + $0x300] sm:$0xff]
    %v6087 = vld [vmem:[#allocation3 + $0x308] sm:$0xff]
    %v6088 = vld [vmem:[#allocation3 + $0x310] sm:$0xff]
    %v6089 = vld [vmem:[#allocation3 + $0x318] sm:$0xff]
    %v6090 = vld [vmem:[#allocation3 + $0x320] sm:$0xff]
    %v6091 = vld [vmem:[#allocation3 + $0x328] sm:$0xff]
    %v6092 = vld [vmem:[#allocation3 + $0x330] sm:$0xff]
    %v6093 = vld [vmem:[#allocation3 + $0x338] sm:$0xff]
    %v6094 = vld [vmem:[#allocation3 + $0x340] sm:$0xff]
    %v6095 = vld [vmem:[#allocation3 + $0x348] sm:$0xff]
    %v6096 = vld [vmem:[#allocation3 + $0x350] sm:$0xff]
    %v6097 = vld [vmem:[#allocation3 + $0x358] sm:$0xff]
    %v6098 = vld [vmem:[#allocation3 + $0x360] sm:$0xff]
    %v6099 = vld [vmem:[#allocation3 + $0x368] sm:$0xff]
    %v6100 = vld [vmem:[#allocation3 + $0x370] sm:$0xff]
    %v6101 = vld [vmem:[#allocation3 + $0x378] sm:$0xff]
    %v6102 = vld [vmem:[#allocation3 + $0x380] sm:$0xff]
    %v6103 = vld [vmem:[#allocation3 + $0x388] sm:$0xff]
    %v6104 = vld [vmem:[#allocation3 + $0x390] sm:$0xff]
    %v6105 = vld [vmem:[#allocation3 + $0x398] sm:$0xff]
    %v6106 = vld [vmem:[#allocation3 + $0x3a0] sm:$0xff]
    %v6107 = vld [vmem:[#allocation3 + $0x3a8] sm:$0xff]
    %v6108 = vld [vmem:[#allocation3 + $0x3b0] sm:$0xff]
    %v6109 = vld [vmem:[#allocation3 + $0x3b8] sm:$0xff]
    %v6110 = vld [vmem:[#allocation3 + $0x3c0] sm:$0xff]
    %v6111 = vld [vmem:[#allocation3 + $0x3c8] sm:$0xff]
    %v6112 = vld [vmem:[#allocation3 + $0x3d0] sm:$0xff]
    %v6113 = vld [vmem:[#allocation3 + $0x3d8] sm:$0xff]
    %v6114 = vld [vmem:[#allocation3 + $0x3e0] sm:$0xff]
    %v6115 = vld [vmem:[#allocation3 + $0x3e8] sm:$0xff]
    %v6116 = vld [vmem:[#allocation3 + $0x3f0] sm:$0xff]
    %v6117 = vld [vmem:[#allocation3 + $0x3f8] sm:$0xff]
    %v6118 = vld [vmem:[#allocation3 + $0x400] sm:$0xff]
    %v6119 = vld [vmem:[#allocation3 + $0x408] sm:$0xff]
    %v6120 = vld [vmem:[#allocation3 + $0x410] sm:$0xff]
    %v6121 = vld [vmem:[#allocation3 + $0x418] sm:$0xff]
    %v6122 = vld [vmem:[#allocation3 + $0x420] sm:$0xff]
    %v6123 = vld [vmem:[#allocation3 + $0x428] sm:$0xff]
    %v6124 = vld [vmem:[#allocation3 + $0x430] sm:$0xff]
    %v6125 = vld [vmem:[#allocation3 + $0x438] sm:$0xff]
    %v6126 = vld [vmem:[#allocation3 + $0x440] sm:$0xff]
    %v6127 = vld [vmem:[#allocation3 + $0x448] sm:$0xff]
    %v6128 = vld [vmem:[#allocation3 + $0x450] sm:$0xff]
    %v6129 = vld [vmem:[#allocation3 + $0x458] sm:$0xff]
    %v6130 = vld [vmem:[#allocation3 + $0x460] sm:$0xff]
    %v6131 = vld [vmem:[#allocation3 + $0x468] sm:$0xff]
    %v6132 = vld [vmem:[#allocation3 + $0x470] sm:$0xff]
    %v6133 = vld [vmem:[#allocation3 + $0x478] sm:$0xff]
    %v6134 = vld [vmem:[#allocation3 + $0x480] sm:$0xff]
    %v6135 = vld [vmem:[#allocation3 + $0x488] sm:$0xff]
    %v6136 = vld [vmem:[#allocation3 + $0x490] sm:$0xff]
    %v6137 = vld [vmem:[#allocation3 + $0x498] sm:$0xff]
    %v6138 = vld [vmem:[#allocation3 + $0x4a0] sm:$0xff]
    %v6139 = vld [vmem:[#allocation3 + $0x4a8] sm:$0xff]
    %v6140 = vld [vmem:[#allocation3 + $0x4b0] sm:$0xff]
    %v6141 = vld [vmem:[#allocation3 + $0x4b8] sm:$0xff]
    %v6142 = vld [vmem:[#allocation3 + $0x4c0] sm:$0xff]
    %v6143 = vld [vmem:[#allocation3 + $0x4c8] sm:$0xff]
    %v6144 = vld [vmem:[#allocation3 + $0x4d0] sm:$0xff]
    %v6145 = vld [vmem:[#allocation3 + $0x4d8] sm:$0xff]
    %v6146 = vld [vmem:[#allocation3 + $0x4e0] sm:$0xff]
    %v6147 = vld [vmem:[#allocation3 + $0x4e8] sm:$0xff]
    %v6148 = vld [vmem:[#allocation3 + $0x4f0] sm:$0xff]
    %v6149 = vld [vmem:[#allocation3 + $0x4f8] sm:$0xff]
    %v6150 = vld [vmem:[#allocation3 + $0x500] sm:$0xff]
    %v6151 = vld [vmem:[#allocation3 + $0x508] sm:$0xff]
    %v6152 = vld [vmem:[#allocation3 + $0x510] sm:$0xff]
    %v6153 = vld [vmem:[#allocation3 + $0x518] sm:$0xff]
    %v6154 = vld [vmem:[#allocation3 + $0x520] sm:$0xff]
    %v6155 = vld [vmem:[#allocation3 + $0x528] sm:$0xff]
    %v6156 = vld [vmem:[#allocation3 + $0x530] sm:$0xff]
    %v6157 = vld [vmem:[#allocation3 + $0x538] sm:$0xff]
    %v6158 = vld [vmem:[#allocation3 + $0x540] sm:$0xff]
    %v6159 = vld [vmem:[#allocation3 + $0x548] sm:$0xff]
    %v6160 = vld [vmem:[#allocation3 + $0x550] sm:$0xff]
    %v6161 = vld [vmem:[#allocation3 + $0x558] sm:$0xff]
    %v6162 = vld [vmem:[#allocation3 + $0x560] sm:$0xff]
    %v6163 = vld [vmem:[#allocation3 + $0x568] sm:$0xff]
    %v6164 = vld [vmem:[#allocation3 + $0x570] sm:$0xff]
    %v6165 = vld [vmem:[#allocation3 + $0x578] sm:$0xff]
    %v6166 = vld [vmem:[#allocation3 + $0x580] sm:$0xff]
    %v6167 = vld [vmem:[#allocation3 + $0x588] sm:$0xff]
    %v6168 = vld [vmem:[#allocation3 + $0x590] sm:$0xff]
    %v6169 = vld [vmem:[#allocation3 + $0x598] sm:$0xff]
    %v6170 = vld [vmem:[#allocation3 + $0x5a0] sm:$0xff]
    %v6171 = vld [vmem:[#allocation3 + $0x5a8] sm:$0xff]
    %v6172 = vld [vmem:[#allocation3 + $0x5b0] sm:$0xff]
    %v6173 = vld [vmem:[#allocation3 + $0x5b8] sm:$0xff]
    %v6174 = vld [vmem:[#allocation3 + $0x5c0] sm:$0xff]
    %v6175 = vld [vmem:[#allocation3 + $0x5c8] sm:$0xff]
    %v6176 = vld [vmem:[#allocation3 + $0x5d0] sm:$0xff]
    %v6177 = vld [vmem:[#allocation3 + $0x5d8] sm:$0xff]
    %v6178 = vld [vmem:[#allocation3 + $0x5e0] sm:$0xff]
    %v6179 = vld [vmem:[#allocation3 + $0x5e8] sm:$0xff]
    %v6180 = vld [vmem:[#allocation3 + $0x5f0] sm:$0xff]
    %v6181 = vld [vmem:[#allocation3 + $0x5f8] sm:$0xff]
    %v6182 = vld [vmem:[#allocation3 + $0x600] sm:$0xff]
    %v6183 = vld [vmem:[#allocation3 + $0x608] sm:$0xff]
    %v6184 = vld [vmem:[#allocation3 + $0x610] sm:$0xff]
    %v6185 = vld [vmem:[#allocation3 + $0x618] sm:$0xff]
    %v6186 = vld [vmem:[#allocation3 + $0x620] sm:$0xff]
    %v6187 = vld [vmem:[#allocation3 + $0x628] sm:$0xff]
    %v6188 = vld [vmem:[#allocation3 + $0x630] sm:$0xff]
    %v6189 = vld [vmem:[#allocation3 + $0x638] sm:$0xff]
    %v6190 = vld [vmem:[#allocation3 + $0x640] sm:$0xff]
    %v6191 = vld [vmem:[#allocation3 + $0x648] sm:$0xff]
    %v6192 = vld [vmem:[#allocation3 + $0x650] sm:$0xff]
    %v6193 = vld [vmem:[#allocation3 + $0x658] sm:$0xff]
    %v6194 = vld [vmem:[#allocation3 + $0x660] sm:$0xff]
    %v6195 = vld [vmem:[#allocation3 + $0x668] sm:$0xff]
    %v6196 = vld [vmem:[#allocation3 + $0x670] sm:$0xff]
    %v6197 = vld [vmem:[#allocation3 + $0x678] sm:$0xff]
    %v6198 = vld [vmem:[#allocation3 + $0x680] sm:$0xff]
    %v6199 = vld [vmem:[#allocation3 + $0x688] sm:$0xff]
    %v6200 = vld [vmem:[#allocation3 + $0x690] sm:$0xff]
    %v6201 = vld [vmem:[#allocation3 + $0x698] sm:$0xff]
    %v6202 = vld [vmem:[#allocation3 + $0x6a0] sm:$0xff]
    %v6203 = vld [vmem:[#allocation3 + $0x6a8] sm:$0xff]
    %v6204 = vld [vmem:[#allocation3 + $0x6b0] sm:$0xff]
    %v6205 = vld [vmem:[#allocation3 + $0x6b8] sm:$0xff]
    %v6206 = vld [vmem:[#allocation3 + $0x6c0] sm:$0xff]
    %v6207 = vld [vmem:[#allocation3 + $0x6c8] sm:$0xff]
    %v6208 = vld [vmem:[#allocation3 + $0x6d0] sm:$0xff]
    %v6209 = vld [vmem:[#allocation3 + $0x6d8] sm:$0xff]
    %v6210 = vld [vmem:[#allocation3 + $0x6e0] sm:$0xff]
    %v6211 = vld [vmem:[#allocation3 + $0x6e8] sm:$0xff]
    %v6212 = vld [vmem:[#allocation3 + $0x6f0] sm:$0xff]
    %v6213 = vld [vmem:[#allocation3 + $0x6f8] sm:$0xff]
    %v6214 = vld [vmem:[#allocation3 + $0x700] sm:$0xff]
    %v6215 = vld [vmem:[#allocation3 + $0x708] sm:$0xff]
    %v6216 = vld [vmem:[#allocation3 + $0x710] sm:$0xff]
    %v6217 = vld [vmem:[#allocation3 + $0x718] sm:$0xff]
    %v6218 = vld [vmem:[#allocation3 + $0x720] sm:$0xff]
    %v6219 = vld [vmem:[#allocation3 + $0x728] sm:$0xff]
    %v6220 = vld [vmem:[#allocation3 + $0x730] sm:$0xff]
    %v6221 = vld [vmem:[#allocation3 + $0x738] sm:$0xff]
    %v6222 = vld [vmem:[#allocation3 + $0x740] sm:$0xff]
    %v6223 = vld [vmem:[#allocation3 + $0x748] sm:$0xff]
    %v6224 = vld [vmem:[#allocation3 + $0x750] sm:$0xff]
    %v6225 = vld [vmem:[#allocation3 + $0x758] sm:$0xff]
    %v6226 = vld [vmem:[#allocation3 + $0x760] sm:$0xff]
    %v6227 = vld [vmem:[#allocation3 + $0x768] sm:$0xff]
    %v6228 = vld [vmem:[#allocation3 + $0x770] sm:$0xff]
    %v6229 = vld [vmem:[#allocation3 + $0x778] sm:$0xff]
    %v6230 = vld [vmem:[#allocation3 + $0x780] sm:$0xff]
    %v6231 = vld [vmem:[#allocation3 + $0x788] sm:$0xff]
    %v6232 = vld [vmem:[#allocation3 + $0x790] sm:$0xff]
    %v6233 = vld [vmem:[#allocation3 + $0x798] sm:$0xff]
    %v6234 = vld [vmem:[#allocation3 + $0x7a0] sm:$0xff]
    %v6235 = vld [vmem:[#allocation3 + $0x7a8] sm:$0xff]
    %v6236 = vld [vmem:[#allocation3 + $0x7b0] sm:$0xff]
    %v6237 = vld [vmem:[#allocation3 + $0x7b8] sm:$0xff]
    %v6238 = vld [vmem:[#allocation3 + $0x7c0] sm:$0xff]
    %v6239 = vld [vmem:[#allocation3 + $0x7c8] sm:$0xff]
    %v6240 = vld [vmem:[#allocation3 + $0x7d0] sm:$0xff]
    %v6241 = vld [vmem:[#allocation3 + $0x7d8] sm:$0xff]
    %v6242 = vld [vmem:[#allocation3 + $0x7e0] sm:$0xff]
    %v6243 = vld [vmem:[#allocation3 + $0x7e8] sm:$0xff]
    %v6244 = vld [vmem:[#allocation3 + $0x7f0] sm:$0xff]
    %v6245 = vld [vmem:[#allocation3 + $0x7f8] sm:$0xff]
    %v6246 = vld [vmem:[#allocation3 + $0x800] sm:$0xff]
    %v6247 = vld [vmem:[#allocation3 + $0x808] sm:$0xff]
    %v6248 = vld [vmem:[#allocation3 + $0x810] sm:$0xff]
    %v6249 = vld [vmem:[#allocation3 + $0x818] sm:$0xff]
    %v6250 = vld [vmem:[#allocation3 + $0x820] sm:$0xff]
    %v6251 = vld [vmem:[#allocation3 + $0x828] sm:$0xff]
    %v6252 = vld [vmem:[#allocation3 + $0x830] sm:$0xff]
    %v6253 = vld [vmem:[#allocation3 + $0x838] sm:$0xff]
    %v6254 = vld [vmem:[#allocation3 + $0x840] sm:$0xff]
    %v6255 = vld [vmem:[#allocation3 + $0x848] sm:$0xff]
    %v6256 = vld [vmem:[#allocation3 + $0x850] sm:$0xff]
    %v6257 = vld [vmem:[#allocation3 + $0x858] sm:$0xff]
    %v6258 = vld [vmem:[#allocation3 + $0x860] sm:$0xff]
    %v6259 = vld [vmem:[#allocation3 + $0x868] sm:$0xff]
    %v6260 = vld [vmem:[#allocation3 + $0x870] sm:$0xff]
    %v6261 = vld [vmem:[#allocation3 + $0x878] sm:$0xff]
    %v6262 = vld [vmem:[#allocation3 + $0x880] sm:$0xff]
    %v6263 = vld [vmem:[#allocation3 + $0x888] sm:$0xff]
    %v6264 = vld [vmem:[#allocation3 + $0x890] sm:$0xff]
    %v6265 = vld [vmem:[#allocation3 + $0x898] sm:$0xff]
    %v6266 = vld [vmem:[#allocation3 + $0x8a0] sm:$0xff]
    %v6267 = vld [vmem:[#allocation3 + $0x8a8] sm:$0xff]
    %v6268 = vld [vmem:[#allocation3 + $0x8b0] sm:$0xff]
    %v6269 = vld [vmem:[#allocation3 + $0x8b8] sm:$0xff]
    %v6270 = vld [vmem:[#allocation3 + $0x8c0] sm:$0xff]
    %v6271 = vld [vmem:[#allocation3 + $0x8c8] sm:$0xff]
    %v6272 = vld [vmem:[#allocation3 + $0x8d0] sm:$0xff]
    %v6273 = vld [vmem:[#allocation3 + $0x8d8] sm:$0xff]
    %v6274 = vld [vmem:[#allocation3 + $0x8e0] sm:$0xff]
    %v6275 = vld [vmem:[#allocation3 + $0x8e8] sm:$0xff]
    %v6276 = vld [vmem:[#allocation3 + $0x8f0] sm:$0xff]
    %v6277 = vld [vmem:[#allocation3 + $0x8f8] sm:$0xff]
    %v6278 = vld [vmem:[#allocation3 + $0x900] sm:$0xff]
    %v6279 = vld [vmem:[#allocation3 + $0x908] sm:$0xff]
    %v6280 = vld [vmem:[#allocation3 + $0x910] sm:$0xff]
    %v6281 = vld [vmem:[#allocation3 + $0x918] sm:$0xff]
    %v6282 = vld [vmem:[#allocation3 + $0x920] sm:$0xff]
    %v6283 = vld [vmem:[#allocation3 + $0x928] sm:$0xff]
    %v6284 = vld [vmem:[#allocation3 + $0x930] sm:$0xff]
    %v6285 = vld [vmem:[#allocation3 + $0x938] sm:$0xff]
    %v6286 = vld [vmem:[#allocation3 + $0x940] sm:$0xff]
    %v6287 = vld [vmem:[#allocation3 + $0x948] sm:$0xff]
    %v6288 = vld [vmem:[#allocation3 + $0x950] sm:$0xff]
    %v6289 = vld [vmem:[#allocation3 + $0x958] sm:$0xff]
    %v6290 = vld [vmem:[#allocation3 + $0x960] sm:$0xff]
    %v6291 = vld [vmem:[#allocation3 + $0x968] sm:$0xff]
    %v6292 = vld [vmem:[#allocation3 + $0x970] sm:$0xff]
    %v6293 = vld [vmem:[#allocation3 + $0x978] sm:$0xff]
    %v6294 = vld [vmem:[#allocation3 + $0x980] sm:$0xff]
    %v6295 = vld [vmem:[#allocation3 + $0x988] sm:$0xff]
    %v6296 = vld [vmem:[#allocation3 + $0x990] sm:$0xff]
    %v6297 = vld [vmem:[#allocation3 + $0x998] sm:$0xff]
    %v6298 = vld [vmem:[#allocation3 + $0x9a0] sm:$0xff]
    %v6299 = vld [vmem:[#allocation3 + $0x9a8] sm:$0xff]
    %v6300 = vld [vmem:[#allocation3 + $0x9b0] sm:$0xff]
    %v6301 = vld [vmem:[#allocation3 + $0x9b8] sm:$0xff]
    %v6302 = vld [vmem:[#allocation3 + $0x9c0] sm:$0xff]
    %v6303 = vld [vmem:[#allocation3 + $0x9c8] sm:$0xff]
    %v6304 = vld [vmem:[#allocation3 + $0x9d0] sm:$0xff]
    %v6305 = vld [vmem:[#allocation3 + $0x9d8] sm:$0xff]
    %v6306 = vld [vmem:[#allocation3 + $0x9e0] sm:$0xff]
    %v6307 = vld [vmem:[#allocation3 + $0x9e8] sm:$0xff]
    %v6308 = vld [vmem:[#allocation3 + $0x9f0] sm:$0xff]
    %v6309 = vld [vmem:[#allocation3 + $0x9f8] sm:$0xff]
    %v6310 = vld [vmem:[#allocation3 + $0xa00] sm:$0xff]
    %v6311 = vld [vmem:[#allocation3 + $0xa08] sm:$0xff]
    %v6312 = vld [vmem:[#allocation3 + $0xa10] sm:$0xff]
    %v6313 = vld [vmem:[#allocation3 + $0xa18] sm:$0xff]
    %v6314 = vld [vmem:[#allocation3 + $0xa20] sm:$0xff]
    %v6315 = vld [vmem:[#allocation3 + $0xa28] sm:$0xff]
    %v6316 = vld [vmem:[#allocation3 + $0xa30] sm:$0xff]
    %v6317 = vld [vmem:[#allocation3 + $0xa38] sm:$0xff]
    %v6318 = vld [vmem:[#allocation3 + $0xa40] sm:$0xff]
    %v6319 = vld [vmem:[#allocation3 + $0xa48] sm:$0xff]
    %v6320 = vld [vmem:[#allocation3 + $0xa50] sm:$0xff]
    %v6321 = vld [vmem:[#allocation3 + $0xa58] sm:$0xff]
    %v6322 = vld [vmem:[#allocation3 + $0xa60] sm:$0xff]
    %v6323 = vld [vmem:[#allocation3 + $0xa68] sm:$0xff]
    %v6324 = vld [vmem:[#allocation3 + $0xa70] sm:$0xff]
    %v6325 = vld [vmem:[#allocation3 + $0xa78] sm:$0xff]
    %v6326 = vld [vmem:[#allocation3 + $0xa80] sm:$0xff]
    %v6327 = vld [vmem:[#allocation3 + $0xa88] sm:$0xff]
    %v6328 = vld [vmem:[#allocation3 + $0xa90] sm:$0xff]
    %v6329 = vld [vmem:[#allocation3 + $0xa98] sm:$0xff]
    %v6330 = vld [vmem:[#allocation3 + $0xaa0] sm:$0xff]
    %v6331 = vld [vmem:[#allocation3 + $0xaa8] sm:$0xff]
    %v6332 = vld [vmem:[#allocation3 + $0xab0] sm:$0xff]
    %v6333 = vld [vmem:[#allocation3 + $0xab8] sm:$0xff]
    %v6334 = vld [vmem:[#allocation3 + $0xac0] sm:$0xff]
    %v6335 = vld [vmem:[#allocation3 + $0xac8] sm:$0xff]
    %v6336 = vld [vmem:[#allocation3 + $0xad0] sm:$0xff]
    %v6337 = vld [vmem:[#allocation3 + $0xad8] sm:$0xff]
    %v6338 = vld [vmem:[#allocation3 + $0xae0] sm:$0xff]
    %v6339 = vld [vmem:[#allocation3 + $0xae8] sm:$0xff]
    %v6340 = vlaneseq
    %v6341 = vshrl.u32 %v6340, 7
    %v6342 = vsub.s32 3, %v6341
    %v6343 = vrot.slane %v5514, %v6342
    %v6344 = vlaneseq
    %v6345 = vshrl.u32 %v6344, 7
    %v6346 = vsub.s32 3, %v6345
    %v6347 = vrot.slane %v5515, %v6346
    %v6348 = vlaneseq
    %v6349 = vshrl.u32 %v6348, 7
    %v6350 = vsub.s32 3, %v6349
    %v6351 = vrot.slane %v5516, %v6350
    %v6352 = vlaneseq
    %v6353 = vshrl.u32 %v6352, 7
    %v6354 = vsub.s32 3, %v6353
    %v6355 = vrot.slane %v5517, %v6354
    %v6356 = vlaneseq
    %v6357 = vshrl.u32 %v6356, 7
    %v6358 = vsub.s32 3, %v6357
    %v6359 = vrot.slane %v5518, %v6358
    %v6360 = vlaneseq
    %v6361 = vshrl.u32 %v6360, 7
    %v6362 = vsub.s32 3, %v6361
    %v6363 = vrot.slane %v5519, %v6362
    %v6364 = vlaneseq
    %v6365 = vshrl.u32 %v6364, 7
    %v6366 = vsub.s32 3, %v6365
    %v6367 = vrot.slane %v5520, %v6366
    %v6369 = vsel %vm3610, %v5989, 0
    %6371 = vmatprep.subr.bf16.mxu0 %v5991
    %6372 = vmatpush1.bf16.msra.mxu0 %v5990
    %6373 = vmatprep.subr.bf16.mxu0 %v5998
    %6374 = vmatpush1.bf16.msra.mxu0 %v5997
    %6375 = vmatprep.subr.bf16.mxu0 %v6005
    %6376 = vmatpush1.bf16.msra.mxu0 %v6004
    %6377 = vmatprep.subr.bf16.mxu0 %v6012
    %6378 = vmatpush1.bf16.msra.mxu0 %v6011
    %6379 = vmatprep.subr.bf16.mxu0 %v6019
    %6380 = vmatpush1.bf16.msra.mxu0 %v6018
    %6381 = vmatprep.subr.bf16.mxu0 %v6026
    %6382 = vmatpush1.bf16.msra.mxu0 %v6025
    %6383 = vmatprep.subr.bf16.mxu0 %v6033
    %6384 = vmatpush1.bf16.msra.mxu0 %v6032
    %6385 = vmatprep.subr.bf16.mxu0 %v6040
    %6386 = vmatpush1.bf16.msra.mxu0 %v6039
    %6387 = vmatprep.subr.bf16.mxu0 %v6047
    %6388 = vmatpush1.bf16.msra.mxu0 %v6046
    %6389 = vmatprep.subr.bf16.mxu0 %v6054
    %6390 = vmatpush1.bf16.msra.mxu0 %v6053
    %6391 = vmatprep.subr.bf16.mxu0 %v6061
    %6392 = vmatpush1.bf16.msra.mxu0 %v6060
    %6393 = vmatprep.subr.bf16.mxu0 %v6068
    %6394 = vmatpush1.bf16.msra.mxu0 %v6067
    %6395 = vmatprep.subr.bf16.mxu0 %v6075
    %6396 = vmatpush1.bf16.msra.mxu0 %v6074
    %6397 = vmatprep.subr.bf16.mxu0 %v6082
    %6398 = vmatpush1.bf16.msra.mxu0 %v6081
    %6399 = vmatprep.subr.bf16.mxu0 %v6089
    %6400 = vmatpush1.bf16.msra.mxu0 %v6088
    %6401 = vmatprep.subr.bf16.mxu0 %v6096
    %6402 = vmatpush1.bf16.msra.mxu0 %v6095
    %6403 = vmatprep.mubr.bf16.mxu0 %v5984
    %6404 = vmatmul.mubr.bf16.gmra.mrb[0].mxu0 %v5983
    %v6405 = vpop.f32.mrb[0].mxu0
    %v6406 = vadd.f32 %v6343, %v6405
    %v6407 = vpop.f32.mrb[0].mxu0
    %v6408 = vadd.f32 %v6347, %v6407
    %v6409 = vpop.f32.mrb[0].mxu0
    %v6410 = vpop.f32.mrb[0].mxu0
    %6411 = vdwg.mxu0
    %6412 = vmatprep.subr.bf16.mxu0 %v6103
    %6413 = vmatpush1.bf16.msra.mxu0 %v6102
    %6414 = vmatprep.subr.bf16.mxu0 %v6110
    %6415 = vmatpush1.bf16.msra.mxu0 %v6109
    %6416 = vmatprep.subr.bf16.mxu0 %v6117
    %6417 = vmatpush1.bf16.msra.mxu0 %v6116
    %6418 = vmatprep.subr.bf16.mxu0 %v6124
    %6419 = vmatpush1.bf16.msra.mxu0 %v6123
    %6420 = vmatprep.subr.bf16.mxu0 %v6131
    %6421 = vmatpush1.bf16.msra.mxu0 %v6130
    %6422 = vmatprep.subr.bf16.mxu0 %v6138
    %6423 = vmatpush1.bf16.msra.mxu0 %v6137
    %6424 = vmatprep.subr.bf16.mxu0 %v6145
    %6425 = vmatpush1.bf16.msra.mxu0 %v6144
    %6426 = vmatprep.subr.bf16.mxu0 %v6152
    %6427 = vmatpush1.bf16.msra.mxu0 %v6151
    %6428 = vmatprep.subr.bf16.mxu0 %v6159
    %6429 = vmatpush1.bf16.msra.mxu0 %v6158
    %6430 = vmatprep.subr.bf16.mxu0 %v6166
    %6431 = vmatpush1.bf16.msra.mxu0 %v6165
    %6432 = vmatprep.subr.bf16.mxu0 %v6173
    %6433 = vmatpush1.bf16.msra.mxu0 %v6172
    %6434 = vmatprep.subr.bf16.mxu0 %v6180
    %6435 = vmatpush1.bf16.msra.mxu0 %v6179
    %6436 = vmatprep.subr.bf16.mxu0 %v6187
    %6437 = vmatpush1.bf16.msra.mxu0 %v6186
    %6438 = vmatprep.subr.bf16.mxu0 %v6194
    %6439 = vmatpush1.bf16.msra.mxu0 %v6193
    %6440 = vmatprep.subr.bf16.mxu0 %v6201
    %6441 = vmatpush1.bf16.msra.mxu0 %v6200
    %6442 = vmatprep.subr.bf16.mxu0 %v6208
    %6443 = vmatpush1.bf16.msra.mxu0 %v6207
    %6444 = vmatprep.mubr.bf16.mxu0 %v5986
    %6445 = vmatmul.mubr.bf16.gmra.mrb[0].mxu0 %v5985
    %v6446 = vpop.f32.mrb[0].mxu0
    %v6447 = vadd.f32 %v6406, %v6446
    %v6448 = vpop.f32.mrb[0].mxu0
    %v6449 = vadd.f32 %v6408, %v6448
    %v6450 = vpop.f32.mrb[0].mxu0
    %v6451 = vpop.f32.mrb[0].mxu0
    %6452 = vdwg.mxu0
    %6453 = vmatprep.subr.bf16.mxu0 %v6215
    %6454 = vmatpush1.bf16.msra.mxu0 %v6214
    %6455 = vmatprep.subr.bf16.mxu0 %v6222
    %6456 = vmatpush1.bf16.msra.mxu0 %v6221
    %6457 = vmatprep.subr.bf16.mxu0 %v6229
    %6458 = vmatpush1.bf16.msra.mxu0 %v6228
    %6459 = vmatprep.subr.bf16.mxu0 %v6236
    %6460 = vmatpush1.bf16.msra.mxu0 %v6235
    %6461 = vmatprep.subr.bf16.mxu0 %v6243
    %6462 = vmatpush1.bf16.msra.mxu0 %v6242
    %6463 = vmatprep.subr.bf16.mxu0 %v6250
    %6464 = vmatpush1.bf16.msra.mxu0 %v6249
    %6465 = vmatprep.subr.bf16.mxu0 %v6257
    %6466 = vmatpush1.bf16.msra.mxu0 %v6256
    %6467 = vmatprep.subr.bf16.mxu0 %v6264
    %6468 = vmatpush1.bf16.msra.mxu0 %v6263
    %6469 = vmatprep.subr.bf16.mxu0 %v6271
    %6470 = vmatpush1.bf16.msra.mxu0 %v6270
    %6471 = vmatprep.subr.bf16.mxu0 %v6278
    %6472 = vmatpush1.bf16.msra.mxu0 %v6277
    %6473 = vmatprep.subr.bf16.mxu0 %v6285
    %6474 = vmatpush1.bf16.msra.mxu0 %v6284
    %6475 = vmatprep.subr.bf16.mxu0 %v6292
    %6476 = vmatpush1.bf16.msra.mxu0 %v6291
    %6477 = vmatprep.subr.bf16.mxu0 %v6299
    %6478 = vmatpush1.bf16.msra.mxu0 %v6298
    %6479 = vmatprep.subr.bf16.mxu0 %v6306
    %6480 = vmatpush1.bf16.msra.mxu0 %v6305
    %6481 = vmatprep.subr.bf16.mxu0 %v6313
    %6482 = vmatpush1.bf16.msra.mxu0 %v6312
    %6483 = vmatprep.subr.bf16.mxu0 %v6320
    %6484 = vmatpush1.bf16.msra.mxu0 %v6319
    %6485 = vmatprep.mubr.bf16.mxu0 %v5988
    %6486 = vmatmul.mubr.bf16.gmra.mrb[0].mxu0 %v5987
    %v6487 = vpop.f32.mrb[0].mxu0
    %v6488 = vadd.f32 %v6447, %v6487
    %v6489 = vpop.f32.mrb[0].mxu0
    %v6490 = vadd.f32 %v6449, %v6489
    %v6491 = vpop.f32.mrb[0].mxu0
    %v6492 = vpop.f32.mrb[0].mxu0
    %6493 = vdwg.mxu0
    %6494 = vmatprep.subr.bf16.mxu0 %v6327
    %6495 = vmatpush1.bf16.msra.mxu0 %v6326
    %6496 = vmatprep.subr.bf16.mxu0 %v6334
    %6497 = vmatpush1.bf16.msra.mxu0 %v6333
    %6498 = vmatprep.subr.bf16.mxu0 0
    %6499 = vmatpush1.bf16.msra.mxu0 0
    %6500 = vmatprep.subr.bf16.mxu0 0
    %6501 = vmatpush1.bf16.msra.mxu0 0
    %6502 = vmatprep.subr.bf16.mxu0 0
    %6503 = vmatpush1.bf16.msra.mxu0 0
    %6504 = vmatprep.subr.bf16.mxu0 0
    %6505 = vmatpush1.bf16.msra.mxu0 0
    %6506 = vmatprep.subr.bf16.mxu0 0
    %6507 = vmatpush1.bf16.msra.mxu0 0
    %6508 = vmatprep.subr.bf16.mxu0 0
    %6509 = vmatpush1.bf16.msra.mxu0 0
    %6510 = vmatprep.subr.bf16.mxu0 0
    %6511 = vmatpush1.bf16.msra.mxu0 0
    %6512 = vmatprep.subr.bf16.mxu0 0
    %6513 = vmatpush1.bf16.msra.mxu0 0
    %6514 = vmatprep.subr.bf16.mxu0 0
    %6515 = vmatpush1.bf16.msra.mxu0 0
    %6516 = vmatprep.subr.bf16.mxu0 0
    %6517 = vmatpush1.bf16.msra.mxu0 0
    %6518 = vmatprep.subr.bf16.mxu0 0
    %6519 = vmatpush1.bf16.msra.mxu0 0
    %6520 = vmatprep.subr.bf16.mxu0 0
    %6521 = vmatpush1.bf16.msra.mxu0 0
    %6522 = vmatprep.subr.bf16.mxu0 0
    %6523 = vmatpush1.bf16.msra.mxu0 0
    %6524 = vmatprep.subr.bf16.mxu0 0
    %6525 = vmatpush1.bf16.msra.mxu0 0
    %6526 = vmatprep.mubr.bf16.mxu0 0
    %6527 = vmatmul.mubr.bf16.gmra.mrb[0].mxu0 %v6369
    %v6528 = vpop.f32.mrb[0].mxu0
    %v6529 = vadd.f32 %v6488, %v6528
    %v6530 = vpop.f32.mrb[0].mxu0
    %v6531 = vadd.f32 %v6490, %v6530
    %v6532 = vpop.f32.mrb[0].mxu0
    %v6533 = vpop.f32.mrb[0].mxu0
    %6534 = vdwg.mxu0
    %6535 = vmatprep.subr.bf16.mxu0 %v5993
    %6536 = vmatpush1.bf16.msra.mxu0 %v5992
    %6537 = vmatprep.subr.bf16.mxu0 %v6000
    %6538 = vmatpush1.bf16.msra.mxu0 %v5999
    %6539 = vmatprep.subr.bf16.mxu0 %v6007
    %6540 = vmatpush1.bf16.msra.mxu0 %v6006
    %6541 = vmatprep.subr.bf16.mxu0 %v6014
    %6542 = vmatpush1.bf16.msra.mxu0 %v6013
    %6543 = vmatprep.subr.bf16.mxu0 %v6021
    %6544 = vmatpush1.bf16.msra.mxu0 %v6020
    %6545 = vmatprep.subr.bf16.mxu0 %v6028
    %6546 = vmatpush1.bf16.msra.mxu0 %v6027
    %6547 = vmatprep.subr.bf16.mxu0 %v6035
    %6548 = vmatpush1.bf16.msra.mxu0 %v6034
    %6549 = vmatprep.subr.bf16.mxu0 %v6042
    %6550 = vmatpush1.bf16.msra.mxu0 %v6041
    %6551 = vmatprep.subr.bf16.mxu0 %v6049
    %6552 = vmatpush1.bf16.msra.mxu0 %v6048
    %6553 = vmatprep.subr.bf16.mxu0 %v6056
    %6554 = vmatpush1.bf16.msra.mxu0 %v6055
    %6555 = vmatprep.subr.bf16.mxu0 %v6063
    %6556 = vmatpush1.bf16.msra.mxu0 %v6062
    %6557 = vmatprep.subr.bf16.mxu0 %v6070
    %6558 = vmatpush1.bf16.msra.mxu0 %v6069
    %6559 = vmatprep.subr.bf16.mxu0 %v6077
    %6560 = vmatpush1.bf16.msra.mxu0 %v6076
    %6561 = vmatprep.subr.bf16.mxu0 %v6084
    %6562 = vmatpush1.bf16.msra.mxu0 %v6083
    %6563 = vmatprep.subr.bf16.mxu0 %v6091
    %6564 = vmatpush1.bf16.msra.mxu0 %v6090
    %6565 = vmatprep.subr.bf16.mxu0 %v6098
    %6566 = vmatpush1.bf16.msra.mxu0 %v6097
    %6567 = vmatprep.mubr.bf16.mxu0 %v5984
    %6568 = vmatmul.mubr.bf16.gmra.mrb[0].mxu0 %v5983
    %v6569 = vpop.f32.mrb[0].mxu0
    %v6570 = vadd.f32 %v6351, %v6569
    %v6571 = vpop.f32.mrb[0].mxu0
    %v6572 = vadd.f32 %v6355, %v6571
    %v6573 = vpop.f32.mrb[0].mxu0
    %v6574 = vpop.f32.mrb[0].mxu0
    %6575 = vdwg.mxu0
    %6576 = vmatprep.subr.bf16.mxu0 %v6105
    %6577 = vmatpush1.bf16.msra.mxu0 %v6104
    %6578 = vmatprep.subr.bf16.mxu0 %v6112
    %6579 = vmatpush1.bf16.msra.mxu0 %v6111
    %6580 = vmatprep.subr.bf16.mxu0 %v6119
    %6581 = vmatpush1.bf16.msra.mxu0 %v6118
    %6582 = vmatprep.subr.bf16.mxu0 %v6126
    %6583 = vmatpush1.bf16.msra.mxu0 %v6125
    %6584 = vmatprep.subr.bf16.mxu0 %v6133
    %6585 = vmatpush1.bf16.msra.mxu0 %v6132
    %6586 = vmatprep.subr.bf16.mxu0 %v6140
    %6587 = vmatpush1.bf16.msra.mxu0 %v6139
    %6588 = vmatprep.subr.bf16.mxu0 %v6147
    %6589 = vmatpush1.bf16.msra.mxu0 %v6146
    %6590 = vmatprep.subr.bf16.mxu0 %v6154
    %6591 = vmatpush1.bf16.msra.mxu0 %v6153
    %6592 = vmatprep.subr.bf16.mxu0 %v6161
    %6593 = vmatpush1.bf16.msra.mxu0 %v6160
    %6594 = vmatprep.subr.bf16.mxu0 %v6168
    %6595 = vmatpush1.bf16.msra.mxu0 %v6167
    %6596 = vmatprep.subr.bf16.mxu0 %v6175
    %6597 = vmatpush1.bf16.msra.mxu0 %v6174
    %6598 = vmatprep.subr.bf16.mxu0 %v6182
    %6599 = vmatpush1.bf16.msra.mxu0 %v6181
    %6600 = vmatprep.subr.bf16.mxu0 %v6189
    %6601 = vmatpush1.bf16.msra.mxu0 %v6188
    %6602 = vmatprep.subr.bf16.mxu0 %v6196
    %6603 = vmatpush1.bf16.msra.mxu0 %v6195
    %6604 = vmatprep.subr.bf16.mxu0 %v6203
    %6605 = vmatpush1.bf16.msra.mxu0 %v6202
    %6606 = vmatprep.subr.bf16.mxu0 %v6210
    %6607 = vmatpush1.bf16.msra.mxu0 %v6209
    %6608 = vmatprep.mubr.bf16.mxu0 %v5986
    %6609 = vmatmul.mubr.bf16.gmra.mrb[0].mxu0 %v5985
    %v6610 = vpop.f32.mrb[0].mxu0
    %v6611 = vadd.f32 %v6570, %v6610
    %v6612 = vpop.f32.mrb[0].mxu0
    %v6613 = vadd.f32 %v6572, %v6612
    %v6614 = vpop.f32.mrb[0].mxu0
    %v6615 = vpop.f32.mrb[0].mxu0
    %6616 = vdwg.mxu0
    %6617 = vmatprep.subr.bf16.mxu0 %v6217
    %6618 = vmatpush1.bf16.msra.mxu0 %v6216
    %6619 = vmatprep.subr.bf16.mxu0 %v6224
    %6620 = vmatpush1.bf16.msra.mxu0 %v6223
    %6621 = vmatprep.subr.bf16.mxu0 %v6231
    %6622 = vmatpush1.bf16.msra.mxu0 %v6230
    %6623 = vmatprep.subr.bf16.mxu0 %v6238
    %6624 = vmatpush1.bf16.msra.mxu0 %v6237
    %6625 = vmatprep.subr.bf16.mxu0 %v6245
    %6626 = vmatpush1.bf16.msra.mxu0 %v6244
    %6627 = vmatprep.subr.bf16.mxu0 %v6252
    %6628 = vmatpush1.bf16.msra.mxu0 %v6251
    %6629 = vmatprep.subr.bf16.mxu0 %v6259
    %6630 = vmatpush1.bf16.msra.mxu0 %v6258
    %6631 = vmatprep.subr.bf16.mxu0 %v6266
    %6632 = vmatpush1.bf16.msra.mxu0 %v6265
    %6633 = vmatprep.subr.bf16.mxu0 %v6273
    %6634 = vmatpush1.bf16.msra.mxu0 %v6272
    %6635 = vmatprep.subr.bf16.mxu0 %v6280
    %6636 = vmatpush1.bf16.msra.mxu0 %v6279
    %6637 = vmatprep.subr.bf16.mxu0 %v6287
    %6638 = vmatpush1.bf16.msra.mxu0 %v6286
    %6639 = vmatprep.subr.bf16.mxu0 %v6294
    %6640 = vmatpush1.bf16.msra.mxu0 %v6293
    %6641 = vmatprep.subr.bf16.mxu0 %v6301
    %6642 = vmatpush1.bf16.msra.mxu0 %v6300
    %6643 = vmatprep.subr.bf16.mxu0 %v6308
    %6644 = vmatpush1.bf16.msra.mxu0 %v6307
    %6645 = vmatprep.subr.bf16.mxu0 %v6315
    %6646 = vmatpush1.bf16.msra.mxu0 %v6314
    %6647 = vmatprep.subr.bf16.mxu0 %v6322
    %6648 = vmatpush1.bf16.msra.mxu0 %v6321
    %6649 = vmatprep.mubr.bf16.mxu0 %v5988
    %6650 = vmatmul.mubr.bf16.gmra.mrb[0].mxu0 %v5987
    %v6651 = vpop.f32.mrb[0].mxu0
    %v6652 = vadd.f32 %v6611, %v6651
    %v6653 = vpop.f32.mrb[0].mxu0
    %v6654 = vadd.f32 %v6613, %v6653
    %v6655 = vpop.f32.mrb[0].mxu0
    %v6656 = vpop.f32.mrb[0].mxu0
    %6657 = vdwg.mxu0
    %6658 = vmatprep.subr.bf16.mxu0 %v6329
    %6659 = vmatpush1.bf16.msra.mxu0 %v6328
    %6660 = vmatprep.subr.bf16.mxu0 %v6336
    %6661 = vmatpush1.bf16.msra.mxu0 %v6335
    %6662 = vmatprep.subr.bf16.mxu0 0
    %6663 = vmatpush1.bf16.msra.mxu0 0
    %6664 = vmatprep.subr.bf16.mxu0 0
    %6665 = vmatpush1.bf16.msra.mxu0 0
    %6666 = vmatprep.subr.bf16.mxu0 0
    %6667 = vmatpush1.bf16.msra.mxu0 0
    %6668 = vmatprep.subr.bf16.mxu0 0
    %6669 = vmatpush1.bf16.msra.mxu0 0
    %6670 = vmatprep.subr.bf16.mxu0 0
    %6671 = vmatpush1.bf16.msra.mxu0 0
    %6672 = vmatprep.subr.bf16.mxu0 0
    %6673 = vmatpush1.bf16.msra.mxu0 0
    %6674 = vmatprep.subr.bf16.mxu0 0
    %6675 = vmatpush1.bf16.msra.mxu0 0
    %6676 = vmatprep.subr.bf16.mxu0 0
    %6677 = vmatpush1.bf16.msra.mxu0 0
    %6678 = vmatprep.subr.bf16.mxu0 0
    %6679 = vmatpush1.bf16.msra.mxu0 0
    %6680 = vmatprep.subr.bf16.mxu0 0
    %6681 = vmatpush1.bf16.msra.mxu0 0
    %6682 = vmatprep.subr.bf16.mxu0 0
    %6683 = vmatpush1.bf16.msra.mxu0 0
    %6684 = vmatprep.subr.bf16.mxu0 0
    %6685 = vmatpush1.bf16.msra.mxu0 0
    %6686 = vmatprep.subr.bf16.mxu0 0
    %6687 = vmatpush1.bf16.msra.mxu0 0
    %6688 = vmatprep.subr.bf16.mxu0 0
    %6689 = vmatpush1.bf16.msra.mxu0 0
    %6690 = vmatprep.mubr.bf16.mxu0 0
    %6691 = vmatmul.mubr.bf16.gmra.mrb[0].mxu0 %v6369
    %v6692 = vpop.f32.mrb[0].mxu0
    %v6693 = vadd.f32 %v6652, %v6692
    %v6694 = vpop.f32.mrb[0].mxu0
    %v6695 = vadd.f32 %v6654, %v6694
    %v6696 = vpop.f32.mrb[0].mxu0
    %v6697 = vpop.f32.mrb[0].mxu0
    %6698 = vdwg.mxu0
    %6699 = vmatprep.subr.bf16.mxu0 %v5995
    %6700 = vmatpush1.bf16.msra.mxu0 %v5994
    %6701 = vmatprep.subr.bf16.mxu0 %v6002
    %6702 = vmatpush1.bf16.msra.mxu0 %v6001
    %6703 = vmatprep.subr.bf16.mxu0 %v6009
    %6704 = vmatpush1.bf16.msra.mxu0 %v6008
    %6705 = vmatprep.subr.bf16.mxu0 %v6016
    %6706 = vmatpush1.bf16.msra.mxu0 %v6015
    %6707 = vmatprep.subr.bf16.mxu0 %v6023
    %6708 = vmatpush1.bf16.msra.mxu0 %v6022
    %6709 = vmatprep.subr.bf16.mxu0 %v6030
    %6710 = vmatpush1.bf16.msra.mxu0 %v6029
    %6711 = vmatprep.subr.bf16.mxu0 %v6037
    %6712 = vmatpush1.bf16.msra.mxu0 %v6036
    %6713 = vmatprep.subr.bf16.mxu0 %v6044
    %6714 = vmatpush1.bf16.msra.mxu0 %v6043
    %6715 = vmatprep.subr.bf16.mxu0 %v6051
    %6716 = vmatpush1.bf16.msra.mxu0 %v6050
    %6717 = vmatprep.subr.bf16.mxu0 %v6058
    %6718 = vmatpush1.bf16.msra.mxu0 %v6057
    %6719 = vmatprep.subr.bf16.mxu0 %v6065
    %6720 = vmatpush1.bf16.msra.mxu0 %v6064
    %6721 = vmatprep.subr.bf16.mxu0 %v6072
    %6722 = vmatpush1.bf16.msra.mxu0 %v6071
    %6723 = vmatprep.subr.bf16.mxu0 %v6079
    %6724 = vmatpush1.bf16.msra.mxu0 %v6078
    %6725 = vmatprep.subr.bf16.mxu0 %v6086
    %6726 = vmatpush1.bf16.msra.mxu0 %v6085
    %6727 = vmatprep.subr.bf16.mxu0 %v6093
    %6728 = vmatpush1.bf16.msra.mxu0 %v6092
    %6729 = vmatprep.subr.bf16.mxu0 %v6100
    %6730 = vmatpush1.bf16.msra.mxu0 %v6099
    %6731 = vmatprep.mubr.bf16.mxu0 %v5984
    %6732 = vmatmul.mubr.bf16.gmra.mrb[0].mxu0 %v5983
    %v6733 = vpop.f32.mrb[0].mxu0
    %v6734 = vadd.f32 %v6359, %v6733
    %v6735 = vpop.f32.mrb[0].mxu0
    %v6736 = vadd.f32 %v6363, %v6735
    %v6737 = vpop.f32.mrb[0].mxu0
    %v6738 = vpop.f32.mrb[0].mxu0
    %6739 = vdwg.mxu0
    %6740 = vmatprep.subr.bf16.mxu0 %v6107
    %6741 = vmatpush1.bf16.msra.mxu0 %v6106
    %6742 = vmatprep.subr.bf16.mxu0 %v6114
    %6743 = vmatpush1.bf16.msra.mxu0 %v6113
    %6744 = vmatprep.subr.bf16.mxu0 %v6121
    %6745 = vmatpush1.bf16.msra.mxu0 %v6120
    %6746 = vmatprep.subr.bf16.mxu0 %v6128
    %6747 = vmatpush1.bf16.msra.mxu0 %v6127
    %6748 = vmatprep.subr.bf16.mxu0 %v6135
    %6749 = vmatpush1.bf16.msra.mxu0 %v6134
    %6750 = vmatprep.subr.bf16.mxu0 %v6142
    %6751 = vmatpush1.bf16.msra.mxu0 %v6141
    %6752 = vmatprep.subr.bf16.mxu0 %v6149
    %6753 = vmatpush1.bf16.msra.mxu0 %v6148
    %6754 = vmatprep.subr.bf16.mxu0 %v6156
    %6755 = vmatpush1.bf16.msra.mxu0 %v6155
    %6756 = vmatprep.subr.bf16.mxu0 %v6163
    %6757 = vmatpush1.bf16.msra.mxu0 %v6162
    %6758 = vmatprep.subr.bf16.mxu0 %v6170
    %6759 = vmatpush1.bf16.msra.mxu0 %v6169
    %6760 = vmatprep.subr.bf16.mxu0 %v6177
    %6761 = vmatpush1.bf16.msra.mxu0 %v6176
    %6762 = vmatprep.subr.bf16.mxu0 %v6184
    %6763 = vmatpush1.bf16.msra.mxu0 %v6183
    %6764 = vmatprep.subr.bf16.mxu0 %v6191
    %6765 = vmatpush1.bf16.msra.mxu0 %v6190
    %6766 = vmatprep.subr.bf16.mxu0 %v6198
    %6767 = vmatpush1.bf16.msra.mxu0 %v6197
    %6768 = vmatprep.subr.bf16.mxu0 %v6205
    %6769 = vmatpush1.bf16.msra.mxu0 %v6204
    %6770 = vmatprep.subr.bf16.mxu0 %v6212
    %6771 = vmatpush1.bf16.msra.mxu0 %v6211
    %6772 = vmatprep.mubr.bf16.mxu0 %v5986
    %6773 = vmatmul.mubr.bf16.gmra.mrb[0].mxu0 %v5985
    %v6774 = vpop.f32.mrb[0].mxu0
    %v6775 = vadd.f32 %v6734, %v6774
    %v6776 = vpop.f32.mrb[0].mxu0
    %v6777 = vadd.f32 %v6736, %v6776
    %v6778 = vpop.f32.mrb[0].mxu0
    %v6779 = vpop.f32.mrb[0].mxu0
    %6780 = vdwg.mxu0
    %6781 = vmatprep.subr.bf16.mxu0 %v6219
    %6782 = vmatpush1.bf16.msra.mxu0 %v6218
    %6783 = vmatprep.subr.bf16.mxu0 %v6226
    %6784 = vmatpush1.bf16.msra.mxu0 %v6225
    %6785 = vmatprep.subr.bf16.mxu0 %v6233
    %6786 = vmatpush1.bf16.msra.mxu0 %v6232
    %6787 = vmatprep.subr.bf16.mxu0 %v6240
    %6788 = vmatpush1.bf16.msra.mxu0 %v6239
    %6789 = vmatprep.subr.bf16.mxu0 %v6247
    %6790 = vmatpush1.bf16.msra.mxu0 %v6246
    %6791 = vmatprep.subr.bf16.mxu0 %v6254
    %6792 = vmatpush1.bf16.msra.mxu0 %v6253
    %6793 = vmatprep.subr.bf16.mxu0 %v6261
    %6794 = vmatpush1.bf16.msra.mxu0 %v6260
    %6795 = vmatprep.subr.bf16.mxu0 %v6268
    %6796 = vmatpush1.bf16.msra.mxu0 %v6267
    %6797 = vmatprep.subr.bf16.mxu0 %v6275
    %6798 = vmatpush1.bf16.msra.mxu0 %v6274
    %6799 = vmatprep.subr.bf16.mxu0 %v6282
    %6800 = vmatpush1.bf16.msra.mxu0 %v6281
    %6801 = vmatprep.subr.bf16.mxu0 %v6289
    %6802 = vmatpush1.bf16.msra.mxu0 %v6288
    %6803 = vmatprep.subr.bf16.mxu0 %v6296
    %6804 = vmatpush1.bf16.msra.mxu0 %v6295
    %6805 = vmatprep.subr.bf16.mxu0 %v6303
    %6806 = vmatpush1.bf16.msra.mxu0 %v6302
    %6807 = vmatprep.subr.bf16.mxu0 %v6310
    %6808 = vmatpush1.bf16.msra.mxu0 %v6309
    %6809 = vmatprep.subr.bf16.mxu0 %v6317
    %6810 = vmatpush1.bf16.msra.mxu0 %v6316
    %6811 = vmatprep.subr.bf16.mxu0 %v6324
    %6812 = vmatpush1.bf16.msra.mxu0 %v6323
    %6813 = vmatprep.mubr.bf16.mxu0 %v5988
    %6814 = vmatmul.mubr.bf16.gmra.mrb[0].mxu0 %v5987
    %v6815 = vpop.f32.mrb[0].mxu0
    %v6816 = vadd.f32 %v6775, %v6815
    %v6817 = vpop.f32.mrb[0].mxu0
    %v6818 = vadd.f32 %v6777, %v6817
    %v6819 = vpop.f32.mrb[0].mxu0
    %v6820 = vpop.f32.mrb[0].mxu0
    %6821 = vdwg.mxu0
    %6822 = vmatprep.subr.bf16.mxu0 %v6331
    %6823 = vmatpush1.bf16.msra.mxu0 %v6330
    %6824 = vmatprep.subr.bf16.mxu0 %v6338
    %6825 = vmatpush1.bf16.msra.mxu0 %v6337
    %6826 = vmatprep.subr.bf16.mxu0 0
    %6827 = vmatpush1.bf16.msra.mxu0 0
    %6828 = vmatprep.subr.bf16.mxu0 0
    %6829 = vmatpush1.bf16.msra.mxu0 0
    %6830 = vmatprep.subr.bf16.mxu0 0
    %6831 = vmatpush1.bf16.msra.mxu0 0
    %6832 = vmatprep.subr.bf16.mxu0 0
    %6833 = vmatpush1.bf16.msra.mxu0 0
    %6834 = vmatprep.subr.bf16.mxu0 0
    %6835 = vmatpush1.bf16.msra.mxu0 0
    %6836 = vmatprep.subr.bf16.mxu0 0
    %6837 = vmatpush1.bf16.msra.mxu0 0
    %6838 = vmatprep.subr.bf16.mxu0 0
    %6839 = vmatpush1.bf16.msra.mxu0 0
    %6840 = vmatprep.subr.bf16.mxu0 0
    %6841 = vmatpush1.bf16.msra.mxu0 0
    %6842 = vmatprep.subr.bf16.mxu0 0
    %6843 = vmatpush1.bf16.msra.mxu0 0
    %6844 = vmatprep.subr.bf16.mxu0 0
    %6845 = vmatpush1.bf16.msra.mxu0 0
    %6846 = vmatprep.subr.bf16.mxu0 0
    %6847 = vmatpush1.bf16.msra.mxu0 0
    %6848 = vmatprep.subr.bf16.mxu0 0
    %6849 = vmatpush1.bf16.msra.mxu0 0
    %6850 = vmatprep.subr.bf16.mxu0 0
    %6851 = vmatpush1.bf16.msra.mxu0 0
    %6852 = vmatprep.subr.bf16.mxu0 0
    %6853 = vmatpush1.bf16.msra.mxu0 0
    %6854 = vmatprep.mubr.bf16.mxu0 0
    %6855 = vmatmul.mubr.bf16.gmra.mrb[0].mxu0 %v6369
    %v6856 = vpop.f32.mrb[0].mxu0
    %v6857 = vadd.f32 %v6816, %v6856
    %v6858 = vpop.f32.mrb[0].mxu0
    %v6859 = vadd.f32 %v6818, %v6858
    %v6860 = vpop.f32.mrb[0].mxu0
    %v6861 = vpop.f32.mrb[0].mxu0
    %6862 = vdwg.mxu0
    %6863 = vmatprep.subr.bf16.mxu0 0
    %6864 = vmatpush1.bf16.msra.mxu0 %v5996
    %6865 = vmatprep.subr.bf16.mxu0 0
    %6866 = vmatpush1.bf16.msra.mxu0 %v6003
    %6867 = vmatprep.subr.bf16.mxu0 0
    %6868 = vmatpush1.bf16.msra.mxu0 %v6010
    %6869 = vmatprep.subr.bf16.mxu0 0
    %6870 = vmatpush1.bf16.msra.mxu0 %v6017
    %6871 = vmatprep.subr.bf16.mxu0 0
    %6872 = vmatpush1.bf16.msra.mxu0 %v6024
    %6873 = vmatprep.subr.bf16.mxu0 0
    %6874 = vmatpush1.bf16.msra.mxu0 %v6031
    %6875 = vmatprep.subr.bf16.mxu0 0
    %6876 = vmatpush1.bf16.msra.mxu0 %v6038
    %6877 = vmatprep.subr.bf16.mxu0 0
    %6878 = vmatpush1.bf16.msra.mxu0 %v6045
    %6879 = vmatprep.subr.bf16.mxu0 0
    %6880 = vmatpush1.bf16.msra.mxu0 %v6052
    %6881 = vmatprep.subr.bf16.mxu0 0
    %6882 = vmatpush1.bf16.msra.mxu0 %v6059
    %6883 = vmatprep.subr.bf16.mxu0 0
    %6884 = vmatpush1.bf16.msra.mxu0 %v6066
    %6885 = vmatprep.subr.bf16.mxu0 0
    %6886 = vmatpush1.bf16.msra.mxu0 %v6073
    %6887 = vmatprep.subr.bf16.mxu0 0
    %6888 = vmatpush1.bf16.msra.mxu0 %v6080
    %6889 = vmatprep.subr.bf16.mxu0 0
    %6890 = vmatpush1.bf16.msra.mxu0 %v6087
    %6891 = vmatprep.subr.bf16.mxu0 0
    %6892 = vmatpush1.bf16.msra.mxu0 %v6094
    %6893 = vmatprep.subr.bf16.mxu0 0
    %6894 = vmatpush1.bf16.msra.mxu0 %v6101
    %6895 = vmatprep.mubr.bf16.mxu0 %v5984
    %6896 = vmatmul.mubr.bf16.gmra.mrb[0].mxu0 %v5983
    %v6897 = vpop.f32.mrb[0].mxu0
    %v6898 = vadd.f32 %v6367, %v6897
    %v6899 = vpop.f32.mrb[0].mxu0
    %v6900 = vpop.f32.mrb[0].mxu0
    %v6901 = vpop.f32.mrb[0].mxu0
    %6902 = vdwg.mxu0
    %6903 = vmatprep.subr.bf16.mxu0 0
    %6904 = vmatpush1.bf16.msra.mxu0 %v6108
    %6905 = vmatprep.subr.bf16.mxu0 0
    %6906 = vmatpush1.bf16.msra.mxu0 %v6115
    %6907 = vmatprep.subr.bf16.mxu0 0
    %6908 = vmatpush1.bf16.msra.mxu0 %v6122
    %6909 = vmatprep.subr.bf16.mxu0 0
    %6910 = vmatpush1.bf16.msra.mxu0 %v6129
    %6911 = vmatprep.subr.bf16.mxu0 0
    %6912 = vmatpush1.bf16.msra.mxu0 %v6136
    %6913 = vmatprep.subr.bf16.mxu0 0
    %6914 = vmatpush1.bf16.msra.mxu0 %v6143
    %6915 = vmatprep.subr.bf16.mxu0 0
    %6916 = vmatpush1.bf16.msra.mxu0 %v6150
    %6917 = vmatprep.subr.bf16.mxu0 0
    %6918 = vmatpush1.bf16.msra.mxu0 %v6157
    %6919 = vmatprep.subr.bf16.mxu0 0
    %6920 = vmatpush1.bf16.msra.mxu0 %v6164
    %6921 = vmatprep.subr.bf16.mxu0 0
    %6922 = vmatpush1.bf16.msra.mxu0 %v6171
    %6923 = vmatprep.subr.bf16.mxu0 0
    %6924 = vmatpush1.bf16.msra.mxu0 %v6178
    %6925 = vmatprep.subr.bf16.mxu0 0
    %6926 = vmatpush1.bf16.msra.mxu0 %v6185
    %6927 = vmatprep.subr.bf16.mxu0 0
    %6928 = vmatpush1.bf16.msra.mxu0 %v6192
    %6929 = vmatprep.subr.bf16.mxu0 0
    %6930 = vmatpush1.bf16.msra.mxu0 %v6199
    %6931 = vmatprep.subr.bf16.mxu0 0
    %6932 = vmatpush1.bf16.msra.mxu0 %v6206
    %6933 = vmatprep.subr.bf16.mxu0 0
    %6934 = vmatpush1.bf16.msra.mxu0 %v6213
    %6935 = vmatprep.mubr.bf16.mxu0 %v5986
    %6936 = vmatmul.mubr.bf16.gmra.mrb[0].mxu0 %v5985
    %v6937 = vpop.f32.mrb[0].mxu0
    %v6938 = vadd.f32 %v6898, %v6937
    %v6939 = vpop.f32.mrb[0].mxu0
    %v6940 = vpop.f32.mrb[0].mxu0
    %v6941 = vpop.f32.mrb[0].mxu0
    %6942 = vdwg.mxu0
    %6943 = vmatprep.subr.bf16.mxu0 0
    %6944 = vmatpush1.bf16.msra.mxu0 %v6220
    %6945 = vmatprep.subr.bf16.mxu0 0
    %6946 = vmatpush1.bf16.msra.mxu0 %v6227
    %6947 = vmatprep.subr.bf16.mxu0 0
    %6948 = vmatpush1.bf16.msra.mxu0 %v6234
    %6949 = vmatprep.subr.bf16.mxu0 0
    %6950 = vmatpush1.bf16.msra.mxu0 %v6241
    %6951 = vmatprep.subr.bf16.mxu0 0
    %6952 = vmatpush1.bf16.msra.mxu0 %v6248
    %6953 = vmatprep.subr.bf16.mxu0 0
    %6954 = vmatpush1.bf16.msra.mxu0 %v6255
    %6955 = vmatprep.subr.bf16.mxu0 0
    %6956 = vmatpush1.bf16.msra.mxu0 %v6262
    %6957 = vmatprep.subr.bf16.mxu0 0
    %6958 = vmatpush1.bf16.msra.mxu0 %v6269
    %6959 = vmatprep.subr.bf16.mxu0 0
    %6960 = vmatpush1.bf16.msra.mxu0 %v6276
    %6961 = vmatprep.subr.bf16.mxu0 0
    %6962 = vmatpush1.bf16.msra.mxu0 %v6283
    %6963 = vmatprep.subr.bf16.mxu0 0
    %6964 = vmatpush1.bf16.msra.mxu0 %v6290
    %6965 = vmatprep.subr.bf16.mxu0 0
    %6966 = vmatpush1.bf16.msra.mxu0 %v6297
    %6967 = vmatprep.subr.bf16.mxu0 0
    %6968 = vmatpush1.bf16.msra.mxu0 %v6304
    %6969 = vmatprep.subr.bf16.mxu0 0
    %6970 = vmatpush1.bf16.msra.mxu0 %v6311
    %6971 = vmatprep.subr.bf16.mxu0 0
    %6972 = vmatpush1.bf16.msra.mxu0 %v6318
    %6973 = vmatprep.subr.bf16.mxu0 0
    %6974 = vmatpush1.bf16.msra.mxu0 %v6325
    %6975 = vmatprep.mubr.bf16.mxu0 %v5988
    %6976 = vmatmul.mubr.bf16.gmra.mrb[0].mxu0 %v5987
    %v6977 = vpop.f32.mrb[0].mxu0
    %v6978 = vadd.f32 %v6938, %v6977
    %v6979 = vpop.f32.mrb[0].mxu0
    %v6980 = vpop.f32.mrb[0].mxu0
    %v6981 = vpop.f32.mrb[0].mxu0
    %6982 = vdwg.mxu0
    %6983 = vmatprep.subr.bf16.mxu0 0
    %6984 = vmatpush1.bf16.msra.mxu0 %v6332
    %6985 = vmatprep.subr.bf16.mxu0 0
    %6986 = vmatpush1.bf16.msra.mxu0 %v6339
    %6987 = vmatprep.subr.bf16.mxu0 0
    %6988 = vmatpush1.bf16.msra.mxu0 0
    %6989 = vmatprep.subr.bf16.mxu0 0
    %6990 = vmatpush1.bf16.msra.mxu0 0
    %6991 = vmatprep.subr.bf16.mxu0 0
    %6992 = vmatpush1.bf16.msra.mxu0 0
    %6993 = vmatprep.subr.bf16.mxu0 0
    %6994 = vmatpush1.bf16.msra.mxu0 0
    %6995 = vmatprep.subr.bf16.mxu0 0
    %6996 = vmatpush1.bf16.msra.mxu0 0
    %6997 = vmatprep.subr.bf16.mxu0 0
    %6998 = vmatpush1.bf16.msra.mxu0 0
    %6999 = vmatprep.subr.bf16.mxu0 0
    %7000 = vmatpush1.bf16.msra.mxu0 0
    %7001 = vmatprep.subr.bf16.mxu0 0
    %7002 = vmatpush1.bf16.msra.mxu0 0
    %7003 = vmatprep.subr.bf16.mxu0 0
    %7004 = vmatpush1.bf16.msra.mxu0 0
    %7005 = vmatprep.subr.bf16.mxu0 0
    %7006 = vmatpush1.bf16.msra.mxu0 0
    %7007 = vmatprep.subr.bf16.mxu0 0
    %7008 = vmatpush1.bf16.msra.mxu0 0
    %7009 = vmatprep.subr.bf16.mxu0 0
    %7010 = vmatpush1.bf16.msra.mxu0 0
    %7011 = vmatprep.subr.bf16.mxu0 0
    %7012 = vmatpush1.bf16.msra.mxu0 0
    %7013 = vmatprep.subr.bf16.mxu0 0
    %7014 = vmatpush1.bf16.msra.mxu0 0
    %7015 = vmatprep.mubr.bf16.mxu0 0
    %7016 = vmatmul.mubr.bf16.gmra.mrb[0].mxu0 %v6369
    %v7017 = vpop.f32.mrb[0].mxu0
    %v7018 = vadd.f32 %v6978, %v7017
    %v7019 = vpop.f32.mrb[0].mxu0
    %v7020 = vpop.f32.mrb[0].mxu0
    %v7021 = vpop.f32.mrb[0].mxu0
    %7022 = vdwg.mxu0
    %v7023 = vsel %vm1148, %v6529, 0.0
    %v7024 = vrot.slane %v7023, 4
    %v7025 = vadd.f32 %v7023, %v7024
    %v7026 = vrot.slane %v7025, 2
    %v7027 = vadd.f32 %v7025, %v7026
    %v7028 = vrot.slane %v7027, 1
    %v7029 = vadd.f32 %v7027, %v7028
    %v7030 = vsel %vm1148, %v6531, 0.0
    %v7031 = vrot.slane %v7030, 4
    %v7032 = vadd.f32 %v7030, %v7031
    %v7033 = vrot.slane %v7032, 2
    %v7034 = vadd.f32 %v7032, %v7033
    %v7035 = vrot.slane %v7034, 1
    %v7036 = vadd.f32 %v7034, %v7035
    %v7037 = vsel %vm1148, %v6693, 0.0
    %v7038 = vrot.slane %v7037, 4
    %v7039 = vadd.f32 %v7037, %v7038
    %v7040 = vrot.slane %v7039, 2
    %v7041 = vadd.f32 %v7039, %v7040
    %v7042 = vrot.slane %v7041, 1
    %v7043 = vadd.f32 %v7041, %v7042
    %v7044 = vsel %vm1148, %v6695, 0.0
    %v7045 = vrot.slane %v7044, 4
    %v7046 = vadd.f32 %v7044, %v7045
    %v7047 = vrot.slane %v7046, 2
    %v7048 = vadd.f32 %v7046, %v7047
    %v7049 = vrot.slane %v7048, 1
    %v7050 = vadd.f32 %v7048, %v7049
    %v7051 = vsel %vm1148, %v6857, 0.0
    %v7052 = vrot.slane %v7051, 4
    %v7053 = vadd.f32 %v7051, %v7052
    %v7054 = vrot.slane %v7053, 2
    %v7055 = vadd.f32 %v7053, %v7054
    %v7056 = vrot.slane %v7055, 1
    %v7057 = vadd.f32 %v7055, %v7056
    %v7058 = vsel %vm1148, %v6859, 0.0
    %v7059 = vrot.slane %v7058, 4
    %v7060 = vadd.f32 %v7058, %v7059
    %v7061 = vrot.slane %v7060, 2
    %v7062 = vadd.f32 %v7060, %v7061
    %v7063 = vrot.slane %v7062, 1
    %v7064 = vadd.f32 %v7062, %v7063
    %v7065 = vsel %vm1191, %v7018, 0.0
    %v7066 = vrot.slane %v7065, 4
    %v7067 = vadd.f32 %v7065, %v7066
    %v7068 = vrot.slane %v7067, 2
    %v7069 = vadd.f32 %v7067, %v7068
    %v7070 = vrot.slane %v7069, 1
    %v7071 = vadd.f32 %v7069, %v7070
    %v7072 = vmul.f32 %v7029, %v1199
    %v7073 = vmul.f32 %v7036, %v1199
    %v7074 = vmul.f32 %v7043, %v1199
    %v7075 = vmul.f32 %v7050, %v1199
    %v7076 = vmul.f32 %v7057, %v1199
    %v7077 = vmul.f32 %v7064, %v1199
    %v7078 = vmul.f32 %v7071, %v1199
    %v7079 = vsub.f32 %v6529, %v7072
    %v7080 = vsub.f32 %v6531, %v7073
    %v7081 = vsub.f32 %v6693, %v7074
    %v7082 = vsub.f32 %v6695, %v7075
    %v7083 = vsub.f32 %v6857, %v7076
    %v7084 = vsub.f32 %v6859, %v7077
    %v7085 = vsub.f32 %v7018, %v7078
    %v7086 = vmul.f32 %v7079, %v7079
    %v7087 = vmul.f32 %v7080, %v7080
    %v7088 = vmul.f32 %v7081, %v7081
    %v7089 = vmul.f32 %v7082, %v7082
    %v7090 = vmul.f32 %v7083, %v7083
    %v7091 = vmul.f32 %v7084, %v7084
    %v7092 = vmul.f32 %v7085, %v7085
    %v7093 = vsel %vm1148, %v7086, 0.0
    %v7094 = vrot.slane %v7093, 4
    %v7095 = vadd.f32 %v7093, %v7094
    %v7096 = vrot.slane %v7095, 2
    %v7097 = vadd.f32 %v7095, %v7096
    %v7098 = vrot.slane %v7097, 1
    %v7099 = vadd.f32 %v7097, %v7098
    %v7100 = vsel %vm1148, %v7087, 0.0
    %v7101 = vrot.slane %v7100, 4
    %v7102 = vadd.f32 %v7100, %v7101
    %v7103 = vrot.slane %v7102, 2
    %v7104 = vadd.f32 %v7102, %v7103
    %v7105 = vrot.slane %v7104, 1
    %v7106 = vadd.f32 %v7104, %v7105
    %v7107 = vsel %vm1148, %v7088, 0.0
    %v7108 = vrot.slane %v7107, 4
    %v7109 = vadd.f32 %v7107, %v7108
    %v7110 = vrot.slane %v7109, 2
    %v7111 = vadd.f32 %v7109, %v7110
    %v7112 = vrot.slane %v7111, 1
    %v7113 = vadd.f32 %v7111, %v7112
    %v7114 = vsel %vm1148, %v7089, 0.0
    %v7115 = vrot.slane %v7114, 4
    %v7116 = vadd.f32 %v7114, %v7115
    %v7117 = vrot.slane %v7116, 2
    %v7118 = vadd.f32 %v7116, %v7117
    %v7119 = vrot.slane %v7118, 1
    %v7120 = vadd.f32 %v7118, %v7119
    %v7121 = vsel %vm1148, %v7090, 0.0
    %v7122 = vrot.slane %v7121, 4
    %v7123 = vadd.f32 %v7121, %v7122
    %v7124 = vrot.slane %v7123, 2
    %v7125 = vadd.f32 %v7123, %v7124
    %v7126 = vrot.slane %v7125, 1
    %v7127 = vadd.f32 %v7125, %v7126
    %v7128 = vsel %vm1148, %v7091, 0.0
    %v7129 = vrot.slane %v7128, 4
    %v7130 = vadd.f32 %v7128, %v7129
    %v7131 = vrot.slane %v7130, 2
    %v7132 = vadd.f32 %v7130, %v7131
    %v7133 = vrot.slane %v7132, 1
    %v7134 = vadd.f32 %v7132, %v7133
    %v7135 = vsel %vm1191, %v7092, 0.0
    %v7136 = vrot.slane %v7135, 4
    %v7137 = vadd.f32 %v7135, %v7136
    %v7138 = vrot.slane %v7137, 2
    %v7139 = vadd.f32 %v7137, %v7138
    %v7140 = vrot.slane %v7139, 1
    %v7141 = vadd.f32 %v7139, %v7140
    %v7142 = vmul.f32 %v7099, %v1199
    %v7143 = vmul.f32 %v7106, %v1199
    %v7144 = vmul.f32 %v7113, %v1199
    %v7145 = vmul.f32 %v7120, %v1199
    %v7146 = vmul.f32 %v7127, %v1199
    %v7147 = vmul.f32 %v7134, %v1199
    %v7148 = vmul.f32 %v7141, %v1199
    %v7149 = vadd.f32 %v7142, 1e-05
    %v7150 = vadd.f32 %v7143, 1e-05
    %v7151 = vadd.f32 %v7144, 1e-05
    %v7152 = vadd.f32 %v7145, 1e-05
    %v7153 = vadd.f32 %v7146, 1e-05
    %v7154 = vadd.f32 %v7147, 1e-05
    %v7155 = vadd.f32 %v7148, 1e-05
    %v7156 = vrsqrt.pop %v7149
    %v7157 = vrsqrt.pop %v7150
    %v7158 = vrsqrt.pop %v7151
    %v7159 = vrsqrt.pop %v7152
    %v7160 = vrsqrt.pop %v7153
    %v7161 = vrsqrt.pop %v7154
    %v7162 = vrsqrt.pop %v7155
    %v7163 = vmul.f32 %v7079, %v7156
    %v7164 = vmul.f32 %v7080, %v7157
    %v7165 = vmul.f32 %v7081, %v7158
    %v7166 = vmul.f32 %v7082, %v7159
    %v7167 = vmul.f32 %v7083, %v7160
    %v7168 = vmul.f32 %v7084, %v7161
    %v7169 = vmul.f32 %v7085, %v7162
    %v7170 = vlaneseq
    %v7171 = vshrl.u32 %v7170, 7
    %v7172 = vsub.s32 4, %v7171
    %v7173 = vrot.slane %v5514, %v7172
    %v7174 = vlaneseq
    %v7175 = vshrl.u32 %v7174, 7
    %v7176 = vsub.s32 4, %v7175
    %v7177 = vrot.slane %v5515, %v7176
    %v7178 = vlaneseq
    %v7179 = vshrl.u32 %v7178, 7
    %v7180 = vsub.s32 4, %v7179
    %v7181 = vrot.slane %v5516, %v7180
    %v7182 = vlaneseq
    %v7183 = vshrl.u32 %v7182, 7
    %v7184 = vsub.s32 4, %v7183
    %v7185 = vrot.slane %v5517, %v7184
    %v7186 = vlaneseq
    %v7187 = vshrl.u32 %v7186, 7
    %v7188 = vsub.s32 4, %v7187
    %v7189 = vrot.slane %v5518, %v7188
    %v7190 = vlaneseq
    %v7191 = vshrl.u32 %v7190, 7
    %v7192 = vsub.s32 4, %v7191
    %v7193 = vrot.slane %v5519, %v7192
    %v7194 = vlaneseq
    %v7195 = vshrl.u32 %v7194, 7
    %v7196 = vsub.s32 4, %v7195
    %v7197 = vrot.slane %v5520, %v7196
    %v7198 = vmul.f32 %v7173, %v7163
    %v7199 = vmul.f32 %v7177, %v7164
    %v7200 = vmul.f32 %v7181, %v7165
    %v7201 = vmul.f32 %v7185, %v7166
    %v7202 = vmul.f32 %v7189, %v7167
    %v7203 = vmul.f32 %v7193, %v7168
    %v7204 = vmul.f32 %v7197, %v7169
    %v7205 = vlaneseq
    %v7206 = vshrl.u32 %v7205, 7
    %v7207 = vsub.s32 5, %v7206
    %v7208 = vrot.slane %v5514, %v7207
    %v7209 = vlaneseq
    %v7210 = vshrl.u32 %v7209, 7
    %v7211 = vsub.s32 5, %v7210
    %v7212 = vrot.slane %v5515, %v7211
    %v7213 = vlaneseq
    %v7214 = vshrl.u32 %v7213, 7
    %v7215 = vsub.s32 5, %v7214
    %v7216 = vrot.slane %v5516, %v7215
    %v7217 = vlaneseq
    %v7218 = vshrl.u32 %v7217, 7
    %v7219 = vsub.s32 5, %v7218
    %v7220 = vrot.slane %v5517, %v7219
    %v7221 = vlaneseq
    %v7222 = vshrl.u32 %v7221, 7
    %v7223 = vsub.s32 5, %v7222
    %v7224 = vrot.slane %v5518, %v7223
    %v7225 = vlaneseq
    %v7226 = vshrl.u32 %v7225, 7
    %v7227 = vsub.s32 5, %v7226
    %v7228 = vrot.slane %v5519, %v7227
    %v7229 = vlaneseq
    %v7230 = vshrl.u32 %v7229, 7
    %v7231 = vsub.s32 5, %v7230
    %v7232 = vrot.slane %v5520, %v7231
    %v7233 = vadd.f32 %v7198, %v7208
    %v7234 = vadd.f32 %v7199, %v7212
    %v7235 = vadd.f32 %v7200, %v7216
    %v7236 = vadd.f32 %v7201, %v7220
    %v7237 = vadd.f32 %v7202, %v7224
    %v7238 = vadd.f32 %v7203, %v7228
    %v7239 = vadd.f32 %v7204, %v7232
    %v7240 = vmax.f32 %v7233, 0.0
    %v7241 = vmax.f32 %v7234, 0.0
    %v7242 = vmax.f32 %v7235, 0.0
    %v7243 = vmax.f32 %v7236, 0.0
    %v7244 = vmax.f32 %v7237, 0.0
    %v7245 = vmax.f32 %v7238, 0.0
    %v7246 = vmax.f32 %v7239, 0.0
    %v7247 = vpack.c.bf16 %v7240, %v7240
    %v7248 = vpack.c.bf16 %v7241, %v7241
    %v7249 = vpack.c.bf16 %v7242, %v7242
    %v7250 = vpack.c.bf16 %v7243, %v7243
    %v7251 = vpack.c.bf16 %v7244, %v7244
    %v7252 = vpack.c.bf16 %v7245, %v7245
    %v7253 = vpack.c.bf16 %v7246, %v7246
    %v7254 = vld [vmem:[#allocation4] sm:$0xff]
    %v7255 = vld [vmem:[#allocation4 + $0x8] sm:$0xff]
    %v7256 = vld [vmem:[#allocation4 + $0x10] sm:$0xff]
    %v7257 = vld [vmem:[#allocation4 + $0x18] sm:$0xff]
    %v7258 = vld [vmem:[#allocation4 + $0x20] sm:$0xff]
    %v7259 = vld [vmem:[#allocation4 + $0x28] sm:$0xff]
    %v7260 = vld [vmem:[#allocation4 + $0x30] sm:$0xff]
    %v7261 = vld [vmem:[#allocation4 + $0x38] sm:$0xff]
    %v7262 = vld [vmem:[#allocation4 + $0x40] sm:$0xff]
    %v7263 = vld [vmem:[#allocation4 + $0x48] sm:$0xff]
    %v7264 = vld [vmem:[#allocation4 + $0x50] sm:$0xff]
    %v7265 = vld [vmem:[#allocation4 + $0x58] sm:$0xff]
    %v7266 = vld [vmem:[#allocation4 + $0x60] sm:$0xff]
    %v7267 = vld [vmem:[#allocation4 + $0x68] sm:$0xff]
    %v7268 = vld [vmem:[#allocation4 + $0x70] sm:$0xff]
    %v7269 = vld [vmem:[#allocation4 + $0x78] sm:$0xff]
    %v7270 = vld [vmem:[#allocation4 + $0x80] sm:$0xff]
    %v7271 = vld [vmem:[#allocation4 + $0x88] sm:$0xff]
    %v7272 = vld [vmem:[#allocation4 + $0x90] sm:$0xff]
    %v7273 = vld [vmem:[#allocation4 + $0x98] sm:$0xff]
    %v7274 = vld [vmem:[#allocation4 + $0xa0] sm:$0xff]
    %v7275 = vld [vmem:[#allocation4 + $0xa8] sm:$0xff]
    %v7276 = vld [vmem:[#allocation4 + $0xb0] sm:$0xff]
    %v7277 = vld [vmem:[#allocation4 + $0xb8] sm:$0xff]
    %v7278 = vld [vmem:[#allocation4 + $0xc0] sm:$0xff]
    %v7279 = vld [vmem:[#allocation4 + $0xc8] sm:$0xff]
    %v7280 = vld [vmem:[#allocation4 + $0xd0] sm:$0xff]
    %v7281 = vld [vmem:[#allocation4 + $0xd8] sm:$0xff]
    %v7282 = vld [vmem:[#allocation4 + $0xe0] sm:$0xff]
    %v7283 = vld [vmem:[#allocation4 + $0xe8] sm:$0xff]
    %v7284 = vld [vmem:[#allocation4 + $0xf0] sm:$0xff]
    %v7285 = vld [vmem:[#allocation4 + $0xf8] sm:$0xff]
    %v7286 = vld [vmem:[#allocation4 + $0x100] sm:$0xff]
    %v7287 = vld [vmem:[#allocation4 + $0x108] sm:$0xff]
    %v7288 = vld [vmem:[#allocation4 + $0x110] sm:$0xff]
    %v7289 = vld [vmem:[#allocation4 + $0x118] sm:$0xff]
    %v7290 = vld [vmem:[#allocation4 + $0x120] sm:$0xff]
    %v7291 = vld [vmem:[#allocation4 + $0x128] sm:$0xff]
    %v7292 = vld [vmem:[#allocation4 + $0x130] sm:$0xff]
    %v7293 = vld [vmem:[#allocation4 + $0x138] sm:$0xff]
    %v7294 = vld [vmem:[#allocation4 + $0x140] sm:$0xff]
    %v7295 = vld [vmem:[#allocation4 + $0x148] sm:$0xff]
    %v7296 = vld [vmem:[#allocation4 + $0x150] sm:$0xff]
    %v7297 = vld [vmem:[#allocation4 + $0x158] sm:$0xff]
    %v7298 = vld [vmem:[#allocation4 + $0x160] sm:$0xff]
    %v7299 = vld [vmem:[#allocation4 + $0x168] sm:$0xff]
    %v7300 = vld [vmem:[#allocation4 + $0x170] sm:$0xff]
    %v7301 = vld [vmem:[#allocation4 + $0x178] sm:$0xff]
    %v7302 = vld [vmem:[#allocation4 + $0x180] sm:$0xff]
    %v7303 = vld [vmem:[#allocation4 + $0x188] sm:$0xff]
    %v7304 = vld [vmem:[#allocation4 + $0x190] sm:$0xff]
    %v7305 = vld [vmem:[#allocation4 + $0x198] sm:$0xff]
    %v7306 = vld [vmem:[#allocation4 + $0x1a0] sm:$0xff]
    %v7307 = vld [vmem:[#allocation4 + $0x1a8] sm:$0xff]
    %v7308 = vld [vmem:[#allocation4 + $0x1b0] sm:$0xff]
    %v7309 = vld [vmem:[#allocation4 + $0x1b8] sm:$0xff]
    %v7310 = vld [vmem:[#allocation4 + $0x1c0] sm:$0xff]
    %v7311 = vld [vmem:[#allocation4 + $0x1c8] sm:$0xff]
    %v7312 = vld [vmem:[#allocation4 + $0x1d0] sm:$0xff]
    %v7313 = vld [vmem:[#allocation4 + $0x1d8] sm:$0xff]
    %v7314 = vld [vmem:[#allocation4 + $0x1e0] sm:$0xff]
    %v7315 = vld [vmem:[#allocation4 + $0x1e8] sm:$0xff]
    %v7316 = vld [vmem:[#allocation4 + $0x1f0] sm:$0xff]
    %v7317 = vld [vmem:[#allocation4 + $0x1f8] sm:$0xff]
    %v7318 = vld [vmem:[#allocation4 + $0x200] sm:$0xff]
    %v7319 = vld [vmem:[#allocation4 + $0x208] sm:$0xff]
    %v7320 = vld [vmem:[#allocation4 + $0x210] sm:$0xff]
    %v7321 = vld [vmem:[#allocation4 + $0x218] sm:$0xff]
    %v7322 = vld [vmem:[#allocation4 + $0x220] sm:$0xff]
    %v7323 = vld [vmem:[#allocation4 + $0x228] sm:$0xff]
    %v7324 = vld [vmem:[#allocation4 + $0x230] sm:$0xff]
    %v7325 = vld [vmem:[#allocation4 + $0x238] sm:$0xff]
    %v7326 = vld [vmem:[#allocation4 + $0x240] sm:$0xff]
    %v7327 = vld [vmem:[#allocation4 + $0x248] sm:$0xff]
    %v7328 = vld [vmem:[#allocation4 + $0x250] sm:$0xff]
    %v7329 = vld [vmem:[#allocation4 + $0x258] sm:$0xff]
    %v7330 = vld [vmem:[#allocation4 + $0x260] sm:$0xff]
    %v7331 = vld [vmem:[#allocation4 + $0x268] sm:$0xff]
    %v7332 = vld [vmem:[#allocation4 + $0x270] sm:$0xff]
    %v7333 = vld [vmem:[#allocation4 + $0x278] sm:$0xff]
    %v7334 = vld [vmem:[#allocation4 + $0x280] sm:$0xff]
    %v7335 = vld [vmem:[#allocation4 + $0x288] sm:$0xff]
    %v7336 = vld [vmem:[#allocation4 + $0x290] sm:$0xff]
    %v7337 = vld [vmem:[#allocation4 + $0x298] sm:$0xff]
    %v7338 = vld [vmem:[#allocation4 + $0x2a0] sm:$0xff]
    %v7339 = vld [vmem:[#allocation4 + $0x2a8] sm:$0xff]
    %v7340 = vld [vmem:[#allocation4 + $0x2b0] sm:$0xff]
    %v7341 = vld [vmem:[#allocation4 + $0x2b8] sm:$0xff]
    %v7342 = vld [vmem:[#allocation4 + $0x2c0] sm:$0xff]
    %v7343 = vld [vmem:[#allocation4 + $0x2c8] sm:$0xff]
    %v7344 = vld [vmem:[#allocation4 + $0x2d0] sm:$0xff]
    %v7345 = vld [vmem:[#allocation4 + $0x2d8] sm:$0xff]
    %v7346 = vld [vmem:[#allocation4 + $0x2e0] sm:$0xff]
    %v7347 = vld [vmem:[#allocation4 + $0x2e8] sm:$0xff]
    %v7348 = vld [vmem:[#allocation4 + $0x2f0] sm:$0xff]
    %v7349 = vld [vmem:[#allocation4 + $0x2f8] sm:$0xff]
    %v7350 = vld [vmem:[#allocation4 + $0x300] sm:$0xff]
    %v7351 = vld [vmem:[#allocation4 + $0x308] sm:$0xff]
    %v7352 = vld [vmem:[#allocation4 + $0x310] sm:$0xff]
    %v7353 = vld [vmem:[#allocation4 + $0x318] sm:$0xff]
    %v7354 = vlaneseq
    %v7355 = vshrl.u32 %v7354, 7
    %v7356 = vsub.s32 6, %v7355
    %v7357 = vrot.slane %v5514, %v7356
    %v7358 = vlaneseq
    %v7359 = vshrl.u32 %v7358, 7
    %v7360 = vsub.s32 6, %v7359
    %v7361 = vrot.slane %v5515, %v7360
    %v7363 = vsel %vm3610, %v7253, 0
    %7365 = vmatprep.subr.bf16.mxu0 %v7255
    %7366 = vmatpush1.bf16.msra.mxu0 %v7254
    %7367 = vmatprep.subr.bf16.mxu0 %v7257
    %7368 = vmatpush1.bf16.msra.mxu0 %v7256
    %7369 = vmatprep.subr.bf16.mxu0 %v7259
    %7370 = vmatpush1.bf16.msra.mxu0 %v7258
    %7371 = vmatprep.subr.bf16.mxu0 %v7261
    %7372 = vmatpush1.bf16.msra.mxu0 %v7260
    %7373 = vmatprep.subr.bf16.mxu0 %v7263
    %7374 = vmatpush1.bf16.msra.mxu0 %v7262
    %7375 = vmatprep.subr.bf16.mxu0 %v7265
    %7376 = vmatpush1.bf16.msra.mxu0 %v7264
    %7377 = vmatprep.subr.bf16.mxu0 %v7267
    %7378 = vmatpush1.bf16.msra.mxu0 %v7266
    %7379 = vmatprep.subr.bf16.mxu0 %v7269
    %7380 = vmatpush1.bf16.msra.mxu0 %v7268
    %7381 = vmatprep.subr.bf16.mxu0 %v7271
    %7382 = vmatpush1.bf16.msra.mxu0 %v7270
    %7383 = vmatprep.subr.bf16.mxu0 %v7273
    %7384 = vmatpush1.bf16.msra.mxu0 %v7272
    %7385 = vmatprep.subr.bf16.mxu0 %v7275
    %7386 = vmatpush1.bf16.msra.mxu0 %v7274
    %7387 = vmatprep.subr.bf16.mxu0 %v7277
    %7388 = vmatpush1.bf16.msra.mxu0 %v7276
    %7389 = vmatprep.subr.bf16.mxu0 %v7279
    %7390 = vmatpush1.bf16.msra.mxu0 %v7278
    %7391 = vmatprep.subr.bf16.mxu0 %v7281
    %7392 = vmatpush1.bf16.msra.mxu0 %v7280
    %7393 = vmatprep.subr.bf16.mxu0 %v7283
    %7394 = vmatpush1.bf16.msra.mxu0 %v7282
    %7395 = vmatprep.subr.bf16.mxu0 %v7285
    %7396 = vmatpush1.bf16.msra.mxu0 %v7284
    %7397 = vmatprep.mubr.bf16.mxu0 %v7248
    %7398 = vmatmul.mubr.bf16.gmra.mrb[0].mxu0 %v7247
    %v7399 = vpop.f32.mrb[0].mxu0
    %v7400 = vadd.f32 %v7357, %v7399
    %v7401 = vpop.f32.mrb[0].mxu0
    %v7402 = vadd.f32 %v7361, %v7401
    %v7403 = vpop.f32.mrb[0].mxu0
    %v7404 = vpop.f32.mrb[0].mxu0
    %7405 = vdwg.mxu0
    %7406 = vmatprep.subr.bf16.mxu0 %v7287
    %7407 = vmatpush1.bf16.msra.mxu0 %v7286
    %7408 = vmatprep.subr.bf16.mxu0 %v7289
    %7409 = vmatpush1.bf16.msra.mxu0 %v7288
    %7410 = vmatprep.subr.bf16.mxu0 %v7291
    %7411 = vmatpush1.bf16.msra.mxu0 %v7290
    %7412 = vmatprep.subr.bf16.mxu0 %v7293
    %7413 = vmatpush1.bf16.msra.mxu0 %v7292
    %7414 = vmatprep.subr.bf16.mxu0 %v7295
    %7415 = vmatpush1.bf16.msra.mxu0 %v7294
    %7416 = vmatprep.subr.bf16.mxu0 %v7297
    %7417 = vmatpush1.bf16.msra.mxu0 %v7296
    %7418 = vmatprep.subr.bf16.mxu0 %v7299
    %7419 = vmatpush1.bf16.msra.mxu0 %v7298
    %7420 = vmatprep.subr.bf16.mxu0 %v7301
    %7421 = vmatpush1.bf16.msra.mxu0 %v7300
    %7422 = vmatprep.subr.bf16.mxu0 %v7303
    %7423 = vmatpush1.bf16.msra.mxu0 %v7302
    %7424 = vmatprep.subr.bf16.mxu0 %v7305
    %7425 = vmatpush1.bf16.msra.mxu0 %v7304
    %7426 = vmatprep.subr.bf16.mxu0 %v7307
    %7427 = vmatpush1.bf16.msra.mxu0 %v7306
    %7428 = vmatprep.subr.bf16.mxu0 %v7309
    %7429 = vmatpush1.bf16.msra.mxu0 %v7308
    %7430 = vmatprep.subr.bf16.mxu0 %v7311
    %7431 = vmatpush1.bf16.msra.mxu0 %v7310
    %7432 = vmatprep.subr.bf16.mxu0 %v7313
    %7433 = vmatpush1.bf16.msra.mxu0 %v7312
    %7434 = vmatprep.subr.bf16.mxu0 %v7315
    %7435 = vmatpush1.bf16.msra.mxu0 %v7314
    %7436 = vmatprep.subr.bf16.mxu0 %v7317
    %7437 = vmatpush1.bf16.msra.mxu0 %v7316
    %7438 = vmatprep.mubr.bf16.mxu0 %v7250
    %7439 = vmatmul.mubr.bf16.gmra.mrb[0].mxu0 %v7249
    %v7440 = vpop.f32.mrb[0].mxu0
    %v7441 = vadd.f32 %v7400, %v7440
    %v7442 = vpop.f32.mrb[0].mxu0
    %v7443 = vadd.f32 %v7402, %v7442
    %v7444 = vpop.f32.mrb[0].mxu0
    %v7445 = vpop.f32.mrb[0].mxu0
    %7446 = vdwg.mxu0
    %7447 = vmatprep.subr.bf16.mxu0 %v7319
    %7448 = vmatpush1.bf16.msra.mxu0 %v7318
    %7449 = vmatprep.subr.bf16.mxu0 %v7321
    %7450 = vmatpush1.bf16.msra.mxu0 %v7320
    %7451 = vmatprep.subr.bf16.mxu0 %v7323
    %7452 = vmatpush1.bf16.msra.mxu0 %v7322
    %7453 = vmatprep.subr.bf16.mxu0 %v7325
    %7454 = vmatpush1.bf16.msra.mxu0 %v7324
    %7455 = vmatprep.subr.bf16.mxu0 %v7327
    %7456 = vmatpush1.bf16.msra.mxu0 %v7326
    %7457 = vmatprep.subr.bf16.mxu0 %v7329
    %7458 = vmatpush1.bf16.msra.mxu0 %v7328
    %7459 = vmatprep.subr.bf16.mxu0 %v7331
    %7460 = vmatpush1.bf16.msra.mxu0 %v7330
    %7461 = vmatprep.subr.bf16.mxu0 %v7333
    %7462 = vmatpush1.bf16.msra.mxu0 %v7332
    %7463 = vmatprep.subr.bf16.mxu0 %v7335
    %7464 = vmatpush1.bf16.msra.mxu0 %v7334
    %7465 = vmatprep.subr.bf16.mxu0 %v7337
    %7466 = vmatpush1.bf16.msra.mxu0 %v7336
    %7467 = vmatprep.subr.bf16.mxu0 %v7339
    %7468 = vmatpush1.bf16.msra.mxu0 %v7338
    %7469 = vmatprep.subr.bf16.mxu0 %v7341
    %7470 = vmatpush1.bf16.msra.mxu0 %v7340
    %7471 = vmatprep.subr.bf16.mxu0 %v7343
    %7472 = vmatpush1.bf16.msra.mxu0 %v7342
    %7473 = vmatprep.subr.bf16.mxu0 %v7345
    %7474 = vmatpush1.bf16.msra.mxu0 %v7344
    %7475 = vmatprep.subr.bf16.mxu0 %v7347
    %7476 = vmatpush1.bf16.msra.mxu0 %v7346
    %7477 = vmatprep.subr.bf16.mxu0 %v7349
    %7478 = vmatpush1.bf16.msra.mxu0 %v7348
    %7479 = vmatprep.mubr.bf16.mxu0 %v7252
    %7480 = vmatmul.mubr.bf16.gmra.mrb[0].mxu0 %v7251
    %v7481 = vpop.f32.mrb[0].mxu0
    %v7482 = vadd.f32 %v7441, %v7481
    %v7483 = vpop.f32.mrb[0].mxu0
    %v7484 = vadd.f32 %v7443, %v7483
    %v7485 = vpop.f32.mrb[0].mxu0
    %v7486 = vpop.f32.mrb[0].mxu0
    %7487 = vdwg.mxu0
    %7488 = vmatprep.subr.bf16.mxu0 %v7351
    %7489 = vmatpush1.bf16.msra.mxu0 %v7350
    %7490 = vmatprep.subr.bf16.mxu0 %v7353
    %7491 = vmatpush1.bf16.msra.mxu0 %v7352
    %7492 = vmatprep.subr.bf16.mxu0 0
    %7493 = vmatpush1.bf16.msra.mxu0 0
    %7494 = vmatprep.subr.bf16.mxu0 0
    %7495 = vmatpush1.bf16.msra.mxu0 0
    %7496 = vmatprep.subr.bf16.mxu0 0
    %7497 = vmatpush1.bf16.msra.mxu0 0
    %7498 = vmatprep.subr.bf16.mxu0 0
    %7499 = vmatpush1.bf16.msra.mxu0 0
    %7500 = vmatprep.subr.bf16.mxu0 0
    %7501 = vmatpush1.bf16.msra.mxu0 0
    %7502 = vmatprep.subr.bf16.mxu0 0
    %7503 = vmatpush1.bf16.msra.mxu0 0
    %7504 = vmatprep.subr.bf16.mxu0 0
    %7505 = vmatpush1.bf16.msra.mxu0 0
    %7506 = vmatprep.subr.bf16.mxu0 0
    %7507 = vmatpush1.bf16.msra.mxu0 0
    %7508 = vmatprep.subr.bf16.mxu0 0
    %7509 = vmatpush1.bf16.msra.mxu0 0
    %7510 = vmatprep.subr.bf16.mxu0 0
    %7511 = vmatpush1.bf16.msra.mxu0 0
    %7512 = vmatprep.subr.bf16.mxu0 0
    %7513 = vmatpush1.bf16.msra.mxu0 0
    %7514 = vmatprep.subr.bf16.mxu0 0
    %7515 = vmatpush1.bf16.msra.mxu0 0
    %7516 = vmatprep.subr.bf16.mxu0 0
    %7517 = vmatpush1.bf16.msra.mxu0 0
    %7518 = vmatprep.subr.bf16.mxu0 0
    %7519 = vmatpush1.bf16.msra.mxu0 0
    %7520 = vmatprep.mubr.bf16.mxu0 0
    %7521 = vmatmul.mubr.bf16.gmra.mrb[0].mxu0 %v7363
    %v7522 = vpop.f32.mrb[0].mxu0
    %v7523 = vadd.f32 %v7482, %v7522
    %v7524 = vpop.f32.mrb[0].mxu0
    %v7525 = vadd.f32 %v7484, %v7524
    %v7526 = vpop.f32.mrb[0].mxu0
    %v7527 = vpop.f32.mrb[0].mxu0
    %7528 = vdwg.mxu0
    %v7529 = vxor.u32 %v7523, 2147483648
    %v7530 = vxor.u32 %v7525, 2147483648
    %v7531 = vmul.f32 %v7529, 1.442695
    %v7532 = vpow.pop %v7531
    %v7533 = vmul.f32 %v7530, 1.442695
    %v7534 = vpow.pop %v7533
    %v7535 = vadd.f32 %v7532, 1.0
    %v7536 = vadd.f32 %v7534, 1.0
    %v7537 = vrcp.pop %v7535
    %v7538 = vmul.f32 1.0, %v7537
    %v7539 = vrcp.pop %v7536
    %v7540 = vmul.f32 1.0, %v7539
    %v7543 = vcombine.low %v7538, %v7540
    %v7545 = vunpack.c.l.s4 1983009808
    %v7546 = vunpack.c.0.s8 %v7545
    %v7547 = vlaneseq
    %v7548 = vshrl.u32 %v7547, 7
    %v7549 = vsub.s32 %v7546, %v7548
    %v7550 = vrot.slane %v7543, %v7549
    %7552 = vst [vmem:[#allocation16] sm:$0xf] %v7550
    // Predicated region
    $region104: #{e2c_forward.3} parent=1 // pred_check
      _
    $region105: #{e2c_forward.3} parent=1 // pred_check_branch
      %7554 = sbr.rel (0) target = $region107
    $region106: #{e2c_forward.3} parent=1 // pred_region
      %s7556 = ssub.s32 64, 64
      %7557 = vsyncadd [#allocation10], %s7556
      %s7559 = sshll.u32 [#allocation16], 4
      %s7560 = int_to_ptr.vmem [resolvable:$true] %s7559
      %7562 = dma.vmem_to_hbm [thread:$0]  %s7560, 64, %s16, [#allocation10]
    $region107: #{e2c_forward.3} parent=1 // pred_fallthru
      _
    // Predicated region
    $region108: #{e2c_forward.3} parent=1 // pred_check
      _
    $region109: #{e2c_forward.3} parent=1 // pred_check_branch
      %7564 = sbr.rel (0) target = $region111
    $region110: #{e2c_forward.3} parent=1 // pred_region
      %7565 = dma.done [#allocation10], 64
    $region111: #{e2c_forward.3} parent=1 // pred_fallthru
      _
    %7566 = vsyncpa [#allocation9], 1
    %7567 = vsyncpa [#allocation12], 1
    %7568 = vsyncpa [#allocation15], 1
    %7569 = vsyncpa [#allocation10], 1
  %7570 = vsyncmov [#allocation6]
  %s7571 = vpop.sfrf %7570
  %p7572 = scmp.eq.s32.totalorder %s7571, 0
  %p7573 = pneg %p7572
  %7575 = shalt.err (%p7573)
  %s7576 = scalar_lea.sflag [#allocation6], 1
  %7577 = vsyncmov %s7576
  %s7578 = vpop.sfrf %7577
  %p7579 = scmp.eq.s32.totalorder %s7578, 0
  %p7580 = pneg %p7579
  %7582 = shalt.err (%p7580)
  %s7583 = scalar_lea.sflag [#allocation6], 2
  %7584 = vsyncmov %s7583
  %s7585 = vpop.sfrf %7584
  %p7586 = scmp.eq.s32.totalorder %s7585, 0
  %p7587 = pneg %p7586
  %7589 = shalt.err (%p7587)
  %s7590 = scalar_lea.sflag [#allocation6], 3
  %7591 = vsyncmov %s7590
  %s7592 = vpop.sfrf %7591
  %p7593 = scmp.eq.s32.totalorder %s7592, 0
  %p7594 = pneg %p7593
  %7596 = shalt.err (%p7594)

</llo_original>
